<compile_context>
chip_gen: v6e
topology: v6e:2x2x1
jax: 0.10.0
libtpu: 0.0.40
codegen_flags: <defaults>
</compile_context>

<pallas_src>
import math

import jax
import jax.numpy as jnp
from jax.experimental import pallas as pl
from jax.experimental.pallas import tpu as pltpu


_STRIDES = (1, 2, 1, 2)   # blocks: (1->32), (32->64, ds), (64->128), (128->256, ds)
_BINS = 4                 # AdaptiveMaxPool1d(4)


# ----------------------------------------------------------------------------
# Fully fused forward kernel: 4 residual blocks + pool + FC head, all in VMEM.
# ----------------------------------------------------------------------------
def _make_fused_kernel(TB, cfg, bins):
    """cfg: list of (L_in, Cin, Cout, stride) per residual block."""
    n_blocks = len(cfg)

    def kernel(*refs):
        f32, bf16 = jnp.float32, jnp.bfloat16
        pos = 0
        x_ref = refs[pos]; pos += 1
        blk_refs = []
        for _ in range(n_blocks):
            blk_refs.append(refs[pos:pos + 6]); pos += 6
        fc1_w_ref, fc1_b_ref, fc2_w_ref, fc2_b_ref = refs[pos:pos + 4]; pos += 4
        o_ref = refs[pos]; pos += 1
        scratch = refs[pos:]

        def mm(a_f32, w_bf16):
            # MXU matmul: bf16 operands, f32 accumulation.
            return jnp.dot(a_f32.astype(bf16), w_bf16, preferred_element_type=f32)

        h = x_ref[...].astype(f32)                         # (TB, L0, 1)

        for i, (L, cin, cout, stride) in enumerate(cfg):
            w1_ref, s1_ref, w2_ref, s2_ref, wsc_ref, ssc_ref = blk_refs[i]
            xp, h1p = scratch[2 * i], scratch[2 * i + 1]
            Lo = L // stride
            M = TB * Lo

            # Zero-padded copy of the block input (padding=1 along L).  Only the
            # two pad rows are zeroed; the interior is overwritten every step.
            xp[:, 0:1, :] = jnp.zeros((TB, 1, cin), f32)
            xp[:, L + 1:L + 2, :] = jnp.zeros((TB, 1, cin), f32)
            xp[:, 1:L + 1, :] = h

            def tap(k, _xp=xp, _Lo=Lo, _cin=cin, _stride=stride):
                # rows  k + stride*l,  l = 0..Lo-1  of the padded input, batched
                # over the TB samples of this grid step and flattened so the MXU
                # sees M = TB*Lo rows.
                if _stride == 1:
                    v = _xp[:, k:k + _Lo, :]
                else:
                    v = _xp[:, pl.ds(k, _Lo, stride=_stride), :]
                return v.reshape(TB * _Lo, _cin)

            t0, t1, t2 = tap(0), tap(1), tap(2)

            if cin == 1:
                # Depth-1 contraction (block 1): broadcast FMA on the VPU, f32.
                h1 = t0 * w1_ref[0] + t1 * w1_ref[1] + t2 * w1_ref[2]
                sc = t1 * wsc_ref[...]
            else:
                h1 = mm(t0, w1_ref[0]) + mm(t1, w1_ref[1]) + mm(t2, w1_ref[2])
                sc = mm(t1, wsc_ref[...])
            h1 = jnp.maximum(h1 + s1_ref[...], 0.0)        # conv1 + BN1 + ReLU
            sc = sc + ssc_ref[...]                         # shortcut conv + BN

            # conv2 (K=3, stride 1) + BN2 on a zero-padded copy of h1; the centre
            # tap reuses the live h1 value (no reload).
            h1p[:, 0:1, :] = jnp.zeros((TB, 1, cout), f32)
            h1p[:, Lo + 1:Lo + 2, :] = jnp.zeros((TB, 1, cout), f32)
            h1p[:, 1:Lo + 1, :] = h1.reshape(TB, Lo, cout)

            u0 = h1p[:, 0:Lo, :].reshape(M, cout)
            u2 = h1p[:, 2:Lo + 2, :].reshape(M, cout)
            h2 = mm(u0, w2_ref[0]) + mm(h1, w2_ref[1]) + mm(u2, w2_ref[2])
            h2 = h2 + s2_ref[...]

            # Residual add + ReLU.  (Dropout is identity in eval mode.)
            h = jnp.maximum(h2 + sc, 0.0).reshape(TB, Lo, cout)

        # --- head: AdaptiveMaxPool1d(4) + flatten(C,L order) + FC1 + ReLU + FC2 -
        Lf = cfg[-1][0] // cfg[-1][3]
        binsize = Lf // bins
        pooled = [jnp.max(h[:, b * binsize:(b + 1) * binsize, :], axis=1)
                  for b in range(bins)]                    # bins x (TB, C)
        flat = jnp.concatenate(pooled, axis=-1)            # (TB, bins*C), lane-dense
        fc1 = jnp.dot(flat.astype(bf16), fc1_w_ref[...], preferred_element_type=f32)
        fc1 = jnp.maximum(fc1 + fc1_b_ref[...], 0.0)
        # Dropout is identity in eval mode.
        logits = jnp.dot(fc1.astype(bf16), fc2_w_ref[...], preferred_element_type=f32)
        o_ref[0] = (logits + fc2_b_ref[...]).astype(o_ref.dtype)

    return kernel


def _const_index_map(ndim):
    return lambda g, _n=ndim: (0,) * _n


def rcnn_forward(fparams, x, num_classes, bins=_BINS):
    """x: (B, seq_len) f32 -> logits (B, num_classes).  Eval-mode semantics."""
    B, L0 = x.shape
    assert L0 % 4 == 0 and (L0 // 4) % bins == 0, \
        "seq_len must survive two stride-2 stages and the pool-to-4"
    # TODO(synk): AdaptiveMaxPool1d with L not divisible by 4 (unequal bins) is
    # not handled by this kernel.

    # Batch tiling: keep 2 grid steps when possible so v7x's two TensorCores
    # both get work; each step processes TB samples with M = TB*Lo matmul rows.
    G = 2 if (B >= 2 and B % 2 == 0) else 1
    TB = B // G

    xin = x[:, :, None].astype(jnp.float32)                # NLC layout: (B, L0, 1)

    cfg = []
    args = [xin]
    in_specs = [pl.BlockSpec((TB, L0, 1), lambda g: (g, 0, 0))]
    L = L0
    for bp, stride in zip(fparams["blocks"], _STRIDES):
        cin, cout = bp["wsc"].shape
        cfg.append((L, cin, cout, stride))
        for arr in (bp["w1"], bp["s1"], bp["w2"], bp["s2"], bp["wsc"], bp["ssc"]):
            args.append(arr)
            in_specs.append(pl.BlockSpec(arr.shape, _const_index_map(arr.ndim)))
        L //= stride
    for arr in (fparams["fc1_w"], fparams["fc1_b"], fparams["fc2_w"], fparams["fc2_b"]):
        args.append(arr)
        in_specs.append(pl.BlockSpec(arr.shape, _const_index_map(arr.ndim)))

    # Per-block padded-activation scratch (f32, VMEM-resident, ~0.2 MiB total).
    scratch = []
    for (Lb, cin, cout, stride) in cfg:
        scratch.append(pltpu.VMEM((TB, Lb + 2, cin), jnp.float32))
        scratch.append(pltpu.VMEM((TB, Lb // stride + 2, cout), jnp.float32))

    npad = fparams["fc2_w"].shape[1]
    out = pl.pallas_call(
        _make_fused_kernel(TB, cfg, bins),
        out_shape=jax.ShapeDtypeStruct((G, TB, npad), jnp.float32),
        grid_spec=pltpu.PrefetchScalarGridSpec(
            num_scalar_prefetch=0,
            grid=(G,),
            in_specs=in_specs,
            out_specs=pl.BlockSpec((1, TB, npad), lambda g: (g, 0, 0)),
            scratch_shapes=scratch,
        ),
        # Total VMEM footprint (~1.5 MiB bf16 weights + ~0.2 MiB scratch) is far
        # below the scoped limit on every generation (incl. v7x's 64 MiB), so no
        # per-generation vmem_limit override is needed.
        compiler_params=pltpu.CompilerParams(
            dimension_semantics=("parallel",),
        ),
    )(*args)
    return out.reshape(B, npad)[:, :num_classes]


# ----------------------------------------------------------------------------
# Parameters: PyTorch-style init + one-time folding into kernel layout
# ----------------------------------------------------------------------------
def _bn_params(c):
    return dict(gamma=jnp.ones((c,), jnp.float32),
                beta=jnp.zeros((c,), jnp.float32),
                mean=jnp.zeros((c,), jnp.float32),
                var=jnp.ones((c,), jnp.float32))


def init_params(key, num_classes):
    def conv_p(k, cin, cout, ksz):
        k1, k2 = jax.random.split(k)
        fan_in = cin * ksz
        w = jax.random.normal(k1, (cout, cin, ksz), jnp.float32) / math.sqrt(fan_in)
        b = jax.random.normal(k2, (cout,), jnp.float32) * 0.01
        return w, b

    blocks = []
    specs = [(1, 32), (32, 64), (64, 128), (128, 256)]
    keys = jax.random.split(key, len(specs) * 3 + 2)
    for i, (cin, cout) in enumerate(specs):
        kw1, kw2, ksc = keys[3 * i], keys[3 * i + 1], keys[3 * i + 2]
        w1, b1 = conv_p(kw1, cin, cout, 3)
        w2, b2 = conv_p(kw2, cout, cout, 3)
        sw, sb = conv_p(ksc, cin, cout, 1)
        blocks.append(dict(w1=w1, b1=b1, bn1=_bn_params(cout),
                           w2=w2, b2=b2, bn2=_bn_params(cout),
                           sc_w=sw, sc_b=sb, sc_bn=_bn_params(cout)))

    kf1, kf2 = keys[-2], keys[-1]
    flat = 256 * 4
    fc1_w = jax.random.normal(kf1, (flat, 256), jnp.float32) / math.sqrt(flat)
    fc1_b = jnp.zeros((256,), jnp.float32)
    fc2_w = jax.random.normal(kf2, (256, num_classes), jnp.float32) / math.sqrt(256)
    fc2_b = jnp.zeros((num_classes,), jnp.float32)
    return dict(blocks=blocks, fc1_w=fc1_w, fc1_b=fc1_b, fc2_w=fc2_w, fc2_b=fc2_b)


def _fold_conv_bn(conv_w, conv_b, bn, eps=1e-5, dtype=jnp.bfloat16):
    """Fold eval-mode BN into the conv: (K, Cin, Cout) weight + (1, Cout) shift."""
    scale = bn["gamma"] / jnp.sqrt(bn["var"] + eps)                  # (Cout,)
    shift = (conv_b - bn["mean"]) * scale + bn["beta"]               # (Cout,)
    w = jnp.transpose(conv_w, (2, 1, 0)) * scale[None, None, :]      # (K, Cin, Cout)
    return w.astype(dtype), shift.astype(jnp.float32).reshape(1, -1)


def fold_params(params, num_classes, bins=_BINS, lane_pad=128):
    """One-time constant folding into the layout consumed by the fused kernel."""
    blocks = []
    for p in params["blocks"]:
        vpu_block = (p["w1"].shape[1] == 1)        # Cin == 1 -> f32 VPU path
        wdt = jnp.float32 if vpu_block else jnp.bfloat16
        w1, s1 = _fold_conv_bn(p["w1"], p["b1"], p["bn1"], dtype=wdt)
        w2, s2 = _fold_conv_bn(p["w2"], p["b2"], p["bn2"], dtype=jnp.bfloat16)
        wsc, ssc = _fold_conv_bn(p["sc_w"], p["sc_b"], p["sc_bn"], dtype=wdt)
        blocks.append(dict(w1=w1, s1=s1, w2=w2, s2=s2,
                           wsc=wsc[0], ssc=ssc))   # 1x1 conv -> (Cin, Cout)

    # FC1: PyTorch flattens (B, C, L) -> flat index c*bins + l.  The kernel
    # concatenates the pool bins along lanes (index l*C + c), so permute.
    flat, hidden = params["fc1_w"].shape
    C = flat // bins
    w1fc = jnp.transpose(params["fc1_w"].reshape(C, bins, hidden),
                         (1, 0, 2)).reshape(bins * C, hidden)

    # FC2: pad output lanes to a multiple of 128 (unmasked final store).
    npad = ((num_classes + lane_pad - 1) // lane_pad) * lane_pad
    w2fc = jnp.zeros((hidden, npad), jnp.float32).at[:, :num_classes].set(params["fc2_w"])
    b2fc = jnp.zeros((1, npad), jnp.float32).at[0, :num_classes].set(params["fc2_b"])

    return dict(blocks=blocks,
                fc1_w=w1fc.astype(jnp.bfloat16),
                fc1_b=params["fc1_b"].reshape(1, -1).astype(jnp.float32),
                fc2_w=w2fc.astype(jnp.bfloat16),
                fc2_b=b2fc)


# ----------------------------------------------------------------------------
if __name__ == "__main__":
    key = jax.random.PRNGKey(0)
    pkey, xkey = jax.random.split(key)

    num_classes = 5
    batch, seq_len = 2, 64   # survives two stride-2 stages and the pool-to-4

    params = init_params(pkey, num_classes)
    fparams = fold_params(params, num_classes)   # one-time weight prep (not per-forward)
    x = jax.random.normal(xkey, (batch, seq_len), jnp.float32)

    fwd = jax.jit(lambda p, xx: rcnn_forward(p, xx, num_classes))
    logits = jax.block_until_ready(fwd(fparams, x))

    assert logits.shape == (batch, num_classes), logits.shape
    assert bool(jnp.all(jnp.isfinite(logits)))
    print("KERNEL_OK")
</pallas_src>

<mosaic_0001>
module attributes {stable_mosaic.version = 11 : i64} {
  func.func @kernel(%arg0: i32, %arg1: memref<1x64x1xf32, #tpu.memory_space<vmem>>, %arg2: memref<3x1x32xf32, #tpu.memory_space<vmem>>, %arg3: memref<1x32xf32, #tpu.memory_space<vmem>>, %arg4: memref<3x32x32xbf16, #tpu.memory_space<vmem>>, %arg5: memref<1x32xf32, #tpu.memory_space<vmem>>, %arg6: memref<1x32xf32, #tpu.memory_space<vmem>>, %arg7: memref<1x32xf32, #tpu.memory_space<vmem>>, %arg8: memref<3x32x64xbf16, #tpu.memory_space<vmem>>, %arg9: memref<1x64xf32, #tpu.memory_space<vmem>>, %arg10: memref<3x64x64xbf16, #tpu.memory_space<vmem>>, %arg11: memref<1x64xf32, #tpu.memory_space<vmem>>, %arg12: memref<32x64xbf16, #tpu.memory_space<vmem>>, %arg13: memref<1x64xf32, #tpu.memory_space<vmem>>, %arg14: memref<3x64x128xbf16, #tpu.memory_space<vmem>>, %arg15: memref<1x128xf32, #tpu.memory_space<vmem>>, %arg16: memref<3x128x128xbf16, #tpu.memory_space<vmem>>, %arg17: memref<1x128xf32, #tpu.memory_space<vmem>>, %arg18: memref<64x128xbf16, #tpu.memory_space<vmem>>, %arg19: memref<1x128xf32, #tpu.memory_space<vmem>>, %arg20: memref<3x128x256xbf16, #tpu.memory_space<vmem>>, %arg21: memref<1x256xf32, #tpu.memory_space<vmem>>, %arg22: memref<3x256x256xbf16, #tpu.memory_space<vmem>>, %arg23: memref<1x256xf32, #tpu.memory_space<vmem>>, %arg24: memref<128x256xbf16, #tpu.memory_space<vmem>>, %arg25: memref<1x256xf32, #tpu.memory_space<vmem>>, %arg26: memref<1024x256xbf16, #tpu.memory_space<vmem>>, %arg27: memref<1x256xf32, #tpu.memory_space<vmem>>, %arg28: memref<256x128xbf16, #tpu.memory_space<vmem>>, %arg29: memref<1x128xf32, #tpu.memory_space<vmem>>, %arg30: memref<1x1x128xf32, #tpu.memory_space<vmem>>, %arg31: memref<1x66x1xf32, #tpu.memory_space<vmem>>, %arg32: memref<1x66x32xf32, #tpu.memory_space<vmem>>, %arg33: memref<1x66x32xf32, #tpu.memory_space<vmem>>, %arg34: memref<1x34x64xf32, #tpu.memory_space<vmem>>, %arg35: memref<1x34x64xf32, #tpu.memory_space<vmem>>, %arg36: memref<1x34x128xf32, #tpu.memory_space<vmem>>, %arg37: memref<1x34x128xf32, #tpu.memory_space<vmem>>, %arg38: memref<1x18x256xf32, #tpu.memory_space<vmem>>) attributes {dimension_semantics = [#tpu.dimension_semantics<parallel>], iteration_bounds = array<i64: 2>, scalar_prefetch = 0 : i64, scratch_operands = 8 : i64, tpu.core_type = #tpu.core_type<tc>, window_params = [{transform_indices = @transform_0, window_bounds = array<i64: 1, 64, 1>}, {pipeline_mode = #tpu.pipeline_mode<synchronous>, transform_indices = @transform_1, window_bounds = array<i64: 3, 1, 32>}, {pipeline_mode = #tpu.pipeline_mode<synchronous>, transform_indices = @transform_2, window_bounds = array<i64: 1, 32>}, {pipeline_mode = #tpu.pipeline_mode<synchronous>, transform_indices = @transform_3, window_bounds = array<i64: 3, 32, 32>}, {pipeline_mode = #tpu.pipeline_mode<synchronous>, transform_indices = @transform_4, window_bounds = array<i64: 1, 32>}, {pipeline_mode = #tpu.pipeline_mode<synchronous>, transform_indices = @transform_5, window_bounds = array<i64: 1, 32>}, {pipeline_mode = #tpu.pipeline_mode<synchronous>, transform_indices = @transform_6, window_bounds = array<i64: 1, 32>}, {pipeline_mode = #tpu.pipeline_mode<synchronous>, transform_indices = @transform_7, window_bounds = array<i64: 3, 32, 64>}, {pipeline_mode = #tpu.pipeline_mode<synchronous>, transform_indices = @transform_8, window_bounds = array<i64: 1, 64>}, {pipeline_mode = #tpu.pipeline_mode<synchronous>, transform_indices = @transform_9, window_bounds = array<i64: 3, 64, 64>}, {pipeline_mode = #tpu.pipeline_mode<synchronous>, transform_indices = @transform_10, window_bounds = array<i64: 1, 64>}, {pipeline_mode = #tpu.pipeline_mode<synchronous>, transform_indices = @transform_11, window_bounds = array<i64: 32, 64>}, {pipeline_mode = #tpu.pipeline_mode<synchronous>, transform_indices = @transform_12, window_bounds = array<i64: 1, 64>}, {pipeline_mode = #tpu.pipeline_mode<synchronous>, transform_indices = @transform_13, window_bounds = array<i64: 3, 64, 128>}, {pipeline_mode = #tpu.pipeline_mode<synchronous>, transform_indices = @transform_14, window_bounds = array<i64: 1, 128>}, {pipeline_mode = #tpu.pipeline_mode<synchronous>, transform_indices = @transform_15, window_bounds = array<i64: 3, 128, 128>}, {pipeline_mode = #tpu.pipeline_mode<synchronous>, transform_indices = @transform_16, window_bounds = array<i64: 1, 128>}, {pipeline_mode = #tpu.pipeline_mode<synchronous>, transform_indices = @transform_17, window_bounds = array<i64: 64, 128>}, {pipeline_mode = #tpu.pipeline_mode<synchronous>, transform_indices = @transform_18, window_bounds = array<i64: 1, 128>}, {pipeline_mode = #tpu.pipeline_mode<synchronous>, transform_indices = @transform_19, window_bounds = array<i64: 3, 128, 256>}, {pipeline_mode = #tpu.pipeline_mode<synchronous>, transform_indices = @transform_20, window_bounds = array<i64: 1, 256>}, {pipeline_mode = #tpu.pipeline_mode<synchronous>, transform_indices = @transform_21, window_bounds = array<i64: 3, 256, 256>}, {pipeline_mode = #tpu.pipeline_mode<synchronous>, transform_indices = @transform_22, window_bounds = array<i64: 1, 256>}, {pipeline_mode = #tpu.pipeline_mode<synchronous>, transform_indices = @transform_23, window_bounds = array<i64: 128, 256>}, {pipeline_mode = #tpu.pipeline_mode<synchronous>, transform_indices = @transform_24, window_bounds = array<i64: 1, 256>}, {pipeline_mode = #tpu.pipeline_mode<synchronous>, transform_indices = @transform_25, window_bounds = array<i64: 1024, 256>}, {pipeline_mode = #tpu.pipeline_mode<synchronous>, transform_indices = @transform_26, window_bounds = array<i64: 1, 256>}, {pipeline_mode = #tpu.pipeline_mode<synchronous>, transform_indices = @transform_27, window_bounds = array<i64: 256, 128>}, {pipeline_mode = #tpu.pipeline_mode<synchronous>, transform_indices = @transform_28, window_bounds = array<i64: 1, 128>}, {transform_indices = @transform_29, window_bounds = array<i64: 1, 1, 128>}]} {
    %c0 = arith.constant 0 : index
    %c0_0 = arith.constant 0 : index
    %c0_1 = arith.constant 0 : index
    %0 = vector.load %arg1[%c0, %c0_0, %c0_1] : memref<1x64x1xf32, #tpu.memory_space<vmem>>, vector<1x64x1xf32>
    %cst = arith.constant 0.000000e+00 : f32
    %1 = vector.broadcast %cst : f32 to vector<1x1x1xf32>
    %c0_2 = arith.constant 0 : index
    %c0_3 = arith.constant 0 : index
    %c0_4 = arith.constant 0 : index
    %2 = vector.load %arg31[%c0_2, %c0_3, %c0_4] : memref<1x66x1xf32, #tpu.memory_space<vmem>>, vector<1x1x1xf32>
    tpu.vector_store %arg31[%c0_2, %c0_3, %c0_4], %1 {strides = array<i32>} : memref<1x66x1xf32, #tpu.memory_space<vmem>>, vector<1x1x1xf32>,
    %cst_5 = arith.constant 0.000000e+00 : f32
    %3 = vector.broadcast %cst_5 : f32 to vector<1x1x1xf32>
    %c0_6 = arith.constant 0 : index
    %c65 = arith.constant 65 : index
    %c0_7 = arith.constant 0 : index
    %4 = vector.load %arg31[%c0_6, %c65, %c0_7] : memref<1x66x1xf32, #tpu.memory_space<vmem>>, vector<1x1x1xf32>
    tpu.vector_store %arg31[%c0_6, %c65, %c0_7], %3 {strides = array<i32>} : memref<1x66x1xf32, #tpu.memory_space<vmem>>, vector<1x1x1xf32>,
    %c0_8 = arith.constant 0 : index
    %c1 = arith.constant 1 : index
    %c0_9 = arith.constant 0 : index
    %5 = vector.load %arg31[%c0_8, %c1, %c0_9] : memref<1x66x1xf32, #tpu.memory_space<vmem>>, vector<1x64x1xf32>
    tpu.vector_store %arg31[%c0_8, %c1, %c0_9], %0 {strides = array<i32>} : memref<1x66x1xf32, #tpu.memory_space<vmem>>, vector<1x64x1xf32>,
    %c0_10 = arith.constant 0 : index
    %c0_11 = arith.constant 0 : index
    %c0_12 = arith.constant 0 : index
    %6 = vector.load %arg31[%c0_10, %c0_11, %c0_12] : memref<1x66x1xf32, #tpu.memory_space<vmem>>, vector<1x64x1xf32>
    %7 = vector.shape_cast %6 : vector<1x64x1xf32> to vector<64x1xf32>
    %c0_13 = arith.constant 0 : index
    %c1_14 = arith.constant 1 : index
    %c0_15 = arith.constant 0 : index
    %8 = vector.load %arg31[%c0_13, %c1_14, %c0_15] : memref<1x66x1xf32, #tpu.memory_space<vmem>>, vector<1x64x1xf32>
    %9 = vector.shape_cast %8 : vector<1x64x1xf32> to vector<64x1xf32>
    %c0_16 = arith.constant 0 : index
    %c2 = arith.constant 2 : index
    %c0_17 = arith.constant 0 : index
    %10 = vector.load %arg31[%c0_16, %c2, %c0_17] : memref<1x66x1xf32, #tpu.memory_space<vmem>>, vector<1x64x1xf32>
    %11 = vector.shape_cast %10 : vector<1x64x1xf32> to vector<64x1xf32>
    %c0_18 = arith.constant 0 : index
    %c0_19 = arith.constant 0 : index
    %c0_20 = arith.constant 0 : index
    %12 = vector.load %arg2[%c0_18, %c0_19, %c0_20] : memref<3x1x32xf32, #tpu.memory_space<vmem>>, vector<1x1x32xf32>
    %13 = vector.shape_cast %12 : vector<1x1x32xf32> to vector<1x32xf32>
    %14 = vector.broadcast %7 : vector<64x1xf32> to vector<64x32xf32>
    %15 = vector.broadcast %13 : vector<1x32xf32> to vector<64x32xf32>
    %16 = arith.mulf %14, %15 : vector<64x32xf32>
    %c1_21 = arith.constant 1 : index
    %c0_22 = arith.constant 0 : index
    %c0_23 = arith.constant 0 : index
    %17 = vector.load %arg2[%c1_21, %c0_22, %c0_23] : memref<3x1x32xf32, #tpu.memory_space<vmem>>, vector<1x1x32xf32>
    %18 = vector.shape_cast %17 : vector<1x1x32xf32> to vector<1x32xf32>
    %19 = vector.broadcast %9 : vector<64x1xf32> to vector<64x32xf32>
    %20 = vector.broadcast %18 : vector<1x32xf32> to vector<64x32xf32>
    %21 = arith.mulf %19, %20 : vector<64x32xf32>
    %22 = arith.addf %16, %21 : vector<64x32xf32>
    %c2_24 = arith.constant 2 : index
    %c0_25 = arith.constant 0 : index
    %c0_26 = arith.constant 0 : index
    %23 = vector.load %arg2[%c2_24, %c0_25, %c0_26] : memref<3x1x32xf32, #tpu.memory_space<vmem>>, vector<1x1x32xf32>
    %24 = vector.shape_cast %23 : vector<1x1x32xf32> to vector<1x32xf32>
    %25 = vector.broadcast %11 : vector<64x1xf32> to vector<64x32xf32>
    %26 = vector.broadcast %24 : vector<1x32xf32> to vector<64x32xf32>
    %27 = arith.mulf %25, %26 : vector<64x32xf32>
    %28 = arith.addf %22, %27 : vector<64x32xf32>
    %c0_27 = arith.constant 0 : index
    %c0_28 = arith.constant 0 : index
    %29 = vector.load %arg6[%c0_27, %c0_28] : memref<1x32xf32, #tpu.memory_space<vmem>>, vector<1x32xf32>
    %30 = vector.broadcast %9 : vector<64x1xf32> to vector<64x32xf32>
    %31 = vector.broadcast %29 : vector<1x32xf32> to vector<64x32xf32>
    %32 = arith.mulf %30, %31 : vector<64x32xf32>
    %c0_29 = arith.constant 0 : index
    %c0_30 = arith.constant 0 : index
    %33 = vector.load %arg3[%c0_29, %c0_30] : memref<1x32xf32, #tpu.memory_space<vmem>>, vector<1x32xf32>
    %34 = vector.broadcast %33 : vector<1x32xf32> to vector<64x32xf32>
    %35 = arith.addf %28, %34 : vector<64x32xf32>
    %cst_31 = arith.constant 0.000000e+00 : f32
    %36 = vector.broadcast %cst_31 : f32 to vector<64x32xf32>
    %37 = arith.maximumf %35, %36 : vector<64x32xf32>
    %c0_32 = arith.constant 0 : index
    %c0_33 = arith.constant 0 : index
    %38 = vector.load %arg7[%c0_32, %c0_33] : memref<1x32xf32, #tpu.memory_space<vmem>>, vector<1x32xf32>
    %39 = vector.broadcast %38 : vector<1x32xf32> to vector<64x32xf32>
    %40 = arith.addf %32, %39 : vector<64x32xf32>
    %cst_34 = arith.constant 0.000000e+00 : f32
    %41 = vector.broadcast %cst_34 : f32 to vector<1x1x32xf32>
    %c0_35 = arith.constant 0 : index
    %c0_36 = arith.constant 0 : index
    %c0_37 = arith.constant 0 : index
    %42 = vector.load %arg32[%c0_35, %c0_36, %c0_37] : memref<1x66x32xf32, #tpu.memory_space<vmem>>, vector<1x1x32xf32>
    tpu.vector_store %arg32[%c0_35, %c0_36, %c0_37], %41 {strides = array<i32>} : memref<1x66x32xf32, #tpu.memory_space<vmem>>, vector<1x1x32xf32>,
    %cst_38 = arith.constant 0.000000e+00 : f32
    %43 = vector.broadcast %cst_38 : f32 to vector<1x1x32xf32>
    %c0_39 = arith.constant 0 : index
    %c65_40 = arith.constant 65 : index
    %c0_41 = arith.constant 0 : index
    %44 = vector.load %arg32[%c0_39, %c65_40, %c0_41] : memref<1x66x32xf32, #tpu.memory_space<vmem>>, vector<1x1x32xf32>
    tpu.vector_store %arg32[%c0_39, %c65_40, %c0_41], %43 {strides = array<i32>} : memref<1x66x32xf32, #tpu.memory_space<vmem>>, vector<1x1x32xf32>,
    %45 = vector.shape_cast %37 : vector<64x32xf32> to vector<1x64x32xf32>
    %c0_42 = arith.constant 0 : index
    %c1_43 = arith.constant 1 : index
    %c0_44 = arith.constant 0 : index
    %46 = vector.load %arg32[%c0_42, %c1_43, %c0_44] : memref<1x66x32xf32, #tpu.memory_space<vmem>>, vector<1x64x32xf32>
    tpu.vector_store %arg32[%c0_42, %c1_43, %c0_44], %45 {strides = array<i32>} : memref<1x66x32xf32, #tpu.memory_space<vmem>>, vector<1x64x32xf32>,
    %c0_45 = arith.constant 0 : index
    %c0_46 = arith.constant 0 : index
    %c0_47 = arith.constant 0 : index
    %47 = vector.load %arg32[%c0_45, %c0_46, %c0_47] : memref<1x66x32xf32, #tpu.memory_space<vmem>>, vector<1x64x32xf32>
    %48 = vector.shape_cast %47 : vector<1x64x32xf32> to vector<64x32xf32>
    %c0_48 = arith.constant 0 : index
    %c2_49 = arith.constant 2 : index
    %c0_50 = arith.constant 0 : index
    %49 = vector.load %arg32[%c0_48, %c2_49, %c0_50] : memref<1x66x32xf32, #tpu.memory_space<vmem>>, vector<1x64x32xf32>
    %50 = vector.shape_cast %49 : vector<1x64x32xf32> to vector<64x32xf32>
    %c0_51 = arith.constant 0 : index
    %c0_52 = arith.constant 0 : index
    %c0_53 = arith.constant 0 : index
    %51 = vector.load %arg4[%c0_51, %c0_52, %c0_53] : memref<3x32x32xbf16, #tpu.memory_space<vmem>>, vector<1x32x32xbf16>
    %52 = vector.shape_cast %51 : vector<1x32x32xbf16> to vector<32x32xbf16>
    %53 = arith.truncf %48 : vector<64x32xf32> to vector<64x32xbf16>
    %cst_54 = arith.constant dense<0.000000e+00> : vector<64x32xf32>
    %54 = tpu.matmul %53, %52, %cst_54 {dimension_numbers = #tpu.dot_dimension_numbers<[1], [0], [0], [1], [0, 0, 1, 1], [], []>} : vector<64x32xbf16>, vector<32x32xbf16>, vector<64x32xf32> -> vector<64x32xf32>
    %c1_55 = arith.constant 1 : index
    %c0_56 = arith.constant 0 : index
    %c0_57 = arith.constant 0 : index
    %55 = vector.load %arg4[%c1_55, %c0_56, %c0_57] : memref<3x32x32xbf16, #tpu.memory_space<vmem>>, vector<1x32x32xbf16>
    %56 = vector.shape_cast %55 : vector<1x32x32xbf16> to vector<32x32xbf16>
    %57 = arith.truncf %37 : vector<64x32xf32> to vector<64x32xbf16>
    %cst_58 = arith.constant dense<0.000000e+00> : vector<64x32xf32>
    %58 = tpu.matmul %57, %56, %cst_58 {dimension_numbers = #tpu.dot_dimension_numbers<[1], [0], [0], [1], [0, 0, 1, 1], [], []>} : vector<64x32xbf16>, vector<32x32xbf16>, vector<64x32xf32> -> vector<64x32xf32>
    %59 = arith.addf %54, %58 : vector<64x32xf32>
    %c2_59 = arith.constant 2 : index
    %c0_60 = arith.constant 0 : index
    %c0_61 = arith.constant 0 : index
    %60 = vector.load %arg4[%c2_59, %c0_60, %c0_61] : memref<3x32x32xbf16, #tpu.memory_space<vmem>>, vector<1x32x32xbf16>
    %61 = vector.shape_cast %60 : vector<1x32x32xbf16> to vector<32x32xbf16>
    %62 = arith.truncf %50 : vector<64x32xf32> to vector<64x32xbf16>
    %cst_62 = arith.constant dense<0.000000e+00> : vector<64x32xf32>
    %63 = tpu.matmul %62, %61, %cst_62 {dimension_numbers = #tpu.dot_dimension_numbers<[1], [0], [0], [1], [0, 0, 1, 1], [], []>} : vector<64x32xbf16>, vector<32x32xbf16>, vector<64x32xf32> -> vector<64x32xf32>
    %64 = arith.addf %59, %63 : vector<64x32xf32>
    %c0_63 = arith.constant 0 : index
    %c0_64 = arith.constant 0 : index
    %65 = vector.load %arg5[%c0_63, %c0_64] : memref<1x32xf32, #tpu.memory_space<vmem>>, vector<1x32xf32>
    %66 = vector.broadcast %65 : vector<1x32xf32> to vector<64x32xf32>
    %67 = arith.addf %64, %66 : vector<64x32xf32>
    %68 = arith.addf %67, %40 : vector<64x32xf32>
    %cst_65 = arith.constant 0.000000e+00 : f32
    %69 = vector.broadcast %cst_65 : f32 to vector<64x32xf32>
    %70 = arith.maximumf %68, %69 : vector<64x32xf32>
    %71 = vector.shape_cast %70 : vector<64x32xf32> to vector<1x64x32xf32>
    %cst_66 = arith.constant 0.000000e+00 : f32
    %72 = vector.broadcast %cst_66 : f32 to vector<1x1x32xf32>
    %c0_67 = arith.constant 0 : index
    %c0_68 = arith.constant 0 : index
    %c0_69 = arith.constant 0 : index
    %73 = vector.load %arg33[%c0_67, %c0_68, %c0_69] : memref<1x66x32xf32, #tpu.memory_space<vmem>>, vector<1x1x32xf32>
    tpu.vector_store %arg33[%c0_67, %c0_68, %c0_69], %72 {strides = array<i32>} : memref<1x66x32xf32, #tpu.memory_space<vmem>>, vector<1x1x32xf32>,
    %cst_70 = arith.constant 0.000000e+00 : f32
    %74 = vector.broadcast %cst_70 : f32 to vector<1x1x32xf32>
    %c0_71 = arith.constant 0 : index
    %c65_72 = arith.constant 65 : index
    %c0_73 = arith.constant 0 : index
    %75 = vector.load %arg33[%c0_71, %c65_72, %c0_73] : memref<1x66x32xf32, #tpu.memory_space<vmem>>, vector<1x1x32xf32>
    tpu.vector_store %arg33[%c0_71, %c65_72, %c0_73], %74 {strides = array<i32>} : memref<1x66x32xf32, #tpu.memory_space<vmem>>, vector<1x1x32xf32>,
    %c0_74 = arith.constant 0 : index
    %c1_75 = arith.constant 1 : index
    %c0_76 = arith.constant 0 : index
    %76 = vector.load %arg33[%c0_74, %c1_75, %c0_76] : memref<1x66x32xf32, #tpu.memory_space<vmem>>, vector<1x64x32xf32>
    tpu.vector_store %arg33[%c0_74, %c1_75, %c0_76], %71 {strides = array<i32>} : memref<1x66x32xf32, #tpu.memory_space<vmem>>, vector<1x64x32xf32>,
    %c0_77 = arith.constant 0 : index
    %c0_78 = arith.constant 0 : index
    %c0_79 = arith.constant 0 : index
    %77 = tpu.strided_load %arg33[%c0_77, %c0_78, %c0_79] {strides = array<i32: 1, 2, 1>} : memref<1x66x32xf32, #tpu.memory_space<vmem>>, vector<1x32x32xf32>
    %78 = vector.shape_cast %77 : vector<1x32x32xf32> to vector<32x32xf32>
    %c0_80 = arith.constant 0 : index
    %c1_81 = arith.constant 1 : index
    %c0_82 = arith.constant 0 : index
    %79 = tpu.strided_load %arg33[%c0_80, %c1_81, %c0_82] {strides = array<i32: 1, 2, 1>} : memref<1x66x32xf32, #tpu.memory_space<vmem>>, vector<1x32x32xf32>
    %80 = vector.shape_cast %79 : vector<1x32x32xf32> to vector<32x32xf32>
    %c0_83 = arith.constant 0 : index
    %c2_84 = arith.constant 2 : index
    %c0_85 = arith.constant 0 : index
    %81 = tpu.strided_load %arg33[%c0_83, %c2_84, %c0_85] {strides = array<i32: 1, 2, 1>} : memref<1x66x32xf32, #tpu.memory_space<vmem>>, vector<1x32x32xf32>
    %82 = vector.shape_cast %81 : vector<1x32x32xf32> to vector<32x32xf32>
    %c0_86 = arith.constant 0 : index
    %c0_87 = arith.constant 0 : index
    %c0_88 = arith.constant 0 : index
    %83 = vector.load %arg8[%c0_86, %c0_87, %c0_88] : memref<3x32x64xbf16, #tpu.memory_space<vmem>>, vector<1x32x64xbf16>
    %84 = vector.shape_cast %83 : vector<1x32x64xbf16> to vector<32x64xbf16>
    %85 = arith.truncf %78 : vector<32x32xf32> to vector<32x32xbf16>
    %cst_89 = arith.constant dense<0.000000e+00> : vector<32x64xf32>
    %86 = tpu.matmul %85, %84, %cst_89 {dimension_numbers = #tpu.dot_dimension_numbers<[1], [0], [0], [1], [0, 0, 1, 1], [], []>} : vector<32x32xbf16>, vector<32x64xbf16>, vector<32x64xf32> -> vector<32x64xf32>
    %c1_90 = arith.constant 1 : index
    %c0_91 = arith.constant 0 : index
    %c0_92 = arith.constant 0 : index
    %87 = vector.load %arg8[%c1_90, %c0_91, %c0_92] : memref<3x32x64xbf16, #tpu.memory_space<vmem>>, vector<1x32x64xbf16>
    %88 = vector.shape_cast %87 : vector<1x32x64xbf16> to vector<32x64xbf16>
    %89 = arith.truncf %80 : vector<32x32xf32> to vector<32x32xbf16>
    %cst_93 = arith.constant dense<0.000000e+00> : vector<32x64xf32>
    %90 = tpu.matmul %89, %88, %cst_93 {dimension_numbers = #tpu.dot_dimension_numbers<[1], [0], [0], [1], [0, 0, 1, 1], [], []>} : vector<32x32xbf16>, vector<32x64xbf16>, vector<32x64xf32> -> vector<32x64xf32>
    %91 = arith.addf %86, %90 : vector<32x64xf32>
    %c2_94 = arith.constant 2 : index
    %c0_95 = arith.constant 0 : index
    %c0_96 = arith.constant 0 : index
    %92 = vector.load %arg8[%c2_94, %c0_95, %c0_96] : memref<3x32x64xbf16, #tpu.memory_space<vmem>>, vector<1x32x64xbf16>
    %93 = vector.shape_cast %92 : vector<1x32x64xbf16> to vector<32x64xbf16>
    %94 = arith.truncf %82 : vector<32x32xf32> to vector<32x32xbf16>
    %cst_97 = arith.constant dense<0.000000e+00> : vector<32x64xf32>
    %95 = tpu.matmul %94, %93, %cst_97 {dimension_numbers = #tpu.dot_dimension_numbers<[1], [0], [0], [1], [0, 0, 1, 1], [], []>} : vector<32x32xbf16>, vector<32x64xbf16>, vector<32x64xf32> -> vector<32x64xf32>
    %96 = arith.addf %91, %95 : vector<32x64xf32>
    %c0_98 = arith.constant 0 : index
    %c0_99 = arith.constant 0 : index
    %97 = vector.load %arg12[%c0_98, %c0_99] : memref<32x64xbf16, #tpu.memory_space<vmem>>, vector<32x64xbf16>
    %98 = arith.truncf %80 : vector<32x32xf32> to vector<32x32xbf16>
    %cst_100 = arith.constant dense<0.000000e+00> : vector<32x64xf32>
    %99 = tpu.matmul %98, %97, %cst_100 {dimension_numbers = #tpu.dot_dimension_numbers<[1], [0], [0], [1], [0, 0, 1, 1], [], []>} : vector<32x32xbf16>, vector<32x64xbf16>, vector<32x64xf32> -> vector<32x64xf32>
    %c0_101 = arith.constant 0 : index
    %c0_102 = arith.constant 0 : index
    %100 = vector.load %arg9[%c0_101, %c0_102] : memref<1x64xf32, #tpu.memory_space<vmem>>, vector<1x64xf32>
    %101 = vector.broadcast %100 : vector<1x64xf32> to vector<32x64xf32>
    %102 = arith.addf %96, %101 : vector<32x64xf32>
    %cst_103 = arith.constant 0.000000e+00 : f32
    %103 = vector.broadcast %cst_103 : f32 to vector<32x64xf32>
    %104 = arith.maximumf %102, %103 : vector<32x64xf32>
    %c0_104 = arith.constant 0 : index
    %c0_105 = arith.constant 0 : index
    %105 = vector.load %arg13[%c0_104, %c0_105] : memref<1x64xf32, #tpu.memory_space<vmem>>, vector<1x64xf32>
    %106 = vector.broadcast %105 : vector<1x64xf32> to vector<32x64xf32>
    %107 = arith.addf %99, %106 : vector<32x64xf32>
    %cst_106 = arith.constant 0.000000e+00 : f32
    %108 = vector.broadcast %cst_106 : f32 to vector<1x1x64xf32>
    %c0_107 = arith.constant 0 : index
    %c0_108 = arith.constant 0 : index
    %c0_109 = arith.constant 0 : index
    %109 = vector.load %arg34[%c0_107, %c0_108, %c0_109] : memref<1x34x64xf32, #tpu.memory_space<vmem>>, vector<1x1x64xf32>
    tpu.vector_store %arg34[%c0_107, %c0_108, %c0_109], %108 {strides = array<i32>} : memref<1x34x64xf32, #tpu.memory_space<vmem>>, vector<1x1x64xf32>,
    %cst_110 = arith.constant 0.000000e+00 : f32
    %110 = vector.broadcast %cst_110 : f32 to vector<1x1x64xf32>
    %c0_111 = arith.constant 0 : index
    %c33 = arith.constant 33 : index
    %c0_112 = arith.constant 0 : index
    %111 = vector.load %arg34[%c0_111, %c33, %c0_112] : memref<1x34x64xf32, #tpu.memory_space<vmem>>, vector<1x1x64xf32>
    tpu.vector_store %arg34[%c0_111, %c33, %c0_112], %110 {strides = array<i32>} : memref<1x34x64xf32, #tpu.memory_space<vmem>>, vector<1x1x64xf32>,
    %112 = vector.shape_cast %104 : vector<32x64xf32> to vector<1x32x64xf32>
    %c0_113 = arith.constant 0 : index
    %c1_114 = arith.constant 1 : index
    %c0_115 = arith.constant 0 : index
    %113 = vector.load %arg34[%c0_113, %c1_114, %c0_115] : memref<1x34x64xf32, #tpu.memory_space<vmem>>, vector<1x32x64xf32>
    tpu.vector_store %arg34[%c0_113, %c1_114, %c0_115], %112 {strides = array<i32>} : memref<1x34x64xf32, #tpu.memory_space<vmem>>, vector<1x32x64xf32>,
    %c0_116 = arith.constant 0 : index
    %c0_117 = arith.constant 0 : index
    %c0_118 = arith.constant 0 : index
    %114 = vector.load %arg34[%c0_116, %c0_117, %c0_118] : memref<1x34x64xf32, #tpu.memory_space<vmem>>, vector<1x32x64xf32>
    %115 = vector.shape_cast %114 : vector<1x32x64xf32> to vector<32x64xf32>
    %c0_119 = arith.constant 0 : index
    %c2_120 = arith.constant 2 : index
    %c0_121 = arith.constant 0 : index
    %116 = vector.load %arg34[%c0_119, %c2_120, %c0_121] : memref<1x34x64xf32, #tpu.memory_space<vmem>>, vector<1x32x64xf32>
    %117 = vector.shape_cast %116 : vector<1x32x64xf32> to vector<32x64xf32>
    %c0_122 = arith.constant 0 : index
    %c0_123 = arith.constant 0 : index
    %c0_124 = arith.constant 0 : index
    %118 = vector.load %arg10[%c0_122, %c0_123, %c0_124] : memref<3x64x64xbf16, #tpu.memory_space<vmem>>, vector<1x64x64xbf16>
    %119 = vector.shape_cast %118 : vector<1x64x64xbf16> to vector<64x64xbf16>
    %120 = arith.truncf %115 : vector<32x64xf32> to vector<32x64xbf16>
    %cst_125 = arith.constant dense<0.000000e+00> : vector<32x64xf32>
    %121 = tpu.matmul %120, %119, %cst_125 {dimension_numbers = #tpu.dot_dimension_numbers<[1], [0], [0], [1], [0, 0, 1, 1], [], []>} : vector<32x64xbf16>, vector<64x64xbf16>, vector<32x64xf32> -> vector<32x64xf32>
    %c1_126 = arith.constant 1 : index
    %c0_127 = arith.constant 0 : index
    %c0_128 = arith.constant 0 : index
    %122 = vector.load %arg10[%c1_126, %c0_127, %c0_128] : memref<3x64x64xbf16, #tpu.memory_space<vmem>>, vector<1x64x64xbf16>
    %123 = vector.shape_cast %122 : vector<1x64x64xbf16> to vector<64x64xbf16>
    %124 = arith.truncf %104 : vector<32x64xf32> to vector<32x64xbf16>
    %cst_129 = arith.constant dense<0.000000e+00> : vector<32x64xf32>
    %125 = tpu.matmul %124, %123, %cst_129 {dimension_numbers = #tpu.dot_dimension_numbers<[1], [0], [0], [1], [0, 0, 1, 1], [], []>} : vector<32x64xbf16>, vector<64x64xbf16>, vector<32x64xf32> -> vector<32x64xf32>
    %126 = arith.addf %121, %125 : vector<32x64xf32>
    %c2_130 = arith.constant 2 : index
    %c0_131 = arith.constant 0 : index
    %c0_132 = arith.constant 0 : index
    %127 = vector.load %arg10[%c2_130, %c0_131, %c0_132] : memref<3x64x64xbf16, #tpu.memory_space<vmem>>, vector<1x64x64xbf16>
    %128 = vector.shape_cast %127 : vector<1x64x64xbf16> to vector<64x64xbf16>
    %129 = arith.truncf %117 : vector<32x64xf32> to vector<32x64xbf16>
    %cst_133 = arith.constant dense<0.000000e+00> : vector<32x64xf32>
    %130 = tpu.matmul %129, %128, %cst_133 {dimension_numbers = #tpu.dot_dimension_numbers<[1], [0], [0], [1], [0, 0, 1, 1], [], []>} : vector<32x64xbf16>, vector<64x64xbf16>, vector<32x64xf32> -> vector<32x64xf32>
    %131 = arith.addf %126, %130 : vector<32x64xf32>
    %c0_134 = arith.constant 0 : index
    %c0_135 = arith.constant 0 : index
    %132 = vector.load %arg11[%c0_134, %c0_135] : memref<1x64xf32, #tpu.memory_space<vmem>>, vector<1x64xf32>
    %133 = vector.broadcast %132 : vector<1x64xf32> to vector<32x64xf32>
    %134 = arith.addf %131, %133 : vector<32x64xf32>
    %135 = arith.addf %134, %107 : vector<32x64xf32>
    %cst_136 = arith.constant 0.000000e+00 : f32
    %136 = vector.broadcast %cst_136 : f32 to vector<32x64xf32>
    %137 = arith.maximumf %135, %136 : vector<32x64xf32>
    %138 = vector.shape_cast %137 : vector<32x64xf32> to vector<1x32x64xf32>
    %cst_137 = arith.constant 0.000000e+00 : f32
    %139 = vector.broadcast %cst_137 : f32 to vector<1x1x64xf32>
    %c0_138 = arith.constant 0 : index
    %c0_139 = arith.constant 0 : index
    %c0_140 = arith.constant 0 : index
    %140 = vector.load %arg35[%c0_138, %c0_139, %c0_140] : memref<1x34x64xf32, #tpu.memory_space<vmem>>, vector<1x1x64xf32>
    tpu.vector_store %arg35[%c0_138, %c0_139, %c0_140], %139 {strides = array<i32>} : memref<1x34x64xf32, #tpu.memory_space<vmem>>, vector<1x1x64xf32>,
    %cst_141 = arith.constant 0.000000e+00 : f32
    %141 = vector.broadcast %cst_141 : f32 to vector<1x1x64xf32>
    %c0_142 = arith.constant 0 : index
    %c33_143 = arith.constant 33 : index
    %c0_144 = arith.constant 0 : index
    %142 = vector.load %arg35[%c0_142, %c33_143, %c0_144] : memref<1x34x64xf32, #tpu.memory_space<vmem>>, vector<1x1x64xf32>
    tpu.vector_store %arg35[%c0_142, %c33_143, %c0_144], %141 {strides = array<i32>} : memref<1x34x64xf32, #tpu.memory_space<vmem>>, vector<1x1x64xf32>,
    %c0_145 = arith.constant 0 : index
    %c1_146 = arith.constant 1 : index
    %c0_147 = arith.constant 0 : index
    %143 = vector.load %arg35[%c0_145, %c1_146, %c0_147] : memref<1x34x64xf32, #tpu.memory_space<vmem>>, vector<1x32x64xf32>
    tpu.vector_store %arg35[%c0_145, %c1_146, %c0_147], %138 {strides = array<i32>} : memref<1x34x64xf32, #tpu.memory_space<vmem>>, vector<1x32x64xf32>,
    %c0_148 = arith.constant 0 : index
    %c0_149 = arith.constant 0 : index
    %c0_150 = arith.constant 0 : index
    %144 = vector.load %arg35[%c0_148, %c0_149, %c0_150] : memref<1x34x64xf32, #tpu.memory_space<vmem>>, vector<1x32x64xf32>
    %145 = vector.shape_cast %144 : vector<1x32x64xf32> to vector<32x64xf32>
    %c0_151 = arith.constant 0 : index
    %c1_152 = arith.constant 1 : index
    %c0_153 = arith.constant 0 : index
    %146 = vector.load %arg35[%c0_151, %c1_152, %c0_153] : memref<1x34x64xf32, #tpu.memory_space<vmem>>, vector<1x32x64xf32>
    %147 = vector.shape_cast %146 : vector<1x32x64xf32> to vector<32x64xf32>
    %c0_154 = arith.constant 0 : index
    %c2_155 = arith.constant 2 : index
    %c0_156 = arith.constant 0 : index
    %148 = vector.load %arg35[%c0_154, %c2_155, %c0_156] : memref<1x34x64xf32, #tpu.memory_space<vmem>>, vector<1x32x64xf32>
    %149 = vector.shape_cast %148 : vector<1x32x64xf32> to vector<32x64xf32>
    %c0_157 = arith.constant 0 : index
    %c0_158 = arith.constant 0 : index
    %c0_159 = arith.constant 0 : index
    %150 = vector.load %arg14[%c0_157, %c0_158, %c0_159] : memref<3x64x128xbf16, #tpu.memory_space<vmem>>, vector<1x64x128xbf16>
    %151 = vector.shape_cast %150 : vector<1x64x128xbf16> to vector<64x128xbf16>
    %152 = arith.truncf %145 : vector<32x64xf32> to vector<32x64xbf16>
    %cst_160 = arith.constant dense<0.000000e+00> : vector<32x128xf32>
    %153 = tpu.matmul %152, %151, %cst_160 {dimension_numbers = #tpu.dot_dimension_numbers<[1], [0], [0], [1], [0, 0, 1, 1], [], []>} : vector<32x64xbf16>, vector<64x128xbf16>, vector<32x128xf32> -> vector<32x128xf32>
    %c1_161 = arith.constant 1 : index
    %c0_162 = arith.constant 0 : index
    %c0_163 = arith.constant 0 : index
    %154 = vector.load %arg14[%c1_161, %c0_162, %c0_163] : memref<3x64x128xbf16, #tpu.memory_space<vmem>>, vector<1x64x128xbf16>
    %155 = vector.shape_cast %154 : vector<1x64x128xbf16> to vector<64x128xbf16>
    %156 = arith.truncf %147 : vector<32x64xf32> to vector<32x64xbf16>
    %cst_164 = arith.constant dense<0.000000e+00> : vector<32x128xf32>
    %157 = tpu.matmul %156, %155, %cst_164 {dimension_numbers = #tpu.dot_dimension_numbers<[1], [0], [0], [1], [0, 0, 1, 1], [], []>} : vector<32x64xbf16>, vector<64x128xbf16>, vector<32x128xf32> -> vector<32x128xf32>
    %158 = arith.addf %153, %157 : vector<32x128xf32>
    %c2_165 = arith.constant 2 : index
    %c0_166 = arith.constant 0 : index
    %c0_167 = arith.constant 0 : index
    %159 = vector.load %arg14[%c2_165, %c0_166, %c0_167] : memref<3x64x128xbf16, #tpu.memory_space<vmem>>, vector<1x64x128xbf16>
    %160 = vector.shape_cast %159 : vector<1x64x128xbf16> to vector<64x128xbf16>
    %161 = arith.truncf %149 : vector<32x64xf32> to vector<32x64xbf16>
    %cst_168 = arith.constant dense<0.000000e+00> : vector<32x128xf32>
    %162 = tpu.matmul %161, %160, %cst_168 {dimension_numbers = #tpu.dot_dimension_numbers<[1], [0], [0], [1], [0, 0, 1, 1], [], []>} : vector<32x64xbf16>, vector<64x128xbf16>, vector<32x128xf32> -> vector<32x128xf32>
    %163 = arith.addf %158, %162 : vector<32x128xf32>
    %c0_169 = arith.constant 0 : index
    %c0_170 = arith.constant 0 : index
    %164 = vector.load %arg18[%c0_169, %c0_170] : memref<64x128xbf16, #tpu.memory_space<vmem>>, vector<64x128xbf16>
    %165 = arith.truncf %147 : vector<32x64xf32> to vector<32x64xbf16>
    %cst_171 = arith.constant dense<0.000000e+00> : vector<32x128xf32>
    %166 = tpu.matmul %165, %164, %cst_171 {dimension_numbers = #tpu.dot_dimension_numbers<[1], [0], [0], [1], [0, 0, 1, 1], [], []>} : vector<32x64xbf16>, vector<64x128xbf16>, vector<32x128xf32> -> vector<32x128xf32>
    %c0_172 = arith.constant 0 : index
    %c0_173 = arith.constant 0 : index
    %167 = vector.load %arg15[%c0_172, %c0_173] : memref<1x128xf32, #tpu.memory_space<vmem>>, vector<1x128xf32>
    %168 = vector.broadcast %167 : vector<1x128xf32> to vector<32x128xf32>
    %169 = arith.addf %163, %168 : vector<32x128xf32>
    %cst_174 = arith.constant 0.000000e+00 : f32
    %170 = vector.broadcast %cst_174 : f32 to vector<32x128xf32>
    %171 = arith.maximumf %169, %170 : vector<32x128xf32>
    %c0_175 = arith.constant 0 : index
    %c0_176 = arith.constant 0 : index
    %172 = vector.load %arg19[%c0_175, %c0_176] : memref<1x128xf32, #tpu.memory_space<vmem>>, vector<1x128xf32>
    %173 = vector.broadcast %172 : vector<1x128xf32> to vector<32x128xf32>
    %174 = arith.addf %166, %173 : vector<32x128xf32>
    %cst_177 = arith.constant 0.000000e+00 : f32
    %175 = vector.broadcast %cst_177 : f32 to vector<1x1x128xf32>
    %c0_178 = arith.constant 0 : index
    %c0_179 = arith.constant 0 : index
    %c0_180 = arith.constant 0 : index
    %176 = vector.load %arg36[%c0_178, %c0_179, %c0_180] : memref<1x34x128xf32, #tpu.memory_space<vmem>>, vector<1x1x128xf32>
    tpu.vector_store %arg36[%c0_178, %c0_179, %c0_180], %175 {strides = array<i32>} : memref<1x34x128xf32, #tpu.memory_space<vmem>>, vector<1x1x128xf32>,
    %cst_181 = arith.constant 0.000000e+00 : f32
    %177 = vector.broadcast %cst_181 : f32 to vector<1x1x128xf32>
    %c0_182 = arith.constant 0 : index
    %c33_183 = arith.constant 33 : index
    %c0_184 = arith.constant 0 : index
    %178 = vector.load %arg36[%c0_182, %c33_183, %c0_184] : memref<1x34x128xf32, #tpu.memory_space<vmem>>, vector<1x1x128xf32>
    tpu.vector_store %arg36[%c0_182, %c33_183, %c0_184], %177 {strides = array<i32>} : memref<1x34x128xf32, #tpu.memory_space<vmem>>, vector<1x1x128xf32>,
    %179 = vector.shape_cast %171 : vector<32x128xf32> to vector<1x32x128xf32>
    %c0_185 = arith.constant 0 : index
    %c1_186 = arith.constant 1 : index
    %c0_187 = arith.constant 0 : index
    %180 = vector.load %arg36[%c0_185, %c1_186, %c0_187] : memref<1x34x128xf32, #tpu.memory_space<vmem>>, vector<1x32x128xf32>
    tpu.vector_store %arg36[%c0_185, %c1_186, %c0_187], %179 {strides = array<i32>} : memref<1x34x128xf32, #tpu.memory_space<vmem>>, vector<1x32x128xf32>,
    %c0_188 = arith.constant 0 : index
    %c0_189 = arith.constant 0 : index
    %c0_190 = arith.constant 0 : index
    %181 = vector.load %arg36[%c0_188, %c0_189, %c0_190] : memref<1x34x128xf32, #tpu.memory_space<vmem>>, vector<1x32x128xf32>
    %182 = vector.shape_cast %181 : vector<1x32x128xf32> to vector<32x128xf32>
    %c0_191 = arith.constant 0 : index
    %c2_192 = arith.constant 2 : index
    %c0_193 = arith.constant 0 : index
    %183 = vector.load %arg36[%c0_191, %c2_192, %c0_193] : memref<1x34x128xf32, #tpu.memory_space<vmem>>, vector<1x32x128xf32>
    %184 = vector.shape_cast %183 : vector<1x32x128xf32> to vector<32x128xf32>
    %c0_194 = arith.constant 0 : index
    %c0_195 = arith.constant 0 : index
    %c0_196 = arith.constant 0 : index
    %185 = vector.load %arg16[%c0_194, %c0_195, %c0_196] : memref<3x128x128xbf16, #tpu.memory_space<vmem>>, vector<1x128x128xbf16>
    %186 = vector.shape_cast %185 : vector<1x128x128xbf16> to vector<128x128xbf16>
    %187 = arith.truncf %182 : vector<32x128xf32> to vector<32x128xbf16>
    %cst_197 = arith.constant dense<0.000000e+00> : vector<32x128xf32>
    %188 = tpu.matmul %187, %186, %cst_197 {dimension_numbers = #tpu.dot_dimension_numbers<[1], [0], [0], [1], [0, 0, 1, 1], [], []>} : vector<32x128xbf16>, vector<128x128xbf16>, vector<32x128xf32> -> vector<32x128xf32>
    %c1_198 = arith.constant 1 : index
    %c0_199 = arith.constant 0 : index
    %c0_200 = arith.constant 0 : index
    %189 = vector.load %arg16[%c1_198, %c0_199, %c0_200] : memref<3x128x128xbf16, #tpu.memory_space<vmem>>, vector<1x128x128xbf16>
    %190 = vector.shape_cast %189 : vector<1x128x128xbf16> to vector<128x128xbf16>
    %191 = arith.truncf %171 : vector<32x128xf32> to vector<32x128xbf16>
    %cst_201 = arith.constant dense<0.000000e+00> : vector<32x128xf32>
    %192 = tpu.matmul %191, %190, %cst_201 {dimension_numbers = #tpu.dot_dimension_numbers<[1], [0], [0], [1], [0, 0, 1, 1], [], []>} : vector<32x128xbf16>, vector<128x128xbf16>, vector<32x128xf32> -> vector<32x128xf32>
    %193 = arith.addf %188, %192 : vector<32x128xf32>
    %c2_202 = arith.constant 2 : index
    %c0_203 = arith.constant 0 : index
    %c0_204 = arith.constant 0 : index
    %194 = vector.load %arg16[%c2_202, %c0_203, %c0_204] : memref<3x128x128xbf16, #tpu.memory_space<vmem>>, vector<1x128x128xbf16>
    %195 = vector.shape_cast %194 : vector<1x128x128xbf16> to vector<128x128xbf16>
    %196 = arith.truncf %184 : vector<32x128xf32> to vector<32x128xbf16>
    %cst_205 = arith.constant dense<0.000000e+00> : vector<32x128xf32>
    %197 = tpu.matmul %196, %195, %cst_205 {dimension_numbers = #tpu.dot_dimension_numbers<[1], [0], [0], [1], [0, 0, 1, 1], [], []>} : vector<32x128xbf16>, vector<128x128xbf16>, vector<32x128xf32> -> vector<32x128xf32>
    %198 = arith.addf %193, %197 : vector<32x128xf32>
    %c0_206 = arith.constant 0 : index
    %c0_207 = arith.constant 0 : index
    %199 = vector.load %arg17[%c0_206, %c0_207] : memref<1x128xf32, #tpu.memory_space<vmem>>, vector<1x128xf32>
    %200 = vector.broadcast %199 : vector<1x128xf32> to vector<32x128xf32>
    %201 = arith.addf %198, %200 : vector<32x128xf32>
    %202 = arith.addf %201, %174 : vector<32x128xf32>
    %cst_208 = arith.constant 0.000000e+00 : f32
    %203 = vector.broadcast %cst_208 : f32 to vector<32x128xf32>
    %204 = arith.maximumf %202, %203 : vector<32x128xf32>
    %205 = vector.shape_cast %204 : vector<32x128xf32> to vector<1x32x128xf32>
    %cst_209 = arith.constant 0.000000e+00 : f32
    %206 = vector.broadcast %cst_209 : f32 to vector<1x1x128xf32>
    %c0_210 = arith.constant 0 : index
    %c0_211 = arith.constant 0 : index
    %c0_212 = arith.constant 0 : index
    %207 = vector.load %arg37[%c0_210, %c0_211, %c0_212] : memref<1x34x128xf32, #tpu.memory_space<vmem>>, vector<1x1x128xf32>
    tpu.vector_store %arg37[%c0_210, %c0_211, %c0_212], %206 {strides = array<i32>} : memref<1x34x128xf32, #tpu.memory_space<vmem>>, vector<1x1x128xf32>,
    %cst_213 = arith.constant 0.000000e+00 : f32
    %208 = vector.broadcast %cst_213 : f32 to vector<1x1x128xf32>
    %c0_214 = arith.constant 0 : index
    %c33_215 = arith.constant 33 : index
    %c0_216 = arith.constant 0 : index
    %209 = vector.load %arg37[%c0_214, %c33_215, %c0_216] : memref<1x34x128xf32, #tpu.memory_space<vmem>>, vector<1x1x128xf32>
    tpu.vector_store %arg37[%c0_214, %c33_215, %c0_216], %208 {strides = array<i32>} : memref<1x34x128xf32, #tpu.memory_space<vmem>>, vector<1x1x128xf32>,
    %c0_217 = arith.constant 0 : index
    %c1_218 = arith.constant 1 : index
    %c0_219 = arith.constant 0 : index
    %210 = vector.load %arg37[%c0_217, %c1_218, %c0_219] : memref<1x34x128xf32, #tpu.memory_space<vmem>>, vector<1x32x128xf32>
    tpu.vector_store %arg37[%c0_217, %c1_218, %c0_219], %205 {strides = array<i32>} : memref<1x34x128xf32, #tpu.memory_space<vmem>>, vector<1x32x128xf32>,
    %c0_220 = arith.constant 0 : index
    %c0_221 = arith.constant 0 : index
    %c0_222 = arith.constant 0 : index
    %211 = tpu.strided_load %arg37[%c0_220, %c0_221, %c0_222] {strides = array<i32: 1, 2, 1>} : memref<1x34x128xf32, #tpu.memory_space<vmem>>, vector<1x16x128xf32>
    %212 = vector.shape_cast %211 : vector<1x16x128xf32> to vector<16x128xf32>
    %c0_223 = arith.constant 0 : index
    %c1_224 = arith.constant 1 : index
    %c0_225 = arith.constant 0 : index
    %213 = tpu.strided_load %arg37[%c0_223, %c1_224, %c0_225] {strides = array<i32: 1, 2, 1>} : memref<1x34x128xf32, #tpu.memory_space<vmem>>, vector<1x16x128xf32>
    %214 = vector.shape_cast %213 : vector<1x16x128xf32> to vector<16x128xf32>
    %c0_226 = arith.constant 0 : index
    %c2_227 = arith.constant 2 : index
    %c0_228 = arith.constant 0 : index
    %215 = tpu.strided_load %arg37[%c0_226, %c2_227, %c0_228] {strides = array<i32: 1, 2, 1>} : memref<1x34x128xf32, #tpu.memory_space<vmem>>, vector<1x16x128xf32>
    %216 = vector.shape_cast %215 : vector<1x16x128xf32> to vector<16x128xf32>
    %c0_229 = arith.constant 0 : index
    %c0_230 = arith.constant 0 : index
    %c0_231 = arith.constant 0 : index
    %217 = vector.load %arg20[%c0_229, %c0_230, %c0_231] : memref<3x128x256xbf16, #tpu.memory_space<vmem>>, vector<1x128x256xbf16>
    %218 = vector.shape_cast %217 : vector<1x128x256xbf16> to vector<128x256xbf16>
    %219 = arith.truncf %212 : vector<16x128xf32> to vector<16x128xbf16>
    %cst_232 = arith.constant dense<0.000000e+00> : vector<16x256xf32>
    %220 = tpu.matmul %219, %218, %cst_232 {dimension_numbers = #tpu.dot_dimension_numbers<[1], [0], [0], [1], [0, 0, 1, 1], [], []>} : vector<16x128xbf16>, vector<128x256xbf16>, vector<16x256xf32> -> vector<16x256xf32>
    %c1_233 = arith.constant 1 : index
    %c0_234 = arith.constant 0 : index
    %c0_235 = arith.constant 0 : index
    %221 = vector.load %arg20[%c1_233, %c0_234, %c0_235] : memref<3x128x256xbf16, #tpu.memory_space<vmem>>, vector<1x128x256xbf16>
    %222 = vector.shape_cast %221 : vector<1x128x256xbf16> to vector<128x256xbf16>
    %223 = arith.truncf %214 : vector<16x128xf32> to vector<16x128xbf16>
    %cst_236 = arith.constant dense<0.000000e+00> : vector<16x256xf32>
    %224 = tpu.matmul %223, %222, %cst_236 {dimension_numbers = #tpu.dot_dimension_numbers<[1], [0], [0], [1], [0, 0, 1, 1], [], []>} : vector<16x128xbf16>, vector<128x256xbf16>, vector<16x256xf32> -> vector<16x256xf32>
    %225 = arith.addf %220, %224 : vector<16x256xf32>
    %c2_237 = arith.constant 2 : index
    %c0_238 = arith.constant 0 : index
    %c0_239 = arith.constant 0 : index
    %226 = vector.load %arg20[%c2_237, %c0_238, %c0_239] : memref<3x128x256xbf16, #tpu.memory_space<vmem>>, vector<1x128x256xbf16>
    %227 = vector.shape_cast %226 : vector<1x128x256xbf16> to vector<128x256xbf16>
    %228 = arith.truncf %216 : vector<16x128xf32> to vector<16x128xbf16>
    %cst_240 = arith.constant dense<0.000000e+00> : vector<16x256xf32>
    %229 = tpu.matmul %228, %227, %cst_240 {dimension_numbers = #tpu.dot_dimension_numbers<[1], [0], [0], [1], [0, 0, 1, 1], [], []>} : vector<16x128xbf16>, vector<128x256xbf16>, vector<16x256xf32> -> vector<16x256xf32>
    %230 = arith.addf %225, %229 : vector<16x256xf32>
    %c0_241 = arith.constant 0 : index
    %c0_242 = arith.constant 0 : index
    %231 = vector.load %arg24[%c0_241, %c0_242] : memref<128x256xbf16, #tpu.memory_space<vmem>>, vector<128x256xbf16>
    %232 = arith.truncf %214 : vector<16x128xf32> to vector<16x128xbf16>
    %cst_243 = arith.constant dense<0.000000e+00> : vector<16x256xf32>
    %233 = tpu.matmul %232, %231, %cst_243 {dimension_numbers = #tpu.dot_dimension_numbers<[1], [0], [0], [1], [0, 0, 1, 1], [], []>} : vector<16x128xbf16>, vector<128x256xbf16>, vector<16x256xf32> -> vector<16x256xf32>
    %c0_244 = arith.constant 0 : index
    %c0_245 = arith.constant 0 : index
    %234 = vector.load %arg21[%c0_244, %c0_245] : memref<1x256xf32, #tpu.memory_space<vmem>>, vector<1x256xf32>
    %235 = vector.broadcast %234 : vector<1x256xf32> to vector<16x256xf32>
    %236 = arith.addf %230, %235 : vector<16x256xf32>
    %cst_246 = arith.constant 0.000000e+00 : f32
    %237 = vector.broadcast %cst_246 : f32 to vector<16x256xf32>
    %238 = arith.maximumf %236, %237 : vector<16x256xf32>
    %c0_247 = arith.constant 0 : index
    %c0_248 = arith.constant 0 : index
    %239 = vector.load %arg25[%c0_247, %c0_248] : memref<1x256xf32, #tpu.memory_space<vmem>>, vector<1x256xf32>
    %240 = vector.broadcast %239 : vector<1x256xf32> to vector<16x256xf32>
    %241 = arith.addf %233, %240 : vector<16x256xf32>
    %cst_249 = arith.constant 0.000000e+00 : f32
    %242 = vector.broadcast %cst_249 : f32 to vector<1x1x256xf32>
    %c0_250 = arith.constant 0 : index
    %c0_251 = arith.constant 0 : index
    %c0_252 = arith.constant 0 : index
    %243 = vector.load %arg38[%c0_250, %c0_251, %c0_252] : memref<1x18x256xf32, #tpu.memory_space<vmem>>, vector<1x1x256xf32>
    tpu.vector_store %arg38[%c0_250, %c0_251, %c0_252], %242 {strides = array<i32>} : memref<1x18x256xf32, #tpu.memory_space<vmem>>, vector<1x1x256xf32>,
    %cst_253 = arith.constant 0.000000e+00 : f32
    %244 = vector.broadcast %cst_253 : f32 to vector<1x1x256xf32>
    %c0_254 = arith.constant 0 : index
    %c17 = arith.constant 17 : index
    %c0_255 = arith.constant 0 : index
    %245 = vector.load %arg38[%c0_254, %c17, %c0_255] : memref<1x18x256xf32, #tpu.memory_space<vmem>>, vector<1x1x256xf32>
    tpu.vector_store %arg38[%c0_254, %c17, %c0_255], %244 {strides = array<i32>} : memref<1x18x256xf32, #tpu.memory_space<vmem>>, vector<1x1x256xf32>,
    %246 = vector.shape_cast %238 : vector<16x256xf32> to vector<1x16x256xf32>
    %c0_256 = arith.constant 0 : index
    %c1_257 = arith.constant 1 : index
    %c0_258 = arith.constant 0 : index
    %247 = vector.load %arg38[%c0_256, %c1_257, %c0_258] : memref<1x18x256xf32, #tpu.memory_space<vmem>>, vector<1x16x256xf32>
    tpu.vector_store %arg38[%c0_256, %c1_257, %c0_258], %246 {strides = array<i32>} : memref<1x18x256xf32, #tpu.memory_space<vmem>>, vector<1x16x256xf32>,
    %c0_259 = arith.constant 0 : index
    %c0_260 = arith.constant 0 : index
    %c0_261 = arith.constant 0 : index
    %248 = vector.load %arg38[%c0_259, %c0_260, %c0_261] : memref<1x18x256xf32, #tpu.memory_space<vmem>>, vector<1x16x256xf32>
    %249 = vector.shape_cast %248 : vector<1x16x256xf32> to vector<16x256xf32>
    %c0_262 = arith.constant 0 : index
    %c2_263 = arith.constant 2 : index
    %c0_264 = arith.constant 0 : index
    %250 = vector.load %arg38[%c0_262, %c2_263, %c0_264] : memref<1x18x256xf32, #tpu.memory_space<vmem>>, vector<1x16x256xf32>
    %251 = vector.shape_cast %250 : vector<1x16x256xf32> to vector<16x256xf32>
    %c0_265 = arith.constant 0 : index
    %c0_266 = arith.constant 0 : index
    %c0_267 = arith.constant 0 : index
    %252 = vector.load %arg22[%c0_265, %c0_266, %c0_267] : memref<3x256x256xbf16, #tpu.memory_space<vmem>>, vector<1x256x256xbf16>
    %253 = vector.shape_cast %252 : vector<1x256x256xbf16> to vector<256x256xbf16>
    %254 = arith.truncf %249 : vector<16x256xf32> to vector<16x256xbf16>
    %cst_268 = arith.constant dense<0.000000e+00> : vector<16x256xf32>
    %255 = tpu.matmul %254, %253, %cst_268 {dimension_numbers = #tpu.dot_dimension_numbers<[1], [0], [0], [1], [0, 0, 1, 1], [], []>} : vector<16x256xbf16>, vector<256x256xbf16>, vector<16x256xf32> -> vector<16x256xf32>
    %c1_269 = arith.constant 1 : index
    %c0_270 = arith.constant 0 : index
    %c0_271 = arith.constant 0 : index
    %256 = vector.load %arg22[%c1_269, %c0_270, %c0_271] : memref<3x256x256xbf16, #tpu.memory_space<vmem>>, vector<1x256x256xbf16>
    %257 = vector.shape_cast %256 : vector<1x256x256xbf16> to vector<256x256xbf16>
    %258 = arith.truncf %238 : vector<16x256xf32> to vector<16x256xbf16>
    %cst_272 = arith.constant dense<0.000000e+00> : vector<16x256xf32>
    %259 = tpu.matmul %258, %257, %cst_272 {dimension_numbers = #tpu.dot_dimension_numbers<[1], [0], [0], [1], [0, 0, 1, 1], [], []>} : vector<16x256xbf16>, vector<256x256xbf16>, vector<16x256xf32> -> vector<16x256xf32>
    %260 = arith.addf %255, %259 : vector<16x256xf32>
    %c2_273 = arith.constant 2 : index
    %c0_274 = arith.constant 0 : index
    %c0_275 = arith.constant 0 : index
    %261 = vector.load %arg22[%c2_273, %c0_274, %c0_275] : memref<3x256x256xbf16, #tpu.memory_space<vmem>>, vector<1x256x256xbf16>
    %262 = vector.shape_cast %261 : vector<1x256x256xbf16> to vector<256x256xbf16>
    %263 = arith.truncf %251 : vector<16x256xf32> to vector<16x256xbf16>
    %cst_276 = arith.constant dense<0.000000e+00> : vector<16x256xf32>
    %264 = tpu.matmul %263, %262, %cst_276 {dimension_numbers = #tpu.dot_dimension_numbers<[1], [0], [0], [1], [0, 0, 1, 1], [], []>} : vector<16x256xbf16>, vector<256x256xbf16>, vector<16x256xf32> -> vector<16x256xf32>
    %265 = arith.addf %260, %264 : vector<16x256xf32>
    %c0_277 = arith.constant 0 : index
    %c0_278 = arith.constant 0 : index
    %266 = vector.load %arg23[%c0_277, %c0_278] : memref<1x256xf32, #tpu.memory_space<vmem>>, vector<1x256xf32>
    %267 = vector.broadcast %266 : vector<1x256xf32> to vector<16x256xf32>
    %268 = arith.addf %265, %267 : vector<16x256xf32>
    %269 = arith.addf %268, %241 : vector<16x256xf32>
    %cst_279 = arith.constant 0.000000e+00 : f32
    %270 = vector.broadcast %cst_279 : f32 to vector<16x256xf32>
    %271 = arith.maximumf %269, %270 : vector<16x256xf32>
    %272 = vector.shape_cast %271 : vector<16x256xf32> to vector<1x16x256xf32>
    %273 = vector.extract_strided_slice %272 {offsets = [0, 0, 0], sizes = [1, 4, 256], strides = [1, 1, 1]} : vector<1x16x256xf32> to vector<1x4x256xf32>
    %cst_280 = arith.constant dense<0xFF800000> : vector<1x256xf32>
    %274 = vector.multi_reduction <maximumf>, %273, %cst_280 [1] : vector<1x4x256xf32> to vector<1x256xf32>
    %275 = vector.extract_strided_slice %272 {offsets = [0, 4, 0], sizes = [1, 4, 256], strides = [1, 1, 1]} : vector<1x16x256xf32> to vector<1x4x256xf32>
    %cst_281 = arith.constant dense<0xFF800000> : vector<1x256xf32>
    %276 = vector.multi_reduction <maximumf>, %275, %cst_281 [1] : vector<1x4x256xf32> to vector<1x256xf32>
    %277 = vector.extract_strided_slice %272 {offsets = [0, 8, 0], sizes = [1, 4, 256], strides = [1, 1, 1]} : vector<1x16x256xf32> to vector<1x4x256xf32>
    %cst_282 = arith.constant dense<0xFF800000> : vector<1x256xf32>
    %278 = vector.multi_reduction <maximumf>, %277, %cst_282 [1] : vector<1x4x256xf32> to vector<1x256xf32>
    %279 = vector.extract_strided_slice %272 {offsets = [0, 12, 0], sizes = [1, 4, 256], strides = [1, 1, 1]} : vector<1x16x256xf32> to vector<1x4x256xf32>
    %cst_283 = arith.constant dense<0xFF800000> : vector<1x256xf32>
    %280 = vector.multi_reduction <maximumf>, %279, %cst_283 [1] : vector<1x4x256xf32> to vector<1x256xf32>
    %281 = tpu.concatenate %274, %276, %278, %280 in 1 : vector<1x256xf32>, vector<1x256xf32>, vector<1x256xf32>, vector<1x256xf32> -> vector<1x1024xf32>
    %282 = arith.truncf %281 : vector<1x1024xf32> to vector<1x1024xbf16>
    %c0_284 = arith.constant 0 : index
    %c0_285 = arith.constant 0 : index
    %283 = vector.load %arg26[%c0_284, %c0_285] : memref<1024x256xbf16, #tpu.memory_space<vmem>>, vector<1024x256xbf16>
    %cst_286 = arith.constant dense<0.000000e+00> : vector<1x256xf32>
    %284 = tpu.matmul %282, %283, %cst_286 {dimension_numbers = #tpu.dot_dimension_numbers<[1], [0], [0], [1], [0, 0, 1, 1], [], []>} : vector<1x1024xbf16>, vector<1024x256xbf16>, vector<1x256xf32> -> vector<1x256xf32>
    %c0_287 = arith.constant 0 : index
    %c0_288 = arith.constant 0 : index
    %285 = vector.load %arg27[%c0_287, %c0_288] : memref<1x256xf32, #tpu.memory_space<vmem>>, vector<1x256xf32>
    %286 = arith.addf %284, %285 : vector<1x256xf32>
    %cst_289 = arith.constant 0.000000e+00 : f32
    %287 = vector.broadcast %cst_289 : f32 to vector<1x256xf32>
    %288 = arith.maximumf %286, %287 : vector<1x256xf32>
    %289 = arith.truncf %288 : vector<1x256xf32> to vector<1x256xbf16>
    %c0_290 = arith.constant 0 : index
    %c0_291 = arith.constant 0 : index
    %290 = vector.load %arg28[%c0_290, %c0_291] : memref<256x128xbf16, #tpu.memory_space<vmem>>, vector<256x128xbf16>
    %cst_292 = arith.constant dense<0.000000e+00> : vector<1x128xf32>
    %291 = tpu.matmul %289, %290, %cst_292 {dimension_numbers = #tpu.dot_dimension_numbers<[1], [0], [0], [1], [0, 0, 1, 1], [], []>} : vector<1x256xbf16>, vector<256x128xbf16>, vector<1x128xf32> -> vector<1x128xf32>
    %c0_293 = arith.constant 0 : index
    %c0_294 = arith.constant 0 : index
    %292 = vector.load %arg29[%c0_293, %c0_294] : memref<1x128xf32, #tpu.memory_space<vmem>>, vector<1x128xf32>
    %293 = arith.addf %291, %292 : vector<1x128xf32>
    %c0_295 = arith.constant 0 : index
    %c0_296 = arith.constant 0 : index
    %c0_297 = arith.constant 0 : index
    %294 = vector.load %arg30[%c0_295, %c0_296, %c0_297] : memref<1x1x128xf32, #tpu.memory_space<vmem>>, vector<1x1x128xf32>
    %295 = vector.shape_cast %294 : vector<1x1x128xf32> to vector<1x128xf32>
    %296 = vector.shape_cast %293 : vector<1x128xf32> to vector<1x1x128xf32>
    tpu.vector_store %arg30[%c0_295, %c0_296, %c0_297], %296 {strides = array<i32>} : memref<1x1x128xf32, #tpu.memory_space<vmem>>, vector<1x1x128xf32>,
    return
  }
  func.func @transform_0(%arg0: i32) -> (i32, i32, i32) {
    %c0_i32 = arith.constant 0 : i32
    %c0_i32_0 = arith.constant 0 : i32
    %c0_i32_1 = arith.constant 0 : i32
    return %arg0, %c0_i32, %c0_i32_0 : i32, i32, i32
  }
  func.func @transform_1(%arg0: i32) -> (i32, i32, i32) {
    %c0_i32 = arith.constant 0 : i32
    %c0_i32_0 = arith.constant 0 : i32
    %c0_i32_1 = arith.constant 0 : i32
    %c0_i32_2 = arith.constant 0 : i32
    return %c0_i32, %c0_i32_0, %c0_i32_1 : i32, i32, i32
  }
  func.func @transform_2(%arg0: i32) -> (i32, i32) {
    %c0_i32 = arith.constant 0 : i32
    %c0_i32_0 = arith.constant 0 : i32
    %c0_i32_1 = arith.constant 0 : i32
    return %c0_i32, %c0_i32_0 : i32, i32
  }
  func.func @transform_3(%arg0: i32) -> (i32, i32, i32) {
    %c0_i32 = arith.constant 0 : i32
    %c0_i32_0 = arith.constant 0 : i32
    %c0_i32_1 = arith.constant 0 : i32
    %c0_i32_2 = arith.constant 0 : i32
    return %c0_i32, %c0_i32_0, %c0_i32_1 : i32, i32, i32
  }
  func.func @transform_4(%arg0: i32) -> (i32, i32) {
    %c0_i32 = arith.constant 0 : i32
    %c0_i32_0 = arith.constant 0 : i32
    %c0_i32_1 = arith.constant 0 : i32
    return %c0_i32, %c0_i32_0 : i32, i32
  }
  func.func @transform_5(%arg0: i32) -> (i32, i32) {
    %c0_i32 = arith.constant 0 : i32
    %c0_i32_0 = arith.constant 0 : i32
    %c0_i32_1 = arith.constant 0 : i32
    return %c0_i32, %c0_i32_0 : i32, i32
  }
  func.func @transform_6(%arg0: i32) -> (i32, i32) {
    %c0_i32 = arith.constant 0 : i32
    %c0_i32_0 = arith.constant 0 : i32
    %c0_i32_1 = arith.constant 0 : i32
    return %c0_i32, %c0_i32_0 : i32, i32
  }
  func.func @transform_7(%arg0: i32) -> (i32, i32, i32) {
    %c0_i32 = arith.constant 0 : i32
    %c0_i32_0 = arith.constant 0 : i32
    %c0_i32_1 = arith.constant 0 : i32
    %c0_i32_2 = arith.constant 0 : i32
    return %c0_i32, %c0_i32_0, %c0_i32_1 : i32, i32, i32
  }
  func.func @transform_8(%arg0: i32) -> (i32, i32) {
    %c0_i32 = arith.constant 0 : i32
    %c0_i32_0 = arith.constant 0 : i32
    %c0_i32_1 = arith.constant 0 : i32
    return %c0_i32, %c0_i32_0 : i32, i32
  }
  func.func @transform_9(%arg0: i32) -> (i32, i32, i32) {
    %c0_i32 = arith.constant 0 : i32
    %c0_i32_0 = arith.constant 0 : i32
    %c0_i32_1 = arith.constant 0 : i32
    %c0_i32_2 = arith.constant 0 : i32
    return %c0_i32, %c0_i32_0, %c0_i32_1 : i32, i32, i32
  }
  func.func @transform_10(%arg0: i32) -> (i32, i32) {
    %c0_i32 = arith.constant 0 : i32
    %c0_i32_0 = arith.constant 0 : i32
    %c0_i32_1 = arith.constant 0 : i32
    return %c0_i32, %c0_i32_0 : i32, i32
  }
  func.func @transform_11(%arg0: i32) -> (i32, i32) {
    %c0_i32 = arith.constant 0 : i32
    %c0_i32_0 = arith.constant 0 : i32
    %c0_i32_1 = arith.constant 0 : i32
    return %c0_i32, %c0_i32_0 : i32, i32
  }
  func.func @transform_12(%arg0: i32) -> (i32, i32) {
    %c0_i32 = arith.constant 0 : i32
    %c0_i32_0 = arith.constant 0 : i32
    %c0_i32_1 = arith.constant 0 : i32
    return %c0_i32, %c0_i32_0 : i32, i32
  }
  func.func @transform_13(%arg0: i32) -> (i32, i32, i32) {
    %c0_i32 = arith.constant 0 : i32
    %c0_i32_0 = arith.constant 0 : i32
    %c0_i32_1 = arith.constant 0 : i32
    %c0_i32_2 = arith.constant 0 : i32
    return %c0_i32, %c0_i32_0, %c0_i32_1 : i32, i32, i32
  }
  func.func @transform_14(%arg0: i32) -> (i32, i32) {
    %c0_i32 = arith.constant 0 : i32
    %c0_i32_0 = arith.constant 0 : i32
    %c0_i32_1 = arith.constant 0 : i32
    return %c0_i32, %c0_i32_0 : i32, i32
  }
  func.func @transform_15(%arg0: i32) -> (i32, i32, i32) {
    %c0_i32 = arith.constant 0 : i32
    %c0_i32_0 = arith.constant 0 : i32
    %c0_i32_1 = arith.constant 0 : i32
    %c0_i32_2 = arith.constant 0 : i32
    return %c0_i32, %c0_i32_0, %c0_i32_1 : i32, i32, i32
  }
  func.func @transform_16(%arg0: i32) -> (i32, i32) {
    %c0_i32 = arith.constant 0 : i32
    %c0_i32_0 = arith.constant 0 : i32
    %c0_i32_1 = arith.constant 0 : i32
    return %c0_i32, %c0_i32_0 : i32, i32
  }
  func.func @transform_17(%arg0: i32) -> (i32, i32) {
    %c0_i32 = arith.constant 0 : i32
    %c0_i32_0 = arith.constant 0 : i32
    %c0_i32_1 = arith.constant 0 : i32
    return %c0_i32, %c0_i32_0 : i32, i32
  }
  func.func @transform_18(%arg0: i32) -> (i32, i32) {
    %c0_i32 = arith.constant 0 : i32
    %c0_i32_0 = arith.constant 0 : i32
    %c0_i32_1 = arith.constant 0 : i32
    return %c0_i32, %c0_i32_0 : i32, i32
  }
  func.func @transform_19(%arg0: i32) -> (i32, i32, i32) {
    %c0_i32 = arith.constant 0 : i32
    %c0_i32_0 = arith.constant 0 : i32
    %c0_i32_1 = arith.constant 0 : i32
    %c0_i32_2 = arith.constant 0 : i32
    return %c0_i32, %c0_i32_0, %c0_i32_1 : i32, i32, i32
  }
  func.func @transform_20(%arg0: i32) -> (i32, i32) {
    %c0_i32 = arith.constant 0 : i32
    %c0_i32_0 = arith.constant 0 : i32
    %c0_i32_1 = arith.constant 0 : i32
    return %c0_i32, %c0_i32_0 : i32, i32
  }
  func.func @transform_21(%arg0: i32) -> (i32, i32, i32) {
    %c0_i32 = arith.constant 0 : i32
    %c0_i32_0 = arith.constant 0 : i32
    %c0_i32_1 = arith.constant 0 : i32
    %c0_i32_2 = arith.constant 0 : i32
    return %c0_i32, %c0_i32_0, %c0_i32_1 : i32, i32, i32
  }
  func.func @transform_22(%arg0: i32) -> (i32, i32) {
    %c0_i32 = arith.constant 0 : i32
    %c0_i32_0 = arith.constant 0 : i32
    %c0_i32_1 = arith.constant 0 : i32
    return %c0_i32, %c0_i32_0 : i32, i32
  }
  func.func @transform_23(%arg0: i32) -> (i32, i32) {
    %c0_i32 = arith.constant 0 : i32
    %c0_i32_0 = arith.constant 0 : i32
    %c0_i32_1 = arith.constant 0 : i32
    return %c0_i32, %c0_i32_0 : i32, i32
  }
  func.func @transform_24(%arg0: i32) -> (i32, i32) {
    %c0_i32 = arith.constant 0 : i32
    %c0_i32_0 = arith.constant 0 : i32
    %c0_i32_1 = arith.constant 0 : i32
    return %c0_i32, %c0_i32_0 : i32, i32
  }
  func.func @transform_25(%arg0: i32) -> (i32, i32) {
    %c0_i32 = arith.constant 0 : i32
    %c0_i32_0 = arith.constant 0 : i32
    %c0_i32_1 = arith.constant 0 : i32
    return %c0_i32, %c0_i32_0 : i32, i32
  }
  func.func @transform_26(%arg0: i32) -> (i32, i32) {
    %c0_i32 = arith.constant 0 : i32
    %c0_i32_0 = arith.constant 0 : i32
    %c0_i32_1 = arith.constant 0 : i32
    return %c0_i32, %c0_i32_0 : i32, i32
  }
  func.func @transform_27(%arg0: i32) -> (i32, i32) {
    %c0_i32 = arith.constant 0 : i32
    %c0_i32_0 = arith.constant 0 : i32
    %c0_i32_1 = arith.constant 0 : i32
    return %c0_i32, %c0_i32_0 : i32, i32
  }
  func.func @transform_28(%arg0: i32) -> (i32, i32) {
    %c0_i32 = arith.constant 0 : i32
    %c0_i32_0 = arith.constant 0 : i32
    %c0_i32_1 = arith.constant 0 : i32
    return %c0_i32, %c0_i32_0 : i32, i32
  }
  func.func @transform_29(%arg0: i32) -> (i32, i32, i32) {
    %c0_i32 = arith.constant 0 : i32
    %c0_i32_0 = arith.constant 0 : i32
    %c0_i32_1 = arith.constant 0 : i32
    return %arg0, %c0_i32, %c0_i32_0 : i32, i32, i32
  }
}

</mosaic_0001>

<llo_original>
// kernel: _lambda_.1
$region0: #{_lambda_.1}
  #allocation0 [shape = 'u32[]', space=smem, size = 0x4, offset = 0x4, fixed_abs, tag = 'smem constant byte address 0x4 - core index']
  #allocation1 [shape = 'u32[144,128]{1,0:T(1,128)}', space=vmem, size = 0x12000, scoped, tag = 'internal scratch']
  #allocation2 [shape = 'f32[1,66,1]{2,1,0:T(8,128)}', space=vmem, size = 0x9000, scoped, tag = 'scratch operand']
  #allocation3 [shape = 'f32[1,66,32]{2,1,0:T(8,128)}', space=vmem, size = 0x9000, scoped, tag = 'scratch operand']
  #allocation4 [shape = 'f32[1,66,32]{2,1,0:T(8,128)}', space=vmem, size = 0x9000, scoped, tag = 'scratch operand']
  #allocation5 [shape = 'f32[1,34,64]{2,1,0:T(8,128)}', space=vmem, size = 0x5000, scoped, tag = 'scratch operand']
  #allocation6 [shape = 'f32[1,34,64]{2,1,0:T(8,128)}', space=vmem, size = 0x5000, scoped, tag = 'scratch operand']
  #allocation7 [shape = 'f32[1,34,128]{2,1,0:T(8,128)}', space=vmem, size = 0x5000, scoped, tag = 'scratch operand']
  #allocation8 [shape = 'f32[1,34,128]{2,1,0:T(8,128)}', space=vmem, size = 0x5000, scoped, tag = 'scratch operand']
  #allocation9 [shape = 'f32[1,18,256]{2,1,0:T(8,128)}', space=vmem, size = 0x6000, scoped, tag = 'scratch operand']
  %s0 = inlined_call_operand.smem [shape: u32[30], index: -1, kind: input, shape index: {}]
  %s1 = sld [smem:[%s0]]
  %s2 = scalar_lea.smem %s0, 1
  %s3 = sld [smem:[%s2]]
  %s4 = scalar_lea.smem %s0, 2
  %s5 = sld [smem:[%s4]]
  %s6 = scalar_lea.smem %s0, 3
  %s7 = sld [smem:[%s6]]
  %s8 = scalar_lea.smem %s0, 4
  %s9 = sld [smem:[%s8]]
  %s10 = scalar_lea.smem %s0, 5
  %s11 = sld [smem:[%s10]]
  %s12 = scalar_lea.smem %s0, 6
  %s13 = sld [smem:[%s12]]
  %s14 = scalar_lea.smem %s0, 7
  %s15 = sld [smem:[%s14]]
  %s16 = scalar_lea.smem %s0, 8
  %s17 = sld [smem:[%s16]]
  %s18 = scalar_lea.smem %s0, 9
  %s19 = sld [smem:[%s18]]
  %s20 = scalar_lea.smem %s0, 10
  %s21 = sld [smem:[%s20]]
  %s22 = scalar_lea.smem %s0, 11
  %s23 = sld [smem:[%s22]]
  %s24 = scalar_lea.smem %s0, 12
  %s25 = sld [smem:[%s24]]
  %s26 = scalar_lea.smem %s0, 13
  %s27 = sld [smem:[%s26]]
  %s28 = scalar_lea.smem %s0, 14
  %s29 = sld [smem:[%s28]]
  %s30 = scalar_lea.smem %s0, 15
  %s31 = sld [smem:[%s30]]
  %s32 = scalar_lea.smem %s0, 16
  %s33 = sld [smem:[%s32]]
  %s34 = scalar_lea.smem %s0, 17
  %s35 = sld [smem:[%s34]]
  %s36 = scalar_lea.smem %s0, 18
  %s37 = sld [smem:[%s36]]
  %s38 = scalar_lea.smem %s0, 19
  %s39 = sld [smem:[%s38]]
  %s40 = scalar_lea.smem %s0, 20
  %s41 = sld [smem:[%s40]]
  %s42 = scalar_lea.smem %s0, 21
  %s43 = sld [smem:[%s42]]
  %s44 = scalar_lea.smem %s0, 22
  %s45 = sld [smem:[%s44]]
  %s46 = scalar_lea.smem %s0, 23
  %s47 = sld [smem:[%s46]]
  %s48 = scalar_lea.smem %s0, 24
  %s49 = sld [smem:[%s48]]
  %s50 = scalar_lea.smem %s0, 25
  %s51 = sld [smem:[%s50]]
  %s52 = scalar_lea.smem %s0, 26
  %s53 = sld [smem:[%s52]]
  %s54 = scalar_lea.smem %s0, 27
  %s55 = sld [smem:[%s54]]
  %s56 = scalar_lea.smem %s0, 28
  %s57 = sld [smem:[%s56]]
  %s58 = scalar_lea.smem %s0, 29
  %s59 = sld [smem:[%s58]]
  %s60 = sld [smem:[#allocation0]]
  $region221: #{_lambda_.1} parent=0
    _
  %s62 = ssub.s32 1, %s60
  %s63 = scalar_select 0, %s62, %s60
  $region1: #{_lambda_.1} parent=0
    #allocation10 [shape = 'u8[24576]{0}', space=vmem, size = 0x6000, scoped, tag = 'input window, operand 3, single buffered']
    #allocation11 [shape = 's32[2]{0}', space=sflag, size = 0x8, scoped, tag = 'scoped memory for _lambda_.1']
    #allocation12 [shape = 's32[2]{0}', space=sflag, size = 0x8, scoped, tag = 'scoped memory for _lambda_.1']
    #allocation13 [shape = 'u8[512]{0}', space=vmem, size = 0x400, scoped, tag = 'input window, operand 5, single buffered']
    #allocation14 [shape = 's32[1]{0}', space=sflag, size = 0x4, scoped, tag = 'scoped memory for _lambda_.1']
    #allocation15 [shape = 'u8[512]{0}', space=vmem, size = 0x400, scoped, tag = 'input window, operand 6, single buffered']
    #allocation16 [shape = 'u8[24576]{0}', space=vmem, size = 0x6000, scoped, tag = 'input window, operand 7, single buffered']
    #allocation17 [shape = 's32[1]{0}', space=sflag, size = 0x4, scoped, tag = 'scoped memory for _lambda_.1']
    #allocation18 [shape = 'u8[512]{0}', space=vmem, size = 0x400, scoped, tag = 'input window, operand 8, single buffered']
    #allocation19 [shape = 'u8[49152]{0}', space=vmem, size = 0xc000, scoped, tag = 'input window, operand 9, single buffered']
    #allocation20 [shape = 's32[1]{0}', space=sflag, size = 0x4, scoped, tag = 'scoped memory for _lambda_.1']
    #allocation21 [shape = 'u8[512]{0}', space=vmem, size = 0x400, scoped, tag = 'input window, operand 10, single buffered']
    #allocation22 [shape = 'u8[8192]{0}', space=vmem, size = 0x2000, scoped, tag = 'input window, operand 11, single buffered']
    #allocation23 [shape = 's32[1]{0}', space=sflag, size = 0x4, scoped, tag = 'scoped memory for _lambda_.1']
    #allocation24 [shape = 'u8[512]{0}', space=vmem, size = 0x400, scoped, tag = 'input window, operand 12, single buffered']
    #allocation25 [shape = 'u8[49152]{0}', space=vmem, size = 0xc000, scoped, tag = 'input window, operand 13, single buffered']
    #allocation26 [shape = 's32[1]{0}', space=sflag, size = 0x4, scoped, tag = 'scoped memory for _lambda_.1']
    #allocation27 [shape = 'u8[512]{0}', space=vmem, size = 0x400, scoped, tag = 'input window, operand 14, single buffered']
    #allocation28 [shape = 'u8[98304]{0}', space=vmem, size = 0x18000, scoped, tag = 'input window, operand 15, single buffered']
    #allocation29 [shape = 's32[1]{0}', space=sflag, size = 0x4, scoped, tag = 'scoped memory for _lambda_.1']
    #allocation30 [shape = 'u8[512]{0}', space=vmem, size = 0x400, scoped, tag = 'input window, operand 16, single buffered']
    #allocation31 [shape = 'u8[512]{0}', space=vmem, size = 0x400, scoped, tag = 'input window, operand 18, single buffered']
    #allocation32 [shape = 's32[1]{0}', space=sflag, size = 0x4, scoped, tag = 'scoped memory for _lambda_.1']
    #allocation33 [shape = 'u8[196608]{0}', space=vmem, size = 0x30000, scoped, tag = 'input window, operand 19, single buffered']
    #allocation34 [shape = 'u8[393216]{0}', space=vmem, size = 0x60000, scoped, tag = 'input window, operand 21, single buffered']
    #allocation35 [shape = 's32[1]{0}', space=sflag, size = 0x4, scoped, tag = 'scoped memory for _lambda_.1']
    #allocation36 [shape = 'u8[524288]{0}', space=vmem, size = 0x80000, scoped, tag = 'input window, operand 25, single buffered']
    #allocation37 [shape = 'u8[65536]{0}', space=vmem, size = 0x10000, scoped, tag = 'input window, operand 27, single buffered']
    #allocation38 [shape = 's32[1]{0}', space=sflag, size = 0x4, scoped, tag = 'scoped memory for _lambda_.1']
    #allocation39 [shape = 'u8[1024]{0}', space=vmem, size = 0x400, scoped, tag = 'output window, operand 0']
    %64 = vsyncpa [#allocation11], 0
    %65 = vsyncpa [#allocation14], 0
    %66 = vsyncpa [#allocation17], 0
    %67 = vsyncpa [#allocation20], 0
    %68 = vsyncpa [#allocation23], 0
    %69 = vsyncpa [#allocation26], 0
    %70 = vsyncpa [#allocation29], 0
    %71 = vsyncpa [#allocation32], 0
    %72 = vsyncpa [#allocation35], 0
    %73 = vsyncpa [#allocation38], 0
    %74 = vsyncpa [#allocation12], 0
    %s75 = scalar_lea.sflag [#allocation12], 1
    %76 = vsyncpa %s75, 0
    loop: start=0, step=1, limit=4
    $region2: #{_lambda_.1} parent=1 // loop_pre_header
      _
    $region3: #{_lambda_.1} parent=1 // loop_header
      %s78 = sphi 0, %s82
      %p79 = scmp.ge.s32.totalorder %s78, 4
      %s88 = sphi 0, %s90
      %s91 = sphi 0, %s88
      %s92 = sphi 0, %s91
      %s108 = sphi 0, %s92
      %s112 = sphi 0, %s112
      %s114 = sphi 0, %s112
      %s115 = sphi 0, %s114
      %s129 = sphi 0, %s115
      %s133 = sphi 0, %s133
      %s135 = sphi 0, %s133
      %s136 = sphi 0, %s135
      %s150 = sphi 0, %s136
      %s154 = sphi 0, %s154
      %s156 = sphi 0, %s154
      %s157 = sphi 0, %s156
      %s171 = sphi 0, %s157
      %s175 = sphi 0, %s175
      %s177 = sphi 0, %s175
      %s178 = sphi 0, %s177
      %s192 = sphi 0, %s178
      %s196 = sphi 0, %s196
      %s198 = sphi 0, %s196
      %s199 = sphi 0, %s198
      %s213 = sphi 0, %s199
      %s217 = sphi 0, %s217
      %s219 = sphi 0, %s217
      %s220 = sphi 0, %s219
      %s234 = sphi 0, %s220
      %s238 = sphi 0, %s238
      %s240 = sphi 0, %s238
      %s241 = sphi 0, %s240
      %s255 = sphi 0, %s241
      %s259 = sphi 0, %s259
      %s261 = sphi 0, %s259
      %s262 = sphi 0, %s261
      %s276 = sphi 0, %s262
      %s280 = sphi 0, %s280
      %s282 = sphi 0, %s280
      %s283 = sphi 0, %s282
      %s297 = sphi 0, %s283
      %s301 = sphi 0, %s301
      %s303 = sphi 0, %s301
      %s304 = sphi 0, %s303
      %s318 = sphi 0, %s304
      %s322 = sphi 0, %s322
      %s324 = sphi 0, %s322
      %s325 = sphi 0, %s324
      %s339 = sphi 0, %s325
      %s343 = sphi 0, %s343
      %s345 = sphi 0, %s343
      %s346 = sphi 0, %s345
      %s360 = sphi 0, %s346
      %s364 = sphi 0, %s364
      %s366 = sphi 0, %s364
      %s367 = sphi 0, %s366
      %s381 = sphi 0, %s367
      %s385 = sphi 0, %s385
      %s387 = sphi 0, %s385
      %s388 = sphi 0, %s387
      %s402 = sphi 0, %s388
      %s406 = sphi 0, %s406
      %s408 = sphi 0, %s406
      %s409 = sphi 0, %s408
      %s423 = sphi 0, %s409
      %s427 = sphi 0, %s427
      %s429 = sphi 0, %s427
      %s430 = sphi 0, %s429
      %s444 = sphi 0, %s430
      %s448 = sphi 0, %s448
      %s450 = sphi 0, %s448
      %s451 = sphi 0, %s450
      %s465 = sphi 0, %s451
      %s469 = sphi 0, %s469
      %s471 = sphi 0, %s469
      %s472 = sphi 0, %s471
      %s486 = sphi 0, %s472
      %s490 = sphi 0, %s490
      %s492 = sphi 0, %s490
      %s493 = sphi 0, %s492
      %s507 = sphi 0, %s493
      %s511 = sphi 0, %s511
      %s513 = sphi 0, %s511
      %s514 = sphi 0, %s513
      %s528 = sphi 0, %s514
      %s532 = sphi 0, %s532
      %s534 = sphi 0, %s532
      %s535 = sphi 0, %s534
      %s549 = sphi 0, %s535
      %s553 = sphi 0, %s553
      %s555 = sphi 0, %s553
      %s556 = sphi 0, %s555
      %s570 = sphi 0, %s556
      %s574 = sphi 0, %s574
      %s576 = sphi 0, %s574
      %s577 = sphi 0, %s576
      %s591 = sphi 0, %s577
      %s595 = sphi 0, %s595
      %s597 = sphi 0, %s595
      %s598 = sphi 0, %s597
      %s612 = sphi 0, %s598
      %s616 = sphi 0, %s616
      %s618 = sphi 0, %s616
      %s619 = sphi 0, %s618
      %s633 = sphi 0, %s619
      %s637 = sphi 0, %s637
      %s639 = sphi 0, %s637
      %s640 = sphi 0, %s639
      %s654 = sphi 0, %s640
      %s658 = sphi 0, %s658
      %s660 = sphi 0, %s658
      %s661 = sphi 0, %s660
      %s675 = sphi 0, %s661
      %s679 = sphi 0, %s679
      %s681 = sphi 0, %s679
      %s682 = sphi 0, %s681
      %s696 = sphi 0, %s682
      %s702 = sphi 0, %s704
      %s705 = sphi 0, %s702
      %s706 = sphi 0, %s705
      %s722 = sphi 0, %s706
    $region4: #{_lambda_.1} parent=1 // loop_header_branch
      %81 = sbr.rel (%p79) target = $region8
    $region5: #{_lambda_.1} parent=1 // loop_body
      %s83 = ssub.s32 %s78, 1
      %s84 = ssub.s32 %s78, 2
      %s85 = sadd.s32 %s78, 1
      %s86 = ssub.s32 %s78, %s85
      %p87 = scmp.eq.s32.totalorder %s86, 0
      %s89 = sadd.s32 %s88, 1
      %s90 = scalar_select %p87, %s88, %s89
      %p93 = pneg %p87
      %p94 = scmp.eq.s32.totalorder %s78, 1
      %p95 = por %p93, %p94
      %p96 = scmp.ne.s32.totalorder %s88, %s91
      %p97 = scmp.eq.s32.totalorder %s78, 0
      %p98 = por %p96, %p97
      %p99 = scmp.ne.s32.totalorder %s88, %s91
      %p100 = scmp.eq.s32.totalorder %s83, 1
      %p101 = por %p99, %p100
      %p102 = scmp.ne.s32.totalorder %s91, %s92
      %p103 = scmp.eq.s32.totalorder %s83, 0
      %p104 = por %p102, %p103
      %p105 = scmp.ne.s32.totalorder %s91, %s92
      %p106 = scmp.eq.s32.totalorder %s84, 1
      %p107 = por %p105, %p106
      %p109 = scmp.ne.s32.totalorder %s92, %s108
      %p110 = scmp.eq.s32.totalorder %s84, 0
      %p111 = por %p109, %p110
      %s113 = sadd.s32 %s112, 1
      %p116 = scmp.eq.s32.totalorder %s78, 1
      %p117 = scmp.ne.s32.totalorder %s112, %s114
      %p118 = scmp.eq.s32.totalorder %s78, 0
      %p119 = por %p117, %p118
      %p120 = scmp.ne.s32.totalorder %s112, %s114
      %p121 = scmp.eq.s32.totalorder %s83, 1
      %p122 = por %p120, %p121
      %p123 = scmp.ne.s32.totalorder %s114, %s115
      %p124 = scmp.eq.s32.totalorder %s83, 0
      %p125 = por %p123, %p124
      %p126 = scmp.ne.s32.totalorder %s114, %s115
      %p127 = scmp.eq.s32.totalorder %s84, 1
      %p128 = por %p126, %p127
      %p130 = scmp.ne.s32.totalorder %s115, %s129
      %p131 = scmp.eq.s32.totalorder %s84, 0
      %p132 = por %p130, %p131
      %s134 = sadd.s32 %s133, 1
      %p137 = scmp.eq.s32.totalorder %s78, 1
      %p138 = scmp.ne.s32.totalorder %s133, %s135
      %p139 = scmp.eq.s32.totalorder %s78, 0
      %p140 = por %p138, %p139
      %p141 = scmp.ne.s32.totalorder %s133, %s135
      %p142 = scmp.eq.s32.totalorder %s83, 1
      %p143 = por %p141, %p142
      %p144 = scmp.ne.s32.totalorder %s135, %s136
      %p145 = scmp.eq.s32.totalorder %s83, 0
      %p146 = por %p144, %p145
      %p147 = scmp.ne.s32.totalorder %s135, %s136
      %p148 = scmp.eq.s32.totalorder %s84, 1
      %p149 = por %p147, %p148
      %p151 = scmp.ne.s32.totalorder %s136, %s150
      %p152 = scmp.eq.s32.totalorder %s84, 0
      %p153 = por %p151, %p152
      %s155 = sadd.s32 %s154, 1
      %p158 = scmp.eq.s32.totalorder %s78, 1
      %p159 = scmp.ne.s32.totalorder %s154, %s156
      %p160 = scmp.eq.s32.totalorder %s78, 0
      %p161 = por %p159, %p160
      %p162 = scmp.ne.s32.totalorder %s154, %s156
      %p163 = scmp.eq.s32.totalorder %s83, 1
      %p164 = por %p162, %p163
      %p165 = scmp.ne.s32.totalorder %s156, %s157
      %p166 = scmp.eq.s32.totalorder %s83, 0
      %p167 = por %p165, %p166
      %p168 = scmp.ne.s32.totalorder %s156, %s157
      %p169 = scmp.eq.s32.totalorder %s84, 1
      %p170 = por %p168, %p169
      %p172 = scmp.ne.s32.totalorder %s157, %s171
      %p173 = scmp.eq.s32.totalorder %s84, 0
      %p174 = por %p172, %p173
      %s176 = sadd.s32 %s175, 1
      %p179 = scmp.eq.s32.totalorder %s78, 1
      %p180 = scmp.ne.s32.totalorder %s175, %s177
      %p181 = scmp.eq.s32.totalorder %s78, 0
      %p182 = por %p180, %p181
      %p183 = scmp.ne.s32.totalorder %s175, %s177
      %p184 = scmp.eq.s32.totalorder %s83, 1
      %p185 = por %p183, %p184
      %p186 = scmp.ne.s32.totalorder %s177, %s178
      %p187 = scmp.eq.s32.totalorder %s83, 0
      %p188 = por %p186, %p187
      %p189 = scmp.ne.s32.totalorder %s177, %s178
      %p190 = scmp.eq.s32.totalorder %s84, 1
      %p191 = por %p189, %p190
      %p193 = scmp.ne.s32.totalorder %s178, %s192
      %p194 = scmp.eq.s32.totalorder %s84, 0
      %p195 = por %p193, %p194
      %s197 = sadd.s32 %s196, 1
      %p200 = scmp.eq.s32.totalorder %s78, 1
      %p201 = scmp.ne.s32.totalorder %s196, %s198
      %p202 = scmp.eq.s32.totalorder %s78, 0
      %p203 = por %p201, %p202
      %p204 = scmp.ne.s32.totalorder %s196, %s198
      %p205 = scmp.eq.s32.totalorder %s83, 1
      %p206 = por %p204, %p205
      %p207 = scmp.ne.s32.totalorder %s198, %s199
      %p208 = scmp.eq.s32.totalorder %s83, 0
      %p209 = por %p207, %p208
      %p210 = scmp.ne.s32.totalorder %s198, %s199
      %p211 = scmp.eq.s32.totalorder %s84, 1
      %p212 = por %p210, %p211
      %p214 = scmp.ne.s32.totalorder %s199, %s213
      %p215 = scmp.eq.s32.totalorder %s84, 0
      %p216 = por %p214, %p215
      %s218 = sadd.s32 %s217, 1
      %p221 = scmp.eq.s32.totalorder %s78, 1
      %p222 = scmp.ne.s32.totalorder %s217, %s219
      %p223 = scmp.eq.s32.totalorder %s78, 0
      %p224 = por %p222, %p223
      %p225 = scmp.ne.s32.totalorder %s217, %s219
      %p226 = scmp.eq.s32.totalorder %s83, 1
      %p227 = por %p225, %p226
      %p228 = scmp.ne.s32.totalorder %s219, %s220
      %p229 = scmp.eq.s32.totalorder %s83, 0
      %p230 = por %p228, %p229
      %p231 = scmp.ne.s32.totalorder %s219, %s220
      %p232 = scmp.eq.s32.totalorder %s84, 1
      %p233 = por %p231, %p232
      %p235 = scmp.ne.s32.totalorder %s220, %s234
      %p236 = scmp.eq.s32.totalorder %s84, 0
      %p237 = por %p235, %p236
      %s239 = sadd.s32 %s238, 1
      %p242 = scmp.eq.s32.totalorder %s78, 1
      %p243 = scmp.ne.s32.totalorder %s238, %s240
      %p244 = scmp.eq.s32.totalorder %s78, 0
      %p245 = por %p243, %p244
      %p246 = scmp.ne.s32.totalorder %s238, %s240
      %p247 = scmp.eq.s32.totalorder %s83, 1
      %p248 = por %p246, %p247
      %p249 = scmp.ne.s32.totalorder %s240, %s241
      %p250 = scmp.eq.s32.totalorder %s83, 0
      %p251 = por %p249, %p250
      %p252 = scmp.ne.s32.totalorder %s240, %s241
      %p253 = scmp.eq.s32.totalorder %s84, 1
      %p254 = por %p252, %p253
      %p256 = scmp.ne.s32.totalorder %s241, %s255
      %p257 = scmp.eq.s32.totalorder %s84, 0
      %p258 = por %p256, %p257
      %s260 = sadd.s32 %s259, 1
      %p263 = scmp.eq.s32.totalorder %s78, 1
      %p264 = scmp.ne.s32.totalorder %s259, %s261
      %p265 = scmp.eq.s32.totalorder %s78, 0
      %p266 = por %p264, %p265
      %p267 = scmp.ne.s32.totalorder %s259, %s261
      %p268 = scmp.eq.s32.totalorder %s83, 1
      %p269 = por %p267, %p268
      %p270 = scmp.ne.s32.totalorder %s261, %s262
      %p271 = scmp.eq.s32.totalorder %s83, 0
      %p272 = por %p270, %p271
      %p273 = scmp.ne.s32.totalorder %s261, %s262
      %p274 = scmp.eq.s32.totalorder %s84, 1
      %p275 = por %p273, %p274
      %p277 = scmp.ne.s32.totalorder %s262, %s276
      %p278 = scmp.eq.s32.totalorder %s84, 0
      %p279 = por %p277, %p278
      %s281 = sadd.s32 %s280, 1
      %p284 = scmp.eq.s32.totalorder %s78, 1
      %p285 = scmp.ne.s32.totalorder %s280, %s282
      %p286 = scmp.eq.s32.totalorder %s78, 0
      %p287 = por %p285, %p286
      %p288 = scmp.ne.s32.totalorder %s280, %s282
      %p289 = scmp.eq.s32.totalorder %s83, 1
      %p290 = por %p288, %p289
      %p291 = scmp.ne.s32.totalorder %s282, %s283
      %p292 = scmp.eq.s32.totalorder %s83, 0
      %p293 = por %p291, %p292
      %p294 = scmp.ne.s32.totalorder %s282, %s283
      %p295 = scmp.eq.s32.totalorder %s84, 1
      %p296 = por %p294, %p295
      %p298 = scmp.ne.s32.totalorder %s283, %s297
      %p299 = scmp.eq.s32.totalorder %s84, 0
      %p300 = por %p298, %p299
      %s302 = sadd.s32 %s301, 1
      %p305 = scmp.eq.s32.totalorder %s78, 1
      %p306 = scmp.ne.s32.totalorder %s301, %s303
      %p307 = scmp.eq.s32.totalorder %s78, 0
      %p308 = por %p306, %p307
      %p309 = scmp.ne.s32.totalorder %s301, %s303
      %p310 = scmp.eq.s32.totalorder %s83, 1
      %p311 = por %p309, %p310
      %p312 = scmp.ne.s32.totalorder %s303, %s304
      %p313 = scmp.eq.s32.totalorder %s83, 0
      %p314 = por %p312, %p313
      %p315 = scmp.ne.s32.totalorder %s303, %s304
      %p316 = scmp.eq.s32.totalorder %s84, 1
      %p317 = por %p315, %p316
      %p319 = scmp.ne.s32.totalorder %s304, %s318
      %p320 = scmp.eq.s32.totalorder %s84, 0
      %p321 = por %p319, %p320
      %s323 = sadd.s32 %s322, 1
      %p326 = scmp.eq.s32.totalorder %s78, 1
      %p327 = scmp.ne.s32.totalorder %s322, %s324
      %p328 = scmp.eq.s32.totalorder %s78, 0
      %p329 = por %p327, %p328
      %p330 = scmp.ne.s32.totalorder %s322, %s324
      %p331 = scmp.eq.s32.totalorder %s83, 1
      %p332 = por %p330, %p331
      %p333 = scmp.ne.s32.totalorder %s324, %s325
      %p334 = scmp.eq.s32.totalorder %s83, 0
      %p335 = por %p333, %p334
      %p336 = scmp.ne.s32.totalorder %s324, %s325
      %p337 = scmp.eq.s32.totalorder %s84, 1
      %p338 = por %p336, %p337
      %p340 = scmp.ne.s32.totalorder %s325, %s339
      %p341 = scmp.eq.s32.totalorder %s84, 0
      %p342 = por %p340, %p341
      %s344 = sadd.s32 %s343, 1
      %p347 = scmp.eq.s32.totalorder %s78, 1
      %p348 = scmp.ne.s32.totalorder %s343, %s345
      %p349 = scmp.eq.s32.totalorder %s78, 0
      %p350 = por %p348, %p349
      %p351 = scmp.ne.s32.totalorder %s343, %s345
      %p352 = scmp.eq.s32.totalorder %s83, 1
      %p353 = por %p351, %p352
      %p354 = scmp.ne.s32.totalorder %s345, %s346
      %p355 = scmp.eq.s32.totalorder %s83, 0
      %p356 = por %p354, %p355
      %p357 = scmp.ne.s32.totalorder %s345, %s346
      %p358 = scmp.eq.s32.totalorder %s84, 1
      %p359 = por %p357, %p358
      %p361 = scmp.ne.s32.totalorder %s346, %s360
      %p362 = scmp.eq.s32.totalorder %s84, 0
      %p363 = por %p361, %p362
      %s365 = sadd.s32 %s364, 1
      %p368 = scmp.eq.s32.totalorder %s78, 1
      %p369 = scmp.ne.s32.totalorder %s364, %s366
      %p370 = scmp.eq.s32.totalorder %s78, 0
      %p371 = por %p369, %p370
      %p372 = scmp.ne.s32.totalorder %s364, %s366
      %p373 = scmp.eq.s32.totalorder %s83, 1
      %p374 = por %p372, %p373
      %p375 = scmp.ne.s32.totalorder %s366, %s367
      %p376 = scmp.eq.s32.totalorder %s83, 0
      %p377 = por %p375, %p376
      %p378 = scmp.ne.s32.totalorder %s366, %s367
      %p379 = scmp.eq.s32.totalorder %s84, 1
      %p380 = por %p378, %p379
      %p382 = scmp.ne.s32.totalorder %s367, %s381
      %p383 = scmp.eq.s32.totalorder %s84, 0
      %p384 = por %p382, %p383
      %s386 = sadd.s32 %s385, 1
      %p389 = scmp.eq.s32.totalorder %s78, 1
      %p390 = scmp.ne.s32.totalorder %s385, %s387
      %p391 = scmp.eq.s32.totalorder %s78, 0
      %p392 = por %p390, %p391
      %p393 = scmp.ne.s32.totalorder %s385, %s387
      %p394 = scmp.eq.s32.totalorder %s83, 1
      %p395 = por %p393, %p394
      %p396 = scmp.ne.s32.totalorder %s387, %s388
      %p397 = scmp.eq.s32.totalorder %s83, 0
      %p398 = por %p396, %p397
      %p399 = scmp.ne.s32.totalorder %s387, %s388
      %p400 = scmp.eq.s32.totalorder %s84, 1
      %p401 = por %p399, %p400
      %p403 = scmp.ne.s32.totalorder %s388, %s402
      %p404 = scmp.eq.s32.totalorder %s84, 0
      %p405 = por %p403, %p404
      %s407 = sadd.s32 %s406, 1
      %p410 = scmp.eq.s32.totalorder %s78, 1
      %p411 = scmp.ne.s32.totalorder %s406, %s408
      %p412 = scmp.eq.s32.totalorder %s78, 0
      %p413 = por %p411, %p412
      %p414 = scmp.ne.s32.totalorder %s406, %s408
      %p415 = scmp.eq.s32.totalorder %s83, 1
      %p416 = por %p414, %p415
      %p417 = scmp.ne.s32.totalorder %s408, %s409
      %p418 = scmp.eq.s32.totalorder %s83, 0
      %p419 = por %p417, %p418
      %p420 = scmp.ne.s32.totalorder %s408, %s409
      %p421 = scmp.eq.s32.totalorder %s84, 1
      %p422 = por %p420, %p421
      %p424 = scmp.ne.s32.totalorder %s409, %s423
      %p425 = scmp.eq.s32.totalorder %s84, 0
      %p426 = por %p424, %p425
      %s428 = sadd.s32 %s427, 1
      %p431 = scmp.eq.s32.totalorder %s78, 1
      %p432 = scmp.ne.s32.totalorder %s427, %s429
      %p433 = scmp.eq.s32.totalorder %s78, 0
      %p434 = por %p432, %p433
      %p435 = scmp.ne.s32.totalorder %s427, %s429
      %p436 = scmp.eq.s32.totalorder %s83, 1
      %p437 = por %p435, %p436
      %p438 = scmp.ne.s32.totalorder %s429, %s430
      %p439 = scmp.eq.s32.totalorder %s83, 0
      %p440 = por %p438, %p439
      %p441 = scmp.ne.s32.totalorder %s429, %s430
      %p442 = scmp.eq.s32.totalorder %s84, 1
      %p443 = por %p441, %p442
      %p445 = scmp.ne.s32.totalorder %s430, %s444
      %p446 = scmp.eq.s32.totalorder %s84, 0
      %p447 = por %p445, %p446
      %s449 = sadd.s32 %s448, 1
      %p452 = scmp.eq.s32.totalorder %s78, 1
      %p453 = scmp.ne.s32.totalorder %s448, %s450
      %p454 = scmp.eq.s32.totalorder %s78, 0
      %p455 = por %p453, %p454
      %p456 = scmp.ne.s32.totalorder %s448, %s450
      %p457 = scmp.eq.s32.totalorder %s83, 1
      %p458 = por %p456, %p457
      %p459 = scmp.ne.s32.totalorder %s450, %s451
      %p460 = scmp.eq.s32.totalorder %s83, 0
      %p461 = por %p459, %p460
      %p462 = scmp.ne.s32.totalorder %s450, %s451
      %p463 = scmp.eq.s32.totalorder %s84, 1
      %p464 = por %p462, %p463
      %p466 = scmp.ne.s32.totalorder %s451, %s465
      %p467 = scmp.eq.s32.totalorder %s84, 0
      %p468 = por %p466, %p467
      %s470 = sadd.s32 %s469, 1
      %p473 = scmp.eq.s32.totalorder %s78, 1
      %p474 = scmp.ne.s32.totalorder %s469, %s471
      %p475 = scmp.eq.s32.totalorder %s78, 0
      %p476 = por %p474, %p475
      %p477 = scmp.ne.s32.totalorder %s469, %s471
      %p478 = scmp.eq.s32.totalorder %s83, 1
      %p479 = por %p477, %p478
      %p480 = scmp.ne.s32.totalorder %s471, %s472
      %p481 = scmp.eq.s32.totalorder %s83, 0
      %p482 = por %p480, %p481
      %p483 = scmp.ne.s32.totalorder %s471, %s472
      %p484 = scmp.eq.s32.totalorder %s84, 1
      %p485 = por %p483, %p484
      %p487 = scmp.ne.s32.totalorder %s472, %s486
      %p488 = scmp.eq.s32.totalorder %s84, 0
      %p489 = por %p487, %p488
      %s491 = sadd.s32 %s490, 1
      %p494 = scmp.eq.s32.totalorder %s78, 1
      %p495 = scmp.ne.s32.totalorder %s490, %s492
      %p496 = scmp.eq.s32.totalorder %s78, 0
      %p497 = por %p495, %p496
      %p498 = scmp.ne.s32.totalorder %s490, %s492
      %p499 = scmp.eq.s32.totalorder %s83, 1
      %p500 = por %p498, %p499
      %p501 = scmp.ne.s32.totalorder %s492, %s493
      %p502 = scmp.eq.s32.totalorder %s83, 0
      %p503 = por %p501, %p502
      %p504 = scmp.ne.s32.totalorder %s492, %s493
      %p505 = scmp.eq.s32.totalorder %s84, 1
      %p506 = por %p504, %p505
      %p508 = scmp.ne.s32.totalorder %s493, %s507
      %p509 = scmp.eq.s32.totalorder %s84, 0
      %p510 = por %p508, %p509
      %s512 = sadd.s32 %s511, 1
      %p515 = scmp.eq.s32.totalorder %s78, 1
      %p516 = scmp.ne.s32.totalorder %s511, %s513
      %p517 = scmp.eq.s32.totalorder %s78, 0
      %p518 = por %p516, %p517
      %p519 = scmp.ne.s32.totalorder %s511, %s513
      %p520 = scmp.eq.s32.totalorder %s83, 1
      %p521 = por %p519, %p520
      %p522 = scmp.ne.s32.totalorder %s513, %s514
      %p523 = scmp.eq.s32.totalorder %s83, 0
      %p524 = por %p522, %p523
      %p525 = scmp.ne.s32.totalorder %s513, %s514
      %p526 = scmp.eq.s32.totalorder %s84, 1
      %p527 = por %p525, %p526
      %p529 = scmp.ne.s32.totalorder %s514, %s528
      %p530 = scmp.eq.s32.totalorder %s84, 0
      %p531 = por %p529, %p530
      %s533 = sadd.s32 %s532, 1
      %p536 = scmp.eq.s32.totalorder %s78, 1
      %p537 = scmp.ne.s32.totalorder %s532, %s534
      %p538 = scmp.eq.s32.totalorder %s78, 0
      %p539 = por %p537, %p538
      %p540 = scmp.ne.s32.totalorder %s532, %s534
      %p541 = scmp.eq.s32.totalorder %s83, 1
      %p542 = por %p540, %p541
      %p543 = scmp.ne.s32.totalorder %s534, %s535
      %p544 = scmp.eq.s32.totalorder %s83, 0
      %p545 = por %p543, %p544
      %p546 = scmp.ne.s32.totalorder %s534, %s535
      %p547 = scmp.eq.s32.totalorder %s84, 1
      %p548 = por %p546, %p547
      %p550 = scmp.ne.s32.totalorder %s535, %s549
      %p551 = scmp.eq.s32.totalorder %s84, 0
      %p552 = por %p550, %p551
      %s554 = sadd.s32 %s553, 1
      %p557 = scmp.eq.s32.totalorder %s78, 1
      %p558 = scmp.ne.s32.totalorder %s553, %s555
      %p559 = scmp.eq.s32.totalorder %s78, 0
      %p560 = por %p558, %p559
      %p561 = scmp.ne.s32.totalorder %s553, %s555
      %p562 = scmp.eq.s32.totalorder %s83, 1
      %p563 = por %p561, %p562
      %p564 = scmp.ne.s32.totalorder %s555, %s556
      %p565 = scmp.eq.s32.totalorder %s83, 0
      %p566 = por %p564, %p565
      %p567 = scmp.ne.s32.totalorder %s555, %s556
      %p568 = scmp.eq.s32.totalorder %s84, 1
      %p569 = por %p567, %p568
      %p571 = scmp.ne.s32.totalorder %s556, %s570
      %p572 = scmp.eq.s32.totalorder %s84, 0
      %p573 = por %p571, %p572
      %s575 = sadd.s32 %s574, 1
      %p578 = scmp.eq.s32.totalorder %s78, 1
      %p579 = scmp.ne.s32.totalorder %s574, %s576
      %p580 = scmp.eq.s32.totalorder %s78, 0
      %p581 = por %p579, %p580
      %p582 = scmp.ne.s32.totalorder %s574, %s576
      %p583 = scmp.eq.s32.totalorder %s83, 1
      %p584 = por %p582, %p583
      %p585 = scmp.ne.s32.totalorder %s576, %s577
      %p586 = scmp.eq.s32.totalorder %s83, 0
      %p587 = por %p585, %p586
      %p588 = scmp.ne.s32.totalorder %s576, %s577
      %p589 = scmp.eq.s32.totalorder %s84, 1
      %p590 = por %p588, %p589
      %p592 = scmp.ne.s32.totalorder %s577, %s591
      %p593 = scmp.eq.s32.totalorder %s84, 0
      %p594 = por %p592, %p593
      %s596 = sadd.s32 %s595, 1
      %p599 = scmp.eq.s32.totalorder %s78, 1
      %p600 = scmp.ne.s32.totalorder %s595, %s597
      %p601 = scmp.eq.s32.totalorder %s78, 0
      %p602 = por %p600, %p601
      %p603 = scmp.ne.s32.totalorder %s595, %s597
      %p604 = scmp.eq.s32.totalorder %s83, 1
      %p605 = por %p603, %p604
      %p606 = scmp.ne.s32.totalorder %s597, %s598
      %p607 = scmp.eq.s32.totalorder %s83, 0
      %p608 = por %p606, %p607
      %p609 = scmp.ne.s32.totalorder %s597, %s598
      %p610 = scmp.eq.s32.totalorder %s84, 1
      %p611 = por %p609, %p610
      %p613 = scmp.ne.s32.totalorder %s598, %s612
      %p614 = scmp.eq.s32.totalorder %s84, 0
      %p615 = por %p613, %p614
      %s617 = sadd.s32 %s616, 1
      %p620 = scmp.eq.s32.totalorder %s78, 1
      %p621 = scmp.ne.s32.totalorder %s616, %s618
      %p622 = scmp.eq.s32.totalorder %s78, 0
      %p623 = por %p621, %p622
      %p624 = scmp.ne.s32.totalorder %s616, %s618
      %p625 = scmp.eq.s32.totalorder %s83, 1
      %p626 = por %p624, %p625
      %p627 = scmp.ne.s32.totalorder %s618, %s619
      %p628 = scmp.eq.s32.totalorder %s83, 0
      %p629 = por %p627, %p628
      %p630 = scmp.ne.s32.totalorder %s618, %s619
      %p631 = scmp.eq.s32.totalorder %s84, 1
      %p632 = por %p630, %p631
      %p634 = scmp.ne.s32.totalorder %s619, %s633
      %p635 = scmp.eq.s32.totalorder %s84, 0
      %p636 = por %p634, %p635
      %s638 = sadd.s32 %s637, 1
      %p641 = scmp.eq.s32.totalorder %s78, 1
      %p642 = scmp.ne.s32.totalorder %s637, %s639
      %p643 = scmp.eq.s32.totalorder %s78, 0
      %p644 = por %p642, %p643
      %p645 = scmp.ne.s32.totalorder %s637, %s639
      %p646 = scmp.eq.s32.totalorder %s83, 1
      %p647 = por %p645, %p646
      %p648 = scmp.ne.s32.totalorder %s639, %s640
      %p649 = scmp.eq.s32.totalorder %s83, 0
      %p650 = por %p648, %p649
      %p651 = scmp.ne.s32.totalorder %s639, %s640
      %p652 = scmp.eq.s32.totalorder %s84, 1
      %p653 = por %p651, %p652
      %p655 = scmp.ne.s32.totalorder %s640, %s654
      %p656 = scmp.eq.s32.totalorder %s84, 0
      %p657 = por %p655, %p656
      %s659 = sadd.s32 %s658, 1
      %p662 = scmp.eq.s32.totalorder %s78, 1
      %p663 = scmp.ne.s32.totalorder %s658, %s660
      %p664 = scmp.eq.s32.totalorder %s78, 0
      %p665 = por %p663, %p664
      %p666 = scmp.ne.s32.totalorder %s658, %s660
      %p667 = scmp.eq.s32.totalorder %s83, 1
      %p668 = por %p666, %p667
      %p669 = scmp.ne.s32.totalorder %s660, %s661
      %p670 = scmp.eq.s32.totalorder %s83, 0
      %p671 = por %p669, %p670
      %p672 = scmp.ne.s32.totalorder %s660, %s661
      %p673 = scmp.eq.s32.totalorder %s84, 1
      %p674 = por %p672, %p673
      %p676 = scmp.ne.s32.totalorder %s661, %s675
      %p677 = scmp.eq.s32.totalorder %s84, 0
      %p678 = por %p676, %p677
      %s680 = sadd.s32 %s679, 1
      %p683 = scmp.eq.s32.totalorder %s78, 1
      %p684 = scmp.ne.s32.totalorder %s679, %s681
      %p685 = scmp.eq.s32.totalorder %s78, 0
      %p686 = por %p684, %p685
      %p687 = scmp.ne.s32.totalorder %s679, %s681
      %p688 = scmp.eq.s32.totalorder %s83, 1
      %p689 = por %p687, %p688
      %p690 = scmp.ne.s32.totalorder %s681, %s682
      %p691 = scmp.eq.s32.totalorder %s83, 0
      %p692 = por %p690, %p691
      %p693 = scmp.ne.s32.totalorder %s681, %s682
      %p694 = scmp.eq.s32.totalorder %s84, 1
      %p695 = por %p693, %p694
      %p697 = scmp.ne.s32.totalorder %s682, %s696
      %p698 = scmp.eq.s32.totalorder %s84, 0
      %p699 = por %p697, %p698
      %s700 = ssub.s32 %s78, %s85
      %p701 = scmp.eq.s32.totalorder %s700, 0
      %s703 = sadd.s32 %s702, 1
      %s704 = scalar_select %p701, %s702, %s703
      %p707 = pneg %p701
      %p708 = scmp.eq.s32.totalorder %s78, 1
      %p709 = por %p707, %p708
      %p710 = scmp.ne.s32.totalorder %s702, %s705
      %p711 = scmp.eq.s32.totalorder %s78, 0
      %p712 = por %p710, %p711
      %p713 = scmp.ne.s32.totalorder %s702, %s705
      %p714 = scmp.eq.s32.totalorder %s83, 1
      %p715 = por %p713, %p714
      %p716 = scmp.ne.s32.totalorder %s705, %s706
      %p717 = scmp.eq.s32.totalorder %s83, 0
      %p718 = por %p716, %p717
      %p719 = scmp.ne.s32.totalorder %s705, %s706
      %p720 = scmp.eq.s32.totalorder %s84, 1
      %p721 = por %p719, %p720
      %p723 = scmp.ne.s32.totalorder %s706, %s722
      %p724 = scmp.eq.s32.totalorder %s84, 0
      %p725 = por %p723, %p724
      %p726 = scmp.le.s32.totalorder 1, %s78
      %p727 = scmp.lt.s32.totalorder %s78, 3
      %p728 = pnand %p726, %p727
      %p729 = pneg %p728
      // Predicated region
      $region9: #{_lambda_.1} parent=5 // pred_check
        _
      $region10: #{_lambda_.1} parent=5 // pred_check_branch
        %731 = sbr.rel (%p728) target = $region12
      $region11: #{_lambda_.1} parent=5 // pred_region
        %s732 = ssub.s32 %s78, 1
        // Predicated region
        $region13: #{_lambda_.1} parent=11 // pred_check
          %p733 = pneg %p125
        $region14: #{_lambda_.1} parent=11 // pred_check_branch
          %735 = sbr.rel (%p733) target = $region16
        $region15: #{_lambda_.1} parent=11 // pred_region
          _
        $region16: #{_lambda_.1} parent=11 // pred_fallthru
          _
        // Predicated region
        $region17: #{_lambda_.1} parent=11 // pred_check
          %p736 = pneg %p146
        $region18: #{_lambda_.1} parent=11 // pred_check_branch
          %738 = sbr.rel (%p736) target = $region20
        $region19: #{_lambda_.1} parent=11 // pred_region
          _
        $region20: #{_lambda_.1} parent=11 // pred_fallthru
          _
        // Predicated region
        $region21: #{_lambda_.1} parent=11 // pred_check
          %p739 = pneg %p167
        $region22: #{_lambda_.1} parent=11 // pred_check_branch
          %741 = sbr.rel (%p739) target = $region24
        $region23: #{_lambda_.1} parent=11 // pred_region
          %s743 = ssub.s32 768, 768
          %744 = vsyncadd [#allocation11], %s743
          %s745 = sshll.u32 [#allocation10], 4
          %s746 = int_to_ptr.vmem [resolvable:$true] %s745
          %751 = dma.hbm_to_vmem [thread:$0]  %s7, 768, %s746, [#allocation11], 64, 64, 4
        $region24: #{_lambda_.1} parent=11 // pred_fallthru
          _
        // Predicated region
        $region25: #{_lambda_.1} parent=11 // pred_check
          %p752 = pneg %p188
        $region26: #{_lambda_.1} parent=11 // pred_check_branch
          %754 = sbr.rel (%p752) target = $region28
        $region27: #{_lambda_.1} parent=11 // pred_region
          _
        $region28: #{_lambda_.1} parent=11 // pred_fallthru
          _
        // Predicated region
        $region29: #{_lambda_.1} parent=11 // pred_check
          %p755 = pneg %p209
        $region30: #{_lambda_.1} parent=11 // pred_check_branch
          %757 = sbr.rel (%p755) target = $region32
        $region31: #{_lambda_.1} parent=11 // pred_region
          %s759 = ssub.s32 16, 16
          %760 = vsyncadd [#allocation14], %s759
          %s762 = sshll.u32 [#allocation13], 4
          %s763 = int_to_ptr.vmem [resolvable:$true] %s762
          %765 = dma.hbm_to_vmem [thread:$0]  %s11, 16, %s763, [#allocation14]
        $region32: #{_lambda_.1} parent=11 // pred_fallthru
          _
        // Predicated region
        $region33: #{_lambda_.1} parent=11 // pred_check
          %p766 = pneg %p230
        $region34: #{_lambda_.1} parent=11 // pred_check_branch
          %768 = sbr.rel (%p766) target = $region36
        $region35: #{_lambda_.1} parent=11 // pred_region
          %s770 = ssub.s32 16, 16
          %771 = vsyncadd [#allocation14], %s770
          %s773 = sshll.u32 [#allocation15], 4
          %s774 = int_to_ptr.vmem [resolvable:$true] %s773
          %776 = dma.hbm_to_vmem [thread:$0]  %s13, 16, %s774, [#allocation14]
        $region36: #{_lambda_.1} parent=11 // pred_fallthru
          _
        // Predicated region
        $region37: #{_lambda_.1} parent=11 // pred_check
          %p777 = pneg %p251
        $region38: #{_lambda_.1} parent=11 // pred_check_branch
          %779 = sbr.rel (%p777) target = $region40
        $region39: #{_lambda_.1} parent=11 // pred_region
          %s781 = ssub.s32 768, 768
          %782 = vsyncadd [#allocation17], %s781
          %s783 = sshll.u32 [#allocation16], 4
          %s784 = int_to_ptr.vmem [resolvable:$true] %s783
          %789 = dma.hbm_to_vmem [thread:$0]  %s15, 768, %s784, [#allocation17], 64, 64, 4
        $region40: #{_lambda_.1} parent=11 // pred_fallthru
          _
        // Predicated region
        $region41: #{_lambda_.1} parent=11 // pred_check
          %p790 = pneg %p272
        $region42: #{_lambda_.1} parent=11 // pred_check_branch
          %792 = sbr.rel (%p790) target = $region44
        $region43: #{_lambda_.1} parent=11 // pred_region
          %s794 = ssub.s32 16, 16
          %795 = vsyncadd [#allocation17], %s794
          %s797 = sshll.u32 [#allocation18], 4
          %s798 = int_to_ptr.vmem [resolvable:$true] %s797
          %800 = dma.hbm_to_vmem [thread:$0]  %s17, 16, %s798, [#allocation17]
        $region44: #{_lambda_.1} parent=11 // pred_fallthru
          _
        // Predicated region
        $region45: #{_lambda_.1} parent=11 // pred_check
          %p801 = pneg %p293
        $region46: #{_lambda_.1} parent=11 // pred_check_branch
          %803 = sbr.rel (%p801) target = $region48
        $region47: #{_lambda_.1} parent=11 // pred_region
          %s805 = ssub.s32 1536, 1536
          %806 = vsyncadd [#allocation20], %s805
          %s807 = sshll.u32 [#allocation19], 4
          %s808 = int_to_ptr.vmem [resolvable:$true] %s807
          %813 = dma.hbm_to_vmem [thread:$0]  %s19, 1536, %s808, [#allocation20], 64, 64, 4
        $region48: #{_lambda_.1} parent=11 // pred_fallthru
          _
        // Predicated region
        $region49: #{_lambda_.1} parent=11 // pred_check
          %p814 = pneg %p314
        $region50: #{_lambda_.1} parent=11 // pred_check_branch
          %816 = sbr.rel (%p814) target = $region52
        $region51: #{_lambda_.1} parent=11 // pred_region
          %s818 = ssub.s32 16, 16
          %819 = vsyncadd [#allocation20], %s818
          %s821 = sshll.u32 [#allocation21], 4
          %s822 = int_to_ptr.vmem [resolvable:$true] %s821
          %824 = dma.hbm_to_vmem [thread:$0]  %s21, 16, %s822, [#allocation20]
        $region52: #{_lambda_.1} parent=11 // pred_fallthru
          _
        // Predicated region
        $region53: #{_lambda_.1} parent=11 // pred_check
          %p825 = pneg %p335
        $region54: #{_lambda_.1} parent=11 // pred_check_branch
          %827 = sbr.rel (%p825) target = $region56
        $region55: #{_lambda_.1} parent=11 // pred_region
          %s829 = ssub.s32 256, 256
          %830 = vsyncadd [#allocation23], %s829
          %s831 = sshll.u32 [#allocation22], 4
          %s832 = int_to_ptr.vmem [resolvable:$true] %s831
          %837 = dma.hbm_to_vmem [thread:$0]  %s23, 256, %s832, [#allocation23], 64, 64, 4
        $region56: #{_lambda_.1} parent=11 // pred_fallthru
          _
        // Predicated region
        $region57: #{_lambda_.1} parent=11 // pred_check
          %p838 = pneg %p356
        $region58: #{_lambda_.1} parent=11 // pred_check_branch
          %840 = sbr.rel (%p838) target = $region60
        $region59: #{_lambda_.1} parent=11 // pred_region
          %s842 = ssub.s32 16, 16
          %843 = vsyncadd [#allocation23], %s842
          %s845 = sshll.u32 [#allocation24], 4
          %s846 = int_to_ptr.vmem [resolvable:$true] %s845
          %848 = dma.hbm_to_vmem [thread:$0]  %s25, 16, %s846, [#allocation23]
        $region60: #{_lambda_.1} parent=11 // pred_fallthru
          _
        // Predicated region
        $region61: #{_lambda_.1} parent=11 // pred_check
          %p849 = pneg %p377
        $region62: #{_lambda_.1} parent=11 // pred_check_branch
          %851 = sbr.rel (%p849) target = $region64
        $region63: #{_lambda_.1} parent=11 // pred_region
          %s853 = ssub.s32 1536, 1536
          %854 = vsyncadd [#allocation26], %s853
          %s855 = sshll.u32 [#allocation25], 4
          %s856 = int_to_ptr.vmem [resolvable:$true] %s855
          %861 = dma.hbm_to_vmem [thread:$0]  %s27, 1536, %s856, [#allocation26], 64, 64, 4
        $region64: #{_lambda_.1} parent=11 // pred_fallthru
          _
        // Predicated region
        $region65: #{_lambda_.1} parent=11 // pred_check
          %p862 = pneg %p398
        $region66: #{_lambda_.1} parent=11 // pred_check_branch
          %864 = sbr.rel (%p862) target = $region68
        $region67: #{_lambda_.1} parent=11 // pred_region
          %s866 = ssub.s32 16, 16
          %867 = vsyncadd [#allocation26], %s866
          %s869 = sshll.u32 [#allocation27], 4
          %s870 = int_to_ptr.vmem [resolvable:$true] %s869
          %872 = dma.hbm_to_vmem [thread:$0]  %s29, 16, %s870, [#allocation26]
        $region68: #{_lambda_.1} parent=11 // pred_fallthru
          _
        // Predicated region
        $region69: #{_lambda_.1} parent=11 // pred_check
          %p873 = pneg %p419
        $region70: #{_lambda_.1} parent=11 // pred_check_branch
          %875 = sbr.rel (%p873) target = $region72
        $region71: #{_lambda_.1} parent=11 // pred_region
          %s877 = ssub.s32 3072, 3072
          %878 = vsyncadd [#allocation29], %s877
          %s879 = sshll.u32 [#allocation28], 4
          %s880 = int_to_ptr.vmem [resolvable:$true] %s879
          %885 = dma.hbm_to_vmem [thread:$0]  %s31, 3072, %s880, [#allocation29], 64, 64, 4
        $region72: #{_lambda_.1} parent=11 // pred_fallthru
          _
        // Predicated region
        $region73: #{_lambda_.1} parent=11 // pred_check
          %p886 = pneg %p440
        $region74: #{_lambda_.1} parent=11 // pred_check_branch
          %888 = sbr.rel (%p886) target = $region76
        $region75: #{_lambda_.1} parent=11 // pred_region
          %s890 = ssub.s32 16, 16
          %891 = vsyncadd [#allocation29], %s890
          %s893 = sshll.u32 [#allocation30], 4
          %s894 = int_to_ptr.vmem [resolvable:$true] %s893
          %896 = dma.hbm_to_vmem [thread:$0]  %s33, 16, %s894, [#allocation29]
        $region76: #{_lambda_.1} parent=11 // pred_fallthru
          _
        // Predicated region
        $region77: #{_lambda_.1} parent=11 // pred_check
          %p897 = pneg %p461
        $region78: #{_lambda_.1} parent=11 // pred_check_branch
          %899 = sbr.rel (%p897) target = $region80
        $region79: #{_lambda_.1} parent=11 // pred_region
          _
        $region80: #{_lambda_.1} parent=11 // pred_fallthru
          _
        // Predicated region
        $region81: #{_lambda_.1} parent=11 // pred_check
          %p900 = pneg %p482
        $region82: #{_lambda_.1} parent=11 // pred_check_branch
          %902 = sbr.rel (%p900) target = $region84
        $region83: #{_lambda_.1} parent=11 // pred_region
          %s904 = ssub.s32 16, 16
          %905 = vsyncadd [#allocation32], %s904
          %s907 = sshll.u32 [#allocation31], 4
          %s908 = int_to_ptr.vmem [resolvable:$true] %s907
          %910 = dma.hbm_to_vmem [thread:$0]  %s37, 16, %s908, [#allocation32]
        $region84: #{_lambda_.1} parent=11 // pred_fallthru
          _
        // Predicated region
        $region85: #{_lambda_.1} parent=11 // pred_check
          %p911 = pneg %p503
        $region86: #{_lambda_.1} parent=11 // pred_check_branch
          %913 = sbr.rel (%p911) target = $region88
        $region87: #{_lambda_.1} parent=11 // pred_region
          %s915 = ssub.s32 6144, 6144
          %916 = vsyncadd [#allocation32], %s915
          %s917 = sshll.u32 [#allocation33], 4
          %s918 = int_to_ptr.vmem [resolvable:$true] %s917
          %923 = dma.hbm_to_vmem [thread:$0]  %s39, 6144, %s918, [#allocation32], 128, 128, 8
        $region88: #{_lambda_.1} parent=11 // pred_fallthru
          _
        // Predicated region
        $region89: #{_lambda_.1} parent=11 // pred_check
          %p924 = pneg %p524
        $region90: #{_lambda_.1} parent=11 // pred_check_branch
          %926 = sbr.rel (%p924) target = $region92
        $region91: #{_lambda_.1} parent=11 // pred_region
          _
        $region92: #{_lambda_.1} parent=11 // pred_fallthru
          _
        // Predicated region
        $region93: #{_lambda_.1} parent=11 // pred_check
          %p927 = pneg %p545
        $region94: #{_lambda_.1} parent=11 // pred_check_branch
          %929 = sbr.rel (%p927) target = $region96
        $region95: #{_lambda_.1} parent=11 // pred_region
          %s931 = ssub.s32 12288, 12288
          %932 = vsyncadd [#allocation35], %s931
          %s933 = sshll.u32 [#allocation34], 4
          %s934 = int_to_ptr.vmem [resolvable:$true] %s933
          %939 = dma.hbm_to_vmem [thread:$0]  %s43, 12288, %s934, [#allocation35], 128, 128, 8
        $region96: #{_lambda_.1} parent=11 // pred_fallthru
          _
        // Predicated region
        $region97: #{_lambda_.1} parent=11 // pred_check
          %p940 = pneg %p566
        $region98: #{_lambda_.1} parent=11 // pred_check_branch
          %942 = sbr.rel (%p940) target = $region100
        $region99: #{_lambda_.1} parent=11 // pred_region
          _
        $region100: #{_lambda_.1} parent=11 // pred_fallthru
          _
        // Predicated region
        $region101: #{_lambda_.1} parent=11 // pred_check
          %p943 = pneg %p587
        $region102: #{_lambda_.1} parent=11 // pred_check_branch
          %945 = sbr.rel (%p943) target = $region104
        $region103: #{_lambda_.1} parent=11 // pred_region
          _
        $region104: #{_lambda_.1} parent=11 // pred_fallthru
          _
        // Predicated region
        $region105: #{_lambda_.1} parent=11 // pred_check
          %p946 = pneg %p608
        $region106: #{_lambda_.1} parent=11 // pred_check_branch
          %948 = sbr.rel (%p946) target = $region108
        $region107: #{_lambda_.1} parent=11 // pred_region
          _
        $region108: #{_lambda_.1} parent=11 // pred_fallthru
          _
        // Predicated region
        $region109: #{_lambda_.1} parent=11 // pred_check
          %p949 = pneg %p629
        $region110: #{_lambda_.1} parent=11 // pred_check_branch
          %951 = sbr.rel (%p949) target = $region112
        $region111: #{_lambda_.1} parent=11 // pred_region
          %s953 = ssub.s32 16384, 16384
          %954 = vsyncadd [#allocation35], %s953
          %s955 = sshll.u32 [#allocation36], 4
          %s956 = int_to_ptr.vmem [resolvable:$true] %s955
          %961 = dma.hbm_to_vmem [thread:$0]  %s51, 16384, %s956, [#allocation35], 128, 128, 8
        $region112: #{_lambda_.1} parent=11 // pred_fallthru
          _
        // Predicated region
        $region113: #{_lambda_.1} parent=11 // pred_check
          %p962 = pneg %p650
        $region114: #{_lambda_.1} parent=11 // pred_check_branch
          %964 = sbr.rel (%p962) target = $region116
        $region115: #{_lambda_.1} parent=11 // pred_region
          _
        $region116: #{_lambda_.1} parent=11 // pred_fallthru
          _
        // Predicated region
        $region117: #{_lambda_.1} parent=11 // pred_check
          %p965 = pneg %p671
        $region118: #{_lambda_.1} parent=11 // pred_check_branch
          %967 = sbr.rel (%p965) target = $region120
        $region119: #{_lambda_.1} parent=11 // pred_region
          %s969 = ssub.s32 2048, 2048
          %970 = vsyncadd [#allocation38], %s969
          %s971 = sshll.u32 [#allocation37], 4
          %s972 = int_to_ptr.vmem [resolvable:$true] %s971
          %977 = dma.hbm_to_vmem [thread:$0]  %s55, 2048, %s972, [#allocation38], 64, 64, 4
        $region120: #{_lambda_.1} parent=11 // pred_fallthru
          _
        // Predicated region
        $region121: #{_lambda_.1} parent=11 // pred_check
          %p978 = pneg %p692
        $region122: #{_lambda_.1} parent=11 // pred_check_branch
          %980 = sbr.rel (%p978) target = $region124
        $region123: #{_lambda_.1} parent=11 // pred_region
          _
        $region124: #{_lambda_.1} parent=11 // pred_fallthru
          _
      $region12: #{_lambda_.1} parent=5 // pred_fallthru
        _
      %p981 = scmp.lt.s32.totalorder %s78, 2
      // Predicated region
      $region125: #{_lambda_.1} parent=5 // pred_check
        %p982 = pneg %p981
      $region126: #{_lambda_.1} parent=5 // pred_check_branch
        %984 = sbr.rel (%p982) target = $region128
      $region127: #{_lambda_.1} parent=5 // pred_region
        // Predicated region
        $region129: #{_lambda_.1} parent=127 // pred_check
          %p985 = pneg %p98
        $region130: #{_lambda_.1} parent=127 // pred_check_branch
          %987 = sbr.rel (%p985) target = $region132
        $region131: #{_lambda_.1} parent=127 // pred_region
          %p988 = scmp.lt.s32.totalorder %s78, 1
          %s989 = scalar_select %p988, %s78, 1
          %s990 = smul.addr %s989, 8
          %s991 = smul.addr %s990, 8
          %s992 = scalar_lea.vmem %s1, %s991
        $region132: #{_lambda_.1} parent=127 // pred_fallthru
          _
      $region128: #{_lambda_.1} parent=5 // pred_fallthru
        _
      %p993 = scmp.le.s32.totalorder 1, %s78
      %p994 = scmp.lt.s32.totalorder %s78, 3
      %p995 = pnand %p993, %p994
      %p996 = pneg %p995
      // Predicated region
      $region133: #{_lambda_.1} parent=5 // pred_check
        _
      $region134: #{_lambda_.1} parent=5 // pred_check_branch
        %998 = sbr.rel (%p995) target = $region136
      $region135: #{_lambda_.1} parent=5 // pred_region
        %s999 = ssub.s32 %s78, 1
        // Predicated region
        $region137: #{_lambda_.1} parent=135 // pred_check
          %p1000 = pneg %p167
        $region138: #{_lambda_.1} parent=135 // pred_check_branch
          %1002 = sbr.rel (%p1000) target = $region140
        $region139: #{_lambda_.1} parent=135 // pred_region
          %1003 = dma.done [#allocation11], 768
        $region140: #{_lambda_.1} parent=135 // pred_fallthru
          _
        // Predicated region
        $region141: #{_lambda_.1} parent=135 // pred_check
          %p1004 = pneg %p209
        $region142: #{_lambda_.1} parent=135 // pred_check_branch
          %1006 = sbr.rel (%p1004) target = $region144
        $region143: #{_lambda_.1} parent=135 // pred_region
          %1007 = dma.done [#allocation14], 16
        $region144: #{_lambda_.1} parent=135 // pred_fallthru
          _
        // Predicated region
        $region145: #{_lambda_.1} parent=135 // pred_check
          %p1008 = pneg %p230
        $region146: #{_lambda_.1} parent=135 // pred_check_branch
          %1010 = sbr.rel (%p1008) target = $region148
        $region147: #{_lambda_.1} parent=135 // pred_region
          %1011 = dma.done [#allocation14], 16
        $region148: #{_lambda_.1} parent=135 // pred_fallthru
          _
        // Predicated region
        $region149: #{_lambda_.1} parent=135 // pred_check
          %p1012 = pneg %p251
        $region150: #{_lambda_.1} parent=135 // pred_check_branch
          %1014 = sbr.rel (%p1012) target = $region152
        $region151: #{_lambda_.1} parent=135 // pred_region
          %1015 = dma.done [#allocation17], 768
        $region152: #{_lambda_.1} parent=135 // pred_fallthru
          _
        // Predicated region
        $region153: #{_lambda_.1} parent=135 // pred_check
          %p1016 = pneg %p272
        $region154: #{_lambda_.1} parent=135 // pred_check_branch
          %1018 = sbr.rel (%p1016) target = $region156
        $region155: #{_lambda_.1} parent=135 // pred_region
          %1019 = dma.done [#allocation17], 16
        $region156: #{_lambda_.1} parent=135 // pred_fallthru
          _
        // Predicated region
        $region157: #{_lambda_.1} parent=135 // pred_check
          %p1020 = pneg %p293
        $region158: #{_lambda_.1} parent=135 // pred_check_branch
          %1022 = sbr.rel (%p1020) target = $region160
        $region159: #{_lambda_.1} parent=135 // pred_region
          %1023 = dma.done [#allocation20], 1536
        $region160: #{_lambda_.1} parent=135 // pred_fallthru
          _
        // Predicated region
        $region161: #{_lambda_.1} parent=135 // pred_check
          %p1024 = pneg %p314
        $region162: #{_lambda_.1} parent=135 // pred_check_branch
          %1026 = sbr.rel (%p1024) target = $region164
        $region163: #{_lambda_.1} parent=135 // pred_region
          %1027 = dma.done [#allocation20], 16
        $region164: #{_lambda_.1} parent=135 // pred_fallthru
          _
        // Predicated region
        $region165: #{_lambda_.1} parent=135 // pred_check
          %p1028 = pneg %p335
        $region166: #{_lambda_.1} parent=135 // pred_check_branch
          %1030 = sbr.rel (%p1028) target = $region168
        $region167: #{_lambda_.1} parent=135 // pred_region
          %1031 = dma.done [#allocation23], 256
        $region168: #{_lambda_.1} parent=135 // pred_fallthru
          _
        // Predicated region
        $region169: #{_lambda_.1} parent=135 // pred_check
          %p1032 = pneg %p356
        $region170: #{_lambda_.1} parent=135 // pred_check_branch
          %1034 = sbr.rel (%p1032) target = $region172
        $region171: #{_lambda_.1} parent=135 // pred_region
          %1035 = dma.done [#allocation23], 16
        $region172: #{_lambda_.1} parent=135 // pred_fallthru
          _
        // Predicated region
        $region173: #{_lambda_.1} parent=135 // pred_check
          %p1036 = pneg %p377
        $region174: #{_lambda_.1} parent=135 // pred_check_branch
          %1038 = sbr.rel (%p1036) target = $region176
        $region175: #{_lambda_.1} parent=135 // pred_region
          %1039 = dma.done [#allocation26], 1536
        $region176: #{_lambda_.1} parent=135 // pred_fallthru
          _
        // Predicated region
        $region177: #{_lambda_.1} parent=135 // pred_check
          %p1040 = pneg %p398
        $region178: #{_lambda_.1} parent=135 // pred_check_branch
          %1042 = sbr.rel (%p1040) target = $region180
        $region179: #{_lambda_.1} parent=135 // pred_region
          %1043 = dma.done [#allocation26], 16
        $region180: #{_lambda_.1} parent=135 // pred_fallthru
          _
        // Predicated region
        $region181: #{_lambda_.1} parent=135 // pred_check
          %p1044 = pneg %p419
        $region182: #{_lambda_.1} parent=135 // pred_check_branch
          %1046 = sbr.rel (%p1044) target = $region184
        $region183: #{_lambda_.1} parent=135 // pred_region
          %1047 = dma.done [#allocation29], 3072
        $region184: #{_lambda_.1} parent=135 // pred_fallthru
          _
        // Predicated region
        $region185: #{_lambda_.1} parent=135 // pred_check
          %p1048 = pneg %p440
        $region186: #{_lambda_.1} parent=135 // pred_check_branch
          %1050 = sbr.rel (%p1048) target = $region188
        $region187: #{_lambda_.1} parent=135 // pred_region
          %1051 = dma.done [#allocation29], 16
        $region188: #{_lambda_.1} parent=135 // pred_fallthru
          _
        // Predicated region
        $region189: #{_lambda_.1} parent=135 // pred_check
          %p1052 = pneg %p482
        $region190: #{_lambda_.1} parent=135 // pred_check_branch
          %1054 = sbr.rel (%p1052) target = $region192
        $region191: #{_lambda_.1} parent=135 // pred_region
          %1055 = dma.done [#allocation32], 16
        $region192: #{_lambda_.1} parent=135 // pred_fallthru
          _
        // Predicated region
        $region193: #{_lambda_.1} parent=135 // pred_check
          %p1056 = pneg %p503
        $region194: #{_lambda_.1} parent=135 // pred_check_branch
          %1058 = sbr.rel (%p1056) target = $region196
        $region195: #{_lambda_.1} parent=135 // pred_region
          %1059 = dma.done [#allocation32], 6144
        $region196: #{_lambda_.1} parent=135 // pred_fallthru
          _
        // Predicated region
        $region197: #{_lambda_.1} parent=135 // pred_check
          %p1060 = pneg %p545
        $region198: #{_lambda_.1} parent=135 // pred_check_branch
          %1062 = sbr.rel (%p1060) target = $region200
        $region199: #{_lambda_.1} parent=135 // pred_region
          %1063 = dma.done [#allocation35], 12288
        $region200: #{_lambda_.1} parent=135 // pred_fallthru
          _
        // Predicated region
        $region201: #{_lambda_.1} parent=135 // pred_check
          %p1064 = pneg %p629
        $region202: #{_lambda_.1} parent=135 // pred_check_branch
          %1066 = sbr.rel (%p1064) target = $region204
        $region203: #{_lambda_.1} parent=135 // pred_region
          %1067 = dma.done [#allocation35], 16384
        $region204: #{_lambda_.1} parent=135 // pred_fallthru
          _
        // Predicated region
        $region205: #{_lambda_.1} parent=135 // pred_check
          %p1068 = pneg %p671
        $region206: #{_lambda_.1} parent=135 // pred_check_branch
          %1070 = sbr.rel (%p1068) target = $region208
        $region207: #{_lambda_.1} parent=135 // pred_region
          %1071 = dma.done [#allocation38], 2048
        $region208: #{_lambda_.1} parent=135 // pred_fallthru
          _
        %p1072 = scmp.lt.s32.totalorder %s83, 1
        %s1073 = scalar_select %p1072, %s83, 1
        %s1074 = smul.addr %s1073, 8
        %s1075 = smul.addr %s1074, 8
        %s1076 = scalar_lea.vmem %s1, %s1075
        %p1077 = pneg %p104
        %p1078 = pneg %p101
        %p1079 = pneg %p125
        %p1080 = pneg %p122
        %p1081 = pneg %p146
        %p1082 = pneg %p143
        %p1083 = pneg %p167
        %p1084 = pneg %p164
        %p1085 = pneg %p188
        %p1086 = pneg %p185
        %p1087 = pneg %p209
        %p1088 = pneg %p206
        %p1089 = pneg %p230
        %p1090 = pneg %p227
        %p1091 = pneg %p251
        %p1092 = pneg %p248
        %p1093 = pneg %p272
        %p1094 = pneg %p269
        %p1095 = pneg %p293
        %p1096 = pneg %p290
        %p1097 = pneg %p314
        %p1098 = pneg %p311
        %p1099 = pneg %p335
        %p1100 = pneg %p332
        %p1101 = pneg %p356
        %p1102 = pneg %p353
        %p1103 = pneg %p377
        %p1104 = pneg %p374
        %p1105 = pneg %p398
        %p1106 = pneg %p395
        %p1107 = pneg %p419
        %p1108 = pneg %p416
        %p1109 = pneg %p440
        %p1110 = pneg %p437
        %p1111 = pneg %p461
        %p1112 = pneg %p458
        %p1113 = pneg %p482
        %p1114 = pneg %p479
        %p1115 = pneg %p503
        %p1116 = pneg %p500
        %p1117 = pneg %p524
        %p1118 = pneg %p521
        %p1119 = pneg %p545
        %p1120 = pneg %p542
        %p1121 = pneg %p566
        %p1122 = pneg %p563
        %p1123 = pneg %p587
        %p1124 = pneg %p584
        %p1125 = pneg %p608
        %p1126 = pneg %p605
        %p1127 = pneg %p629
        %p1128 = pneg %p626
        %p1129 = pneg %p650
        %p1130 = pneg %p647
        %p1131 = pneg %p671
        %p1132 = pneg %p668
        %p1133 = pneg %p692
        %p1134 = pneg %p689
        %p1135 = pneg %p718
        %p1136 = pneg %p715
        %s1137 = sand.u32 %s705, 1
        %s1138 = scalar_lea.sflag [#allocation12], %s1137
        %s1139 = sand.u32 %s705, 1
        %s1140 = scalar_lea.vmem [#allocation39], %s1139
        %p1141 = scmp.lt.s32.totalorder %s83, 1
        %s1142 = scalar_select %p1141, %s83, 1
        %s1143 = smul.addr %s1142, 8
        %s1144 = smul.addr %s1143, 8
        %s1145 = scalar_lea.vmem %s1, %s1144
        %v1147 = vld [vmem:[%s1145] sm:$0xff]
        %v1148 = vld [vmem:[%s1145 + $0x8] sm:$0xff]
        %v1149 = vld [vmem:[%s1145 + $0x10] sm:$0xff]
        %v1150 = vld [vmem:[%s1145 + $0x18] sm:$0xff]
        %v1151 = vld [vmem:[%s1145 + $0x20] sm:$0xff]
        %v1152 = vld [vmem:[%s1145 + $0x28] sm:$0xff]
        %v1153 = vld [vmem:[%s1145 + $0x30] sm:$0xff]
        %v1154 = vld [vmem:[%s1145 + $0x38] sm:$0xff]
        %vm1155 = vcmask 0
        %1156 = vst.msk [vmem:[#allocation2] sm:$0x1] %vm1155, 0.0
        %1157 = vst.msk [vmem:[#allocation2 + $0x41] sm:$0x1] %vm1155, 0.0
        %vm1158 = vcmask 7168
        %1159 = vst.msk [vmem:[#allocation2 + $0x1] sm:$0xff] %vm1158, %v1147
        %1160 = vst.msk [vmem:[#allocation2 + $0x9] sm:$0xff] %vm1158, %v1148
        %1161 = vst.msk [vmem:[#allocation2 + $0x11] sm:$0xff] %vm1158, %v1149
        %1162 = vst.msk [vmem:[#allocation2 + $0x19] sm:$0xff] %vm1158, %v1150
        %1163 = vst.msk [vmem:[#allocation2 + $0x21] sm:$0xff] %vm1158, %v1151
        %1164 = vst.msk [vmem:[#allocation2 + $0x29] sm:$0xff] %vm1158, %v1152
        %1165 = vst.msk [vmem:[#allocation2 + $0x31] sm:$0xff] %vm1158, %v1153
        %1166 = vst.msk [vmem:[#allocation2 + $0x39] sm:$0xff] %vm1158, %v1154
        %v1167 = vld [vmem:[#allocation2] sm:$0xff]
        %v1168 = vld [vmem:[#allocation2 + $0x8] sm:$0xff]
        %v1169 = vld [vmem:[#allocation2 + $0x10] sm:$0xff]
        %v1170 = vld [vmem:[#allocation2 + $0x18] sm:$0xff]
        %v1171 = vld [vmem:[#allocation2 + $0x20] sm:$0xff]
        %v1172 = vld [vmem:[#allocation2 + $0x28] sm:$0xff]
        %v1173 = vld [vmem:[#allocation2 + $0x30] sm:$0xff]
        %v1174 = vld [vmem:[#allocation2 + $0x38] sm:$0xff]
        %v1175 = vld [vmem:[#allocation2 + $0x1] sm:$0xff]
        %v1176 = vld [vmem:[#allocation2 + $0x9] sm:$0xff]
        %v1177 = vld [vmem:[#allocation2 + $0x11] sm:$0xff]
        %v1178 = vld [vmem:[#allocation2 + $0x19] sm:$0xff]
        %v1179 = vld [vmem:[#allocation2 + $0x21] sm:$0xff]
        %v1180 = vld [vmem:[#allocation2 + $0x29] sm:$0xff]
        %v1181 = vld [vmem:[#allocation2 + $0x31] sm:$0xff]
        %v1182 = vld [vmem:[#allocation2 + $0x39] sm:$0xff]
        %v1183 = vld [vmem:[#allocation2 + $0x2] sm:$0xff]
        %v1184 = vld [vmem:[#allocation2 + $0xa] sm:$0xff]
        %v1185 = vld [vmem:[#allocation2 + $0x12] sm:$0xff]
        %v1186 = vld [vmem:[#allocation2 + $0x1a] sm:$0xff]
        %v1187 = vld [vmem:[#allocation2 + $0x22] sm:$0xff]
        %v1188 = vld [vmem:[#allocation2 + $0x2a] sm:$0xff]
        %v1189 = vld [vmem:[#allocation2 + $0x32] sm:$0xff]
        %v1190 = vld [vmem:[#allocation2 + $0x3a] sm:$0xff]
        %v1191 = vld [vmem:[%s3] sm:$0x1]
        %1193 = vset.pattern.permute.xlu0 0
        %1194 = vperm.xlu0 %1193, %v1167
        %v1195 = vpop.permute.xlu0 %1194
        %1198 = vset.pattern.permute.xlu0 0
        %1199 = vperm.xlu0 %1198, %v1168
        %v1200 = vpop.permute.xlu0 %1199
        %1203 = vset.pattern.permute.xlu0 0
        %1204 = vperm.xlu0 %1203, %v1169
        %v1205 = vpop.permute.xlu0 %1204
        %1208 = vset.pattern.permute.xlu0 0
        %1209 = vperm.xlu0 %1208, %v1170
        %v1210 = vpop.permute.xlu0 %1209
        %1213 = vset.pattern.permute.xlu0 0
        %1214 = vperm.xlu0 %1213, %v1171
        %v1215 = vpop.permute.xlu0 %1214
        %1218 = vset.pattern.permute.xlu0 0
        %1219 = vperm.xlu0 %1218, %v1172
        %v1220 = vpop.permute.xlu0 %1219
        %1223 = vset.pattern.permute.xlu0 0
        %1224 = vperm.xlu0 %1223, %v1173
        %v1225 = vpop.permute.xlu0 %1224
        %1228 = vset.pattern.permute.xlu0 0
        %1229 = vperm.xlu0 %1228, %v1174
        %v1230 = vpop.permute.xlu0 %1229
        %v1233 = vlaneseq
        %v1234 = vshrl.u32 %v1233, 7
        %v1235 = vsub.s32 0, %v1234
        %v1236 = vrot.slane %v1191, %v1235
        %v1238 = vmul.f32 %v1195, %v1236
        %v1239 = vmul.f32 %v1200, %v1236
        %v1240 = vmul.f32 %v1205, %v1236
        %v1241 = vmul.f32 %v1210, %v1236
        %v1242 = vmul.f32 %v1215, %v1236
        %v1243 = vmul.f32 %v1220, %v1236
        %v1244 = vmul.f32 %v1225, %v1236
        %v1245 = vmul.f32 %v1230, %v1236
        %s1246 = scalar_lea.vmem %s3, 1
        %v1247 = vld [vmem:[%s1246] sm:$0x1]
        %1249 = vset.pattern.permute.xlu0 0
        %1250 = vperm.xlu0 %1249, %v1175
        %v1251 = vpop.permute.xlu0 %1250
        %1254 = vset.pattern.permute.xlu0 0
        %1255 = vperm.xlu0 %1254, %v1176
        %v1256 = vpop.permute.xlu0 %1255
        %1259 = vset.pattern.permute.xlu0 0
        %1260 = vperm.xlu0 %1259, %v1177
        %v1261 = vpop.permute.xlu0 %1260
        %1264 = vset.pattern.permute.xlu0 0
        %1265 = vperm.xlu0 %1264, %v1178
        %v1266 = vpop.permute.xlu0 %1265
        %1269 = vset.pattern.permute.xlu0 0
        %1270 = vperm.xlu0 %1269, %v1179
        %v1271 = vpop.permute.xlu0 %1270
        %1274 = vset.pattern.permute.xlu0 0
        %1275 = vperm.xlu0 %1274, %v1180
        %v1276 = vpop.permute.xlu0 %1275
        %1279 = vset.pattern.permute.xlu0 0
        %1280 = vperm.xlu0 %1279, %v1181
        %v1281 = vpop.permute.xlu0 %1280
        %1284 = vset.pattern.permute.xlu0 0
        %1285 = vperm.xlu0 %1284, %v1182
        %v1286 = vpop.permute.xlu0 %1285
        %v1289 = vlaneseq
        %v1290 = vshrl.u32 %v1289, 7
        %v1291 = vsub.s32 0, %v1290
        %v1292 = vrot.slane %v1247, %v1291
        %v1294 = vmul.f32 %v1251, %v1292
        %v1295 = vmul.f32 %v1256, %v1292
        %v1296 = vmul.f32 %v1261, %v1292
        %v1297 = vmul.f32 %v1266, %v1292
        %v1298 = vmul.f32 %v1271, %v1292
        %v1299 = vmul.f32 %v1276, %v1292
        %v1300 = vmul.f32 %v1281, %v1292
        %v1301 = vmul.f32 %v1286, %v1292
        %v1302 = vadd.f32 %v1238, %v1294
        %v1303 = vadd.f32 %v1239, %v1295
        %v1304 = vadd.f32 %v1240, %v1296
        %v1305 = vadd.f32 %v1241, %v1297
        %v1306 = vadd.f32 %v1242, %v1298
        %v1307 = vadd.f32 %v1243, %v1299
        %v1308 = vadd.f32 %v1244, %v1300
        %v1309 = vadd.f32 %v1245, %v1301
        %s1310 = scalar_lea.vmem %s3, 2
        %v1311 = vld [vmem:[%s1310] sm:$0x1]
        %1313 = vset.pattern.permute.xlu0 0
        %1314 = vperm.xlu0 %1313, %v1183
        %v1315 = vpop.permute.xlu0 %1314
        %1318 = vset.pattern.permute.xlu0 0
        %1319 = vperm.xlu0 %1318, %v1184
        %v1320 = vpop.permute.xlu0 %1319
        %1323 = vset.pattern.permute.xlu0 0
        %1324 = vperm.xlu0 %1323, %v1185
        %v1325 = vpop.permute.xlu0 %1324
        %1328 = vset.pattern.permute.xlu0 0
        %1329 = vperm.xlu0 %1328, %v1186
        %v1330 = vpop.permute.xlu0 %1329
        %1333 = vset.pattern.permute.xlu0 0
        %1334 = vperm.xlu0 %1333, %v1187
        %v1335 = vpop.permute.xlu0 %1334
        %1338 = vset.pattern.permute.xlu0 0
        %1339 = vperm.xlu0 %1338, %v1188
        %v1340 = vpop.permute.xlu0 %1339
        %1343 = vset.pattern.permute.xlu0 0
        %1344 = vperm.xlu0 %1343, %v1189
        %v1345 = vpop.permute.xlu0 %1344
        %1348 = vset.pattern.permute.xlu0 0
        %1349 = vperm.xlu0 %1348, %v1190
        %v1350 = vpop.permute.xlu0 %1349
        %v1353 = vlaneseq
        %v1354 = vshrl.u32 %v1353, 7
        %v1355 = vsub.s32 0, %v1354
        %v1356 = vrot.slane %v1311, %v1355
        %v1358 = vmul.f32 %v1315, %v1356
        %v1359 = vmul.f32 %v1320, %v1356
        %v1360 = vmul.f32 %v1325, %v1356
        %v1361 = vmul.f32 %v1330, %v1356
        %v1362 = vmul.f32 %v1335, %v1356
        %v1363 = vmul.f32 %v1340, %v1356
        %v1364 = vmul.f32 %v1345, %v1356
        %v1365 = vmul.f32 %v1350, %v1356
        %v1366 = vadd.f32 %v1302, %v1358
        %v1367 = vadd.f32 %v1303, %v1359
        %v1368 = vadd.f32 %v1304, %v1360
        %v1369 = vadd.f32 %v1305, %v1361
        %v1370 = vadd.f32 %v1306, %v1362
        %v1371 = vadd.f32 %v1307, %v1363
        %v1372 = vadd.f32 %v1308, %v1364
        %v1373 = vadd.f32 %v1309, %v1365
        %v1374 = vld [vmem:[#allocation13] sm:$0x1]
        %v1376 = vlaneseq
        %v1377 = vshrl.u32 %v1376, 7
        %v1378 = vsub.s32 0, %v1377
        %v1379 = vrot.slane %v1374, %v1378
        %v1381 = vmul.f32 %v1251, %v1379
        %v1382 = vmul.f32 %v1256, %v1379
        %v1383 = vmul.f32 %v1261, %v1379
        %v1384 = vmul.f32 %v1266, %v1379
        %v1385 = vmul.f32 %v1271, %v1379
        %v1386 = vmul.f32 %v1276, %v1379
        %v1387 = vmul.f32 %v1281, %v1379
        %v1388 = vmul.f32 %v1286, %v1379
        %v1389 = vld [vmem:[%s5] sm:$0x1]
        %v1391 = vlaneseq
        %v1392 = vshrl.u32 %v1391, 7
        %v1393 = vsub.s32 0, %v1392
        %v1394 = vrot.slane %v1389, %v1393
        %v1396 = vadd.f32 %v1366, %v1394
        %v1397 = vadd.f32 %v1367, %v1394
        %v1398 = vadd.f32 %v1368, %v1394
        %v1399 = vadd.f32 %v1369, %v1394
        %v1400 = vadd.f32 %v1370, %v1394
        %v1401 = vadd.f32 %v1371, %v1394
        %v1402 = vadd.f32 %v1372, %v1394
        %v1403 = vadd.f32 %v1373, %v1394
        %v1404 = vmax.f32 %v1396, 0.0
        %v1405 = vmax.f32 %v1397, 0.0
        %v1406 = vmax.f32 %v1398, 0.0
        %v1407 = vmax.f32 %v1399, 0.0
        %v1408 = vmax.f32 %v1400, 0.0
        %v1409 = vmax.f32 %v1401, 0.0
        %v1410 = vmax.f32 %v1402, 0.0
        %v1411 = vmax.f32 %v1403, 0.0
        %v1412 = vld [vmem:[#allocation15] sm:$0x1]
        %v1414 = vlaneseq
        %v1415 = vshrl.u32 %v1414, 7
        %v1416 = vsub.s32 0, %v1415
        %v1417 = vrot.slane %v1412, %v1416
        %v1419 = vadd.f32 %v1381, %v1417
        %v1420 = vadd.f32 %v1382, %v1417
        %v1421 = vadd.f32 %v1383, %v1417
        %v1422 = vadd.f32 %v1384, %v1417
        %v1423 = vadd.f32 %v1385, %v1417
        %v1424 = vadd.f32 %v1386, %v1417
        %v1425 = vadd.f32 %v1387, %v1417
        %v1426 = vadd.f32 %v1388, %v1417
        %vm1427 = vcmask 253952
        %1428 = vst.msk [vmem:[#allocation3] sm:$0x1] %vm1427, 0.0
        %1429 = vst.msk [vmem:[#allocation3 + $0x41] sm:$0x1] %vm1427, 0.0
        %vm1430 = vcmask 261120
        %1431 = vst.msk [vmem:[#allocation3 + $0x1] sm:$0xff] %vm1430, %v1404
        %1432 = vst.msk [vmem:[#allocation3 + $0x9] sm:$0xff] %vm1430, %v1405
        %1433 = vst.msk [vmem:[#allocation3 + $0x11] sm:$0xff] %vm1430, %v1406
        %1434 = vst.msk [vmem:[#allocation3 + $0x19] sm:$0xff] %vm1430, %v1407
        %1435 = vst.msk [vmem:[#allocation3 + $0x21] sm:$0xff] %vm1430, %v1408
        %1436 = vst.msk [vmem:[#allocation3 + $0x29] sm:$0xff] %vm1430, %v1409
        %1437 = vst.msk [vmem:[#allocation3 + $0x31] sm:$0xff] %vm1430, %v1410
        %1438 = vst.msk [vmem:[#allocation3 + $0x39] sm:$0xff] %vm1430, %v1411
        %v1439 = vld [vmem:[#allocation3] sm:$0xff]
        %v1440 = vld [vmem:[#allocation3 + $0x8] sm:$0xff]
        %v1441 = vld [vmem:[#allocation3 + $0x10] sm:$0xff]
        %v1442 = vld [vmem:[#allocation3 + $0x18] sm:$0xff]
        %v1443 = vld [vmem:[#allocation3 + $0x20] sm:$0xff]
        %v1444 = vld [vmem:[#allocation3 + $0x28] sm:$0xff]
        %v1445 = vld [vmem:[#allocation3 + $0x30] sm:$0xff]
        %v1446 = vld [vmem:[#allocation3 + $0x38] sm:$0xff]
        %v1447 = vld [vmem:[#allocation3 + $0x2] sm:$0xff]
        %v1448 = vld [vmem:[#allocation3 + $0xa] sm:$0xff]
        %v1449 = vld [vmem:[#allocation3 + $0x12] sm:$0xff]
        %v1450 = vld [vmem:[#allocation3 + $0x1a] sm:$0xff]
        %v1451 = vld [vmem:[#allocation3 + $0x22] sm:$0xff]
        %v1452 = vld [vmem:[#allocation3 + $0x2a] sm:$0xff]
        %v1453 = vld [vmem:[#allocation3 + $0x32] sm:$0xff]
        %v1454 = vld [vmem:[#allocation3 + $0x3a] sm:$0xff]
        %v1455 = vld [vmem:[#allocation10] sm:$0xf]
        %v1456 = vld [vmem:[#allocation10 + $0x4] sm:$0xf]
        %v1457 = vld [vmem:[#allocation10 + $0x8] sm:$0xf]
        %v1458 = vld [vmem:[#allocation10 + $0xc] sm:$0xf]
        %v1459 = vpack.c.bf16 %v1440, %v1439
        %v1460 = vpack.c.bf16 %v1442, %v1441
        %v1461 = vpack.c.bf16 %v1444, %v1443
        %v1462 = vpack.c.bf16 %v1446, %v1445
        %s1463 = scalar_lea.vmem [#allocation10], 16
        %v1464 = vld [vmem:[%s1463] sm:$0xf]
        %v1465 = vld [vmem:[%s1463 + $0x4] sm:$0xf]
        %v1466 = vld [vmem:[%s1463 + $0x8] sm:$0xf]
        %v1467 = vld [vmem:[%s1463 + $0xc] sm:$0xf]
        %v1468 = vpack.c.bf16 %v1405, %v1404
        %v1469 = vpack.c.bf16 %v1407, %v1406
        %v1470 = vpack.c.bf16 %v1409, %v1408
        %v1471 = vpack.c.bf16 %v1411, %v1410
        %v1476 = vunpack.c.l.b16 %v1464
        %v1477 = vunpack.c.l.b16 %v1465
        %v1478 = vunpack.c.l.b16 %v1466
        %v1479 = vunpack.c.l.b16 %v1467
        %v1480 = vpack.c.b16 %v1477, %v1476
        %v1481 = vpack.c.b16 %v1479, %v1478
        %v1485 = vsel %vm1430, %v1468, 0
        %v1488 = vsel %vm1430, %v1469, 0
        %v1491 = vsel %vm1430, %v1470, 0
        %v1494 = vsel %vm1430, %v1471, 0
        %1496 = vmatprep.subr.bf16.mxu0 0
        %1497 = vmatpush1.bf16.msra.mxu0 0
        %1498 = vmatprep.subr.bf16.mxu0 0
        %1499 = vmatpush1.bf16.msra.mxu0 0
        %1500 = vmatprep.subr.bf16.mxu0 0
        %1501 = vmatpush1.bf16.msra.mxu0 0
        %1502 = vmatprep.subr.bf16.mxu0 0
        %1503 = vmatpush1.bf16.msra.mxu0 0
        %1504 = vmatprep.subr.bf16.mxu0 0
        %1505 = vmatpush1.bf16.msra.mxu0 0
        %1506 = vmatprep.subr.bf16.mxu0 0
        %1507 = vmatpush1.bf16.msra.mxu0 0
        %1508 = vmatprep.subr.bf16.mxu0 0
        %1509 = vmatpush1.bf16.msra.mxu0 %v1481
        %1510 = vmatprep.subr.bf16.mxu0 0
        %1511 = vmatpush1.bf16.msra.mxu0 %v1480
        %1512 = vmatprep.subr.bf16.mxu0 0
        %1513 = vmatpush2.bf16.msra.mxu0 0
        %1514 = vmatprep.subr.bf16.mxu0 0
        %1515 = vmatpush2.bf16.msra.mxu0 0
        %1516 = vmatprep.subr.bf16.mxu0 0
        %1517 = vmatpush2.bf16.msra.mxu0 0
        %1518 = vmatprep.subr.bf16.mxu0 0
        %1519 = vmatpush2.bf16.msra.mxu0 0
        %1520 = vmatprep.subr.bf16.mxu0 0
        %1521 = vmatpush2.bf16.msra.mxu0 0
        %1522 = vmatprep.subr.bf16.mxu0 0
        %1523 = vmatpush2.bf16.msra.mxu0 0
        %1524 = vmatprep.subr.bf16.mxu0 0
        %1525 = vmatpush2.bf16.msra.mxu0 0
        %1526 = vmatprep.subr.bf16.mxu0 0
        %1527 = vmatpush2.bf16.msra.mxu0 0
        %1528 = vmatprep.mubr.bf16.mxu0 0
        %1529 = vmatmul.mubr.bf16.gmra.mxu0 %v1485
        %v1530 = vpop.f32.mrf.mxu0
        %v1531 = vadd.f32 0.0, %v1530
        %v1532 = vpop.f32.mrf.mxu0
        %v1533 = vpop.f32.mrf.mxu0
        %v1534 = vadd.f32 0.0, %v1533
        %v1535 = vpop.f32.mrf.mxu0
        %1536 = vmatprep.mubr.bf16.mxu0 0
        %1537 = vmatmul.mubr.bf16.gmra.mxu0 %v1488
        %v1538 = vpop.f32.mrf.mxu0
        %v1539 = vadd.f32 0.0, %v1538
        %v1540 = vpop.f32.mrf.mxu0
        %v1541 = vpop.f32.mrf.mxu0
        %v1542 = vadd.f32 0.0, %v1541
        %v1543 = vpop.f32.mrf.mxu0
        %1544 = vmatprep.mubr.bf16.mxu0 0
        %1545 = vmatmul.mubr.bf16.gmra.mxu0 %v1491
        %v1546 = vpop.f32.mrf.mxu0
        %v1547 = vadd.f32 0.0, %v1546
        %v1548 = vpop.f32.mrf.mxu0
        %v1549 = vpop.f32.mrf.mxu0
        %v1550 = vadd.f32 0.0, %v1549
        %v1551 = vpop.f32.mrf.mxu0
        %1552 = vmatprep.mubr.bf16.mxu0 0
        %1553 = vmatmul.mubr.bf16.gmra.mxu0 %v1494
        %v1554 = vpop.f32.mrf.mxu0
        %v1555 = vadd.f32 0.0, %v1554
        %v1556 = vpop.f32.mrf.mxu0
        %v1557 = vpop.f32.mrf.mxu0
        %v1558 = vadd.f32 0.0, %v1557
        %v1559 = vpop.f32.mrf.mxu0
        %1560 = vdwg.mxu0
        %v1565 = vunpack.c.l.b16 %v1455
        %v1566 = vunpack.c.l.b16 %v1456
        %v1567 = vunpack.c.l.b16 %v1457
        %v1568 = vunpack.c.l.b16 %v1458
        %v1569 = vpack.c.b16 %v1566, %v1565
        %v1570 = vpack.c.b16 %v1568, %v1567
        %v1574 = vsel %vm1430, %v1459, 0
        %v1577 = vsel %vm1430, %v1460, 0
        %v1580 = vsel %vm1430, %v1461, 0
        %v1583 = vsel %vm1430, %v1462, 0
        %1585 = vmatprep.subr.bf16.mxu0 0
        %1586 = vmatpush1.bf16.msra.mxu0 0
        %1587 = vmatprep.subr.bf16.mxu0 0
        %1588 = vmatpush1.bf16.msra.mxu0 0
        %1589 = vmatprep.subr.bf16.mxu0 0
        %1590 = vmatpush1.bf16.msra.mxu0 0
        %1591 = vmatprep.subr.bf16.mxu0 0
        %1592 = vmatpush1.bf16.msra.mxu0 0
        %1593 = vmatprep.subr.bf16.mxu0 0
        %1594 = vmatpush1.bf16.msra.mxu0 0
        %1595 = vmatprep.subr.bf16.mxu0 0
        %1596 = vmatpush1.bf16.msra.mxu0 0
        %1597 = vmatprep.subr.bf16.mxu0 0
        %1598 = vmatpush1.bf16.msra.mxu0 %v1570
        %1599 = vmatprep.subr.bf16.mxu0 0
        %1600 = vmatpush1.bf16.msra.mxu0 %v1569
        %1601 = vmatprep.subr.bf16.mxu0 0
        %1602 = vmatpush2.bf16.msra.mxu0 0
        %1603 = vmatprep.subr.bf16.mxu0 0
        %1604 = vmatpush2.bf16.msra.mxu0 0
        %1605 = vmatprep.subr.bf16.mxu0 0
        %1606 = vmatpush2.bf16.msra.mxu0 0
        %1607 = vmatprep.subr.bf16.mxu0 0
        %1608 = vmatpush2.bf16.msra.mxu0 0
        %1609 = vmatprep.subr.bf16.mxu0 0
        %1610 = vmatpush2.bf16.msra.mxu0 0
        %1611 = vmatprep.subr.bf16.mxu0 0
        %1612 = vmatpush2.bf16.msra.mxu0 0
        %1613 = vmatprep.subr.bf16.mxu0 0
        %1614 = vmatpush2.bf16.msra.mxu0 0
        %1615 = vmatprep.subr.bf16.mxu0 0
        %1616 = vmatpush2.bf16.msra.mxu0 0
        %1617 = vmatprep.mubr.bf16.mxu0 0
        %1618 = vmatmul.mubr.bf16.gmra.mxu0 %v1574
        %v1619 = vpop.f32.mrf.mxu0
        %v1620 = vadd.f32 %v1531, %v1619
        %v1621 = vpop.f32.mrf.mxu0
        %v1622 = vpop.f32.mrf.mxu0
        %v1623 = vadd.f32 %v1534, %v1622
        %v1624 = vpop.f32.mrf.mxu0
        %1625 = vmatprep.mubr.bf16.mxu0 0
        %1626 = vmatmul.mubr.bf16.gmra.mxu0 %v1577
        %v1627 = vpop.f32.mrf.mxu0
        %v1628 = vadd.f32 %v1539, %v1627
        %v1629 = vpop.f32.mrf.mxu0
        %v1630 = vpop.f32.mrf.mxu0
        %v1631 = vadd.f32 %v1542, %v1630
        %v1632 = vpop.f32.mrf.mxu0
        %1633 = vmatprep.mubr.bf16.mxu0 0
        %1634 = vmatmul.mubr.bf16.gmra.mxu0 %v1580
        %v1635 = vpop.f32.mrf.mxu0
        %v1636 = vadd.f32 %v1547, %v1635
        %v1637 = vpop.f32.mrf.mxu0
        %v1638 = vpop.f32.mrf.mxu0
        %v1639 = vadd.f32 %v1550, %v1638
        %v1640 = vpop.f32.mrf.mxu0
        %1641 = vmatprep.mubr.bf16.mxu0 0
        %1642 = vmatmul.mubr.bf16.gmra.mxu0 %v1583
        %v1643 = vpop.f32.mrf.mxu0
        %v1644 = vadd.f32 %v1555, %v1643
        %v1645 = vpop.f32.mrf.mxu0
        %v1646 = vpop.f32.mrf.mxu0
        %v1647 = vadd.f32 %v1558, %v1646
        %v1648 = vpop.f32.mrf.mxu0
        %1649 = vdwg.mxu0
        %s1650 = scalar_lea.vmem [#allocation10], 32
        %v1651 = vld [vmem:[%s1650] sm:$0xf]
        %v1652 = vld [vmem:[%s1650 + $0x4] sm:$0xf]
        %v1653 = vld [vmem:[%s1650 + $0x8] sm:$0xf]
        %v1654 = vld [vmem:[%s1650 + $0xc] sm:$0xf]
        %v1655 = vpack.c.bf16 %v1448, %v1447
        %v1656 = vpack.c.bf16 %v1450, %v1449
        %v1657 = vpack.c.bf16 %v1452, %v1451
        %v1658 = vpack.c.bf16 %v1454, %v1453
        %v1663 = vunpack.c.l.b16 %v1651
        %v1664 = vunpack.c.l.b16 %v1652
        %v1665 = vunpack.c.l.b16 %v1653
        %v1666 = vunpack.c.l.b16 %v1654
        %v1667 = vpack.c.b16 %v1664, %v1663
        %v1668 = vpack.c.b16 %v1666, %v1665
        %v1672 = vsel %vm1430, %v1655, 0
        %v1675 = vsel %vm1430, %v1656, 0
        %v1678 = vsel %vm1430, %v1657, 0
        %v1681 = vsel %vm1430, %v1658, 0
        %1683 = vmatprep.subr.bf16.mxu0 0
        %1684 = vmatpush1.bf16.msra.mxu0 0
        %1685 = vmatprep.subr.bf16.mxu0 0
        %1686 = vmatpush1.bf16.msra.mxu0 0
        %1687 = vmatprep.subr.bf16.mxu0 0
        %1688 = vmatpush1.bf16.msra.mxu0 0
        %1689 = vmatprep.subr.bf16.mxu0 0
        %1690 = vmatpush1.bf16.msra.mxu0 0
        %1691 = vmatprep.subr.bf16.mxu0 0
        %1692 = vmatpush1.bf16.msra.mxu0 0
        %1693 = vmatprep.subr.bf16.mxu0 0
        %1694 = vmatpush1.bf16.msra.mxu0 0
        %1695 = vmatprep.subr.bf16.mxu0 0
        %1696 = vmatpush1.bf16.msra.mxu0 %v1668
        %1697 = vmatprep.subr.bf16.mxu0 0
        %1698 = vmatpush1.bf16.msra.mxu0 %v1667
        %1699 = vmatprep.subr.bf16.mxu0 0
        %1700 = vmatpush2.bf16.msra.mxu0 0
        %1701 = vmatprep.subr.bf16.mxu0 0
        %1702 = vmatpush2.bf16.msra.mxu0 0
        %1703 = vmatprep.subr.bf16.mxu0 0
        %1704 = vmatpush2.bf16.msra.mxu0 0
        %1705 = vmatprep.subr.bf16.mxu0 0
        %1706 = vmatpush2.bf16.msra.mxu0 0
        %1707 = vmatprep.subr.bf16.mxu0 0
        %1708 = vmatpush2.bf16.msra.mxu0 0
        %1709 = vmatprep.subr.bf16.mxu0 0
        %1710 = vmatpush2.bf16.msra.mxu0 0
        %1711 = vmatprep.subr.bf16.mxu0 0
        %1712 = vmatpush2.bf16.msra.mxu0 0
        %1713 = vmatprep.subr.bf16.mxu0 0
        %1714 = vmatpush2.bf16.msra.mxu0 0
        %1715 = vmatprep.mubr.bf16.mxu0 0
        %1716 = vmatmul.mubr.bf16.gmra.mxu0 %v1672
        %v1717 = vpop.f32.mrf.mxu0
        %v1718 = vadd.f32 0.0, %v1717
        %v1719 = vpop.f32.mrf.mxu0
        %v1720 = vpop.f32.mrf.mxu0
        %v1721 = vadd.f32 0.0, %v1720
        %v1722 = vpop.f32.mrf.mxu0
        %1723 = vmatprep.mubr.bf16.mxu0 0
        %1724 = vmatmul.mubr.bf16.gmra.mxu0 %v1675
        %v1725 = vpop.f32.mrf.mxu0
        %v1726 = vadd.f32 0.0, %v1725
        %v1727 = vpop.f32.mrf.mxu0
        %v1728 = vpop.f32.mrf.mxu0
        %v1729 = vadd.f32 0.0, %v1728
        %v1730 = vpop.f32.mrf.mxu0
        %1731 = vmatprep.mubr.bf16.mxu0 0
        %1732 = vmatmul.mubr.bf16.gmra.mxu0 %v1678
        %v1733 = vpop.f32.mrf.mxu0
        %v1734 = vadd.f32 0.0, %v1733
        %v1735 = vpop.f32.mrf.mxu0
        %v1736 = vpop.f32.mrf.mxu0
        %v1737 = vadd.f32 0.0, %v1736
        %v1738 = vpop.f32.mrf.mxu0
        %1739 = vmatprep.mubr.bf16.mxu0 0
        %1740 = vmatmul.mubr.bf16.gmra.mxu0 %v1681
        %v1741 = vpop.f32.mrf.mxu0
        %v1742 = vadd.f32 0.0, %v1741
        %v1743 = vpop.f32.mrf.mxu0
        %v1744 = vpop.f32.mrf.mxu0
        %v1745 = vadd.f32 0.0, %v1744
        %v1746 = vpop.f32.mrf.mxu0
        %1747 = vdwg.mxu0
        %v1748 = vadd.f32 %v1620, %v1718
        %v1749 = vadd.f32 %v1623, %v1721
        %v1750 = vadd.f32 %v1628, %v1726
        %v1751 = vadd.f32 %v1631, %v1729
        %v1752 = vadd.f32 %v1636, %v1734
        %v1753 = vadd.f32 %v1639, %v1737
        %v1754 = vadd.f32 %v1644, %v1742
        %v1755 = vadd.f32 %v1647, %v1745
        %v1756 = vld [vmem:[%s9] sm:$0x1]
        %v1758 = vlaneseq
        %v1759 = vshrl.u32 %v1758, 7
        %v1760 = vsub.s32 0, %v1759
        %v1761 = vrot.slane %v1756, %v1760
        %v1763 = vadd.f32 %v1748, %v1761
        %v1764 = vadd.f32 %v1749, %v1761
        %v1765 = vadd.f32 %v1750, %v1761
        %v1766 = vadd.f32 %v1751, %v1761
        %v1767 = vadd.f32 %v1752, %v1761
        %v1768 = vadd.f32 %v1753, %v1761
        %v1769 = vadd.f32 %v1754, %v1761
        %v1770 = vadd.f32 %v1755, %v1761
        %v1771 = vadd.f32 %v1763, %v1419
        %v1772 = vadd.f32 %v1764, %v1420
        %v1773 = vadd.f32 %v1765, %v1421
        %v1774 = vadd.f32 %v1766, %v1422
        %v1775 = vadd.f32 %v1767, %v1423
        %v1776 = vadd.f32 %v1768, %v1424
        %v1777 = vadd.f32 %v1769, %v1425
        %v1778 = vadd.f32 %v1770, %v1426
        %v1779 = vmax.f32 %v1771, 0.0
        %v1780 = vmax.f32 %v1772, 0.0
        %v1781 = vmax.f32 %v1773, 0.0
        %v1782 = vmax.f32 %v1774, 0.0
        %v1783 = vmax.f32 %v1775, 0.0
        %v1784 = vmax.f32 %v1776, 0.0
        %v1785 = vmax.f32 %v1777, 0.0
        %v1786 = vmax.f32 %v1778, 0.0
        %1787 = vst.msk [vmem:[#allocation4] sm:$0x1] %vm1427, 0.0
        %1788 = vst.msk [vmem:[#allocation4 + $0x41] sm:$0x1] %vm1427, 0.0
        %1789 = vst.msk [vmem:[#allocation4 + $0x1] sm:$0xff] %vm1430, %v1779
        %1790 = vst.msk [vmem:[#allocation4 + $0x9] sm:$0xff] %vm1430, %v1780
        %1791 = vst.msk [vmem:[#allocation4 + $0x11] sm:$0xff] %vm1430, %v1781
        %1792 = vst.msk [vmem:[#allocation4 + $0x19] sm:$0xff] %vm1430, %v1782
        %1793 = vst.msk [vmem:[#allocation4 + $0x21] sm:$0xff] %vm1430, %v1783
        %1794 = vst.msk [vmem:[#allocation4 + $0x29] sm:$0xff] %vm1430, %v1784
        %1795 = vst.msk [vmem:[#allocation4 + $0x31] sm:$0xff] %vm1430, %v1785
        %1796 = vst.msk [vmem:[#allocation4 + $0x39] sm:$0xff] %vm1430, %v1786
        %v1797 = vld [vmem:[#allocation4] ss:$2 sm:$0xff]
        %s1798 = scalar_lea.vmem [#allocation4], 16
        %v1799 = vld [vmem:[%s1798] ss:$2 sm:$0xff]
        %s1800 = scalar_lea.vmem [#allocation4], 32
        %v1801 = vld [vmem:[%s1800] ss:$2 sm:$0xff]
        %s1802 = scalar_lea.vmem [#allocation4], 48
        %v1803 = vld [vmem:[%s1802] ss:$2 sm:$0xff]
        %s1804 = scalar_lea.vmem [#allocation4], 1
        %v1805 = vld [vmem:[%s1804] ss:$2 sm:$0xff]
        %s1806 = scalar_lea.vmem [#allocation4], 17
        %v1807 = vld [vmem:[%s1806] ss:$2 sm:$0xff]
        %s1808 = scalar_lea.vmem [#allocation4], 33
        %v1809 = vld [vmem:[%s1808] ss:$2 sm:$0xff]
        %s1810 = scalar_lea.vmem [#allocation4], 49
        %v1811 = vld [vmem:[%s1810] ss:$2 sm:$0xff]
        %s1812 = scalar_lea.vmem [#allocation4], 2
        %v1813 = vld [vmem:[%s1812] ss:$2 sm:$0xff]
        %s1814 = scalar_lea.vmem [#allocation4], 18
        %v1815 = vld [vmem:[%s1814] ss:$2 sm:$0xff]
        %s1816 = scalar_lea.vmem [#allocation4], 34
        %v1817 = vld [vmem:[%s1816] ss:$2 sm:$0xff]
        %s1818 = scalar_lea.vmem [#allocation4], 50
        %v1819 = vld [vmem:[%s1818] ss:$2 sm:$0xff]
        %v1820 = vld [vmem:[#allocation16] sm:$0xf]
        %v1821 = vld [vmem:[#allocation16 + $0x4] sm:$0xf]
        %v1822 = vld [vmem:[#allocation16 + $0x8] sm:$0xf]
        %v1823 = vld [vmem:[#allocation16 + $0xc] sm:$0xf]
        %v1824 = vpack.c.bf16 %v1799, %v1797
        %v1825 = vpack.c.bf16 %v1803, %v1801
        %s1826 = scalar_lea.vmem [#allocation16], 16
        %v1827 = vld [vmem:[%s1826] sm:$0xf]
        %v1828 = vld [vmem:[%s1826 + $0x4] sm:$0xf]
        %v1829 = vld [vmem:[%s1826 + $0x8] sm:$0xf]
        %v1830 = vld [vmem:[%s1826 + $0xc] sm:$0xf]
        %v1831 = vpack.c.bf16 %v1807, %v1805
        %v1832 = vpack.c.bf16 %v1811, %v1809
        %v1837 = vunpack.c.l.b16 %v1827
        %v1838 = vunpack.c.l.b16 %v1828
        %v1839 = vunpack.c.l.b16 %v1829
        %v1840 = vunpack.c.l.b16 %v1830
        %v1841 = vpack.c.b16 %v1838, %v1837
        %v1842 = vpack.c.b16 %v1840, %v1839
        %v1846 = vsel %vm1430, %v1831, 0
        %v1849 = vsel %vm1430, %v1832, 0
        %1851 = vmatprep.subr.bf16.mxu0 0
        %1852 = vmatpush1.bf16.msra.mxu0 0
        %1853 = vmatprep.subr.bf16.mxu0 0
        %1854 = vmatpush1.bf16.msra.mxu0 0
        %1855 = vmatprep.subr.bf16.mxu0 0
        %1856 = vmatpush1.bf16.msra.mxu0 0
        %1857 = vmatprep.subr.bf16.mxu0 0
        %1858 = vmatpush1.bf16.msra.mxu0 0
        %1859 = vmatprep.subr.bf16.mxu0 0
        %1860 = vmatpush1.bf16.msra.mxu0 0
        %1861 = vmatprep.subr.bf16.mxu0 0
        %1862 = vmatpush1.bf16.msra.mxu0 0
        %1863 = vmatprep.subr.bf16.mxu0 0
        %1864 = vmatpush1.bf16.msra.mxu0 %v1842
        %1865 = vmatprep.subr.bf16.mxu0 0
        %1866 = vmatpush1.bf16.msra.mxu0 %v1841
        %1867 = vmatprep.subr.bf16.mxu0 0
        %1868 = vmatpush2.bf16.msra.mxu0 0
        %1869 = vmatprep.subr.bf16.mxu0 0
        %1870 = vmatpush2.bf16.msra.mxu0 0
        %1871 = vmatprep.subr.bf16.mxu0 0
        %1872 = vmatpush2.bf16.msra.mxu0 0
        %1873 = vmatprep.subr.bf16.mxu0 0
        %1874 = vmatpush2.bf16.msra.mxu0 0
        %1875 = vmatprep.subr.bf16.mxu0 0
        %1876 = vmatpush2.bf16.msra.mxu0 0
        %1877 = vmatprep.subr.bf16.mxu0 0
        %1878 = vmatpush2.bf16.msra.mxu0 0
        %1879 = vmatprep.subr.bf16.mxu0 0
        %1880 = vmatpush2.bf16.msra.mxu0 0
        %1881 = vmatprep.subr.bf16.mxu0 0
        %1882 = vmatpush2.bf16.msra.mxu0 0
        %1883 = vmatprep.mubr.bf16.mxu0 0
        %1884 = vmatmul.mubr.bf16.gmra.mxu0 %v1846
        %v1885 = vpop.f32.mrf.mxu0
        %v1886 = vadd.f32 0.0, %v1885
        %v1887 = vpop.f32.mrf.mxu0
        %v1888 = vpop.f32.mrf.mxu0
        %v1889 = vadd.f32 0.0, %v1888
        %v1890 = vpop.f32.mrf.mxu0
        %1891 = vmatprep.mubr.bf16.mxu0 0
        %1892 = vmatmul.mubr.bf16.gmra.mxu0 %v1849
        %v1893 = vpop.f32.mrf.mxu0
        %v1894 = vadd.f32 0.0, %v1893
        %v1895 = vpop.f32.mrf.mxu0
        %v1896 = vpop.f32.mrf.mxu0
        %v1897 = vadd.f32 0.0, %v1896
        %v1898 = vpop.f32.mrf.mxu0
        %1899 = vdwg.mxu0
        %v1904 = vunpack.c.l.b16 %v1820
        %v1905 = vunpack.c.l.b16 %v1821
        %v1906 = vunpack.c.l.b16 %v1822
        %v1907 = vunpack.c.l.b16 %v1823
        %v1908 = vpack.c.b16 %v1905, %v1904
        %v1909 = vpack.c.b16 %v1907, %v1906
        %v1913 = vsel %vm1430, %v1824, 0
        %v1916 = vsel %vm1430, %v1825, 0
        %1918 = vmatprep.subr.bf16.mxu0 0
        %1919 = vmatpush1.bf16.msra.mxu0 0
        %1920 = vmatprep.subr.bf16.mxu0 0
        %1921 = vmatpush1.bf16.msra.mxu0 0
        %1922 = vmatprep.subr.bf16.mxu0 0
        %1923 = vmatpush1.bf16.msra.mxu0 0
        %1924 = vmatprep.subr.bf16.mxu0 0
        %1925 = vmatpush1.bf16.msra.mxu0 0
        %1926 = vmatprep.subr.bf16.mxu0 0
        %1927 = vmatpush1.bf16.msra.mxu0 0
        %1928 = vmatprep.subr.bf16.mxu0 0
        %1929 = vmatpush1.bf16.msra.mxu0 0
        %1930 = vmatprep.subr.bf16.mxu0 0
        %1931 = vmatpush1.bf16.msra.mxu0 %v1909
        %1932 = vmatprep.subr.bf16.mxu0 0
        %1933 = vmatpush1.bf16.msra.mxu0 %v1908
        %1934 = vmatprep.subr.bf16.mxu0 0
        %1935 = vmatpush2.bf16.msra.mxu0 0
        %1936 = vmatprep.subr.bf16.mxu0 0
        %1937 = vmatpush2.bf16.msra.mxu0 0
        %1938 = vmatprep.subr.bf16.mxu0 0
        %1939 = vmatpush2.bf16.msra.mxu0 0
        %1940 = vmatprep.subr.bf16.mxu0 0
        %1941 = vmatpush2.bf16.msra.mxu0 0
        %1942 = vmatprep.subr.bf16.mxu0 0
        %1943 = vmatpush2.bf16.msra.mxu0 0
        %1944 = vmatprep.subr.bf16.mxu0 0
        %1945 = vmatpush2.bf16.msra.mxu0 0
        %1946 = vmatprep.subr.bf16.mxu0 0
        %1947 = vmatpush2.bf16.msra.mxu0 0
        %1948 = vmatprep.subr.bf16.mxu0 0
        %1949 = vmatpush2.bf16.msra.mxu0 0
        %1950 = vmatprep.mubr.bf16.mxu0 0
        %1951 = vmatmul.mubr.bf16.gmra.mxu0 %v1913
        %v1952 = vpop.f32.mrf.mxu0
        %v1953 = vadd.f32 %v1886, %v1952
        %v1954 = vpop.f32.mrf.mxu0
        %v1955 = vpop.f32.mrf.mxu0
        %v1956 = vadd.f32 %v1889, %v1955
        %v1957 = vpop.f32.mrf.mxu0
        %1958 = vmatprep.mubr.bf16.mxu0 0
        %1959 = vmatmul.mubr.bf16.gmra.mxu0 %v1916
        %v1960 = vpop.f32.mrf.mxu0
        %v1961 = vadd.f32 %v1894, %v1960
        %v1962 = vpop.f32.mrf.mxu0
        %v1963 = vpop.f32.mrf.mxu0
        %v1964 = vadd.f32 %v1897, %v1963
        %v1965 = vpop.f32.mrf.mxu0
        %1966 = vdwg.mxu0
        %s1967 = scalar_lea.vmem [#allocation16], 32
        %v1968 = vld [vmem:[%s1967] sm:$0xf]
        %v1969 = vld [vmem:[%s1967 + $0x4] sm:$0xf]
        %v1970 = vld [vmem:[%s1967 + $0x8] sm:$0xf]
        %v1971 = vld [vmem:[%s1967 + $0xc] sm:$0xf]
        %v1972 = vpack.c.bf16 %v1815, %v1813
        %v1973 = vpack.c.bf16 %v1819, %v1817
        %v1978 = vunpack.c.l.b16 %v1968
        %v1979 = vunpack.c.l.b16 %v1969
        %v1980 = vunpack.c.l.b16 %v1970
        %v1981 = vunpack.c.l.b16 %v1971
        %v1982 = vpack.c.b16 %v1979, %v1978
        %v1983 = vpack.c.b16 %v1981, %v1980
        %v1987 = vsel %vm1430, %v1972, 0
        %v1990 = vsel %vm1430, %v1973, 0
        %1992 = vmatprep.subr.bf16.mxu0 0
        %1993 = vmatpush1.bf16.msra.mxu0 0
        %1994 = vmatprep.subr.bf16.mxu0 0
        %1995 = vmatpush1.bf16.msra.mxu0 0
        %1996 = vmatprep.subr.bf16.mxu0 0
        %1997 = vmatpush1.bf16.msra.mxu0 0
        %1998 = vmatprep.subr.bf16.mxu0 0
        %1999 = vmatpush1.bf16.msra.mxu0 0
        %2000 = vmatprep.subr.bf16.mxu0 0
        %2001 = vmatpush1.bf16.msra.mxu0 0
        %2002 = vmatprep.subr.bf16.mxu0 0
        %2003 = vmatpush1.bf16.msra.mxu0 0
        %2004 = vmatprep.subr.bf16.mxu0 0
        %2005 = vmatpush1.bf16.msra.mxu0 %v1983
        %2006 = vmatprep.subr.bf16.mxu0 0
        %2007 = vmatpush1.bf16.msra.mxu0 %v1982
        %2008 = vmatprep.subr.bf16.mxu0 0
        %2009 = vmatpush2.bf16.msra.mxu0 0
        %2010 = vmatprep.subr.bf16.mxu0 0
        %2011 = vmatpush2.bf16.msra.mxu0 0
        %2012 = vmatprep.subr.bf16.mxu0 0
        %2013 = vmatpush2.bf16.msra.mxu0 0
        %2014 = vmatprep.subr.bf16.mxu0 0
        %2015 = vmatpush2.bf16.msra.mxu0 0
        %2016 = vmatprep.subr.bf16.mxu0 0
        %2017 = vmatpush2.bf16.msra.mxu0 0
        %2018 = vmatprep.subr.bf16.mxu0 0
        %2019 = vmatpush2.bf16.msra.mxu0 0
        %2020 = vmatprep.subr.bf16.mxu0 0
        %2021 = vmatpush2.bf16.msra.mxu0 0
        %2022 = vmatprep.subr.bf16.mxu0 0
        %2023 = vmatpush2.bf16.msra.mxu0 0
        %2024 = vmatprep.mubr.bf16.mxu0 0
        %2025 = vmatmul.mubr.bf16.gmra.mxu0 %v1987
        %v2026 = vpop.f32.mrf.mxu0
        %v2027 = vadd.f32 0.0, %v2026
        %v2028 = vpop.f32.mrf.mxu0
        %v2029 = vpop.f32.mrf.mxu0
        %v2030 = vadd.f32 0.0, %v2029
        %v2031 = vpop.f32.mrf.mxu0
        %2032 = vmatprep.mubr.bf16.mxu0 0
        %2033 = vmatmul.mubr.bf16.gmra.mxu0 %v1990
        %v2034 = vpop.f32.mrf.mxu0
        %v2035 = vadd.f32 0.0, %v2034
        %v2036 = vpop.f32.mrf.mxu0
        %v2037 = vpop.f32.mrf.mxu0
        %v2038 = vadd.f32 0.0, %v2037
        %v2039 = vpop.f32.mrf.mxu0
        %2040 = vdwg.mxu0
        %v2041 = vadd.f32 %v1953, %v2027
        %v2042 = vadd.f32 %v1956, %v2030
        %v2043 = vadd.f32 %v1961, %v2035
        %v2044 = vadd.f32 %v1964, %v2038
        %v2045 = vld [vmem:[#allocation22] sm:$0xf]
        %v2046 = vld [vmem:[#allocation22 + $0x4] sm:$0xf]
        %v2047 = vld [vmem:[#allocation22 + $0x8] sm:$0xf]
        %v2048 = vld [vmem:[#allocation22 + $0xc] sm:$0xf]
        %v2049 = vld [vmem:[#allocation18] sm:$0x1]
        %v2051 = vlaneseq
        %v2052 = vshrl.u32 %v2051, 7
        %v2053 = vsub.s32 0, %v2052
        %v2054 = vrot.slane %v2049, %v2053
        %v2056 = vadd.f32 %v2041, %v2054
        %v2057 = vadd.f32 %v2042, %v2054
        %v2058 = vadd.f32 %v2043, %v2054
        %v2059 = vadd.f32 %v2044, %v2054
        %v2060 = vmax.f32 %v2056, 0.0
        %v2061 = vmax.f32 %v2057, 0.0
        %v2062 = vmax.f32 %v2058, 0.0
        %v2063 = vmax.f32 %v2059, 0.0
        %v2064 = vld [vmem:[#allocation24] sm:$0x1]
        %v2066 = vlaneseq
        %v2067 = vshrl.u32 %v2066, 7
        %v2068 = vsub.s32 0, %v2067
        %v2069 = vrot.slane %v2064, %v2068
        %v2075 = vunpack.c.l.b16 %v2045
        %v2076 = vunpack.c.l.b16 %v2046
        %v2077 = vunpack.c.l.b16 %v2047
        %v2078 = vunpack.c.l.b16 %v2048
        %v2079 = vpack.c.b16 %v2076, %v2075
        %v2080 = vpack.c.b16 %v2078, %v2077
        %2083 = vmatprep.subr.bf16.mxu0 0
        %2084 = vmatpush1.bf16.msra.mxu0 0
        %2085 = vmatprep.subr.bf16.mxu0 0
        %2086 = vmatpush1.bf16.msra.mxu0 0
        %2087 = vmatprep.subr.bf16.mxu0 0
        %2088 = vmatpush1.bf16.msra.mxu0 0
        %2089 = vmatprep.subr.bf16.mxu0 0
        %2090 = vmatpush1.bf16.msra.mxu0 0
        %2091 = vmatprep.subr.bf16.mxu0 0
        %2092 = vmatpush1.bf16.msra.mxu0 0
        %2093 = vmatprep.subr.bf16.mxu0 0
        %2094 = vmatpush1.bf16.msra.mxu0 0
        %2095 = vmatprep.subr.bf16.mxu0 0
        %2096 = vmatpush1.bf16.msra.mxu0 %v2080
        %2097 = vmatprep.subr.bf16.mxu0 0
        %2098 = vmatpush1.bf16.msra.mxu0 %v2079
        %2099 = vmatprep.subr.bf16.mxu0 0
        %2100 = vmatpush2.bf16.msra.mxu0 0
        %2101 = vmatprep.subr.bf16.mxu0 0
        %2102 = vmatpush2.bf16.msra.mxu0 0
        %2103 = vmatprep.subr.bf16.mxu0 0
        %2104 = vmatpush2.bf16.msra.mxu0 0
        %2105 = vmatprep.subr.bf16.mxu0 0
        %2106 = vmatpush2.bf16.msra.mxu0 0
        %2107 = vmatprep.subr.bf16.mxu0 0
        %2108 = vmatpush2.bf16.msra.mxu0 0
        %2109 = vmatprep.subr.bf16.mxu0 0
        %2110 = vmatpush2.bf16.msra.mxu0 0
        %2111 = vmatprep.subr.bf16.mxu0 0
        %2112 = vmatpush2.bf16.msra.mxu0 0
        %2113 = vmatprep.subr.bf16.mxu0 0
        %2114 = vmatpush2.bf16.msra.mxu0 0
        %2115 = vmatprep.mubr.bf16.mxu0 0
        %2116 = vmatmul.mubr.bf16.gmra.mxu0 %v1846
        %v2117 = vpop.f32.mrf.mxu0
        %v2118 = vadd.f32 %v2069, %v2117
        %v2119 = vpop.f32.mrf.mxu0
        %v2120 = vpop.f32.mrf.mxu0
        %v2121 = vadd.f32 %v2069, %v2120
        %v2122 = vpop.f32.mrf.mxu0
        %2123 = vmatprep.mubr.bf16.mxu0 0
        %2124 = vmatmul.mubr.bf16.gmra.mxu0 %v1849
        %v2125 = vpop.f32.mrf.mxu0
        %v2126 = vadd.f32 %v2069, %v2125
        %v2127 = vpop.f32.mrf.mxu0
        %v2128 = vpop.f32.mrf.mxu0
        %v2129 = vadd.f32 %v2069, %v2128
        %v2130 = vpop.f32.mrf.mxu0
        %2131 = vdwg.mxu0
        %vm2132 = vcmask 516096
        %2133 = vst.msk [vmem:[#allocation5] sm:$0x1] %vm2132, 0.0
        %2134 = vst.msk [vmem:[#allocation5 + $0x21] sm:$0x1] %vm2132, 0.0
        %vm2135 = vcmask 523264
        %2136 = vst.msk [vmem:[#allocation5 + $0x1] sm:$0xff] %vm2135, %v2060
        %2137 = vst.msk [vmem:[#allocation5 + $0x9] sm:$0xff] %vm2135, %v2061
        %2138 = vst.msk [vmem:[#allocation5 + $0x11] sm:$0xff] %vm2135, %v2062
        %2139 = vst.msk [vmem:[#allocation5 + $0x19] sm:$0xff] %vm2135, %v2063
        %v2140 = vld [vmem:[#allocation5] sm:$0xff]
        %v2141 = vld [vmem:[#allocation5 + $0x8] sm:$0xff]
        %v2142 = vld [vmem:[#allocation5 + $0x10] sm:$0xff]
        %v2143 = vld [vmem:[#allocation5 + $0x18] sm:$0xff]
        %v2144 = vld [vmem:[#allocation5 + $0x2] sm:$0xff]
        %v2145 = vld [vmem:[#allocation5 + $0xa] sm:$0xff]
        %v2146 = vld [vmem:[#allocation5 + $0x12] sm:$0xff]
        %v2147 = vld [vmem:[#allocation5 + $0x1a] sm:$0xff]
        %v2148 = vld [vmem:[#allocation19] sm:$0xf]
        %v2149 = vld [vmem:[#allocation19 + $0x4] sm:$0xf]
        %v2150 = vld [vmem:[#allocation19 + $0x8] sm:$0xf]
        %v2151 = vld [vmem:[#allocation19 + $0xc] sm:$0xf]
        %v2152 = vld [vmem:[#allocation19 + $0x10] sm:$0xf]
        %v2153 = vld [vmem:[#allocation19 + $0x14] sm:$0xf]
        %v2154 = vld [vmem:[#allocation19 + $0x18] sm:$0xf]
        %v2155 = vld [vmem:[#allocation19 + $0x1c] sm:$0xf]
        %v2156 = vpack.c.bf16 %v2141, %v2140
        %v2157 = vpack.c.bf16 %v2143, %v2142
        %s2158 = scalar_lea.vmem [#allocation19], 32
        %v2159 = vld [vmem:[%s2158] sm:$0xf]
        %v2160 = vld [vmem:[%s2158 + $0x4] sm:$0xf]
        %v2161 = vld [vmem:[%s2158 + $0x8] sm:$0xf]
        %v2162 = vld [vmem:[%s2158 + $0xc] sm:$0xf]
        %v2163 = vld [vmem:[%s2158 + $0x10] sm:$0xf]
        %v2164 = vld [vmem:[%s2158 + $0x14] sm:$0xf]
        %v2165 = vld [vmem:[%s2158 + $0x18] sm:$0xf]
        %v2166 = vld [vmem:[%s2158 + $0x1c] sm:$0xf]
        %v2167 = vpack.c.bf16 %v2061, %v2060
        %v2168 = vpack.c.bf16 %v2063, %v2062
        %v2177 = vunpack.c.l.b16 %v2159
        %v2178 = vunpack.c.l.b16 %v2160
        %v2179 = vunpack.c.l.b16 %v2161
        %v2180 = vunpack.c.l.b16 %v2162
        %v2181 = vunpack.c.l.b16 %v2163
        %v2182 = vunpack.c.l.b16 %v2164
        %v2183 = vunpack.c.l.b16 %v2165
        %v2184 = vunpack.c.l.b16 %v2166
        %v2185 = vpack.c.b16 %v2178, %v2177
        %v2186 = vpack.c.b16 %v2180, %v2179
        %v2187 = vpack.c.b16 %v2182, %v2181
        %v2188 = vpack.c.b16 %v2184, %v2183
        %v2194 = vsel %vm2135, %v2167, 0
        %v2197 = vsel %vm2135, %v2168, 0
        %2199 = vmatprep.subr.bf16.mxu0 0
        %2200 = vmatpush1.bf16.msra.mxu0 0
        %2201 = vmatprep.subr.bf16.mxu0 0
        %2202 = vmatpush1.bf16.msra.mxu0 0
        %2203 = vmatprep.subr.bf16.mxu0 0
        %2204 = vmatpush1.bf16.msra.mxu0 0
        %2205 = vmatprep.subr.bf16.mxu0 0
        %2206 = vmatpush1.bf16.msra.mxu0 0
        %2207 = vmatprep.subr.bf16.mxu0 0
        %2208 = vmatpush1.bf16.msra.mxu0 %v2188
        %2209 = vmatprep.subr.bf16.mxu0 0
        %2210 = vmatpush1.bf16.msra.mxu0 %v2187
        %2211 = vmatprep.subr.bf16.mxu0 0
        %2212 = vmatpush1.bf16.msra.mxu0 %v2186
        %2213 = vmatprep.subr.bf16.mxu0 0
        %2214 = vmatpush1.bf16.msra.mxu0 %v2185
        %2215 = vmatprep.subr.bf16.mxu0 0
        %2216 = vmatpush2.bf16.msra.mxu0 0
        %2217 = vmatprep.subr.bf16.mxu0 0
        %2218 = vmatpush2.bf16.msra.mxu0 0
        %2219 = vmatprep.subr.bf16.mxu0 0
        %2220 = vmatpush2.bf16.msra.mxu0 0
        %2221 = vmatprep.subr.bf16.mxu0 0
        %2222 = vmatpush2.bf16.msra.mxu0 0
        %2223 = vmatprep.subr.bf16.mxu0 0
        %2224 = vmatpush2.bf16.msra.mxu0 0
        %2225 = vmatprep.subr.bf16.mxu0 0
        %2226 = vmatpush2.bf16.msra.mxu0 0
        %2227 = vmatprep.subr.bf16.mxu0 0
        %2228 = vmatpush2.bf16.msra.mxu0 0
        %2229 = vmatprep.subr.bf16.mxu0 0
        %2230 = vmatpush2.bf16.msra.mxu0 0
        %2231 = vmatprep.mubr.bf16.mxu0 0
        %2232 = vmatmul.mubr.bf16.gmra.mxu0 %v2194
        %v2233 = vpop.f32.mrf.mxu0
        %v2234 = vadd.f32 0.0, %v2233
        %v2235 = vpop.f32.mrf.mxu0
        %v2236 = vpop.f32.mrf.mxu0
        %v2237 = vadd.f32 0.0, %v2236
        %v2238 = vpop.f32.mrf.mxu0
        %2239 = vmatprep.mubr.bf16.mxu0 0
        %2240 = vmatmul.mubr.bf16.gmra.mxu0 %v2197
        %v2241 = vpop.f32.mrf.mxu0
        %v2242 = vadd.f32 0.0, %v2241
        %v2243 = vpop.f32.mrf.mxu0
        %v2244 = vpop.f32.mrf.mxu0
        %v2245 = vadd.f32 0.0, %v2244
        %v2246 = vpop.f32.mrf.mxu0
        %2247 = vdwg.mxu0
        %v2256 = vunpack.c.l.b16 %v2148
        %v2257 = vunpack.c.l.b16 %v2149
        %v2258 = vunpack.c.l.b16 %v2150
        %v2259 = vunpack.c.l.b16 %v2151
        %v2260 = vunpack.c.l.b16 %v2152
        %v2261 = vunpack.c.l.b16 %v2153
        %v2262 = vunpack.c.l.b16 %v2154
        %v2263 = vunpack.c.l.b16 %v2155
        %v2264 = vpack.c.b16 %v2257, %v2256
        %v2265 = vpack.c.b16 %v2259, %v2258
        %v2266 = vpack.c.b16 %v2261, %v2260
        %v2267 = vpack.c.b16 %v2263, %v2262
        %v2273 = vsel %vm2135, %v2156, 0
        %v2276 = vsel %vm2135, %v2157, 0
        %2278 = vmatprep.subr.bf16.mxu0 0
        %2279 = vmatpush1.bf16.msra.mxu0 0
        %2280 = vmatprep.subr.bf16.mxu0 0
        %2281 = vmatpush1.bf16.msra.mxu0 0
        %2282 = vmatprep.subr.bf16.mxu0 0
        %2283 = vmatpush1.bf16.msra.mxu0 0
        %2284 = vmatprep.subr.bf16.mxu0 0
        %2285 = vmatpush1.bf16.msra.mxu0 0
        %2286 = vmatprep.subr.bf16.mxu0 0
        %2287 = vmatpush1.bf16.msra.mxu0 %v2267
        %2288 = vmatprep.subr.bf16.mxu0 0
        %2289 = vmatpush1.bf16.msra.mxu0 %v2266
        %2290 = vmatprep.subr.bf16.mxu0 0
        %2291 = vmatpush1.bf16.msra.mxu0 %v2265
        %2292 = vmatprep.subr.bf16.mxu0 0
        %2293 = vmatpush1.bf16.msra.mxu0 %v2264
        %2294 = vmatprep.subr.bf16.mxu0 0
        %2295 = vmatpush2.bf16.msra.mxu0 0
        %2296 = vmatprep.subr.bf16.mxu0 0
        %2297 = vmatpush2.bf16.msra.mxu0 0
        %2298 = vmatprep.subr.bf16.mxu0 0
        %2299 = vmatpush2.bf16.msra.mxu0 0
        %2300 = vmatprep.subr.bf16.mxu0 0
        %2301 = vmatpush2.bf16.msra.mxu0 0
        %2302 = vmatprep.subr.bf16.mxu0 0
        %2303 = vmatpush2.bf16.msra.mxu0 0
        %2304 = vmatprep.subr.bf16.mxu0 0
        %2305 = vmatpush2.bf16.msra.mxu0 0
        %2306 = vmatprep.subr.bf16.mxu0 0
        %2307 = vmatpush2.bf16.msra.mxu0 0
        %2308 = vmatprep.subr.bf16.mxu0 0
        %2309 = vmatpush2.bf16.msra.mxu0 0
        %2310 = vmatprep.mubr.bf16.mxu0 0
        %2311 = vmatmul.mubr.bf16.gmra.mxu0 %v2273
        %v2312 = vpop.f32.mrf.mxu0
        %v2313 = vadd.f32 %v2234, %v2312
        %v2314 = vpop.f32.mrf.mxu0
        %v2315 = vpop.f32.mrf.mxu0
        %v2316 = vadd.f32 %v2237, %v2315
        %v2317 = vpop.f32.mrf.mxu0
        %2318 = vmatprep.mubr.bf16.mxu0 0
        %2319 = vmatmul.mubr.bf16.gmra.mxu0 %v2276
        %v2320 = vpop.f32.mrf.mxu0
        %v2321 = vadd.f32 %v2242, %v2320
        %v2322 = vpop.f32.mrf.mxu0
        %v2323 = vpop.f32.mrf.mxu0
        %v2324 = vadd.f32 %v2245, %v2323
        %v2325 = vpop.f32.mrf.mxu0
        %2326 = vdwg.mxu0
        %s2327 = scalar_lea.vmem [#allocation19], 64
        %v2328 = vld [vmem:[%s2327] sm:$0xf]
        %v2329 = vld [vmem:[%s2327 + $0x4] sm:$0xf]
        %v2330 = vld [vmem:[%s2327 + $0x8] sm:$0xf]
        %v2331 = vld [vmem:[%s2327 + $0xc] sm:$0xf]
        %v2332 = vld [vmem:[%s2327 + $0x10] sm:$0xf]
        %v2333 = vld [vmem:[%s2327 + $0x14] sm:$0xf]
        %v2334 = vld [vmem:[%s2327 + $0x18] sm:$0xf]
        %v2335 = vld [vmem:[%s2327 + $0x1c] sm:$0xf]
        %v2336 = vpack.c.bf16 %v2145, %v2144
        %v2337 = vpack.c.bf16 %v2147, %v2146
        %v2346 = vunpack.c.l.b16 %v2328
        %v2347 = vunpack.c.l.b16 %v2329
        %v2348 = vunpack.c.l.b16 %v2330
        %v2349 = vunpack.c.l.b16 %v2331
        %v2350 = vunpack.c.l.b16 %v2332
        %v2351 = vunpack.c.l.b16 %v2333
        %v2352 = vunpack.c.l.b16 %v2334
        %v2353 = vunpack.c.l.b16 %v2335
        %v2354 = vpack.c.b16 %v2347, %v2346
        %v2355 = vpack.c.b16 %v2349, %v2348
        %v2356 = vpack.c.b16 %v2351, %v2350
        %v2357 = vpack.c.b16 %v2353, %v2352
        %v2363 = vsel %vm2135, %v2336, 0
        %v2366 = vsel %vm2135, %v2337, 0
        %2368 = vmatprep.subr.bf16.mxu0 0
        %2369 = vmatpush1.bf16.msra.mxu0 0
        %2370 = vmatprep.subr.bf16.mxu0 0
        %2371 = vmatpush1.bf16.msra.mxu0 0
        %2372 = vmatprep.subr.bf16.mxu0 0
        %2373 = vmatpush1.bf16.msra.mxu0 0
        %2374 = vmatprep.subr.bf16.mxu0 0
        %2375 = vmatpush1.bf16.msra.mxu0 0
        %2376 = vmatprep.subr.bf16.mxu0 0
        %2377 = vmatpush1.bf16.msra.mxu0 %v2357
        %2378 = vmatprep.subr.bf16.mxu0 0
        %2379 = vmatpush1.bf16.msra.mxu0 %v2356
        %2380 = vmatprep.subr.bf16.mxu0 0
        %2381 = vmatpush1.bf16.msra.mxu0 %v2355
        %2382 = vmatprep.subr.bf16.mxu0 0
        %2383 = vmatpush1.bf16.msra.mxu0 %v2354
        %2384 = vmatprep.subr.bf16.mxu0 0
        %2385 = vmatpush2.bf16.msra.mxu0 0
        %2386 = vmatprep.subr.bf16.mxu0 0
        %2387 = vmatpush2.bf16.msra.mxu0 0
        %2388 = vmatprep.subr.bf16.mxu0 0
        %2389 = vmatpush2.bf16.msra.mxu0 0
        %2390 = vmatprep.subr.bf16.mxu0 0
        %2391 = vmatpush2.bf16.msra.mxu0 0
        %2392 = vmatprep.subr.bf16.mxu0 0
        %2393 = vmatpush2.bf16.msra.mxu0 0
        %2394 = vmatprep.subr.bf16.mxu0 0
        %2395 = vmatpush2.bf16.msra.mxu0 0
        %2396 = vmatprep.subr.bf16.mxu0 0
        %2397 = vmatpush2.bf16.msra.mxu0 0
        %2398 = vmatprep.subr.bf16.mxu0 0
        %2399 = vmatpush2.bf16.msra.mxu0 0
        %2400 = vmatprep.mubr.bf16.mxu0 0
        %2401 = vmatmul.mubr.bf16.gmra.mxu0 %v2363
        %v2402 = vpop.f32.mrf.mxu0
        %v2403 = vadd.f32 0.0, %v2402
        %v2404 = vpop.f32.mrf.mxu0
        %v2405 = vpop.f32.mrf.mxu0
        %v2406 = vadd.f32 0.0, %v2405
        %v2407 = vpop.f32.mrf.mxu0
        %2408 = vmatprep.mubr.bf16.mxu0 0
        %2409 = vmatmul.mubr.bf16.gmra.mxu0 %v2366
        %v2410 = vpop.f32.mrf.mxu0
        %v2411 = vadd.f32 0.0, %v2410
        %v2412 = vpop.f32.mrf.mxu0
        %v2413 = vpop.f32.mrf.mxu0
        %v2414 = vadd.f32 0.0, %v2413
        %v2415 = vpop.f32.mrf.mxu0
        %2416 = vdwg.mxu0
        %v2417 = vadd.f32 %v2313, %v2403
        %v2418 = vadd.f32 %v2316, %v2406
        %v2419 = vadd.f32 %v2321, %v2411
        %v2420 = vadd.f32 %v2324, %v2414
        %v2421 = vld [vmem:[#allocation21] sm:$0x1]
        %v2423 = vlaneseq
        %v2424 = vshrl.u32 %v2423, 7
        %v2425 = vsub.s32 0, %v2424
        %v2426 = vrot.slane %v2421, %v2425
        %v2428 = vadd.f32 %v2417, %v2426
        %v2429 = vadd.f32 %v2418, %v2426
        %v2430 = vadd.f32 %v2419, %v2426
        %v2431 = vadd.f32 %v2420, %v2426
        %v2432 = vadd.f32 %v2428, %v2118
        %v2433 = vadd.f32 %v2429, %v2121
        %v2434 = vadd.f32 %v2430, %v2126
        %v2435 = vadd.f32 %v2431, %v2129
        %v2436 = vmax.f32 %v2432, 0.0
        %v2437 = vmax.f32 %v2433, 0.0
        %v2438 = vmax.f32 %v2434, 0.0
        %v2439 = vmax.f32 %v2435, 0.0
        %2440 = vst.msk [vmem:[#allocation6] sm:$0x1] %vm2132, 0.0
        %2441 = vst.msk [vmem:[#allocation6 + $0x21] sm:$0x1] %vm2132, 0.0
        %2442 = vst.msk [vmem:[#allocation6 + $0x1] sm:$0xff] %vm2135, %v2436
        %2443 = vst.msk [vmem:[#allocation6 + $0x9] sm:$0xff] %vm2135, %v2437
        %2444 = vst.msk [vmem:[#allocation6 + $0x11] sm:$0xff] %vm2135, %v2438
        %2445 = vst.msk [vmem:[#allocation6 + $0x19] sm:$0xff] %vm2135, %v2439
        %v2446 = vld [vmem:[#allocation6] sm:$0xff]
        %v2447 = vld [vmem:[#allocation6 + $0x8] sm:$0xff]
        %v2448 = vld [vmem:[#allocation6 + $0x10] sm:$0xff]
        %v2449 = vld [vmem:[#allocation6 + $0x18] sm:$0xff]
        %v2450 = vld [vmem:[#allocation6 + $0x1] sm:$0xff]
        %v2451 = vld [vmem:[#allocation6 + $0x9] sm:$0xff]
        %v2452 = vld [vmem:[#allocation6 + $0x11] sm:$0xff]
        %v2453 = vld [vmem:[#allocation6 + $0x19] sm:$0xff]
        %v2454 = vld [vmem:[#allocation6 + $0x2] sm:$0xff]
        %v2455 = vld [vmem:[#allocation6 + $0xa] sm:$0xff]
        %v2456 = vld [vmem:[#allocation6 + $0x12] sm:$0xff]
        %v2457 = vld [vmem:[#allocation6 + $0x1a] sm:$0xff]
        %v2458 = vld [vmem:[#allocation25] sm:$0xf]
        %v2459 = vld [vmem:[#allocation25 + $0x4] sm:$0xf]
        %v2460 = vld [vmem:[#allocation25 + $0x8] sm:$0xf]
        %v2461 = vld [vmem:[#allocation25 + $0xc] sm:$0xf]
        %v2462 = vld [vmem:[#allocation25 + $0x10] sm:$0xf]
        %v2463 = vld [vmem:[#allocation25 + $0x14] sm:$0xf]
        %v2464 = vld [vmem:[#allocation25 + $0x18] sm:$0xf]
        %v2465 = vld [vmem:[#allocation25 + $0x1c] sm:$0xf]
        %v2466 = vpack.c.bf16 %v2447, %v2446
        %v2467 = vpack.c.bf16 %v2449, %v2448
        %s2468 = scalar_lea.vmem [#allocation25], 32
        %v2469 = vld [vmem:[%s2468] sm:$0xf]
        %v2470 = vld [vmem:[%s2468 + $0x4] sm:$0xf]
        %v2471 = vld [vmem:[%s2468 + $0x8] sm:$0xf]
        %v2472 = vld [vmem:[%s2468 + $0xc] sm:$0xf]
        %v2473 = vld [vmem:[%s2468 + $0x10] sm:$0xf]
        %v2474 = vld [vmem:[%s2468 + $0x14] sm:$0xf]
        %v2475 = vld [vmem:[%s2468 + $0x18] sm:$0xf]
        %v2476 = vld [vmem:[%s2468 + $0x1c] sm:$0xf]
        %v2477 = vpack.c.bf16 %v2451, %v2450
        %v2478 = vpack.c.bf16 %v2453, %v2452
        %v2487 = vunpack.c.l.b16 %v2469
        %v2488 = vunpack.c.l.b16 %v2470
        %v2489 = vunpack.c.l.b16 %v2471
        %v2490 = vunpack.c.l.b16 %v2472
        %v2491 = vunpack.c.l.b16 %v2473
        %v2492 = vunpack.c.l.b16 %v2474
        %v2493 = vunpack.c.l.b16 %v2475
        %v2494 = vunpack.c.l.b16 %v2476
        %v2495 = vpack.c.b16 %v2488, %v2487
        %v2496 = vpack.c.b16 %v2490, %v2489
        %v2497 = vpack.c.b16 %v2492, %v2491
        %v2498 = vpack.c.b16 %v2494, %v2493
        %v2504 = vsel %vm2135, %v2477, 0
        %v2507 = vsel %vm2135, %v2478, 0
        %2509 = vmatprep.subr.bf16.mxu0 0
        %2510 = vmatpush1.bf16.msra.mxu0 0
        %2511 = vmatprep.subr.bf16.mxu0 0
        %2512 = vmatpush1.bf16.msra.mxu0 0
        %2513 = vmatprep.subr.bf16.mxu0 0
        %2514 = vmatpush1.bf16.msra.mxu0 0
        %2515 = vmatprep.subr.bf16.mxu0 0
        %2516 = vmatpush1.bf16.msra.mxu0 0
        %2517 = vmatprep.subr.bf16.mxu0 0
        %2518 = vmatpush1.bf16.msra.mxu0 %v2498
        %2519 = vmatprep.subr.bf16.mxu0 0
        %2520 = vmatpush1.bf16.msra.mxu0 %v2497
        %2521 = vmatprep.subr.bf16.mxu0 0
        %2522 = vmatpush1.bf16.msra.mxu0 %v2496
        %2523 = vmatprep.subr.bf16.mxu0 0
        %2524 = vmatpush1.bf16.msra.mxu0 %v2495
        %2525 = vmatprep.subr.bf16.mxu0 0
        %2526 = vmatpush2.bf16.msra.mxu0 0
        %2527 = vmatprep.subr.bf16.mxu0 0
        %2528 = vmatpush2.bf16.msra.mxu0 0
        %2529 = vmatprep.subr.bf16.mxu0 0
        %2530 = vmatpush2.bf16.msra.mxu0 0
        %2531 = vmatprep.subr.bf16.mxu0 0
        %2532 = vmatpush2.bf16.msra.mxu0 0
        %2533 = vmatprep.subr.bf16.mxu0 0
        %2534 = vmatpush2.bf16.msra.mxu0 0
        %2535 = vmatprep.subr.bf16.mxu0 0
        %2536 = vmatpush2.bf16.msra.mxu0 0
        %2537 = vmatprep.subr.bf16.mxu0 0
        %2538 = vmatpush2.bf16.msra.mxu0 0
        %2539 = vmatprep.subr.bf16.mxu0 0
        %2540 = vmatpush2.bf16.msra.mxu0 0
        %2541 = vmatprep.mubr.bf16.mxu0 0
        %2542 = vmatmul.mubr.bf16.gmra.mxu0 %v2504
        %v2543 = vpop.f32.mrf.mxu0
        %v2544 = vadd.f32 0.0, %v2543
        %v2545 = vpop.f32.mrf.mxu0
        %v2546 = vpop.f32.mrf.mxu0
        %v2547 = vadd.f32 0.0, %v2546
        %v2548 = vpop.f32.mrf.mxu0
        %2549 = vmatprep.mubr.bf16.mxu0 0
        %2550 = vmatmul.mubr.bf16.gmra.mxu0 %v2507
        %v2551 = vpop.f32.mrf.mxu0
        %v2552 = vadd.f32 0.0, %v2551
        %v2553 = vpop.f32.mrf.mxu0
        %v2554 = vpop.f32.mrf.mxu0
        %v2555 = vadd.f32 0.0, %v2554
        %v2556 = vpop.f32.mrf.mxu0
        %2557 = vdwg.mxu0
        %v2566 = vunpack.c.l.b16 %v2458
        %v2567 = vunpack.c.l.b16 %v2459
        %v2568 = vunpack.c.l.b16 %v2460
        %v2569 = vunpack.c.l.b16 %v2461
        %v2570 = vunpack.c.l.b16 %v2462
        %v2571 = vunpack.c.l.b16 %v2463
        %v2572 = vunpack.c.l.b16 %v2464
        %v2573 = vunpack.c.l.b16 %v2465
        %v2574 = vpack.c.b16 %v2567, %v2566
        %v2575 = vpack.c.b16 %v2569, %v2568
        %v2576 = vpack.c.b16 %v2571, %v2570
        %v2577 = vpack.c.b16 %v2573, %v2572
        %v2583 = vsel %vm2135, %v2466, 0
        %v2586 = vsel %vm2135, %v2467, 0
        %2588 = vmatprep.subr.bf16.mxu0 0
        %2589 = vmatpush1.bf16.msra.mxu0 0
        %2590 = vmatprep.subr.bf16.mxu0 0
        %2591 = vmatpush1.bf16.msra.mxu0 0
        %2592 = vmatprep.subr.bf16.mxu0 0
        %2593 = vmatpush1.bf16.msra.mxu0 0
        %2594 = vmatprep.subr.bf16.mxu0 0
        %2595 = vmatpush1.bf16.msra.mxu0 0
        %2596 = vmatprep.subr.bf16.mxu0 0
        %2597 = vmatpush1.bf16.msra.mxu0 %v2577
        %2598 = vmatprep.subr.bf16.mxu0 0
        %2599 = vmatpush1.bf16.msra.mxu0 %v2576
        %2600 = vmatprep.subr.bf16.mxu0 0
        %2601 = vmatpush1.bf16.msra.mxu0 %v2575
        %2602 = vmatprep.subr.bf16.mxu0 0
        %2603 = vmatpush1.bf16.msra.mxu0 %v2574
        %2604 = vmatprep.subr.bf16.mxu0 0
        %2605 = vmatpush2.bf16.msra.mxu0 0
        %2606 = vmatprep.subr.bf16.mxu0 0
        %2607 = vmatpush2.bf16.msra.mxu0 0
        %2608 = vmatprep.subr.bf16.mxu0 0
        %2609 = vmatpush2.bf16.msra.mxu0 0
        %2610 = vmatprep.subr.bf16.mxu0 0
        %2611 = vmatpush2.bf16.msra.mxu0 0
        %2612 = vmatprep.subr.bf16.mxu0 0
        %2613 = vmatpush2.bf16.msra.mxu0 0
        %2614 = vmatprep.subr.bf16.mxu0 0
        %2615 = vmatpush2.bf16.msra.mxu0 0
        %2616 = vmatprep.subr.bf16.mxu0 0
        %2617 = vmatpush2.bf16.msra.mxu0 0
        %2618 = vmatprep.subr.bf16.mxu0 0
        %2619 = vmatpush2.bf16.msra.mxu0 0
        %2620 = vmatprep.mubr.bf16.mxu0 0
        %2621 = vmatmul.mubr.bf16.gmra.mxu0 %v2583
        %v2622 = vpop.f32.mrf.mxu0
        %v2623 = vadd.f32 %v2544, %v2622
        %v2624 = vpop.f32.mrf.mxu0
        %v2625 = vpop.f32.mrf.mxu0
        %v2626 = vadd.f32 %v2547, %v2625
        %v2627 = vpop.f32.mrf.mxu0
        %2628 = vmatprep.mubr.bf16.mxu0 0
        %2629 = vmatmul.mubr.bf16.gmra.mxu0 %v2586
        %v2630 = vpop.f32.mrf.mxu0
        %v2631 = vadd.f32 %v2552, %v2630
        %v2632 = vpop.f32.mrf.mxu0
        %v2633 = vpop.f32.mrf.mxu0
        %v2634 = vadd.f32 %v2555, %v2633
        %v2635 = vpop.f32.mrf.mxu0
        %2636 = vdwg.mxu0
        %s2637 = scalar_lea.vmem [#allocation25], 64
        %v2638 = vld [vmem:[%s2637] sm:$0xf]
        %v2639 = vld [vmem:[%s2637 + $0x4] sm:$0xf]
        %v2640 = vld [vmem:[%s2637 + $0x8] sm:$0xf]
        %v2641 = vld [vmem:[%s2637 + $0xc] sm:$0xf]
        %v2642 = vld [vmem:[%s2637 + $0x10] sm:$0xf]
        %v2643 = vld [vmem:[%s2637 + $0x14] sm:$0xf]
        %v2644 = vld [vmem:[%s2637 + $0x18] sm:$0xf]
        %v2645 = vld [vmem:[%s2637 + $0x1c] sm:$0xf]
        %v2646 = vpack.c.bf16 %v2455, %v2454
        %v2647 = vpack.c.bf16 %v2457, %v2456
        %v2656 = vunpack.c.l.b16 %v2638
        %v2657 = vunpack.c.l.b16 %v2639
        %v2658 = vunpack.c.l.b16 %v2640
        %v2659 = vunpack.c.l.b16 %v2641
        %v2660 = vunpack.c.l.b16 %v2642
        %v2661 = vunpack.c.l.b16 %v2643
        %v2662 = vunpack.c.l.b16 %v2644
        %v2663 = vunpack.c.l.b16 %v2645
        %v2664 = vpack.c.b16 %v2657, %v2656
        %v2665 = vpack.c.b16 %v2659, %v2658
        %v2666 = vpack.c.b16 %v2661, %v2660
        %v2667 = vpack.c.b16 %v2663, %v2662
        %v2673 = vsel %vm2135, %v2646, 0
        %v2676 = vsel %vm2135, %v2647, 0
        %2678 = vmatprep.subr.bf16.mxu0 0
        %2679 = vmatpush1.bf16.msra.mxu0 0
        %2680 = vmatprep.subr.bf16.mxu0 0
        %2681 = vmatpush1.bf16.msra.mxu0 0
        %2682 = vmatprep.subr.bf16.mxu0 0
        %2683 = vmatpush1.bf16.msra.mxu0 0
        %2684 = vmatprep.subr.bf16.mxu0 0
        %2685 = vmatpush1.bf16.msra.mxu0 0
        %2686 = vmatprep.subr.bf16.mxu0 0
        %2687 = vmatpush1.bf16.msra.mxu0 %v2667
        %2688 = vmatprep.subr.bf16.mxu0 0
        %2689 = vmatpush1.bf16.msra.mxu0 %v2666
        %2690 = vmatprep.subr.bf16.mxu0 0
        %2691 = vmatpush1.bf16.msra.mxu0 %v2665
        %2692 = vmatprep.subr.bf16.mxu0 0
        %2693 = vmatpush1.bf16.msra.mxu0 %v2664
        %2694 = vmatprep.subr.bf16.mxu0 0
        %2695 = vmatpush2.bf16.msra.mxu0 0
        %2696 = vmatprep.subr.bf16.mxu0 0
        %2697 = vmatpush2.bf16.msra.mxu0 0
        %2698 = vmatprep.subr.bf16.mxu0 0
        %2699 = vmatpush2.bf16.msra.mxu0 0
        %2700 = vmatprep.subr.bf16.mxu0 0
        %2701 = vmatpush2.bf16.msra.mxu0 0
        %2702 = vmatprep.subr.bf16.mxu0 0
        %2703 = vmatpush2.bf16.msra.mxu0 0
        %2704 = vmatprep.subr.bf16.mxu0 0
        %2705 = vmatpush2.bf16.msra.mxu0 0
        %2706 = vmatprep.subr.bf16.mxu0 0
        %2707 = vmatpush2.bf16.msra.mxu0 0
        %2708 = vmatprep.subr.bf16.mxu0 0
        %2709 = vmatpush2.bf16.msra.mxu0 0
        %2710 = vmatprep.mubr.bf16.mxu0 0
        %2711 = vmatmul.mubr.bf16.gmra.mxu0 %v2673
        %v2712 = vpop.f32.mrf.mxu0
        %v2713 = vadd.f32 0.0, %v2712
        %v2714 = vpop.f32.mrf.mxu0
        %v2715 = vpop.f32.mrf.mxu0
        %v2716 = vadd.f32 0.0, %v2715
        %v2717 = vpop.f32.mrf.mxu0
        %2718 = vmatprep.mubr.bf16.mxu0 0
        %2719 = vmatmul.mubr.bf16.gmra.mxu0 %v2676
        %v2720 = vpop.f32.mrf.mxu0
        %v2721 = vadd.f32 0.0, %v2720
        %v2722 = vpop.f32.mrf.mxu0
        %v2723 = vpop.f32.mrf.mxu0
        %v2724 = vadd.f32 0.0, %v2723
        %v2725 = vpop.f32.mrf.mxu0
        %2726 = vdwg.mxu0
        %v2727 = vadd.f32 %v2623, %v2713
        %v2728 = vadd.f32 %v2626, %v2716
        %v2729 = vadd.f32 %v2631, %v2721
        %v2730 = vadd.f32 %v2634, %v2724
        %v2731 = vld [vmem:[%s35] sm:$0xf]
        %v2732 = vld [vmem:[%s35 + $0x4] sm:$0xf]
        %v2733 = vld [vmem:[%s35 + $0x8] sm:$0xf]
        %v2734 = vld [vmem:[%s35 + $0xc] sm:$0xf]
        %v2735 = vld [vmem:[%s35 + $0x10] sm:$0xf]
        %v2736 = vld [vmem:[%s35 + $0x14] sm:$0xf]
        %v2737 = vld [vmem:[%s35 + $0x18] sm:$0xf]
        %v2738 = vld [vmem:[%s35 + $0x1c] sm:$0xf]
        %v2739 = vld [vmem:[#allocation27] sm:$0x1]
        %v2741 = vlaneseq
        %v2742 = vshrl.u32 %v2741, 7
        %v2743 = vsub.s32 0, %v2742
        %v2744 = vrot.slane %v2739, %v2743
        %v2746 = vadd.f32 %v2727, %v2744
        %v2747 = vadd.f32 %v2728, %v2744
        %v2748 = vadd.f32 %v2729, %v2744
        %v2749 = vadd.f32 %v2730, %v2744
        %v2750 = vmax.f32 %v2746, 0.0
        %v2751 = vmax.f32 %v2747, 0.0
        %v2752 = vmax.f32 %v2748, 0.0
        %v2753 = vmax.f32 %v2749, 0.0
        %v2754 = vld [vmem:[#allocation31] sm:$0x1]
        %v2756 = vlaneseq
        %v2757 = vshrl.u32 %v2756, 7
        %v2758 = vsub.s32 0, %v2757
        %v2759 = vrot.slane %v2754, %v2758
        %v2769 = vunpack.c.l.b16 %v2731
        %v2770 = vunpack.c.l.b16 %v2732
        %v2771 = vunpack.c.l.b16 %v2733
        %v2772 = vunpack.c.l.b16 %v2734
        %v2773 = vunpack.c.l.b16 %v2735
        %v2774 = vunpack.c.l.b16 %v2736
        %v2775 = vunpack.c.l.b16 %v2737
        %v2776 = vunpack.c.l.b16 %v2738
        %v2777 = vpack.c.b16 %v2770, %v2769
        %v2778 = vpack.c.b16 %v2772, %v2771
        %v2779 = vpack.c.b16 %v2774, %v2773
        %v2780 = vpack.c.b16 %v2776, %v2775
        %2785 = vmatprep.subr.bf16.mxu0 0
        %2786 = vmatpush1.bf16.msra.mxu0 0
        %2787 = vmatprep.subr.bf16.mxu0 0
        %2788 = vmatpush1.bf16.msra.mxu0 0
        %2789 = vmatprep.subr.bf16.mxu0 0
        %2790 = vmatpush1.bf16.msra.mxu0 0
        %2791 = vmatprep.subr.bf16.mxu0 0
        %2792 = vmatpush1.bf16.msra.mxu0 0
        %2793 = vmatprep.subr.bf16.mxu0 0
        %2794 = vmatpush1.bf16.msra.mxu0 %v2780
        %2795 = vmatprep.subr.bf16.mxu0 0
        %2796 = vmatpush1.bf16.msra.mxu0 %v2779
        %2797 = vmatprep.subr.bf16.mxu0 0
        %2798 = vmatpush1.bf16.msra.mxu0 %v2778
        %2799 = vmatprep.subr.bf16.mxu0 0
        %2800 = vmatpush1.bf16.msra.mxu0 %v2777
        %2801 = vmatprep.subr.bf16.mxu0 0
        %2802 = vmatpush2.bf16.msra.mxu0 0
        %2803 = vmatprep.subr.bf16.mxu0 0
        %2804 = vmatpush2.bf16.msra.mxu0 0
        %2805 = vmatprep.subr.bf16.mxu0 0
        %2806 = vmatpush2.bf16.msra.mxu0 0
        %2807 = vmatprep.subr.bf16.mxu0 0
        %2808 = vmatpush2.bf16.msra.mxu0 0
        %2809 = vmatprep.subr.bf16.mxu0 0
        %2810 = vmatpush2.bf16.msra.mxu0 0
        %2811 = vmatprep.subr.bf16.mxu0 0
        %2812 = vmatpush2.bf16.msra.mxu0 0
        %2813 = vmatprep.subr.bf16.mxu0 0
        %2814 = vmatpush2.bf16.msra.mxu0 0
        %2815 = vmatprep.subr.bf16.mxu0 0
        %2816 = vmatpush2.bf16.msra.mxu0 0
        %2817 = vmatprep.mubr.bf16.mxu0 0
        %2818 = vmatmul.mubr.bf16.gmra.mxu0 %v2504
        %v2819 = vpop.f32.mrf.mxu0
        %v2820 = vadd.f32 %v2759, %v2819
        %v2821 = vpop.f32.mrf.mxu0
        %v2822 = vpop.f32.mrf.mxu0
        %v2823 = vadd.f32 %v2759, %v2822
        %v2824 = vpop.f32.mrf.mxu0
        %2825 = vmatprep.mubr.bf16.mxu0 0
        %2826 = vmatmul.mubr.bf16.gmra.mxu0 %v2507
        %v2827 = vpop.f32.mrf.mxu0
        %v2828 = vadd.f32 %v2759, %v2827
        %v2829 = vpop.f32.mrf.mxu0
        %v2830 = vpop.f32.mrf.mxu0
        %v2831 = vadd.f32 %v2759, %v2830
        %v2832 = vpop.f32.mrf.mxu0
        %2833 = vdwg.mxu0
        %2834 = vst [vmem:[#allocation7] sm:$0x1] 0.0
        %2835 = vst [vmem:[#allocation7 + $0x21] sm:$0x1] 0.0
        %2836 = vst [vmem:[#allocation7 + $0x1] sm:$0xff] %v2750
        %2837 = vst [vmem:[#allocation7 + $0x9] sm:$0xff] %v2751
        %2838 = vst [vmem:[#allocation7 + $0x11] sm:$0xff] %v2752
        %2839 = vst [vmem:[#allocation7 + $0x19] sm:$0xff] %v2753
        %v2840 = vld [vmem:[#allocation7] sm:$0xff]
        %v2841 = vld [vmem:[#allocation7 + $0x8] sm:$0xff]
        %v2842 = vld [vmem:[#allocation7 + $0x10] sm:$0xff]
        %v2843 = vld [vmem:[#allocation7 + $0x18] sm:$0xff]
        %v2844 = vld [vmem:[#allocation7 + $0x2] sm:$0xff]
        %v2845 = vld [vmem:[#allocation7 + $0xa] sm:$0xff]
        %v2846 = vld [vmem:[#allocation7 + $0x12] sm:$0xff]
        %v2847 = vld [vmem:[#allocation7 + $0x1a] sm:$0xff]
        %v2848 = vld [vmem:[#allocation28] sm:$0xf]
        %v2849 = vld [vmem:[#allocation28 + $0x4] sm:$0xf]
        %v2850 = vld [vmem:[#allocation28 + $0x8] sm:$0xf]
        %v2851 = vld [vmem:[#allocation28 + $0xc] sm:$0xf]
        %v2852 = vld [vmem:[#allocation28 + $0x10] sm:$0xf]
        %v2853 = vld [vmem:[#allocation28 + $0x14] sm:$0xf]
        %v2854 = vld [vmem:[#allocation28 + $0x18] sm:$0xf]
        %v2855 = vld [vmem:[#allocation28 + $0x1c] sm:$0xf]
        %v2856 = vld [vmem:[#allocation28 + $0x20] sm:$0xf]
        %v2857 = vld [vmem:[#allocation28 + $0x24] sm:$0xf]
        %v2858 = vld [vmem:[#allocation28 + $0x28] sm:$0xf]
        %v2859 = vld [vmem:[#allocation28 + $0x2c] sm:$0xf]
        %v2860 = vld [vmem:[#allocation28 + $0x30] sm:$0xf]
        %v2861 = vld [vmem:[#allocation28 + $0x34] sm:$0xf]
        %v2862 = vld [vmem:[#allocation28 + $0x38] sm:$0xf]
        %v2863 = vld [vmem:[#allocation28 + $0x3c] sm:$0xf]
        %v2864 = vpack.c.bf16 %v2841, %v2840
        %v2865 = vpack.c.bf16 %v2843, %v2842
        %s2866 = scalar_lea.vmem [#allocation28], 64
        %v2867 = vld [vmem:[%s2866] sm:$0xf]
        %v2868 = vld [vmem:[%s2866 + $0x4] sm:$0xf]
        %v2869 = vld [vmem:[%s2866 + $0x8] sm:$0xf]
        %v2870 = vld [vmem:[%s2866 + $0xc] sm:$0xf]
        %v2871 = vld [vmem:[%s2866 + $0x10] sm:$0xf]
        %v2872 = vld [vmem:[%s2866 + $0x14] sm:$0xf]
        %v2873 = vld [vmem:[%s2866 + $0x18] sm:$0xf]
        %v2874 = vld [vmem:[%s2866 + $0x1c] sm:$0xf]
        %v2875 = vld [vmem:[%s2866 + $0x20] sm:$0xf]
        %v2876 = vld [vmem:[%s2866 + $0x24] sm:$0xf]
        %v2877 = vld [vmem:[%s2866 + $0x28] sm:$0xf]
        %v2878 = vld [vmem:[%s2866 + $0x2c] sm:$0xf]
        %v2879 = vld [vmem:[%s2866 + $0x30] sm:$0xf]
        %v2880 = vld [vmem:[%s2866 + $0x34] sm:$0xf]
        %v2881 = vld [vmem:[%s2866 + $0x38] sm:$0xf]
        %v2882 = vld [vmem:[%s2866 + $0x3c] sm:$0xf]
        %v2883 = vpack.c.bf16 %v2751, %v2750
        %v2884 = vpack.c.bf16 %v2753, %v2752
        %v2901 = vunpack.c.l.b16 %v2867
        %v2902 = vunpack.c.l.b16 %v2868
        %v2903 = vunpack.c.l.b16 %v2869
        %v2904 = vunpack.c.l.b16 %v2870
        %v2905 = vunpack.c.l.b16 %v2871
        %v2906 = vunpack.c.l.b16 %v2872
        %v2907 = vunpack.c.l.b16 %v2873
        %v2908 = vunpack.c.l.b16 %v2874
        %v2909 = vunpack.c.l.b16 %v2875
        %v2910 = vunpack.c.l.b16 %v2876
        %v2911 = vunpack.c.l.b16 %v2877
        %v2912 = vunpack.c.l.b16 %v2878
        %v2913 = vunpack.c.l.b16 %v2879
        %v2914 = vunpack.c.l.b16 %v2880
        %v2915 = vunpack.c.l.b16 %v2881
        %v2916 = vunpack.c.l.b16 %v2882
        %v2917 = vpack.c.b16 %v2902, %v2901
        %v2918 = vpack.c.b16 %v2904, %v2903
        %v2919 = vpack.c.b16 %v2906, %v2905
        %v2920 = vpack.c.b16 %v2908, %v2907
        %v2921 = vpack.c.b16 %v2910, %v2909
        %v2922 = vpack.c.b16 %v2912, %v2911
        %v2923 = vpack.c.b16 %v2914, %v2913
        %v2924 = vpack.c.b16 %v2916, %v2915
        %2933 = vmatprep.subr.bf16.mxu0 0
        %2934 = vmatpush1.bf16.msra.mxu0 %v2924
        %2935 = vmatprep.subr.bf16.mxu0 0
        %2936 = vmatpush1.bf16.msra.mxu0 %v2923
        %2937 = vmatprep.subr.bf16.mxu0 0
        %2938 = vmatpush1.bf16.msra.mxu0 %v2922
        %2939 = vmatprep.subr.bf16.mxu0 0
        %2940 = vmatpush1.bf16.msra.mxu0 %v2921
        %2941 = vmatprep.subr.bf16.mxu0 0
        %2942 = vmatpush1.bf16.msra.mxu0 %v2920
        %2943 = vmatprep.subr.bf16.mxu0 0
        %2944 = vmatpush1.bf16.msra.mxu0 %v2919
        %2945 = vmatprep.subr.bf16.mxu0 0
        %2946 = vmatpush1.bf16.msra.mxu0 %v2918
        %2947 = vmatprep.subr.bf16.mxu0 0
        %2948 = vmatpush1.bf16.msra.mxu0 %v2917
        %2949 = vmatprep.subr.bf16.mxu0 0
        %2950 = vmatpush2.bf16.msra.mxu0 0
        %2951 = vmatprep.subr.bf16.mxu0 0
        %2952 = vmatpush2.bf16.msra.mxu0 0
        %2953 = vmatprep.subr.bf16.mxu0 0
        %2954 = vmatpush2.bf16.msra.mxu0 0
        %2955 = vmatprep.subr.bf16.mxu0 0
        %2956 = vmatpush2.bf16.msra.mxu0 0
        %2957 = vmatprep.subr.bf16.mxu0 0
        %2958 = vmatpush2.bf16.msra.mxu0 0
        %2959 = vmatprep.subr.bf16.mxu0 0
        %2960 = vmatpush2.bf16.msra.mxu0 0
        %2961 = vmatprep.subr.bf16.mxu0 0
        %2962 = vmatpush2.bf16.msra.mxu0 0
        %2963 = vmatprep.subr.bf16.mxu0 0
        %2964 = vmatpush2.bf16.msra.mxu0 0
        %2965 = vmatprep.mubr.bf16.mxu0 0
        %2966 = vmatmul.mubr.bf16.gmra.mxu0 %v2883
        %v2967 = vpop.f32.mrf.mxu0
        %v2968 = vadd.f32 0.0, %v2967
        %v2969 = vpop.f32.mrf.mxu0
        %v2970 = vpop.f32.mrf.mxu0
        %v2971 = vadd.f32 0.0, %v2970
        %v2972 = vpop.f32.mrf.mxu0
        %2973 = vmatprep.mubr.bf16.mxu0 0
        %2974 = vmatmul.mubr.bf16.gmra.mxu0 %v2884
        %v2975 = vpop.f32.mrf.mxu0
        %v2976 = vadd.f32 0.0, %v2975
        %v2977 = vpop.f32.mrf.mxu0
        %v2978 = vpop.f32.mrf.mxu0
        %v2979 = vadd.f32 0.0, %v2978
        %v2980 = vpop.f32.mrf.mxu0
        %2981 = vdwg.mxu0
        %v2998 = vunpack.c.l.b16 %v2848
        %v2999 = vunpack.c.l.b16 %v2849
        %v3000 = vunpack.c.l.b16 %v2850
        %v3001 = vunpack.c.l.b16 %v2851
        %v3002 = vunpack.c.l.b16 %v2852
        %v3003 = vunpack.c.l.b16 %v2853
        %v3004 = vunpack.c.l.b16 %v2854
        %v3005 = vunpack.c.l.b16 %v2855
        %v3006 = vunpack.c.l.b16 %v2856
        %v3007 = vunpack.c.l.b16 %v2857
        %v3008 = vunpack.c.l.b16 %v2858
        %v3009 = vunpack.c.l.b16 %v2859
        %v3010 = vunpack.c.l.b16 %v2860
        %v3011 = vunpack.c.l.b16 %v2861
        %v3012 = vunpack.c.l.b16 %v2862
        %v3013 = vunpack.c.l.b16 %v2863
        %v3014 = vpack.c.b16 %v2999, %v2998
        %v3015 = vpack.c.b16 %v3001, %v3000
        %v3016 = vpack.c.b16 %v3003, %v3002
        %v3017 = vpack.c.b16 %v3005, %v3004
        %v3018 = vpack.c.b16 %v3007, %v3006
        %v3019 = vpack.c.b16 %v3009, %v3008
        %v3020 = vpack.c.b16 %v3011, %v3010
        %v3021 = vpack.c.b16 %v3013, %v3012
        %3030 = vmatprep.subr.bf16.mxu0 0
        %3031 = vmatpush1.bf16.msra.mxu0 %v3021
        %3032 = vmatprep.subr.bf16.mxu0 0
        %3033 = vmatpush1.bf16.msra.mxu0 %v3020
        %3034 = vmatprep.subr.bf16.mxu0 0
        %3035 = vmatpush1.bf16.msra.mxu0 %v3019
        %3036 = vmatprep.subr.bf16.mxu0 0
        %3037 = vmatpush1.bf16.msra.mxu0 %v3018
        %3038 = vmatprep.subr.bf16.mxu0 0
        %3039 = vmatpush1.bf16.msra.mxu0 %v3017
        %3040 = vmatprep.subr.bf16.mxu0 0
        %3041 = vmatpush1.bf16.msra.mxu0 %v3016
        %3042 = vmatprep.subr.bf16.mxu0 0
        %3043 = vmatpush1.bf16.msra.mxu0 %v3015
        %3044 = vmatprep.subr.bf16.mxu0 0
        %3045 = vmatpush1.bf16.msra.mxu0 %v3014
        %3046 = vmatprep.subr.bf16.mxu0 0
        %3047 = vmatpush2.bf16.msra.mxu0 0
        %3048 = vmatprep.subr.bf16.mxu0 0
        %3049 = vmatpush2.bf16.msra.mxu0 0
        %3050 = vmatprep.subr.bf16.mxu0 0
        %3051 = vmatpush2.bf16.msra.mxu0 0
        %3052 = vmatprep.subr.bf16.mxu0 0
        %3053 = vmatpush2.bf16.msra.mxu0 0
        %3054 = vmatprep.subr.bf16.mxu0 0
        %3055 = vmatpush2.bf16.msra.mxu0 0
        %3056 = vmatprep.subr.bf16.mxu0 0
        %3057 = vmatpush2.bf16.msra.mxu0 0
        %3058 = vmatprep.subr.bf16.mxu0 0
        %3059 = vmatpush2.bf16.msra.mxu0 0
        %3060 = vmatprep.subr.bf16.mxu0 0
        %3061 = vmatpush2.bf16.msra.mxu0 0
        %3062 = vmatprep.mubr.bf16.mxu0 0
        %3063 = vmatmul.mubr.bf16.gmra.mxu0 %v2864
        %v3064 = vpop.f32.mrf.mxu0
        %v3065 = vadd.f32 %v2968, %v3064
        %v3066 = vpop.f32.mrf.mxu0
        %v3067 = vpop.f32.mrf.mxu0
        %v3068 = vadd.f32 %v2971, %v3067
        %v3069 = vpop.f32.mrf.mxu0
        %3070 = vmatprep.mubr.bf16.mxu0 0
        %3071 = vmatmul.mubr.bf16.gmra.mxu0 %v2865
        %v3072 = vpop.f32.mrf.mxu0
        %v3073 = vadd.f32 %v2976, %v3072
        %v3074 = vpop.f32.mrf.mxu0
        %v3075 = vpop.f32.mrf.mxu0
        %v3076 = vadd.f32 %v2979, %v3075
        %v3077 = vpop.f32.mrf.mxu0
        %3078 = vdwg.mxu0
        %s3079 = scalar_lea.vmem [#allocation28], 128
        %v3080 = vld [vmem:[%s3079] sm:$0xf]
        %v3081 = vld [vmem:[%s3079 + $0x4] sm:$0xf]
        %v3082 = vld [vmem:[%s3079 + $0x8] sm:$0xf]
        %v3083 = vld [vmem:[%s3079 + $0xc] sm:$0xf]
        %v3084 = vld [vmem:[%s3079 + $0x10] sm:$0xf]
        %v3085 = vld [vmem:[%s3079 + $0x14] sm:$0xf]
        %v3086 = vld [vmem:[%s3079 + $0x18] sm:$0xf]
        %v3087 = vld [vmem:[%s3079 + $0x1c] sm:$0xf]
        %v3088 = vld [vmem:[%s3079 + $0x20] sm:$0xf]
        %v3089 = vld [vmem:[%s3079 + $0x24] sm:$0xf]
        %v3090 = vld [vmem:[%s3079 + $0x28] sm:$0xf]
        %v3091 = vld [vmem:[%s3079 + $0x2c] sm:$0xf]
        %v3092 = vld [vmem:[%s3079 + $0x30] sm:$0xf]
        %v3093 = vld [vmem:[%s3079 + $0x34] sm:$0xf]
        %v3094 = vld [vmem:[%s3079 + $0x38] sm:$0xf]
        %v3095 = vld [vmem:[%s3079 + $0x3c] sm:$0xf]
        %v3096 = vpack.c.bf16 %v2845, %v2844
        %v3097 = vpack.c.bf16 %v2847, %v2846
        %v3114 = vunpack.c.l.b16 %v3080
        %v3115 = vunpack.c.l.b16 %v3081
        %v3116 = vunpack.c.l.b16 %v3082
        %v3117 = vunpack.c.l.b16 %v3083
        %v3118 = vunpack.c.l.b16 %v3084
        %v3119 = vunpack.c.l.b16 %v3085
        %v3120 = vunpack.c.l.b16 %v3086
        %v3121 = vunpack.c.l.b16 %v3087
        %v3122 = vunpack.c.l.b16 %v3088
        %v3123 = vunpack.c.l.b16 %v3089
        %v3124 = vunpack.c.l.b16 %v3090
        %v3125 = vunpack.c.l.b16 %v3091
        %v3126 = vunpack.c.l.b16 %v3092
        %v3127 = vunpack.c.l.b16 %v3093
        %v3128 = vunpack.c.l.b16 %v3094
        %v3129 = vunpack.c.l.b16 %v3095
        %v3130 = vpack.c.b16 %v3115, %v3114
        %v3131 = vpack.c.b16 %v3117, %v3116
        %v3132 = vpack.c.b16 %v3119, %v3118
        %v3133 = vpack.c.b16 %v3121, %v3120
        %v3134 = vpack.c.b16 %v3123, %v3122
        %v3135 = vpack.c.b16 %v3125, %v3124
        %v3136 = vpack.c.b16 %v3127, %v3126
        %v3137 = vpack.c.b16 %v3129, %v3128
        %3146 = vmatprep.subr.bf16.mxu0 0
        %3147 = vmatpush1.bf16.msra.mxu0 %v3137
        %3148 = vmatprep.subr.bf16.mxu0 0
        %3149 = vmatpush1.bf16.msra.mxu0 %v3136
        %3150 = vmatprep.subr.bf16.mxu0 0
        %3151 = vmatpush1.bf16.msra.mxu0 %v3135
        %3152 = vmatprep.subr.bf16.mxu0 0
        %3153 = vmatpush1.bf16.msra.mxu0 %v3134
        %3154 = vmatprep.subr.bf16.mxu0 0
        %3155 = vmatpush1.bf16.msra.mxu0 %v3133
        %3156 = vmatprep.subr.bf16.mxu0 0
        %3157 = vmatpush1.bf16.msra.mxu0 %v3132
        %3158 = vmatprep.subr.bf16.mxu0 0
        %3159 = vmatpush1.bf16.msra.mxu0 %v3131
        %3160 = vmatprep.subr.bf16.mxu0 0
        %3161 = vmatpush1.bf16.msra.mxu0 %v3130
        %3162 = vmatprep.subr.bf16.mxu0 0
        %3163 = vmatpush2.bf16.msra.mxu0 0
        %3164 = vmatprep.subr.bf16.mxu0 0
        %3165 = vmatpush2.bf16.msra.mxu0 0
        %3166 = vmatprep.subr.bf16.mxu0 0
        %3167 = vmatpush2.bf16.msra.mxu0 0
        %3168 = vmatprep.subr.bf16.mxu0 0
        %3169 = vmatpush2.bf16.msra.mxu0 0
        %3170 = vmatprep.subr.bf16.mxu0 0
        %3171 = vmatpush2.bf16.msra.mxu0 0
        %3172 = vmatprep.subr.bf16.mxu0 0
        %3173 = vmatpush2.bf16.msra.mxu0 0
        %3174 = vmatprep.subr.bf16.mxu0 0
        %3175 = vmatpush2.bf16.msra.mxu0 0
        %3176 = vmatprep.subr.bf16.mxu0 0
        %3177 = vmatpush2.bf16.msra.mxu0 0
        %3178 = vmatprep.mubr.bf16.mxu0 0
        %3179 = vmatmul.mubr.bf16.gmra.mxu0 %v3096
        %v3180 = vpop.f32.mrf.mxu0
        %v3181 = vadd.f32 0.0, %v3180
        %v3182 = vpop.f32.mrf.mxu0
        %v3183 = vpop.f32.mrf.mxu0
        %v3184 = vadd.f32 0.0, %v3183
        %v3185 = vpop.f32.mrf.mxu0
        %3186 = vmatprep.mubr.bf16.mxu0 0
        %3187 = vmatmul.mubr.bf16.gmra.mxu0 %v3097
        %v3188 = vpop.f32.mrf.mxu0
        %v3189 = vadd.f32 0.0, %v3188
        %v3190 = vpop.f32.mrf.mxu0
        %v3191 = vpop.f32.mrf.mxu0
        %v3192 = vadd.f32 0.0, %v3191
        %v3193 = vpop.f32.mrf.mxu0
        %3194 = vdwg.mxu0
        %v3195 = vadd.f32 %v3065, %v3181
        %v3196 = vadd.f32 %v3068, %v3184
        %v3197 = vadd.f32 %v3073, %v3189
        %v3198 = vadd.f32 %v3076, %v3192
        %v3199 = vld [vmem:[#allocation30] sm:$0x1]
        %v3201 = vlaneseq
        %v3202 = vshrl.u32 %v3201, 7
        %v3203 = vsub.s32 0, %v3202
        %v3204 = vrot.slane %v3199, %v3203
        %v3206 = vadd.f32 %v3195, %v3204
        %v3207 = vadd.f32 %v3196, %v3204
        %v3208 = vadd.f32 %v3197, %v3204
        %v3209 = vadd.f32 %v3198, %v3204
        %v3210 = vadd.f32 %v3206, %v2820
        %v3211 = vadd.f32 %v3207, %v2823
        %v3212 = vadd.f32 %v3208, %v2828
        %v3213 = vadd.f32 %v3209, %v2831
        %v3214 = vmax.f32 %v3210, 0.0
        %v3215 = vmax.f32 %v3211, 0.0
        %v3216 = vmax.f32 %v3212, 0.0
        %v3217 = vmax.f32 %v3213, 0.0
        %3218 = vst [vmem:[#allocation8] sm:$0x1] 0.0
        %3219 = vst [vmem:[#allocation8 + $0x21] sm:$0x1] 0.0
        %3220 = vst [vmem:[#allocation8 + $0x1] sm:$0xff] %v3214
        %3221 = vst [vmem:[#allocation8 + $0x9] sm:$0xff] %v3215
        %3222 = vst [vmem:[#allocation8 + $0x11] sm:$0xff] %v3216
        %3223 = vst [vmem:[#allocation8 + $0x19] sm:$0xff] %v3217
        %v3224 = vld [vmem:[#allocation8] ss:$2 sm:$0xff]
        %s3225 = scalar_lea.vmem [#allocation8], 16
        %v3226 = vld [vmem:[%s3225] ss:$2 sm:$0xff]
        %s3227 = scalar_lea.vmem [#allocation8], 1
        %v3228 = vld [vmem:[%s3227] ss:$2 sm:$0xff]
        %s3229 = scalar_lea.vmem [#allocation8], 17
        %v3230 = vld [vmem:[%s3229] ss:$2 sm:$0xff]
        %s3231 = scalar_lea.vmem [#allocation8], 2
        %v3232 = vld [vmem:[%s3231] ss:$2 sm:$0xff]
        %s3233 = scalar_lea.vmem [#allocation8], 18
        %v3234 = vld [vmem:[%s3233] ss:$2 sm:$0xff]
        %v3235 = vld [vmem:[#allocation33] sm:$0xff]
        %v3236 = vld [vmem:[#allocation33 + $0x8] sm:$0xff]
        %v3237 = vld [vmem:[#allocation33 + $0x10] sm:$0xff]
        %v3238 = vld [vmem:[#allocation33 + $0x18] sm:$0xff]
        %v3239 = vld [vmem:[#allocation33 + $0x20] sm:$0xff]
        %v3240 = vld [vmem:[#allocation33 + $0x28] sm:$0xff]
        %v3241 = vld [vmem:[#allocation33 + $0x30] sm:$0xff]
        %v3242 = vld [vmem:[#allocation33 + $0x38] sm:$0xff]
        %v3243 = vld [vmem:[#allocation33 + $0x40] sm:$0xff]
        %v3244 = vld [vmem:[#allocation33 + $0x48] sm:$0xff]
        %v3245 = vld [vmem:[#allocation33 + $0x50] sm:$0xff]
        %v3246 = vld [vmem:[#allocation33 + $0x58] sm:$0xff]
        %v3247 = vld [vmem:[#allocation33 + $0x60] sm:$0xff]
        %v3248 = vld [vmem:[#allocation33 + $0x68] sm:$0xff]
        %v3249 = vld [vmem:[#allocation33 + $0x70] sm:$0xff]
        %v3250 = vld [vmem:[#allocation33 + $0x78] sm:$0xff]
        %v3251 = vpack.c.bf16 %v3226, %v3224
        %s3252 = scalar_lea.vmem [#allocation33], 128
        %v3253 = vld [vmem:[%s3252] sm:$0xff]
        %v3254 = vld [vmem:[%s3252 + $0x8] sm:$0xff]
        %v3255 = vld [vmem:[%s3252 + $0x10] sm:$0xff]
        %v3256 = vld [vmem:[%s3252 + $0x18] sm:$0xff]
        %v3257 = vld [vmem:[%s3252 + $0x20] sm:$0xff]
        %v3258 = vld [vmem:[%s3252 + $0x28] sm:$0xff]
        %v3259 = vld [vmem:[%s3252 + $0x30] sm:$0xff]
        %v3260 = vld [vmem:[%s3252 + $0x38] sm:$0xff]
        %v3261 = vld [vmem:[%s3252 + $0x40] sm:$0xff]
        %v3262 = vld [vmem:[%s3252 + $0x48] sm:$0xff]
        %v3263 = vld [vmem:[%s3252 + $0x50] sm:$0xff]
        %v3264 = vld [vmem:[%s3252 + $0x58] sm:$0xff]
        %v3265 = vld [vmem:[%s3252 + $0x60] sm:$0xff]
        %v3266 = vld [vmem:[%s3252 + $0x68] sm:$0xff]
        %v3267 = vld [vmem:[%s3252 + $0x70] sm:$0xff]
        %v3268 = vld [vmem:[%s3252 + $0x78] sm:$0xff]
        %v3269 = vpack.c.bf16 %v3230, %v3228
        %v3286 = vunpack.c.l.b16 %v3253
        %v3287 = vunpack.c.h.b16 %v3253
        %v3288 = vunpack.c.l.b16 %v3254
        %v3289 = vunpack.c.h.b16 %v3254
        %v3290 = vunpack.c.l.b16 %v3255
        %v3291 = vunpack.c.h.b16 %v3255
        %v3292 = vunpack.c.l.b16 %v3256
        %v3293 = vunpack.c.h.b16 %v3256
        %v3294 = vunpack.c.l.b16 %v3257
        %v3295 = vunpack.c.h.b16 %v3257
        %v3296 = vunpack.c.l.b16 %v3258
        %v3297 = vunpack.c.h.b16 %v3258
        %v3298 = vunpack.c.l.b16 %v3259
        %v3299 = vunpack.c.h.b16 %v3259
        %v3300 = vunpack.c.l.b16 %v3260
        %v3301 = vunpack.c.h.b16 %v3260
        %v3302 = vunpack.c.l.b16 %v3261
        %v3303 = vunpack.c.h.b16 %v3261
        %v3304 = vunpack.c.l.b16 %v3262
        %v3305 = vunpack.c.h.b16 %v3262
        %v3306 = vunpack.c.l.b16 %v3263
        %v3307 = vunpack.c.h.b16 %v3263
        %v3308 = vunpack.c.l.b16 %v3264
        %v3309 = vunpack.c.h.b16 %v3264
        %v3310 = vunpack.c.l.b16 %v3265
        %v3311 = vunpack.c.h.b16 %v3265
        %v3312 = vunpack.c.l.b16 %v3266
        %v3313 = vunpack.c.h.b16 %v3266
        %v3314 = vunpack.c.l.b16 %v3267
        %v3315 = vunpack.c.h.b16 %v3267
        %v3316 = vunpack.c.l.b16 %v3268
        %v3317 = vunpack.c.h.b16 %v3268
        %v3318 = vpack.c.b16 %v3288, %v3286
        %v3319 = vpack.c.b16 %v3289, %v3287
        %v3320 = vpack.c.b16 %v3292, %v3290
        %v3321 = vpack.c.b16 %v3293, %v3291
        %v3322 = vpack.c.b16 %v3296, %v3294
        %v3323 = vpack.c.b16 %v3297, %v3295
        %v3324 = vpack.c.b16 %v3300, %v3298
        %v3325 = vpack.c.b16 %v3301, %v3299
        %v3326 = vpack.c.b16 %v3304, %v3302
        %v3327 = vpack.c.b16 %v3305, %v3303
        %v3328 = vpack.c.b16 %v3308, %v3306
        %v3329 = vpack.c.b16 %v3309, %v3307
        %v3330 = vpack.c.b16 %v3312, %v3310
        %v3331 = vpack.c.b16 %v3313, %v3311
        %v3332 = vpack.c.b16 %v3316, %v3314
        %v3333 = vpack.c.b16 %v3317, %v3315
        %3350 = vmatprep.subr.bf16.mxu0 %v3333
        %3351 = vmatpush1.bf16.msra.mxu0 %v3332
        %3352 = vmatprep.subr.bf16.mxu0 %v3331
        %3353 = vmatpush1.bf16.msra.mxu0 %v3330
        %3354 = vmatprep.subr.bf16.mxu0 %v3329
        %3355 = vmatpush1.bf16.msra.mxu0 %v3328
        %3356 = vmatprep.subr.bf16.mxu0 %v3327
        %3357 = vmatpush1.bf16.msra.mxu0 %v3326
        %3358 = vmatprep.subr.bf16.mxu0 %v3325
        %3359 = vmatpush1.bf16.msra.mxu0 %v3324
        %3360 = vmatprep.subr.bf16.mxu0 %v3323
        %3361 = vmatpush1.bf16.msra.mxu0 %v3322
        %3362 = vmatprep.subr.bf16.mxu0 %v3321
        %3363 = vmatpush1.bf16.msra.mxu0 %v3320
        %3364 = vmatprep.subr.bf16.mxu0 %v3319
        %3365 = vmatpush1.bf16.msra.mxu0 %v3318
        %3366 = vmatprep.subr.bf16.mxu0 0
        %3367 = vmatpush2.bf16.msra.mxu0 0
        %3368 = vmatprep.subr.bf16.mxu0 0
        %3369 = vmatpush2.bf16.msra.mxu0 0
        %3370 = vmatprep.subr.bf16.mxu0 0
        %3371 = vmatpush2.bf16.msra.mxu0 0
        %3372 = vmatprep.subr.bf16.mxu0 0
        %3373 = vmatpush2.bf16.msra.mxu0 0
        %3374 = vmatprep.subr.bf16.mxu0 0
        %3375 = vmatpush2.bf16.msra.mxu0 0
        %3376 = vmatprep.subr.bf16.mxu0 0
        %3377 = vmatpush2.bf16.msra.mxu0 0
        %3378 = vmatprep.subr.bf16.mxu0 0
        %3379 = vmatpush2.bf16.msra.mxu0 0
        %3380 = vmatprep.subr.bf16.mxu0 0
        %3381 = vmatpush2.bf16.msra.mxu0 0
        %3382 = vmatprep.mubr.bf16.mxu0 0
        %3383 = vmatmul.mubr.bf16.gmra.mxu0 %v3269
        %v3384 = vpop.f32.mrf.mxu0
        %v3385 = vadd.f32 0.0, %v3384
        %v3386 = vpop.f32.mrf.mxu0
        %v3387 = vadd.f32 0.0, %v3386
        %v3388 = vpop.f32.mrf.mxu0
        %v3389 = vadd.f32 0.0, %v3388
        %v3390 = vpop.f32.mrf.mxu0
        %v3391 = vadd.f32 0.0, %v3390
        %3392 = vdwg.mxu0
        %v3409 = vunpack.c.l.b16 %v3235
        %v3410 = vunpack.c.h.b16 %v3235
        %v3411 = vunpack.c.l.b16 %v3236
        %v3412 = vunpack.c.h.b16 %v3236
        %v3413 = vunpack.c.l.b16 %v3237
        %v3414 = vunpack.c.h.b16 %v3237
        %v3415 = vunpack.c.l.b16 %v3238
        %v3416 = vunpack.c.h.b16 %v3238
        %v3417 = vunpack.c.l.b16 %v3239
        %v3418 = vunpack.c.h.b16 %v3239
        %v3419 = vunpack.c.l.b16 %v3240
        %v3420 = vunpack.c.h.b16 %v3240
        %v3421 = vunpack.c.l.b16 %v3241
        %v3422 = vunpack.c.h.b16 %v3241
        %v3423 = vunpack.c.l.b16 %v3242
        %v3424 = vunpack.c.h.b16 %v3242
        %v3425 = vunpack.c.l.b16 %v3243
        %v3426 = vunpack.c.h.b16 %v3243
        %v3427 = vunpack.c.l.b16 %v3244
        %v3428 = vunpack.c.h.b16 %v3244
        %v3429 = vunpack.c.l.b16 %v3245
        %v3430 = vunpack.c.h.b16 %v3245
        %v3431 = vunpack.c.l.b16 %v3246
        %v3432 = vunpack.c.h.b16 %v3246
        %v3433 = vunpack.c.l.b16 %v3247
        %v3434 = vunpack.c.h.b16 %v3247
        %v3435 = vunpack.c.l.b16 %v3248
        %v3436 = vunpack.c.h.b16 %v3248
        %v3437 = vunpack.c.l.b16 %v3249
        %v3438 = vunpack.c.h.b16 %v3249
        %v3439 = vunpack.c.l.b16 %v3250
        %v3440 = vunpack.c.h.b16 %v3250
        %v3441 = vpack.c.b16 %v3411, %v3409
        %v3442 = vpack.c.b16 %v3412, %v3410
        %v3443 = vpack.c.b16 %v3415, %v3413
        %v3444 = vpack.c.b16 %v3416, %v3414
        %v3445 = vpack.c.b16 %v3419, %v3417
        %v3446 = vpack.c.b16 %v3420, %v3418
        %v3447 = vpack.c.b16 %v3423, %v3421
        %v3448 = vpack.c.b16 %v3424, %v3422
        %v3449 = vpack.c.b16 %v3427, %v3425
        %v3450 = vpack.c.b16 %v3428, %v3426
        %v3451 = vpack.c.b16 %v3431, %v3429
        %v3452 = vpack.c.b16 %v3432, %v3430
        %v3453 = vpack.c.b16 %v3435, %v3433
        %v3454 = vpack.c.b16 %v3436, %v3434
        %v3455 = vpack.c.b16 %v3439, %v3437
        %v3456 = vpack.c.b16 %v3440, %v3438
        %3473 = vmatprep.subr.bf16.mxu0 %v3456
        %3474 = vmatpush1.bf16.msra.mxu0 %v3455
        %3475 = vmatprep.subr.bf16.mxu0 %v3454
        %3476 = vmatpush1.bf16.msra.mxu0 %v3453
        %3477 = vmatprep.subr.bf16.mxu0 %v3452
        %3478 = vmatpush1.bf16.msra.mxu0 %v3451
        %3479 = vmatprep.subr.bf16.mxu0 %v3450
        %3480 = vmatpush1.bf16.msra.mxu0 %v3449
        %3481 = vmatprep.subr.bf16.mxu0 %v3448
        %3482 = vmatpush1.bf16.msra.mxu0 %v3447
        %3483 = vmatprep.subr.bf16.mxu0 %v3446
        %3484 = vmatpush1.bf16.msra.mxu0 %v3445
        %3485 = vmatprep.subr.bf16.mxu0 %v3444
        %3486 = vmatpush1.bf16.msra.mxu0 %v3443
        %3487 = vmatprep.subr.bf16.mxu0 %v3442
        %3488 = vmatpush1.bf16.msra.mxu0 %v3441
        %3489 = vmatprep.subr.bf16.mxu0 0
        %3490 = vmatpush2.bf16.msra.mxu0 0
        %3491 = vmatprep.subr.bf16.mxu0 0
        %3492 = vmatpush2.bf16.msra.mxu0 0
        %3493 = vmatprep.subr.bf16.mxu0 0
        %3494 = vmatpush2.bf16.msra.mxu0 0
        %3495 = vmatprep.subr.bf16.mxu0 0
        %3496 = vmatpush2.bf16.msra.mxu0 0
        %3497 = vmatprep.subr.bf16.mxu0 0
        %3498 = vmatpush2.bf16.msra.mxu0 0
        %3499 = vmatprep.subr.bf16.mxu0 0
        %3500 = vmatpush2.bf16.msra.mxu0 0
        %3501 = vmatprep.subr.bf16.mxu0 0
        %3502 = vmatpush2.bf16.msra.mxu0 0
        %3503 = vmatprep.subr.bf16.mxu0 0
        %3504 = vmatpush2.bf16.msra.mxu0 0
        %3505 = vmatprep.mubr.bf16.mxu0 0
        %3506 = vmatmul.mubr.bf16.gmra.mxu0 %v3251
        %v3507 = vpop.f32.mrf.mxu0
        %v3508 = vadd.f32 %v3385, %v3507
        %v3509 = vpop.f32.mrf.mxu0
        %v3510 = vadd.f32 %v3387, %v3509
        %v3511 = vpop.f32.mrf.mxu0
        %v3512 = vadd.f32 %v3389, %v3511
        %v3513 = vpop.f32.mrf.mxu0
        %v3514 = vadd.f32 %v3391, %v3513
        %3515 = vdwg.mxu0
        %s3516 = scalar_lea.vmem [#allocation33], 256
        %v3517 = vld [vmem:[%s3516] sm:$0xff]
        %v3518 = vld [vmem:[%s3516 + $0x8] sm:$0xff]
        %v3519 = vld [vmem:[%s3516 + $0x10] sm:$0xff]
        %v3520 = vld [vmem:[%s3516 + $0x18] sm:$0xff]
        %v3521 = vld [vmem:[%s3516 + $0x20] sm:$0xff]
        %v3522 = vld [vmem:[%s3516 + $0x28] sm:$0xff]
        %v3523 = vld [vmem:[%s3516 + $0x30] sm:$0xff]
        %v3524 = vld [vmem:[%s3516 + $0x38] sm:$0xff]
        %v3525 = vld [vmem:[%s3516 + $0x40] sm:$0xff]
        %v3526 = vld [vmem:[%s3516 + $0x48] sm:$0xff]
        %v3527 = vld [vmem:[%s3516 + $0x50] sm:$0xff]
        %v3528 = vld [vmem:[%s3516 + $0x58] sm:$0xff]
        %v3529 = vld [vmem:[%s3516 + $0x60] sm:$0xff]
        %v3530 = vld [vmem:[%s3516 + $0x68] sm:$0xff]
        %v3531 = vld [vmem:[%s3516 + $0x70] sm:$0xff]
        %v3532 = vld [vmem:[%s3516 + $0x78] sm:$0xff]
        %v3533 = vpack.c.bf16 %v3234, %v3232
        %v3550 = vunpack.c.l.b16 %v3517
        %v3551 = vunpack.c.h.b16 %v3517
        %v3552 = vunpack.c.l.b16 %v3518
        %v3553 = vunpack.c.h.b16 %v3518
        %v3554 = vunpack.c.l.b16 %v3519
        %v3555 = vunpack.c.h.b16 %v3519
        %v3556 = vunpack.c.l.b16 %v3520
        %v3557 = vunpack.c.h.b16 %v3520
        %v3558 = vunpack.c.l.b16 %v3521
        %v3559 = vunpack.c.h.b16 %v3521
        %v3560 = vunpack.c.l.b16 %v3522
        %v3561 = vunpack.c.h.b16 %v3522
        %v3562 = vunpack.c.l.b16 %v3523
        %v3563 = vunpack.c.h.b16 %v3523
        %v3564 = vunpack.c.l.b16 %v3524
        %v3565 = vunpack.c.h.b16 %v3524
        %v3566 = vunpack.c.l.b16 %v3525
        %v3567 = vunpack.c.h.b16 %v3525
        %v3568 = vunpack.c.l.b16 %v3526
        %v3569 = vunpack.c.h.b16 %v3526
        %v3570 = vunpack.c.l.b16 %v3527
        %v3571 = vunpack.c.h.b16 %v3527
        %v3572 = vunpack.c.l.b16 %v3528
        %v3573 = vunpack.c.h.b16 %v3528
        %v3574 = vunpack.c.l.b16 %v3529
        %v3575 = vunpack.c.h.b16 %v3529
        %v3576 = vunpack.c.l.b16 %v3530
        %v3577 = vunpack.c.h.b16 %v3530
        %v3578 = vunpack.c.l.b16 %v3531
        %v3579 = vunpack.c.h.b16 %v3531
        %v3580 = vunpack.c.l.b16 %v3532
        %v3581 = vunpack.c.h.b16 %v3532
        %v3582 = vpack.c.b16 %v3552, %v3550
        %v3583 = vpack.c.b16 %v3553, %v3551
        %v3584 = vpack.c.b16 %v3556, %v3554
        %v3585 = vpack.c.b16 %v3557, %v3555
        %v3586 = vpack.c.b16 %v3560, %v3558
        %v3587 = vpack.c.b16 %v3561, %v3559
        %v3588 = vpack.c.b16 %v3564, %v3562
        %v3589 = vpack.c.b16 %v3565, %v3563
        %v3590 = vpack.c.b16 %v3568, %v3566
        %v3591 = vpack.c.b16 %v3569, %v3567
        %v3592 = vpack.c.b16 %v3572, %v3570
        %v3593 = vpack.c.b16 %v3573, %v3571
        %v3594 = vpack.c.b16 %v3576, %v3574
        %v3595 = vpack.c.b16 %v3577, %v3575
        %v3596 = vpack.c.b16 %v3580, %v3578
        %v3597 = vpack.c.b16 %v3581, %v3579
        %3614 = vmatprep.subr.bf16.mxu0 %v3597
        %3615 = vmatpush1.bf16.msra.mxu0 %v3596
        %3616 = vmatprep.subr.bf16.mxu0 %v3595
        %3617 = vmatpush1.bf16.msra.mxu0 %v3594
        %3618 = vmatprep.subr.bf16.mxu0 %v3593
        %3619 = vmatpush1.bf16.msra.mxu0 %v3592
        %3620 = vmatprep.subr.bf16.mxu0 %v3591
        %3621 = vmatpush1.bf16.msra.mxu0 %v3590
        %3622 = vmatprep.subr.bf16.mxu0 %v3589
        %3623 = vmatpush1.bf16.msra.mxu0 %v3588
        %3624 = vmatprep.subr.bf16.mxu0 %v3587
        %3625 = vmatpush1.bf16.msra.mxu0 %v3586
        %3626 = vmatprep.subr.bf16.mxu0 %v3585
        %3627 = vmatpush1.bf16.msra.mxu0 %v3584
        %3628 = vmatprep.subr.bf16.mxu0 %v3583
        %3629 = vmatpush1.bf16.msra.mxu0 %v3582
        %3630 = vmatprep.subr.bf16.mxu0 0
        %3631 = vmatpush2.bf16.msra.mxu0 0
        %3632 = vmatprep.subr.bf16.mxu0 0
        %3633 = vmatpush2.bf16.msra.mxu0 0
        %3634 = vmatprep.subr.bf16.mxu0 0
        %3635 = vmatpush2.bf16.msra.mxu0 0
        %3636 = vmatprep.subr.bf16.mxu0 0
        %3637 = vmatpush2.bf16.msra.mxu0 0
        %3638 = vmatprep.subr.bf16.mxu0 0
        %3639 = vmatpush2.bf16.msra.mxu0 0
        %3640 = vmatprep.subr.bf16.mxu0 0
        %3641 = vmatpush2.bf16.msra.mxu0 0
        %3642 = vmatprep.subr.bf16.mxu0 0
        %3643 = vmatpush2.bf16.msra.mxu0 0
        %3644 = vmatprep.subr.bf16.mxu0 0
        %3645 = vmatpush2.bf16.msra.mxu0 0
        %3646 = vmatprep.mubr.bf16.mxu0 0
        %3647 = vmatmul.mubr.bf16.gmra.mxu0 %v3533
        %v3648 = vpop.f32.mrf.mxu0
        %v3649 = vadd.f32 0.0, %v3648
        %v3650 = vpop.f32.mrf.mxu0
        %v3651 = vadd.f32 0.0, %v3650
        %v3652 = vpop.f32.mrf.mxu0
        %v3653 = vadd.f32 0.0, %v3652
        %v3654 = vpop.f32.mrf.mxu0
        %v3655 = vadd.f32 0.0, %v3654
        %3656 = vdwg.mxu0
        %v3657 = vadd.f32 %v3508, %v3649
        %v3658 = vadd.f32 %v3510, %v3651
        %v3659 = vadd.f32 %v3512, %v3653
        %v3660 = vadd.f32 %v3514, %v3655
        %v3661 = vld [vmem:[%s47] sm:$0xff]
        %v3662 = vld [vmem:[%s47 + $0x8] sm:$0xff]
        %v3663 = vld [vmem:[%s47 + $0x10] sm:$0xff]
        %v3664 = vld [vmem:[%s47 + $0x18] sm:$0xff]
        %v3665 = vld [vmem:[%s47 + $0x20] sm:$0xff]
        %v3666 = vld [vmem:[%s47 + $0x28] sm:$0xff]
        %v3667 = vld [vmem:[%s47 + $0x30] sm:$0xff]
        %v3668 = vld [vmem:[%s47 + $0x38] sm:$0xff]
        %v3669 = vld [vmem:[%s47 + $0x40] sm:$0xff]
        %v3670 = vld [vmem:[%s47 + $0x48] sm:$0xff]
        %v3671 = vld [vmem:[%s47 + $0x50] sm:$0xff]
        %v3672 = vld [vmem:[%s47 + $0x58] sm:$0xff]
        %v3673 = vld [vmem:[%s47 + $0x60] sm:$0xff]
        %v3674 = vld [vmem:[%s47 + $0x68] sm:$0xff]
        %v3675 = vld [vmem:[%s47 + $0x70] sm:$0xff]
        %v3676 = vld [vmem:[%s47 + $0x78] sm:$0xff]
        %v3677 = vld [vmem:[%s41] sm:$0x3]
        %v3679 = vlaneseq
        %v3680 = vshrl.u32 %v3679, 7
        %v3681 = vsub.s32 0, %v3680
        %v3682 = vrot.slane %v3677, %v3681
        %v3683 = vlaneseq
        %v3684 = vshrl.u32 %v3683, 7
        %v3685 = vsub.s32 1, %v3684
        %v3686 = vrot.slane %v3677, %v3685
        %v3689 = vadd.f32 %v3657, %v3682
        %v3690 = vadd.f32 %v3658, %v3686
        %v3691 = vadd.f32 %v3659, %v3682
        %v3692 = vadd.f32 %v3660, %v3686
        %v3693 = vmax.f32 %v3689, 0.0
        %v3694 = vmax.f32 %v3690, 0.0
        %v3695 = vmax.f32 %v3691, 0.0
        %v3696 = vmax.f32 %v3692, 0.0
        %v3697 = vld [vmem:[%s49] sm:$0x3]
        %v3699 = vlaneseq
        %v3700 = vshrl.u32 %v3699, 7
        %v3701 = vsub.s32 0, %v3700
        %v3702 = vrot.slane %v3697, %v3701
        %v3703 = vlaneseq
        %v3704 = vshrl.u32 %v3703, 7
        %v3705 = vsub.s32 1, %v3704
        %v3706 = vrot.slane %v3697, %v3705
        %v3725 = vunpack.c.l.b16 %v3661
        %v3726 = vunpack.c.h.b16 %v3661
        %v3727 = vunpack.c.l.b16 %v3662
        %v3728 = vunpack.c.h.b16 %v3662
        %v3729 = vunpack.c.l.b16 %v3663
        %v3730 = vunpack.c.h.b16 %v3663
        %v3731 = vunpack.c.l.b16 %v3664
        %v3732 = vunpack.c.h.b16 %v3664
        %v3733 = vunpack.c.l.b16 %v3665
        %v3734 = vunpack.c.h.b16 %v3665
        %v3735 = vunpack.c.l.b16 %v3666
        %v3736 = vunpack.c.h.b16 %v3666
        %v3737 = vunpack.c.l.b16 %v3667
        %v3738 = vunpack.c.h.b16 %v3667
        %v3739 = vunpack.c.l.b16 %v3668
        %v3740 = vunpack.c.h.b16 %v3668
        %v3741 = vunpack.c.l.b16 %v3669
        %v3742 = vunpack.c.h.b16 %v3669
        %v3743 = vunpack.c.l.b16 %v3670
        %v3744 = vunpack.c.h.b16 %v3670
        %v3745 = vunpack.c.l.b16 %v3671
        %v3746 = vunpack.c.h.b16 %v3671
        %v3747 = vunpack.c.l.b16 %v3672
        %v3748 = vunpack.c.h.b16 %v3672
        %v3749 = vunpack.c.l.b16 %v3673
        %v3750 = vunpack.c.h.b16 %v3673
        %v3751 = vunpack.c.l.b16 %v3674
        %v3752 = vunpack.c.h.b16 %v3674
        %v3753 = vunpack.c.l.b16 %v3675
        %v3754 = vunpack.c.h.b16 %v3675
        %v3755 = vunpack.c.l.b16 %v3676
        %v3756 = vunpack.c.h.b16 %v3676
        %v3757 = vpack.c.b16 %v3727, %v3725
        %v3758 = vpack.c.b16 %v3728, %v3726
        %v3759 = vpack.c.b16 %v3731, %v3729
        %v3760 = vpack.c.b16 %v3732, %v3730
        %v3761 = vpack.c.b16 %v3735, %v3733
        %v3762 = vpack.c.b16 %v3736, %v3734
        %v3763 = vpack.c.b16 %v3739, %v3737
        %v3764 = vpack.c.b16 %v3740, %v3738
        %v3765 = vpack.c.b16 %v3743, %v3741
        %v3766 = vpack.c.b16 %v3744, %v3742
        %v3767 = vpack.c.b16 %v3747, %v3745
        %v3768 = vpack.c.b16 %v3748, %v3746
        %v3769 = vpack.c.b16 %v3751, %v3749
        %v3770 = vpack.c.b16 %v3752, %v3750
        %v3771 = vpack.c.b16 %v3755, %v3753
        %v3772 = vpack.c.b16 %v3756, %v3754
        %3789 = vmatprep.subr.bf16.mxu0 %v3772
        %3790 = vmatpush1.bf16.msra.mxu0 %v3771
        %3791 = vmatprep.subr.bf16.mxu0 %v3770
        %3792 = vmatpush1.bf16.msra.mxu0 %v3769
        %3793 = vmatprep.subr.bf16.mxu0 %v3768
        %3794 = vmatpush1.bf16.msra.mxu0 %v3767
        %3795 = vmatprep.subr.bf16.mxu0 %v3766
        %3796 = vmatpush1.bf16.msra.mxu0 %v3765
        %3797 = vmatprep.subr.bf16.mxu0 %v3764
        %3798 = vmatpush1.bf16.msra.mxu0 %v3763
        %3799 = vmatprep.subr.bf16.mxu0 %v3762
        %3800 = vmatpush1.bf16.msra.mxu0 %v3761
        %3801 = vmatprep.subr.bf16.mxu0 %v3760
        %3802 = vmatpush1.bf16.msra.mxu0 %v3759
        %3803 = vmatprep.subr.bf16.mxu0 %v3758
        %3804 = vmatpush1.bf16.msra.mxu0 %v3757
        %3805 = vmatprep.subr.bf16.mxu0 0
        %3806 = vmatpush2.bf16.msra.mxu0 0
        %3807 = vmatprep.subr.bf16.mxu0 0
        %3808 = vmatpush2.bf16.msra.mxu0 0
        %3809 = vmatprep.subr.bf16.mxu0 0
        %3810 = vmatpush2.bf16.msra.mxu0 0
        %3811 = vmatprep.subr.bf16.mxu0 0
        %3812 = vmatpush2.bf16.msra.mxu0 0
        %3813 = vmatprep.subr.bf16.mxu0 0
        %3814 = vmatpush2.bf16.msra.mxu0 0
        %3815 = vmatprep.subr.bf16.mxu0 0
        %3816 = vmatpush2.bf16.msra.mxu0 0
        %3817 = vmatprep.subr.bf16.mxu0 0
        %3818 = vmatpush2.bf16.msra.mxu0 0
        %3819 = vmatprep.subr.bf16.mxu0 0
        %3820 = vmatpush2.bf16.msra.mxu0 0
        %3821 = vmatprep.mubr.bf16.mxu0 0
        %3822 = vmatmul.mubr.bf16.gmra.mxu0 %v3269
        %v3823 = vpop.f32.mrf.mxu0
        %v3824 = vadd.f32 %v3702, %v3823
        %v3825 = vpop.f32.mrf.mxu0
        %v3826 = vadd.f32 %v3706, %v3825
        %v3827 = vpop.f32.mrf.mxu0
        %v3828 = vadd.f32 %v3702, %v3827
        %v3829 = vpop.f32.mrf.mxu0
        %v3830 = vadd.f32 %v3706, %v3829
        %3831 = vdwg.mxu0
        %v3832 = vlaneseq
        %vm3833 = vcmp.ge.s32.totalorder %v3832, 0
        %vm3834 = vcmp.lt.s32.totalorder %v3832, 256
        %vm3835 = vmand %vm3833, %vm3834
        %3836 = vst.msk [vmem:[#allocation9] ss:$8 sm:$0x3] %vm3835, 0.0
        %3837 = vst.msk [vmem:[#allocation9] ss:$8 sm:$0x0] %vm3835, 0.0
        %s3838 = scalar_lea.vmem [#allocation9], 33
        %3839 = vst.msk [vmem:[%s3838] ss:$8 sm:$0x3] %vm3835, 0.0
        %3840 = vst.msk [vmem:[%s3838] ss:$8 sm:$0x0] %vm3835, 0.0
        %vm3845 = vcmask 1040384
        %v3846 = vrot.slane %v3693, 7
        %v3847 = vrot.slane %v3694, 7
        %v3848 = vrot.slane %v3695, 7
        %v3849 = vsel %vm3845, %v3846, %v3848
        %v3850 = vrot.slane %v3696, 7
        %v3851 = vsel %vm3845, %v3847, %v3850
        %3858 = vst [vmem:[#allocation9] sm:$0xfe] %v3846
        %3859 = vst [vmem:[#allocation9 + $0x8] sm:$0xfe] %v3847
        %3860 = vst [vmem:[#allocation9 + $0x10] sm:$0xff] %v3849
        %3861 = vst [vmem:[#allocation9 + $0x18] sm:$0xff] %v3851
        %3862 = vst [vmem:[#allocation9 + $0x20] sm:$0x1] %v3848
        %3863 = vst [vmem:[#allocation9 + $0x28] sm:$0x1] %v3850
        %v3864 = vld [vmem:[#allocation9] sm:$0xff]
        %v3865 = vld [vmem:[#allocation9 + $0x8] sm:$0xff]
        %v3866 = vld [vmem:[#allocation9 + $0x10] sm:$0xff]
        %v3867 = vld [vmem:[#allocation9 + $0x18] sm:$0xff]
        %v3868 = vld [vmem:[#allocation9] sm:$0xfc]
        %v3869 = vld [vmem:[#allocation9 + $0x8] sm:$0xfc]
        %v3870 = vld [vmem:[#allocation9 + $0x20] sm:$0x3]
        %v3871 = vld [vmem:[#allocation9 + $0x28] sm:$0x3]
        %v3872 = vld [vmem:[#allocation34] sm:$0xff]
        %v3873 = vld [vmem:[#allocation34 + $0x8] sm:$0xff]
        %v3874 = vld [vmem:[#allocation34 + $0x10] sm:$0xff]
        %v3875 = vld [vmem:[#allocation34 + $0x18] sm:$0xff]
        %v3876 = vld [vmem:[#allocation34 + $0x20] sm:$0xff]
        %v3877 = vld [vmem:[#allocation34 + $0x28] sm:$0xff]
        %v3878 = vld [vmem:[#allocation34 + $0x30] sm:$0xff]
        %v3879 = vld [vmem:[#allocation34 + $0x38] sm:$0xff]
        %v3880 = vld [vmem:[#allocation34 + $0x40] sm:$0xff]
        %v3881 = vld [vmem:[#allocation34 + $0x48] sm:$0xff]
        %v3882 = vld [vmem:[#allocation34 + $0x50] sm:$0xff]
        %v3883 = vld [vmem:[#allocation34 + $0x58] sm:$0xff]
        %v3884 = vld [vmem:[#allocation34 + $0x60] sm:$0xff]
        %v3885 = vld [vmem:[#allocation34 + $0x68] sm:$0xff]
        %v3886 = vld [vmem:[#allocation34 + $0x70] sm:$0xff]
        %v3887 = vld [vmem:[#allocation34 + $0x78] sm:$0xff]
        %v3888 = vld [vmem:[#allocation34 + $0x80] sm:$0xff]
        %v3889 = vld [vmem:[#allocation34 + $0x88] sm:$0xff]
        %v3890 = vld [vmem:[#allocation34 + $0x90] sm:$0xff]
        %v3891 = vld [vmem:[#allocation34 + $0x98] sm:$0xff]
        %v3892 = vld [vmem:[#allocation34 + $0xa0] sm:$0xff]
        %v3893 = vld [vmem:[#allocation34 + $0xa8] sm:$0xff]
        %v3894 = vld [vmem:[#allocation34 + $0xb0] sm:$0xff]
        %v3895 = vld [vmem:[#allocation34 + $0xb8] sm:$0xff]
        %v3896 = vld [vmem:[#allocation34 + $0xc0] sm:$0xff]
        %v3897 = vld [vmem:[#allocation34 + $0xc8] sm:$0xff]
        %v3898 = vld [vmem:[#allocation34 + $0xd0] sm:$0xff]
        %v3899 = vld [vmem:[#allocation34 + $0xd8] sm:$0xff]
        %v3900 = vld [vmem:[#allocation34 + $0xe0] sm:$0xff]
        %v3901 = vld [vmem:[#allocation34 + $0xe8] sm:$0xff]
        %v3902 = vld [vmem:[#allocation34 + $0xf0] sm:$0xff]
        %v3903 = vld [vmem:[#allocation34 + $0xf8] sm:$0xff]
        %v3904 = vpack.c.bf16 %v3866, %v3864
        %v3905 = vpack.c.bf16 %v3867, %v3865
        %s3906 = scalar_lea.vmem [#allocation34], 256
        %v3907 = vld [vmem:[%s3906] sm:$0xff]
        %v3908 = vld [vmem:[%s3906 + $0x8] sm:$0xff]
        %v3909 = vld [vmem:[%s3906 + $0x10] sm:$0xff]
        %v3910 = vld [vmem:[%s3906 + $0x18] sm:$0xff]
        %v3911 = vld [vmem:[%s3906 + $0x20] sm:$0xff]
        %v3912 = vld [vmem:[%s3906 + $0x28] sm:$0xff]
        %v3913 = vld [vmem:[%s3906 + $0x30] sm:$0xff]
        %v3914 = vld [vmem:[%s3906 + $0x38] sm:$0xff]
        %v3915 = vld [vmem:[%s3906 + $0x40] sm:$0xff]
        %v3916 = vld [vmem:[%s3906 + $0x48] sm:$0xff]
        %v3917 = vld [vmem:[%s3906 + $0x50] sm:$0xff]
        %v3918 = vld [vmem:[%s3906 + $0x58] sm:$0xff]
        %v3919 = vld [vmem:[%s3906 + $0x60] sm:$0xff]
        %v3920 = vld [vmem:[%s3906 + $0x68] sm:$0xff]
        %v3921 = vld [vmem:[%s3906 + $0x70] sm:$0xff]
        %v3922 = vld [vmem:[%s3906 + $0x78] sm:$0xff]
        %v3923 = vld [vmem:[%s3906 + $0x80] sm:$0xff]
        %v3924 = vld [vmem:[%s3906 + $0x88] sm:$0xff]
        %v3925 = vld [vmem:[%s3906 + $0x90] sm:$0xff]
        %v3926 = vld [vmem:[%s3906 + $0x98] sm:$0xff]
        %v3927 = vld [vmem:[%s3906 + $0xa0] sm:$0xff]
        %v3928 = vld [vmem:[%s3906 + $0xa8] sm:$0xff]
        %v3929 = vld [vmem:[%s3906 + $0xb0] sm:$0xff]
        %v3930 = vld [vmem:[%s3906 + $0xb8] sm:$0xff]
        %v3931 = vld [vmem:[%s3906 + $0xc0] sm:$0xff]
        %v3932 = vld [vmem:[%s3906 + $0xc8] sm:$0xff]
        %v3933 = vld [vmem:[%s3906 + $0xd0] sm:$0xff]
        %v3934 = vld [vmem:[%s3906 + $0xd8] sm:$0xff]
        %v3935 = vld [vmem:[%s3906 + $0xe0] sm:$0xff]
        %v3936 = vld [vmem:[%s3906 + $0xe8] sm:$0xff]
        %v3937 = vld [vmem:[%s3906 + $0xf0] sm:$0xff]
        %v3938 = vld [vmem:[%s3906 + $0xf8] sm:$0xff]
        %v3939 = vpack.c.bf16 %v3695, %v3693
        %v3940 = vpack.c.bf16 %v3696, %v3694
        %v3973 = vunpack.c.l.b16 %v3907
        %v3974 = vunpack.c.h.b16 %v3907
        %v3975 = vunpack.c.l.b16 %v3908
        %v3976 = vunpack.c.h.b16 %v3908
        %v3977 = vunpack.c.l.b16 %v3909
        %v3978 = vunpack.c.h.b16 %v3909
        %v3979 = vunpack.c.l.b16 %v3910
        %v3980 = vunpack.c.h.b16 %v3910
        %v3981 = vunpack.c.l.b16 %v3911
        %v3982 = vunpack.c.h.b16 %v3911
        %v3983 = vunpack.c.l.b16 %v3912
        %v3984 = vunpack.c.h.b16 %v3912
        %v3985 = vunpack.c.l.b16 %v3913
        %v3986 = vunpack.c.h.b16 %v3913
        %v3987 = vunpack.c.l.b16 %v3914
        %v3988 = vunpack.c.h.b16 %v3914
        %v3989 = vunpack.c.l.b16 %v3915
        %v3990 = vunpack.c.h.b16 %v3915
        %v3991 = vunpack.c.l.b16 %v3916
        %v3992 = vunpack.c.h.b16 %v3916
        %v3993 = vunpack.c.l.b16 %v3917
        %v3994 = vunpack.c.h.b16 %v3917
        %v3995 = vunpack.c.l.b16 %v3918
        %v3996 = vunpack.c.h.b16 %v3918
        %v3997 = vunpack.c.l.b16 %v3919
        %v3998 = vunpack.c.h.b16 %v3919
        %v3999 = vunpack.c.l.b16 %v3920
        %v4000 = vunpack.c.h.b16 %v3920
        %v4001 = vunpack.c.l.b16 %v3921
        %v4002 = vunpack.c.h.b16 %v3921
        %v4003 = vunpack.c.l.b16 %v3922
        %v4004 = vunpack.c.h.b16 %v3922
        %v4005 = vunpack.c.l.b16 %v3923
        %v4006 = vunpack.c.h.b16 %v3923
        %v4007 = vunpack.c.l.b16 %v3924
        %v4008 = vunpack.c.h.b16 %v3924
        %v4009 = vunpack.c.l.b16 %v3925
        %v4010 = vunpack.c.h.b16 %v3925
        %v4011 = vunpack.c.l.b16 %v3926
        %v4012 = vunpack.c.h.b16 %v3926
        %v4013 = vunpack.c.l.b16 %v3927
        %v4014 = vunpack.c.h.b16 %v3927
        %v4015 = vunpack.c.l.b16 %v3928
        %v4016 = vunpack.c.h.b16 %v3928
        %v4017 = vunpack.c.l.b16 %v3929
        %v4018 = vunpack.c.h.b16 %v3929
        %v4019 = vunpack.c.l.b16 %v3930
        %v4020 = vunpack.c.h.b16 %v3930
        %v4021 = vunpack.c.l.b16 %v3931
        %v4022 = vunpack.c.h.b16 %v3931
        %v4023 = vunpack.c.l.b16 %v3932
        %v4024 = vunpack.c.h.b16 %v3932
        %v4025 = vunpack.c.l.b16 %v3933
        %v4026 = vunpack.c.h.b16 %v3933
        %v4027 = vunpack.c.l.b16 %v3934
        %v4028 = vunpack.c.h.b16 %v3934
        %v4029 = vunpack.c.l.b16 %v3935
        %v4030 = vunpack.c.h.b16 %v3935
        %v4031 = vunpack.c.l.b16 %v3936
        %v4032 = vunpack.c.h.b16 %v3936
        %v4033 = vunpack.c.l.b16 %v3937
        %v4034 = vunpack.c.h.b16 %v3937
        %v4035 = vunpack.c.l.b16 %v3938
        %v4036 = vunpack.c.h.b16 %v3938
        %v4037 = vpack.c.b16 %v3975, %v3973
        %v4038 = vpack.c.b16 %v3976, %v3974
        %v4039 = vpack.c.b16 %v3979, %v3977
        %v4040 = vpack.c.b16 %v3980, %v3978
        %v4041 = vpack.c.b16 %v3983, %v3981
        %v4042 = vpack.c.b16 %v3984, %v3982
        %v4043 = vpack.c.b16 %v3987, %v3985
        %v4044 = vpack.c.b16 %v3988, %v3986
        %v4045 = vpack.c.b16 %v3991, %v3989
        %v4046 = vpack.c.b16 %v3992, %v3990
        %v4047 = vpack.c.b16 %v3995, %v3993
        %v4048 = vpack.c.b16 %v3996, %v3994
        %v4049 = vpack.c.b16 %v3999, %v3997
        %v4050 = vpack.c.b16 %v4000, %v3998
        %v4051 = vpack.c.b16 %v4003, %v4001
        %v4052 = vpack.c.b16 %v4004, %v4002
        %v4053 = vpack.c.b16 %v4007, %v4005
        %v4054 = vpack.c.b16 %v4008, %v4006
        %v4055 = vpack.c.b16 %v4011, %v4009
        %v4056 = vpack.c.b16 %v4012, %v4010
        %v4057 = vpack.c.b16 %v4015, %v4013
        %v4058 = vpack.c.b16 %v4016, %v4014
        %v4059 = vpack.c.b16 %v4019, %v4017
        %v4060 = vpack.c.b16 %v4020, %v4018
        %v4061 = vpack.c.b16 %v4023, %v4021
        %v4062 = vpack.c.b16 %v4024, %v4022
        %v4063 = vpack.c.b16 %v4027, %v4025
        %v4064 = vpack.c.b16 %v4028, %v4026
        %v4065 = vpack.c.b16 %v4031, %v4029
        %v4066 = vpack.c.b16 %v4032, %v4030
        %v4067 = vpack.c.b16 %v4035, %v4033
        %v4068 = vpack.c.b16 %v4036, %v4034
        %4101 = vmatprep.subr.bf16.mxu0 %v4052
        %4102 = vmatpush1.bf16.msra.mxu0 %v4051
        %4103 = vmatprep.subr.bf16.mxu0 %v4050
        %4104 = vmatpush1.bf16.msra.mxu0 %v4049
        %4105 = vmatprep.subr.bf16.mxu0 %v4048
        %4106 = vmatpush1.bf16.msra.mxu0 %v4047
        %4107 = vmatprep.subr.bf16.mxu0 %v4046
        %4108 = vmatpush1.bf16.msra.mxu0 %v4045
        %4109 = vmatprep.subr.bf16.mxu0 %v4044
        %4110 = vmatpush1.bf16.msra.mxu0 %v4043
        %4111 = vmatprep.subr.bf16.mxu0 %v4042
        %4112 = vmatpush1.bf16.msra.mxu0 %v4041
        %4113 = vmatprep.subr.bf16.mxu0 %v4040
        %4114 = vmatpush1.bf16.msra.mxu0 %v4039
        %4115 = vmatprep.subr.bf16.mxu0 %v4038
        %4116 = vmatpush1.bf16.msra.mxu0 %v4037
        %4117 = vmatprep.subr.bf16.mxu0 %v4068
        %4118 = vmatpush2.bf16.msra.mxu0 %v4067
        %4119 = vmatprep.subr.bf16.mxu0 %v4066
        %4120 = vmatpush2.bf16.msra.mxu0 %v4065
        %4121 = vmatprep.subr.bf16.mxu0 %v4064
        %4122 = vmatpush2.bf16.msra.mxu0 %v4063
        %4123 = vmatprep.subr.bf16.mxu0 %v4062
        %4124 = vmatpush2.bf16.msra.mxu0 %v4061
        %4125 = vmatprep.subr.bf16.mxu0 %v4060
        %4126 = vmatpush2.bf16.msra.mxu0 %v4059
        %4127 = vmatprep.subr.bf16.mxu0 %v4058
        %4128 = vmatpush2.bf16.msra.mxu0 %v4057
        %4129 = vmatprep.subr.bf16.mxu0 %v4056
        %4130 = vmatpush2.bf16.msra.mxu0 %v4055
        %4131 = vmatprep.subr.bf16.mxu0 %v4054
        %4132 = vmatpush2.bf16.msra.mxu0 %v4053
        %4133 = vmatprep.mubr.bf16.mxu0 %v3940
        %4134 = vmatmul.mubr.bf16.gmra.mxu0 %v3939
        %v4135 = vpop.f32.mrf.mxu0
        %v4136 = vadd.f32 0.0, %v4135
        %v4137 = vpop.f32.mrf.mxu0
        %v4138 = vadd.f32 0.0, %v4137
        %v4139 = vpop.f32.mrf.mxu0
        %v4140 = vadd.f32 0.0, %v4139
        %v4141 = vpop.f32.mrf.mxu0
        %v4142 = vadd.f32 0.0, %v4141
        %4143 = vdwg.mxu0
        %v4176 = vunpack.c.l.b16 %v3872
        %v4177 = vunpack.c.h.b16 %v3872
        %v4178 = vunpack.c.l.b16 %v3873
        %v4179 = vunpack.c.h.b16 %v3873
        %v4180 = vunpack.c.l.b16 %v3874
        %v4181 = vunpack.c.h.b16 %v3874
        %v4182 = vunpack.c.l.b16 %v3875
        %v4183 = vunpack.c.h.b16 %v3875
        %v4184 = vunpack.c.l.b16 %v3876
        %v4185 = vunpack.c.h.b16 %v3876
        %v4186 = vunpack.c.l.b16 %v3877
        %v4187 = vunpack.c.h.b16 %v3877
        %v4188 = vunpack.c.l.b16 %v3878
        %v4189 = vunpack.c.h.b16 %v3878
        %v4190 = vunpack.c.l.b16 %v3879
        %v4191 = vunpack.c.h.b16 %v3879
        %v4192 = vunpack.c.l.b16 %v3880
        %v4193 = vunpack.c.h.b16 %v3880
        %v4194 = vunpack.c.l.b16 %v3881
        %v4195 = vunpack.c.h.b16 %v3881
        %v4196 = vunpack.c.l.b16 %v3882
        %v4197 = vunpack.c.h.b16 %v3882
        %v4198 = vunpack.c.l.b16 %v3883
        %v4199 = vunpack.c.h.b16 %v3883
        %v4200 = vunpack.c.l.b16 %v3884
        %v4201 = vunpack.c.h.b16 %v3884
        %v4202 = vunpack.c.l.b16 %v3885
        %v4203 = vunpack.c.h.b16 %v3885
        %v4204 = vunpack.c.l.b16 %v3886
        %v4205 = vunpack.c.h.b16 %v3886
        %v4206 = vunpack.c.l.b16 %v3887
        %v4207 = vunpack.c.h.b16 %v3887
        %v4208 = vunpack.c.l.b16 %v3888
        %v4209 = vunpack.c.h.b16 %v3888
        %v4210 = vunpack.c.l.b16 %v3889
        %v4211 = vunpack.c.h.b16 %v3889
        %v4212 = vunpack.c.l.b16 %v3890
        %v4213 = vunpack.c.h.b16 %v3890
        %v4214 = vunpack.c.l.b16 %v3891
        %v4215 = vunpack.c.h.b16 %v3891
        %v4216 = vunpack.c.l.b16 %v3892
        %v4217 = vunpack.c.h.b16 %v3892
        %v4218 = vunpack.c.l.b16 %v3893
        %v4219 = vunpack.c.h.b16 %v3893
        %v4220 = vunpack.c.l.b16 %v3894
        %v4221 = vunpack.c.h.b16 %v3894
        %v4222 = vunpack.c.l.b16 %v3895
        %v4223 = vunpack.c.h.b16 %v3895
        %v4224 = vunpack.c.l.b16 %v3896
        %v4225 = vunpack.c.h.b16 %v3896
        %v4226 = vunpack.c.l.b16 %v3897
        %v4227 = vunpack.c.h.b16 %v3897
        %v4228 = vunpack.c.l.b16 %v3898
        %v4229 = vunpack.c.h.b16 %v3898
        %v4230 = vunpack.c.l.b16 %v3899
        %v4231 = vunpack.c.h.b16 %v3899
        %v4232 = vunpack.c.l.b16 %v3900
        %v4233 = vunpack.c.h.b16 %v3900
        %v4234 = vunpack.c.l.b16 %v3901
        %v4235 = vunpack.c.h.b16 %v3901
        %v4236 = vunpack.c.l.b16 %v3902
        %v4237 = vunpack.c.h.b16 %v3902
        %v4238 = vunpack.c.l.b16 %v3903
        %v4239 = vunpack.c.h.b16 %v3903
        %v4240 = vpack.c.b16 %v4178, %v4176
        %v4241 = vpack.c.b16 %v4179, %v4177
        %v4242 = vpack.c.b16 %v4182, %v4180
        %v4243 = vpack.c.b16 %v4183, %v4181
        %v4244 = vpack.c.b16 %v4186, %v4184
        %v4245 = vpack.c.b16 %v4187, %v4185
        %v4246 = vpack.c.b16 %v4190, %v4188
        %v4247 = vpack.c.b16 %v4191, %v4189
        %v4248 = vpack.c.b16 %v4194, %v4192
        %v4249 = vpack.c.b16 %v4195, %v4193
        %v4250 = vpack.c.b16 %v4198, %v4196
        %v4251 = vpack.c.b16 %v4199, %v4197
        %v4252 = vpack.c.b16 %v4202, %v4200
        %v4253 = vpack.c.b16 %v4203, %v4201
        %v4254 = vpack.c.b16 %v4206, %v4204
        %v4255 = vpack.c.b16 %v4207, %v4205
        %v4256 = vpack.c.b16 %v4210, %v4208
        %v4257 = vpack.c.b16 %v4211, %v4209
        %v4258 = vpack.c.b16 %v4214, %v4212
        %v4259 = vpack.c.b16 %v4215, %v4213
        %v4260 = vpack.c.b16 %v4218, %v4216
        %v4261 = vpack.c.b16 %v4219, %v4217
        %v4262 = vpack.c.b16 %v4222, %v4220
        %v4263 = vpack.c.b16 %v4223, %v4221
        %v4264 = vpack.c.b16 %v4226, %v4224
        %v4265 = vpack.c.b16 %v4227, %v4225
        %v4266 = vpack.c.b16 %v4230, %v4228
        %v4267 = vpack.c.b16 %v4231, %v4229
        %v4268 = vpack.c.b16 %v4234, %v4232
        %v4269 = vpack.c.b16 %v4235, %v4233
        %v4270 = vpack.c.b16 %v4238, %v4236
        %v4271 = vpack.c.b16 %v4239, %v4237
        %4304 = vmatprep.subr.bf16.mxu0 %v4255
        %4305 = vmatpush1.bf16.msra.mxu0 %v4254
        %4306 = vmatprep.subr.bf16.mxu0 %v4253
        %4307 = vmatpush1.bf16.msra.mxu0 %v4252
        %4308 = vmatprep.subr.bf16.mxu0 %v4251
        %4309 = vmatpush1.bf16.msra.mxu0 %v4250
        %4310 = vmatprep.subr.bf16.mxu0 %v4249
        %4311 = vmatpush1.bf16.msra.mxu0 %v4248
        %4312 = vmatprep.subr.bf16.mxu0 %v4247
        %4313 = vmatpush1.bf16.msra.mxu0 %v4246
        %4314 = vmatprep.subr.bf16.mxu0 %v4245
        %4315 = vmatpush1.bf16.msra.mxu0 %v4244
        %4316 = vmatprep.subr.bf16.mxu0 %v4243
        %4317 = vmatpush1.bf16.msra.mxu0 %v4242
        %4318 = vmatprep.subr.bf16.mxu0 %v4241
        %4319 = vmatpush1.bf16.msra.mxu0 %v4240
        %4320 = vmatprep.subr.bf16.mxu0 %v4271
        %4321 = vmatpush2.bf16.msra.mxu0 %v4270
        %4322 = vmatprep.subr.bf16.mxu0 %v4269
        %4323 = vmatpush2.bf16.msra.mxu0 %v4268
        %4324 = vmatprep.subr.bf16.mxu0 %v4267
        %4325 = vmatpush2.bf16.msra.mxu0 %v4266
        %4326 = vmatprep.subr.bf16.mxu0 %v4265
        %4327 = vmatpush2.bf16.msra.mxu0 %v4264
        %4328 = vmatprep.subr.bf16.mxu0 %v4263
        %4329 = vmatpush2.bf16.msra.mxu0 %v4262
        %4330 = vmatprep.subr.bf16.mxu0 %v4261
        %4331 = vmatpush2.bf16.msra.mxu0 %v4260
        %4332 = vmatprep.subr.bf16.mxu0 %v4259
        %4333 = vmatpush2.bf16.msra.mxu0 %v4258
        %4334 = vmatprep.subr.bf16.mxu0 %v4257
        %4335 = vmatpush2.bf16.msra.mxu0 %v4256
        %4336 = vmatprep.mubr.bf16.mxu0 %v3905
        %4337 = vmatmul.mubr.bf16.gmra.mxu0 %v3904
        %v4338 = vpop.f32.mrf.mxu0
        %v4339 = vadd.f32 %v4136, %v4338
        %v4340 = vpop.f32.mrf.mxu0
        %v4341 = vadd.f32 %v4138, %v4340
        %v4342 = vpop.f32.mrf.mxu0
        %v4343 = vadd.f32 %v4140, %v4342
        %v4344 = vpop.f32.mrf.mxu0
        %v4345 = vadd.f32 %v4142, %v4344
        %4346 = vdwg.mxu0
        %s4347 = scalar_lea.vmem [#allocation34], 512
        %v4348 = vld [vmem:[%s4347] sm:$0xff]
        %v4349 = vld [vmem:[%s4347 + $0x8] sm:$0xff]
        %v4350 = vld [vmem:[%s4347 + $0x10] sm:$0xff]
        %v4351 = vld [vmem:[%s4347 + $0x18] sm:$0xff]
        %v4352 = vld [vmem:[%s4347 + $0x20] sm:$0xff]
        %v4353 = vld [vmem:[%s4347 + $0x28] sm:$0xff]
        %v4354 = vld [vmem:[%s4347 + $0x30] sm:$0xff]
        %v4355 = vld [vmem:[%s4347 + $0x38] sm:$0xff]
        %v4356 = vld [vmem:[%s4347 + $0x40] sm:$0xff]
        %v4357 = vld [vmem:[%s4347 + $0x48] sm:$0xff]
        %v4358 = vld [vmem:[%s4347 + $0x50] sm:$0xff]
        %v4359 = vld [vmem:[%s4347 + $0x58] sm:$0xff]
        %v4360 = vld [vmem:[%s4347 + $0x60] sm:$0xff]
        %v4361 = vld [vmem:[%s4347 + $0x68] sm:$0xff]
        %v4362 = vld [vmem:[%s4347 + $0x70] sm:$0xff]
        %v4363 = vld [vmem:[%s4347 + $0x78] sm:$0xff]
        %v4364 = vld [vmem:[%s4347 + $0x80] sm:$0xff]
        %v4365 = vld [vmem:[%s4347 + $0x88] sm:$0xff]
        %v4366 = vld [vmem:[%s4347 + $0x90] sm:$0xff]
        %v4367 = vld [vmem:[%s4347 + $0x98] sm:$0xff]
        %v4368 = vld [vmem:[%s4347 + $0xa0] sm:$0xff]
        %v4369 = vld [vmem:[%s4347 + $0xa8] sm:$0xff]
        %v4370 = vld [vmem:[%s4347 + $0xb0] sm:$0xff]
        %v4371 = vld [vmem:[%s4347 + $0xb8] sm:$0xff]
        %v4372 = vld [vmem:[%s4347 + $0xc0] sm:$0xff]
        %v4373 = vld [vmem:[%s4347 + $0xc8] sm:$0xff]
        %v4374 = vld [vmem:[%s4347 + $0xd0] sm:$0xff]
        %v4375 = vld [vmem:[%s4347 + $0xd8] sm:$0xff]
        %v4376 = vld [vmem:[%s4347 + $0xe0] sm:$0xff]
        %v4377 = vld [vmem:[%s4347 + $0xe8] sm:$0xff]
        %v4378 = vld [vmem:[%s4347 + $0xf0] sm:$0xff]
        %v4379 = vld [vmem:[%s4347 + $0xf8] sm:$0xff]
        %v4380 = vpack.c.bf16 %v3866, %v3868
        %v4381 = vpack.c.bf16 %v3867, %v3869
        %v4382 = vpack.c.bf16 %v3870, %v3870
        %v4383 = vpack.c.bf16 %v3871, %v3871
        %vm4388 = vcmask 1046528
        %v4389 = vrot.slane %v4380, 1
        %v4390 = vrot.slane %v4382, 1
        %v4391 = vsel %vm4388, %v4389, %v4390
        %v4392 = vrot.slane %v4381, 1
        %v4393 = vrot.slane %v4383, 1
        %v4394 = vsel %vm4388, %v4392, %v4393
        %v4429 = vunpack.c.l.b16 %v4348
        %v4430 = vunpack.c.h.b16 %v4348
        %v4431 = vunpack.c.l.b16 %v4349
        %v4432 = vunpack.c.h.b16 %v4349
        %v4433 = vunpack.c.l.b16 %v4350
        %v4434 = vunpack.c.h.b16 %v4350
        %v4435 = vunpack.c.l.b16 %v4351
        %v4436 = vunpack.c.h.b16 %v4351
        %v4437 = vunpack.c.l.b16 %v4352
        %v4438 = vunpack.c.h.b16 %v4352
        %v4439 = vunpack.c.l.b16 %v4353
        %v4440 = vunpack.c.h.b16 %v4353
        %v4441 = vunpack.c.l.b16 %v4354
        %v4442 = vunpack.c.h.b16 %v4354
        %v4443 = vunpack.c.l.b16 %v4355
        %v4444 = vunpack.c.h.b16 %v4355
        %v4445 = vunpack.c.l.b16 %v4356
        %v4446 = vunpack.c.h.b16 %v4356
        %v4447 = vunpack.c.l.b16 %v4357
        %v4448 = vunpack.c.h.b16 %v4357
        %v4449 = vunpack.c.l.b16 %v4358
        %v4450 = vunpack.c.h.b16 %v4358
        %v4451 = vunpack.c.l.b16 %v4359
        %v4452 = vunpack.c.h.b16 %v4359
        %v4453 = vunpack.c.l.b16 %v4360
        %v4454 = vunpack.c.h.b16 %v4360
        %v4455 = vunpack.c.l.b16 %v4361
        %v4456 = vunpack.c.h.b16 %v4361
        %v4457 = vunpack.c.l.b16 %v4362
        %v4458 = vunpack.c.h.b16 %v4362
        %v4459 = vunpack.c.l.b16 %v4363
        %v4460 = vunpack.c.h.b16 %v4363
        %v4461 = vunpack.c.l.b16 %v4364
        %v4462 = vunpack.c.h.b16 %v4364
        %v4463 = vunpack.c.l.b16 %v4365
        %v4464 = vunpack.c.h.b16 %v4365
        %v4465 = vunpack.c.l.b16 %v4366
        %v4466 = vunpack.c.h.b16 %v4366
        %v4467 = vunpack.c.l.b16 %v4367
        %v4468 = vunpack.c.h.b16 %v4367
        %v4469 = vunpack.c.l.b16 %v4368
        %v4470 = vunpack.c.h.b16 %v4368
        %v4471 = vunpack.c.l.b16 %v4369
        %v4472 = vunpack.c.h.b16 %v4369
        %v4473 = vunpack.c.l.b16 %v4370
        %v4474 = vunpack.c.h.b16 %v4370
        %v4475 = vunpack.c.l.b16 %v4371
        %v4476 = vunpack.c.h.b16 %v4371
        %v4477 = vunpack.c.l.b16 %v4372
        %v4478 = vunpack.c.h.b16 %v4372
        %v4479 = vunpack.c.l.b16 %v4373
        %v4480 = vunpack.c.h.b16 %v4373
        %v4481 = vunpack.c.l.b16 %v4374
        %v4482 = vunpack.c.h.b16 %v4374
        %v4483 = vunpack.c.l.b16 %v4375
        %v4484 = vunpack.c.h.b16 %v4375
        %v4485 = vunpack.c.l.b16 %v4376
        %v4486 = vunpack.c.h.b16 %v4376
        %v4487 = vunpack.c.l.b16 %v4377
        %v4488 = vunpack.c.h.b16 %v4377
        %v4489 = vunpack.c.l.b16 %v4378
        %v4490 = vunpack.c.h.b16 %v4378
        %v4491 = vunpack.c.l.b16 %v4379
        %v4492 = vunpack.c.h.b16 %v4379
        %v4493 = vpack.c.b16 %v4431, %v4429
        %v4494 = vpack.c.b16 %v4432, %v4430
        %v4495 = vpack.c.b16 %v4435, %v4433
        %v4496 = vpack.c.b16 %v4436, %v4434
        %v4497 = vpack.c.b16 %v4439, %v4437
        %v4498 = vpack.c.b16 %v4440, %v4438
        %v4499 = vpack.c.b16 %v4443, %v4441
        %v4500 = vpack.c.b16 %v4444, %v4442
        %v4501 = vpack.c.b16 %v4447, %v4445
        %v4502 = vpack.c.b16 %v4448, %v4446
        %v4503 = vpack.c.b16 %v4451, %v4449
        %v4504 = vpack.c.b16 %v4452, %v4450
        %v4505 = vpack.c.b16 %v4455, %v4453
        %v4506 = vpack.c.b16 %v4456, %v4454
        %v4507 = vpack.c.b16 %v4459, %v4457
        %v4508 = vpack.c.b16 %v4460, %v4458
        %v4509 = vpack.c.b16 %v4463, %v4461
        %v4510 = vpack.c.b16 %v4464, %v4462
        %v4511 = vpack.c.b16 %v4467, %v4465
        %v4512 = vpack.c.b16 %v4468, %v4466
        %v4513 = vpack.c.b16 %v4471, %v4469
        %v4514 = vpack.c.b16 %v4472, %v4470
        %v4515 = vpack.c.b16 %v4475, %v4473
        %v4516 = vpack.c.b16 %v4476, %v4474
        %v4517 = vpack.c.b16 %v4479, %v4477
        %v4518 = vpack.c.b16 %v4480, %v4478
        %v4519 = vpack.c.b16 %v4483, %v4481
        %v4520 = vpack.c.b16 %v4484, %v4482
        %v4521 = vpack.c.b16 %v4487, %v4485
        %v4522 = vpack.c.b16 %v4488, %v4486
        %v4523 = vpack.c.b16 %v4491, %v4489
        %v4524 = vpack.c.b16 %v4492, %v4490
        %4557 = vmatprep.subr.bf16.mxu0 %v4508
        %4558 = vmatpush1.bf16.msra.mxu0 %v4507
        %4559 = vmatprep.subr.bf16.mxu0 %v4506
        %4560 = vmatpush1.bf16.msra.mxu0 %v4505
        %4561 = vmatprep.subr.bf16.mxu0 %v4504
        %4562 = vmatpush1.bf16.msra.mxu0 %v4503
        %4563 = vmatprep.subr.bf16.mxu0 %v4502
        %4564 = vmatpush1.bf16.msra.mxu0 %v4501
        %4565 = vmatprep.subr.bf16.mxu0 %v4500
        %4566 = vmatpush1.bf16.msra.mxu0 %v4499
        %4567 = vmatprep.subr.bf16.mxu0 %v4498
        %4568 = vmatpush1.bf16.msra.mxu0 %v4497
        %4569 = vmatprep.subr.bf16.mxu0 %v4496
        %4570 = vmatpush1.bf16.msra.mxu0 %v4495
        %4571 = vmatprep.subr.bf16.mxu0 %v4494
        %4572 = vmatpush1.bf16.msra.mxu0 %v4493
        %4573 = vmatprep.subr.bf16.mxu0 %v4524
        %4574 = vmatpush2.bf16.msra.mxu0 %v4523
        %4575 = vmatprep.subr.bf16.mxu0 %v4522
        %4576 = vmatpush2.bf16.msra.mxu0 %v4521
        %4577 = vmatprep.subr.bf16.mxu0 %v4520
        %4578 = vmatpush2.bf16.msra.mxu0 %v4519
        %4579 = vmatprep.subr.bf16.mxu0 %v4518
        %4580 = vmatpush2.bf16.msra.mxu0 %v4517
        %4581 = vmatprep.subr.bf16.mxu0 %v4516
        %4582 = vmatpush2.bf16.msra.mxu0 %v4515
        %4583 = vmatprep.subr.bf16.mxu0 %v4514
        %4584 = vmatpush2.bf16.msra.mxu0 %v4513
        %4585 = vmatprep.subr.bf16.mxu0 %v4512
        %4586 = vmatpush2.bf16.msra.mxu0 %v4511
        %4587 = vmatprep.subr.bf16.mxu0 %v4510
        %4588 = vmatpush2.bf16.msra.mxu0 %v4509
        %4589 = vmatprep.mubr.bf16.mxu0 %v4394
        %4590 = vmatmul.mubr.bf16.gmra.mxu0 %v4391
        %v4591 = vpop.f32.mrf.mxu0
        %v4592 = vadd.f32 0.0, %v4591
        %v4593 = vpop.f32.mrf.mxu0
        %v4594 = vadd.f32 0.0, %v4593
        %v4595 = vpop.f32.mrf.mxu0
        %v4596 = vadd.f32 0.0, %v4595
        %v4597 = vpop.f32.mrf.mxu0
        %v4598 = vadd.f32 0.0, %v4597
        %4599 = vdwg.mxu0
        %v4600 = vadd.f32 %v4339, %v4592
        %v4601 = vadd.f32 %v4341, %v4594
        %v4602 = vadd.f32 %v4343, %v4596
        %v4603 = vadd.f32 %v4345, %v4598
        %v4604 = vld [vmem:[%s45] sm:$0x3]
        %v4606 = vlaneseq
        %v4607 = vshrl.u32 %v4606, 7
        %v4608 = vsub.s32 0, %v4607
        %v4609 = vrot.slane %v4604, %v4608
        %v4610 = vlaneseq
        %v4611 = vshrl.u32 %v4610, 7
        %v4612 = vsub.s32 1, %v4611
        %v4613 = vrot.slane %v4604, %v4612
        %v4616 = vadd.f32 %v4600, %v4609
        %v4617 = vadd.f32 %v4601, %v4613
        %v4618 = vadd.f32 %v4602, %v4609
        %v4619 = vadd.f32 %v4603, %v4613
        %v4620 = vadd.f32 %v4616, %v3824
        %v4621 = vadd.f32 %v4617, %v3826
        %v4622 = vadd.f32 %v4618, %v3828
        %v4623 = vadd.f32 %v4619, %v3830
        %v4624 = vmax.f32 %v4620, 0.0
        %v4625 = vmax.f32 %v4621, 0.0
        %v4626 = vmax.f32 %v4622, 0.0
        %v4627 = vmax.f32 %v4623, 0.0
        %vm4628 = vcmask 1043456
        %v4629 = vsel %vm4628, %v4624, -inf
        %v4630 = vrot.slane %v4629, 4
        %v4631 = vmax.f32 %v4629, %v4630
        %v4632 = vrot.slane %v4631, 2
        %v4633 = vmax.f32 %v4631, %v4632
        %v4634 = vrot.slane %v4633, 1
        %v4635 = vmax.f32 %v4633, %v4634
        %v4636 = vsel %vm4628, %v4625, -inf
        %v4637 = vrot.slane %v4636, 4
        %v4638 = vmax.f32 %v4636, %v4637
        %v4639 = vrot.slane %v4638, 2
        %v4640 = vmax.f32 %v4638, %v4639
        %v4641 = vrot.slane %v4640, 1
        %v4642 = vmax.f32 %v4640, %v4641
        %vm4643 = vcmask 1047556
        %v4644 = vsel %vm4643, %v4624, -inf
        %v4645 = vrot.slane %v4644, 4
        %v4646 = vmax.f32 %v4644, %v4645
        %v4647 = vrot.slane %v4646, 2
        %v4648 = vmax.f32 %v4646, %v4647
        %v4649 = vrot.slane %v4648, 1
        %v4650 = vmax.f32 %v4648, %v4649
        %v4651 = vsel %vm4643, %v4625, -inf
        %v4652 = vrot.slane %v4651, 4
        %v4653 = vmax.f32 %v4651, %v4652
        %v4654 = vrot.slane %v4653, 2
        %v4655 = vmax.f32 %v4653, %v4654
        %v4656 = vrot.slane %v4655, 1
        %v4657 = vmax.f32 %v4655, %v4656
        %v4658 = vsel %vm4628, %v4626, -inf
        %v4659 = vrot.slane %v4658, 4
        %v4660 = vmax.f32 %v4658, %v4659
        %v4661 = vrot.slane %v4660, 2
        %v4662 = vmax.f32 %v4660, %v4661
        %v4663 = vrot.slane %v4662, 1
        %v4664 = vmax.f32 %v4662, %v4663
        %v4665 = vsel %vm4628, %v4627, -inf
        %v4666 = vrot.slane %v4665, 4
        %v4667 = vmax.f32 %v4665, %v4666
        %v4668 = vrot.slane %v4667, 2
        %v4669 = vmax.f32 %v4667, %v4668
        %v4670 = vrot.slane %v4669, 1
        %v4671 = vmax.f32 %v4669, %v4670
        %v4672 = vsel %vm4643, %v4626, -inf
        %v4673 = vrot.slane %v4672, 4
        %v4674 = vmax.f32 %v4672, %v4673
        %v4675 = vrot.slane %v4674, 2
        %v4676 = vmax.f32 %v4674, %v4675
        %v4677 = vrot.slane %v4676, 1
        %v4678 = vmax.f32 %v4676, %v4677
        %v4679 = vsel %vm4643, %v4627, -inf
        %v4680 = vrot.slane %v4679, 4
        %v4681 = vmax.f32 %v4679, %v4680
        %v4682 = vrot.slane %v4681, 2
        %v4683 = vmax.f32 %v4681, %v4682
        %v4684 = vrot.slane %v4683, 1
        %v4685 = vmax.f32 %v4683, %v4684
        %v4686 = vpack.c.bf16 %v4635, %v4635
        %v4687 = vpack.c.bf16 %v4642, %v4642
        %v4688 = vpack.c.bf16 %v4650, %v4650
        %v4689 = vpack.c.bf16 %v4657, %v4657
        %v4690 = vpack.c.bf16 %v4664, %v4664
        %v4691 = vpack.c.bf16 %v4671, %v4671
        %v4692 = vpack.c.bf16 %v4678, %v4678
        %v4693 = vpack.c.bf16 %v4685, %v4685
        %v4694 = vld [vmem:[#allocation36] sm:$0xff]
        %v4695 = vld [vmem:[#allocation36 + $0x8] sm:$0xff]
        %v4696 = vld [vmem:[#allocation36 + $0x10] sm:$0xff]
        %v4697 = vld [vmem:[#allocation36 + $0x18] sm:$0xff]
        %v4698 = vld [vmem:[#allocation36 + $0x20] sm:$0xff]
        %v4699 = vld [vmem:[#allocation36 + $0x28] sm:$0xff]
        %v4700 = vld [vmem:[#allocation36 + $0x30] sm:$0xff]
        %v4701 = vld [vmem:[#allocation36 + $0x38] sm:$0xff]
        %v4702 = vld [vmem:[#allocation36 + $0x40] sm:$0xff]
        %v4703 = vld [vmem:[#allocation36 + $0x48] sm:$0xff]
        %v4704 = vld [vmem:[#allocation36 + $0x50] sm:$0xff]
        %v4705 = vld [vmem:[#allocation36 + $0x58] sm:$0xff]
        %v4706 = vld [vmem:[#allocation36 + $0x60] sm:$0xff]
        %v4707 = vld [vmem:[#allocation36 + $0x68] sm:$0xff]
        %v4708 = vld [vmem:[#allocation36 + $0x70] sm:$0xff]
        %v4709 = vld [vmem:[#allocation36 + $0x78] sm:$0xff]
        %v4710 = vld [vmem:[#allocation36 + $0x80] sm:$0xff]
        %v4711 = vld [vmem:[#allocation36 + $0x88] sm:$0xff]
        %v4712 = vld [vmem:[#allocation36 + $0x90] sm:$0xff]
        %v4713 = vld [vmem:[#allocation36 + $0x98] sm:$0xff]
        %v4714 = vld [vmem:[#allocation36 + $0xa0] sm:$0xff]
        %v4715 = vld [vmem:[#allocation36 + $0xa8] sm:$0xff]
        %v4716 = vld [vmem:[#allocation36 + $0xb0] sm:$0xff]
        %v4717 = vld [vmem:[#allocation36 + $0xb8] sm:$0xff]
        %v4718 = vld [vmem:[#allocation36 + $0xc0] sm:$0xff]
        %v4719 = vld [vmem:[#allocation36 + $0xc8] sm:$0xff]
        %v4720 = vld [vmem:[#allocation36 + $0xd0] sm:$0xff]
        %v4721 = vld [vmem:[#allocation36 + $0xd8] sm:$0xff]
        %v4722 = vld [vmem:[#allocation36 + $0xe0] sm:$0xff]
        %v4723 = vld [vmem:[#allocation36 + $0xe8] sm:$0xff]
        %v4724 = vld [vmem:[#allocation36 + $0xf0] sm:$0xff]
        %v4725 = vld [vmem:[#allocation36 + $0xf8] sm:$0xff]
        %v4726 = vld [vmem:[#allocation36 + $0x100] sm:$0xff]
        %v4727 = vld [vmem:[#allocation36 + $0x108] sm:$0xff]
        %v4728 = vld [vmem:[#allocation36 + $0x110] sm:$0xff]
        %v4729 = vld [vmem:[#allocation36 + $0x118] sm:$0xff]
        %v4730 = vld [vmem:[#allocation36 + $0x120] sm:$0xff]
        %v4731 = vld [vmem:[#allocation36 + $0x128] sm:$0xff]
        %v4732 = vld [vmem:[#allocation36 + $0x130] sm:$0xff]
        %v4733 = vld [vmem:[#allocation36 + $0x138] sm:$0xff]
        %v4734 = vld [vmem:[#allocation36 + $0x140] sm:$0xff]
        %v4735 = vld [vmem:[#allocation36 + $0x148] sm:$0xff]
        %v4736 = vld [vmem:[#allocation36 + $0x150] sm:$0xff]
        %v4737 = vld [vmem:[#allocation36 + $0x158] sm:$0xff]
        %v4738 = vld [vmem:[#allocation36 + $0x160] sm:$0xff]
        %v4739 = vld [vmem:[#allocation36 + $0x168] sm:$0xff]
        %v4740 = vld [vmem:[#allocation36 + $0x170] sm:$0xff]
        %v4741 = vld [vmem:[#allocation36 + $0x178] sm:$0xff]
        %v4742 = vld [vmem:[#allocation36 + $0x180] sm:$0xff]
        %v4743 = vld [vmem:[#allocation36 + $0x188] sm:$0xff]
        %v4744 = vld [vmem:[#allocation36 + $0x190] sm:$0xff]
        %v4745 = vld [vmem:[#allocation36 + $0x198] sm:$0xff]
        %v4746 = vld [vmem:[#allocation36 + $0x1a0] sm:$0xff]
        %v4747 = vld [vmem:[#allocation36 + $0x1a8] sm:$0xff]
        %v4748 = vld [vmem:[#allocation36 + $0x1b0] sm:$0xff]
        %v4749 = vld [vmem:[#allocation36 + $0x1b8] sm:$0xff]
        %v4750 = vld [vmem:[#allocation36 + $0x1c0] sm:$0xff]
        %v4751 = vld [vmem:[#allocation36 + $0x1c8] sm:$0xff]
        %v4752 = vld [vmem:[#allocation36 + $0x1d0] sm:$0xff]
        %v4753 = vld [vmem:[#allocation36 + $0x1d8] sm:$0xff]
        %v4754 = vld [vmem:[#allocation36 + $0x1e0] sm:$0xff]
        %v4755 = vld [vmem:[#allocation36 + $0x1e8] sm:$0xff]
        %v4756 = vld [vmem:[#allocation36 + $0x1f0] sm:$0xff]
        %v4757 = vld [vmem:[#allocation36 + $0x1f8] sm:$0xff]
        %v4758 = vld [vmem:[#allocation36 + $0x200] sm:$0xff]
        %v4759 = vld [vmem:[#allocation36 + $0x208] sm:$0xff]
        %v4760 = vld [vmem:[#allocation36 + $0x210] sm:$0xff]
        %v4761 = vld [vmem:[#allocation36 + $0x218] sm:$0xff]
        %v4762 = vld [vmem:[#allocation36 + $0x220] sm:$0xff]
        %v4763 = vld [vmem:[#allocation36 + $0x228] sm:$0xff]
        %v4764 = vld [vmem:[#allocation36 + $0x230] sm:$0xff]
        %v4765 = vld [vmem:[#allocation36 + $0x238] sm:$0xff]
        %v4766 = vld [vmem:[#allocation36 + $0x240] sm:$0xff]
        %v4767 = vld [vmem:[#allocation36 + $0x248] sm:$0xff]
        %v4768 = vld [vmem:[#allocation36 + $0x250] sm:$0xff]
        %v4769 = vld [vmem:[#allocation36 + $0x258] sm:$0xff]
        %v4770 = vld [vmem:[#allocation36 + $0x260] sm:$0xff]
        %v4771 = vld [vmem:[#allocation36 + $0x268] sm:$0xff]
        %v4772 = vld [vmem:[#allocation36 + $0x270] sm:$0xff]
        %v4773 = vld [vmem:[#allocation36 + $0x278] sm:$0xff]
        %v4774 = vld [vmem:[#allocation36 + $0x280] sm:$0xff]
        %v4775 = vld [vmem:[#allocation36 + $0x288] sm:$0xff]
        %v4776 = vld [vmem:[#allocation36 + $0x290] sm:$0xff]
        %v4777 = vld [vmem:[#allocation36 + $0x298] sm:$0xff]
        %v4778 = vld [vmem:[#allocation36 + $0x2a0] sm:$0xff]
        %v4779 = vld [vmem:[#allocation36 + $0x2a8] sm:$0xff]
        %v4780 = vld [vmem:[#allocation36 + $0x2b0] sm:$0xff]
        %v4781 = vld [vmem:[#allocation36 + $0x2b8] sm:$0xff]
        %v4782 = vld [vmem:[#allocation36 + $0x2c0] sm:$0xff]
        %v4783 = vld [vmem:[#allocation36 + $0x2c8] sm:$0xff]
        %v4784 = vld [vmem:[#allocation36 + $0x2d0] sm:$0xff]
        %v4785 = vld [vmem:[#allocation36 + $0x2d8] sm:$0xff]
        %v4786 = vld [vmem:[#allocation36 + $0x2e0] sm:$0xff]
        %v4787 = vld [vmem:[#allocation36 + $0x2e8] sm:$0xff]
        %v4788 = vld [vmem:[#allocation36 + $0x2f0] sm:$0xff]
        %v4789 = vld [vmem:[#allocation36 + $0x2f8] sm:$0xff]
        %v4790 = vld [vmem:[#allocation36 + $0x300] sm:$0xff]
        %v4791 = vld [vmem:[#allocation36 + $0x308] sm:$0xff]
        %v4792 = vld [vmem:[#allocation36 + $0x310] sm:$0xff]
        %v4793 = vld [vmem:[#allocation36 + $0x318] sm:$0xff]
        %v4794 = vld [vmem:[#allocation36 + $0x320] sm:$0xff]
        %v4795 = vld [vmem:[#allocation36 + $0x328] sm:$0xff]
        %v4796 = vld [vmem:[#allocation36 + $0x330] sm:$0xff]
        %v4797 = vld [vmem:[#allocation36 + $0x338] sm:$0xff]
        %v4798 = vld [vmem:[#allocation36 + $0x340] sm:$0xff]
        %v4799 = vld [vmem:[#allocation36 + $0x348] sm:$0xff]
        %v4800 = vld [vmem:[#allocation36 + $0x350] sm:$0xff]
        %v4801 = vld [vmem:[#allocation36 + $0x358] sm:$0xff]
        %v4802 = vld [vmem:[#allocation36 + $0x360] sm:$0xff]
        %v4803 = vld [vmem:[#allocation36 + $0x368] sm:$0xff]
        %v4804 = vld [vmem:[#allocation36 + $0x370] sm:$0xff]
        %v4805 = vld [vmem:[#allocation36 + $0x378] sm:$0xff]
        %v4806 = vld [vmem:[#allocation36 + $0x380] sm:$0xff]
        %v4807 = vld [vmem:[#allocation36 + $0x388] sm:$0xff]
        %v4808 = vld [vmem:[#allocation36 + $0x390] sm:$0xff]
        %v4809 = vld [vmem:[#allocation36 + $0x398] sm:$0xff]
        %v4810 = vld [vmem:[#allocation36 + $0x3a0] sm:$0xff]
        %v4811 = vld [vmem:[#allocation36 + $0x3a8] sm:$0xff]
        %v4812 = vld [vmem:[#allocation36 + $0x3b0] sm:$0xff]
        %v4813 = vld [vmem:[#allocation36 + $0x3b8] sm:$0xff]
        %v4814 = vld [vmem:[#allocation36 + $0x3c0] sm:$0xff]
        %v4815 = vld [vmem:[#allocation36 + $0x3c8] sm:$0xff]
        %v4816 = vld [vmem:[#allocation36 + $0x3d0] sm:$0xff]
        %v4817 = vld [vmem:[#allocation36 + $0x3d8] sm:$0xff]
        %v4818 = vld [vmem:[#allocation36 + $0x3e0] sm:$0xff]
        %v4819 = vld [vmem:[#allocation36 + $0x3e8] sm:$0xff]
        %v4820 = vld [vmem:[#allocation36 + $0x3f0] sm:$0xff]
        %v4821 = vld [vmem:[#allocation36 + $0x3f8] sm:$0xff]
        %v4822 = vld [vmem:[%s53] sm:$0x3]
        %v4951 = vunpack.c.l.b16 %v4694
        %v4952 = vunpack.c.h.b16 %v4694
        %v4953 = vunpack.c.l.b16 %v4695
        %v4954 = vunpack.c.h.b16 %v4695
        %v4955 = vunpack.c.l.b16 %v4696
        %v4956 = vunpack.c.h.b16 %v4696
        %v4957 = vunpack.c.l.b16 %v4697
        %v4958 = vunpack.c.h.b16 %v4697
        %v4959 = vunpack.c.l.b16 %v4698
        %v4960 = vunpack.c.h.b16 %v4698
        %v4961 = vunpack.c.l.b16 %v4699
        %v4962 = vunpack.c.h.b16 %v4699
        %v4963 = vunpack.c.l.b16 %v4700
        %v4964 = vunpack.c.h.b16 %v4700
        %v4965 = vunpack.c.l.b16 %v4701
        %v4966 = vunpack.c.h.b16 %v4701
        %v4967 = vunpack.c.l.b16 %v4702
        %v4968 = vunpack.c.h.b16 %v4702
        %v4969 = vunpack.c.l.b16 %v4703
        %v4970 = vunpack.c.h.b16 %v4703
        %v4971 = vunpack.c.l.b16 %v4704
        %v4972 = vunpack.c.h.b16 %v4704
        %v4973 = vunpack.c.l.b16 %v4705
        %v4974 = vunpack.c.h.b16 %v4705
        %v4975 = vunpack.c.l.b16 %v4706
        %v4976 = vunpack.c.h.b16 %v4706
        %v4977 = vunpack.c.l.b16 %v4707
        %v4978 = vunpack.c.h.b16 %v4707
        %v4979 = vunpack.c.l.b16 %v4708
        %v4980 = vunpack.c.h.b16 %v4708
        %v4981 = vunpack.c.l.b16 %v4709
        %v4982 = vunpack.c.h.b16 %v4709
        %v4983 = vunpack.c.l.b16 %v4710
        %v4984 = vunpack.c.h.b16 %v4710
        %v4985 = vunpack.c.l.b16 %v4711
        %v4986 = vunpack.c.h.b16 %v4711
        %v4987 = vunpack.c.l.b16 %v4712
        %v4988 = vunpack.c.h.b16 %v4712
        %v4989 = vunpack.c.l.b16 %v4713
        %v4990 = vunpack.c.h.b16 %v4713
        %v4991 = vunpack.c.l.b16 %v4714
        %v4992 = vunpack.c.h.b16 %v4714
        %v4993 = vunpack.c.l.b16 %v4715
        %v4994 = vunpack.c.h.b16 %v4715
        %v4995 = vunpack.c.l.b16 %v4716
        %v4996 = vunpack.c.h.b16 %v4716
        %v4997 = vunpack.c.l.b16 %v4717
        %v4998 = vunpack.c.h.b16 %v4717
        %v4999 = vunpack.c.l.b16 %v4718
        %v5000 = vunpack.c.h.b16 %v4718
        %v5001 = vunpack.c.l.b16 %v4719
        %v5002 = vunpack.c.h.b16 %v4719
        %v5003 = vunpack.c.l.b16 %v4720
        %v5004 = vunpack.c.h.b16 %v4720
        %v5005 = vunpack.c.l.b16 %v4721
        %v5006 = vunpack.c.h.b16 %v4721
        %v5007 = vunpack.c.l.b16 %v4722
        %v5008 = vunpack.c.h.b16 %v4722
        %v5009 = vunpack.c.l.b16 %v4723
        %v5010 = vunpack.c.h.b16 %v4723
        %v5011 = vunpack.c.l.b16 %v4724
        %v5012 = vunpack.c.h.b16 %v4724
        %v5013 = vunpack.c.l.b16 %v4725
        %v5014 = vunpack.c.h.b16 %v4725
        %v5015 = vunpack.c.l.b16 %v4726
        %v5016 = vunpack.c.h.b16 %v4726
        %v5017 = vunpack.c.l.b16 %v4727
        %v5018 = vunpack.c.h.b16 %v4727
        %v5019 = vunpack.c.l.b16 %v4728
        %v5020 = vunpack.c.h.b16 %v4728
        %v5021 = vunpack.c.l.b16 %v4729
        %v5022 = vunpack.c.h.b16 %v4729
        %v5023 = vunpack.c.l.b16 %v4730
        %v5024 = vunpack.c.h.b16 %v4730
        %v5025 = vunpack.c.l.b16 %v4731
        %v5026 = vunpack.c.h.b16 %v4731
        %v5027 = vunpack.c.l.b16 %v4732
        %v5028 = vunpack.c.h.b16 %v4732
        %v5029 = vunpack.c.l.b16 %v4733
        %v5030 = vunpack.c.h.b16 %v4733
        %v5031 = vunpack.c.l.b16 %v4734
        %v5032 = vunpack.c.h.b16 %v4734
        %v5033 = vunpack.c.l.b16 %v4735
        %v5034 = vunpack.c.h.b16 %v4735
        %v5035 = vunpack.c.l.b16 %v4736
        %v5036 = vunpack.c.h.b16 %v4736
        %v5037 = vunpack.c.l.b16 %v4737
        %v5038 = vunpack.c.h.b16 %v4737
        %v5039 = vunpack.c.l.b16 %v4738
        %v5040 = vunpack.c.h.b16 %v4738
        %v5041 = vunpack.c.l.b16 %v4739
        %v5042 = vunpack.c.h.b16 %v4739
        %v5043 = vunpack.c.l.b16 %v4740
        %v5044 = vunpack.c.h.b16 %v4740
        %v5045 = vunpack.c.l.b16 %v4741
        %v5046 = vunpack.c.h.b16 %v4741
        %v5047 = vunpack.c.l.b16 %v4742
        %v5048 = vunpack.c.h.b16 %v4742
        %v5049 = vunpack.c.l.b16 %v4743
        %v5050 = vunpack.c.h.b16 %v4743
        %v5051 = vunpack.c.l.b16 %v4744
        %v5052 = vunpack.c.h.b16 %v4744
        %v5053 = vunpack.c.l.b16 %v4745
        %v5054 = vunpack.c.h.b16 %v4745
        %v5055 = vunpack.c.l.b16 %v4746
        %v5056 = vunpack.c.h.b16 %v4746
        %v5057 = vunpack.c.l.b16 %v4747
        %v5058 = vunpack.c.h.b16 %v4747
        %v5059 = vunpack.c.l.b16 %v4748
        %v5060 = vunpack.c.h.b16 %v4748
        %v5061 = vunpack.c.l.b16 %v4749
        %v5062 = vunpack.c.h.b16 %v4749
        %v5063 = vunpack.c.l.b16 %v4750
        %v5064 = vunpack.c.h.b16 %v4750
        %v5065 = vunpack.c.l.b16 %v4751
        %v5066 = vunpack.c.h.b16 %v4751
        %v5067 = vunpack.c.l.b16 %v4752
        %v5068 = vunpack.c.h.b16 %v4752
        %v5069 = vunpack.c.l.b16 %v4753
        %v5070 = vunpack.c.h.b16 %v4753
        %v5071 = vunpack.c.l.b16 %v4754
        %v5072 = vunpack.c.h.b16 %v4754
        %v5073 = vunpack.c.l.b16 %v4755
        %v5074 = vunpack.c.h.b16 %v4755
        %v5075 = vunpack.c.l.b16 %v4756
        %v5076 = vunpack.c.h.b16 %v4756
        %v5077 = vunpack.c.l.b16 %v4757
        %v5078 = vunpack.c.h.b16 %v4757
        %v5079 = vunpack.c.l.b16 %v4758
        %v5080 = vunpack.c.h.b16 %v4758
        %v5081 = vunpack.c.l.b16 %v4759
        %v5082 = vunpack.c.h.b16 %v4759
        %v5083 = vunpack.c.l.b16 %v4760
        %v5084 = vunpack.c.h.b16 %v4760
        %v5085 = vunpack.c.l.b16 %v4761
        %v5086 = vunpack.c.h.b16 %v4761
        %v5087 = vunpack.c.l.b16 %v4762
        %v5088 = vunpack.c.h.b16 %v4762
        %v5089 = vunpack.c.l.b16 %v4763
        %v5090 = vunpack.c.h.b16 %v4763
        %v5091 = vunpack.c.l.b16 %v4764
        %v5092 = vunpack.c.h.b16 %v4764
        %v5093 = vunpack.c.l.b16 %v4765
        %v5094 = vunpack.c.h.b16 %v4765
        %v5095 = vunpack.c.l.b16 %v4766
        %v5096 = vunpack.c.h.b16 %v4766
        %v5097 = vunpack.c.l.b16 %v4767
        %v5098 = vunpack.c.h.b16 %v4767
        %v5099 = vunpack.c.l.b16 %v4768
        %v5100 = vunpack.c.h.b16 %v4768
        %v5101 = vunpack.c.l.b16 %v4769
        %v5102 = vunpack.c.h.b16 %v4769
        %v5103 = vunpack.c.l.b16 %v4770
        %v5104 = vunpack.c.h.b16 %v4770
        %v5105 = vunpack.c.l.b16 %v4771
        %v5106 = vunpack.c.h.b16 %v4771
        %v5107 = vunpack.c.l.b16 %v4772
        %v5108 = vunpack.c.h.b16 %v4772
        %v5109 = vunpack.c.l.b16 %v4773
        %v5110 = vunpack.c.h.b16 %v4773
        %v5111 = vunpack.c.l.b16 %v4774
        %v5112 = vunpack.c.h.b16 %v4774
        %v5113 = vunpack.c.l.b16 %v4775
        %v5114 = vunpack.c.h.b16 %v4775
        %v5115 = vunpack.c.l.b16 %v4776
        %v5116 = vunpack.c.h.b16 %v4776
        %v5117 = vunpack.c.l.b16 %v4777
        %v5118 = vunpack.c.h.b16 %v4777
        %v5119 = vunpack.c.l.b16 %v4778
        %v5120 = vunpack.c.h.b16 %v4778
        %v5121 = vunpack.c.l.b16 %v4779
        %v5122 = vunpack.c.h.b16 %v4779
        %v5123 = vunpack.c.l.b16 %v4780
        %v5124 = vunpack.c.h.b16 %v4780
        %v5125 = vunpack.c.l.b16 %v4781
        %v5126 = vunpack.c.h.b16 %v4781
        %v5127 = vunpack.c.l.b16 %v4782
        %v5128 = vunpack.c.h.b16 %v4782
        %v5129 = vunpack.c.l.b16 %v4783
        %v5130 = vunpack.c.h.b16 %v4783
        %v5131 = vunpack.c.l.b16 %v4784
        %v5132 = vunpack.c.h.b16 %v4784
        %v5133 = vunpack.c.l.b16 %v4785
        %v5134 = vunpack.c.h.b16 %v4785
        %v5135 = vunpack.c.l.b16 %v4786
        %v5136 = vunpack.c.h.b16 %v4786
        %v5137 = vunpack.c.l.b16 %v4787
        %v5138 = vunpack.c.h.b16 %v4787
        %v5139 = vunpack.c.l.b16 %v4788
        %v5140 = vunpack.c.h.b16 %v4788
        %v5141 = vunpack.c.l.b16 %v4789
        %v5142 = vunpack.c.h.b16 %v4789
        %v5143 = vunpack.c.l.b16 %v4790
        %v5144 = vunpack.c.h.b16 %v4790
        %v5145 = vunpack.c.l.b16 %v4791
        %v5146 = vunpack.c.h.b16 %v4791
        %v5147 = vunpack.c.l.b16 %v4792
        %v5148 = vunpack.c.h.b16 %v4792
        %v5149 = vunpack.c.l.b16 %v4793
        %v5150 = vunpack.c.h.b16 %v4793
        %v5151 = vunpack.c.l.b16 %v4794
        %v5152 = vunpack.c.h.b16 %v4794
        %v5153 = vunpack.c.l.b16 %v4795
        %v5154 = vunpack.c.h.b16 %v4795
        %v5155 = vunpack.c.l.b16 %v4796
        %v5156 = vunpack.c.h.b16 %v4796
        %v5157 = vunpack.c.l.b16 %v4797
        %v5158 = vunpack.c.h.b16 %v4797
        %v5159 = vunpack.c.l.b16 %v4798
        %v5160 = vunpack.c.h.b16 %v4798
        %v5161 = vunpack.c.l.b16 %v4799
        %v5162 = vunpack.c.h.b16 %v4799
        %v5163 = vunpack.c.l.b16 %v4800
        %v5164 = vunpack.c.h.b16 %v4800
        %v5165 = vunpack.c.l.b16 %v4801
        %v5166 = vunpack.c.h.b16 %v4801
        %v5167 = vunpack.c.l.b16 %v4802
        %v5168 = vunpack.c.h.b16 %v4802
        %v5169 = vunpack.c.l.b16 %v4803
        %v5170 = vunpack.c.h.b16 %v4803
        %v5171 = vunpack.c.l.b16 %v4804
        %v5172 = vunpack.c.h.b16 %v4804
        %v5173 = vunpack.c.l.b16 %v4805
        %v5174 = vunpack.c.h.b16 %v4805
        %v5175 = vunpack.c.l.b16 %v4806
        %v5176 = vunpack.c.h.b16 %v4806
        %v5177 = vunpack.c.l.b16 %v4807
        %v5178 = vunpack.c.h.b16 %v4807
        %v5179 = vunpack.c.l.b16 %v4808
        %v5180 = vunpack.c.h.b16 %v4808
        %v5181 = vunpack.c.l.b16 %v4809
        %v5182 = vunpack.c.h.b16 %v4809
        %v5183 = vunpack.c.l.b16 %v4810
        %v5184 = vunpack.c.h.b16 %v4810
        %v5185 = vunpack.c.l.b16 %v4811
        %v5186 = vunpack.c.h.b16 %v4811
        %v5187 = vunpack.c.l.b16 %v4812
        %v5188 = vunpack.c.h.b16 %v4812
        %v5189 = vunpack.c.l.b16 %v4813
        %v5190 = vunpack.c.h.b16 %v4813
        %v5191 = vunpack.c.l.b16 %v4814
        %v5192 = vunpack.c.h.b16 %v4814
        %v5193 = vunpack.c.l.b16 %v4815
        %v5194 = vunpack.c.h.b16 %v4815
        %v5195 = vunpack.c.l.b16 %v4816
        %v5196 = vunpack.c.h.b16 %v4816
        %v5197 = vunpack.c.l.b16 %v4817
        %v5198 = vunpack.c.h.b16 %v4817
        %v5199 = vunpack.c.l.b16 %v4818
        %v5200 = vunpack.c.h.b16 %v4818
        %v5201 = vunpack.c.l.b16 %v4819
        %v5202 = vunpack.c.h.b16 %v4819
        %v5203 = vunpack.c.l.b16 %v4820
        %v5204 = vunpack.c.h.b16 %v4820
        %v5205 = vunpack.c.l.b16 %v4821
        %v5206 = vunpack.c.h.b16 %v4821
        %v5207 = vpack.c.b16 %v4953, %v4951
        %v5208 = vpack.c.b16 %v4954, %v4952
        %v5209 = vpack.c.b16 %v4957, %v4955
        %v5210 = vpack.c.b16 %v4958, %v4956
        %v5211 = vpack.c.b16 %v4961, %v4959
        %v5212 = vpack.c.b16 %v4962, %v4960
        %v5213 = vpack.c.b16 %v4965, %v4963
        %v5214 = vpack.c.b16 %v4966, %v4964
        %v5215 = vpack.c.b16 %v4969, %v4967
        %v5216 = vpack.c.b16 %v4970, %v4968
        %v5217 = vpack.c.b16 %v4973, %v4971
        %v5218 = vpack.c.b16 %v4974, %v4972
        %v5219 = vpack.c.b16 %v4977, %v4975
        %v5220 = vpack.c.b16 %v4978, %v4976
        %v5221 = vpack.c.b16 %v4981, %v4979
        %v5222 = vpack.c.b16 %v4982, %v4980
        %v5223 = vpack.c.b16 %v4985, %v4983
        %v5224 = vpack.c.b16 %v4986, %v4984
        %v5225 = vpack.c.b16 %v4989, %v4987
        %v5226 = vpack.c.b16 %v4990, %v4988
        %v5227 = vpack.c.b16 %v4993, %v4991
        %v5228 = vpack.c.b16 %v4994, %v4992
        %v5229 = vpack.c.b16 %v4997, %v4995
        %v5230 = vpack.c.b16 %v4998, %v4996
        %v5231 = vpack.c.b16 %v5001, %v4999
        %v5232 = vpack.c.b16 %v5002, %v5000
        %v5233 = vpack.c.b16 %v5005, %v5003
        %v5234 = vpack.c.b16 %v5006, %v5004
        %v5235 = vpack.c.b16 %v5009, %v5007
        %v5236 = vpack.c.b16 %v5010, %v5008
        %v5237 = vpack.c.b16 %v5013, %v5011
        %v5238 = vpack.c.b16 %v5014, %v5012
        %v5239 = vpack.c.b16 %v5017, %v5015
        %v5240 = vpack.c.b16 %v5018, %v5016
        %v5241 = vpack.c.b16 %v5021, %v5019
        %v5242 = vpack.c.b16 %v5022, %v5020
        %v5243 = vpack.c.b16 %v5025, %v5023
        %v5244 = vpack.c.b16 %v5026, %v5024
        %v5245 = vpack.c.b16 %v5029, %v5027
        %v5246 = vpack.c.b16 %v5030, %v5028
        %v5247 = vpack.c.b16 %v5033, %v5031
        %v5248 = vpack.c.b16 %v5034, %v5032
        %v5249 = vpack.c.b16 %v5037, %v5035
        %v5250 = vpack.c.b16 %v5038, %v5036
        %v5251 = vpack.c.b16 %v5041, %v5039
        %v5252 = vpack.c.b16 %v5042, %v5040
        %v5253 = vpack.c.b16 %v5045, %v5043
        %v5254 = vpack.c.b16 %v5046, %v5044
        %v5255 = vpack.c.b16 %v5049, %v5047
        %v5256 = vpack.c.b16 %v5050, %v5048
        %v5257 = vpack.c.b16 %v5053, %v5051
        %v5258 = vpack.c.b16 %v5054, %v5052
        %v5259 = vpack.c.b16 %v5057, %v5055
        %v5260 = vpack.c.b16 %v5058, %v5056
        %v5261 = vpack.c.b16 %v5061, %v5059
        %v5262 = vpack.c.b16 %v5062, %v5060
        %v5263 = vpack.c.b16 %v5065, %v5063
        %v5264 = vpack.c.b16 %v5066, %v5064
        %v5265 = vpack.c.b16 %v5069, %v5067
        %v5266 = vpack.c.b16 %v5070, %v5068
        %v5267 = vpack.c.b16 %v5073, %v5071
        %v5268 = vpack.c.b16 %v5074, %v5072
        %v5269 = vpack.c.b16 %v5077, %v5075
        %v5270 = vpack.c.b16 %v5078, %v5076
        %v5271 = vpack.c.b16 %v5081, %v5079
        %v5272 = vpack.c.b16 %v5082, %v5080
        %v5273 = vpack.c.b16 %v5085, %v5083
        %v5274 = vpack.c.b16 %v5086, %v5084
        %v5275 = vpack.c.b16 %v5089, %v5087
        %v5276 = vpack.c.b16 %v5090, %v5088
        %v5277 = vpack.c.b16 %v5093, %v5091
        %v5278 = vpack.c.b16 %v5094, %v5092
        %v5279 = vpack.c.b16 %v5097, %v5095
        %v5280 = vpack.c.b16 %v5098, %v5096
        %v5281 = vpack.c.b16 %v5101, %v5099
        %v5282 = vpack.c.b16 %v5102, %v5100
        %v5283 = vpack.c.b16 %v5105, %v5103
        %v5284 = vpack.c.b16 %v5106, %v5104
        %v5285 = vpack.c.b16 %v5109, %v5107
        %v5286 = vpack.c.b16 %v5110, %v5108
        %v5287 = vpack.c.b16 %v5113, %v5111
        %v5288 = vpack.c.b16 %v5114, %v5112
        %v5289 = vpack.c.b16 %v5117, %v5115
        %v5290 = vpack.c.b16 %v5118, %v5116
        %v5291 = vpack.c.b16 %v5121, %v5119
        %v5292 = vpack.c.b16 %v5122, %v5120
        %v5293 = vpack.c.b16 %v5125, %v5123
        %v5294 = vpack.c.b16 %v5126, %v5124
        %v5295 = vpack.c.b16 %v5129, %v5127
        %v5296 = vpack.c.b16 %v5130, %v5128
        %v5297 = vpack.c.b16 %v5133, %v5131
        %v5298 = vpack.c.b16 %v5134, %v5132
        %v5299 = vpack.c.b16 %v5137, %v5135
        %v5300 = vpack.c.b16 %v5138, %v5136
        %v5301 = vpack.c.b16 %v5141, %v5139
        %v5302 = vpack.c.b16 %v5142, %v5140
        %v5303 = vpack.c.b16 %v5145, %v5143
        %v5304 = vpack.c.b16 %v5146, %v5144
        %v5305 = vpack.c.b16 %v5149, %v5147
        %v5306 = vpack.c.b16 %v5150, %v5148
        %v5307 = vpack.c.b16 %v5153, %v5151
        %v5308 = vpack.c.b16 %v5154, %v5152
        %v5309 = vpack.c.b16 %v5157, %v5155
        %v5310 = vpack.c.b16 %v5158, %v5156
        %v5311 = vpack.c.b16 %v5161, %v5159
        %v5312 = vpack.c.b16 %v5162, %v5160
        %v5313 = vpack.c.b16 %v5165, %v5163
        %v5314 = vpack.c.b16 %v5166, %v5164
        %v5315 = vpack.c.b16 %v5169, %v5167
        %v5316 = vpack.c.b16 %v5170, %v5168
        %v5317 = vpack.c.b16 %v5173, %v5171
        %v5318 = vpack.c.b16 %v5174, %v5172
        %v5319 = vpack.c.b16 %v5177, %v5175
        %v5320 = vpack.c.b16 %v5178, %v5176
        %v5321 = vpack.c.b16 %v5181, %v5179
        %v5322 = vpack.c.b16 %v5182, %v5180
        %v5323 = vpack.c.b16 %v5185, %v5183
        %v5324 = vpack.c.b16 %v5186, %v5184
        %v5325 = vpack.c.b16 %v5189, %v5187
        %v5326 = vpack.c.b16 %v5190, %v5188
        %v5327 = vpack.c.b16 %v5193, %v5191
        %v5328 = vpack.c.b16 %v5194, %v5192
        %v5329 = vpack.c.b16 %v5197, %v5195
        %v5330 = vpack.c.b16 %v5198, %v5196
        %v5331 = vpack.c.b16 %v5201, %v5199
        %v5332 = vpack.c.b16 %v5202, %v5200
        %v5333 = vpack.c.b16 %v5205, %v5203
        %v5334 = vpack.c.b16 %v5206, %v5204
        %v5464 = vlaneseq
        %v5465 = vshrl.u32 %v5464, 7
        %v5466 = vsub.s32 0, %v5465
        %v5467 = vrot.slane %v4822, %v5466
        %v5468 = vlaneseq
        %v5469 = vshrl.u32 %v5468, 7
        %v5470 = vsub.s32 1, %v5469
        %v5471 = vrot.slane %v4822, %v5470
        %5474 = vmatprep.subr.bf16.mxu0 %v5222
        %5475 = vmatpush1.bf16.msra.mxu0 %v5221
        %5476 = vmatprep.subr.bf16.mxu0 %v5220
        %5477 = vmatpush1.bf16.msra.mxu0 %v5219
        %5478 = vmatprep.subr.bf16.mxu0 %v5218
        %5479 = vmatpush1.bf16.msra.mxu0 %v5217
        %5480 = vmatprep.subr.bf16.mxu0 %v5216
        %5481 = vmatpush1.bf16.msra.mxu0 %v5215
        %5482 = vmatprep.subr.bf16.mxu0 %v5214
        %5483 = vmatpush1.bf16.msra.mxu0 %v5213
        %5484 = vmatprep.subr.bf16.mxu0 %v5212
        %5485 = vmatpush1.bf16.msra.mxu0 %v5211
        %5486 = vmatprep.subr.bf16.mxu0 %v5210
        %5487 = vmatpush1.bf16.msra.mxu0 %v5209
        %5488 = vmatprep.subr.bf16.mxu0 %v5208
        %5489 = vmatpush1.bf16.msra.mxu0 %v5207
        %5490 = vmatprep.subr.bf16.mxu0 %v5238
        %5491 = vmatpush2.bf16.msra.mxu0 %v5237
        %5492 = vmatprep.subr.bf16.mxu0 %v5236
        %5493 = vmatpush2.bf16.msra.mxu0 %v5235
        %5494 = vmatprep.subr.bf16.mxu0 %v5234
        %5495 = vmatpush2.bf16.msra.mxu0 %v5233
        %5496 = vmatprep.subr.bf16.mxu0 %v5232
        %5497 = vmatpush2.bf16.msra.mxu0 %v5231
        %5498 = vmatprep.subr.bf16.mxu0 %v5230
        %5499 = vmatpush2.bf16.msra.mxu0 %v5229
        %5500 = vmatprep.subr.bf16.mxu0 %v5228
        %5501 = vmatpush2.bf16.msra.mxu0 %v5227
        %5502 = vmatprep.subr.bf16.mxu0 %v5226
        %5503 = vmatpush2.bf16.msra.mxu0 %v5225
        %5504 = vmatprep.subr.bf16.mxu0 %v5224
        %5505 = vmatpush2.bf16.msra.mxu0 %v5223
        %5506 = vmatprep.mubr.bf16.mxu0 %v4687
        %5507 = vmatmul.mubr.bf16.gmra.mxu0 %v4686
        %v5508 = vpop.f32.mrf.mxu0
        %v5509 = vadd.f32 %v5467, %v5508
        %v5510 = vpop.f32.mrf.mxu0
        %v5511 = vadd.f32 %v5471, %v5510
        %v5512 = vpop.f32.mrf.mxu0
        %v5513 = vpop.f32.mrf.mxu0
        %5514 = vdwg.mxu0
        %5515 = vmatprep.subr.bf16.mxu0 %v5254
        %5516 = vmatpush1.bf16.msra.mxu0 %v5253
        %5517 = vmatprep.subr.bf16.mxu0 %v5252
        %5518 = vmatpush1.bf16.msra.mxu0 %v5251
        %5519 = vmatprep.subr.bf16.mxu0 %v5250
        %5520 = vmatpush1.bf16.msra.mxu0 %v5249
        %5521 = vmatprep.subr.bf16.mxu0 %v5248
        %5522 = vmatpush1.bf16.msra.mxu0 %v5247
        %5523 = vmatprep.subr.bf16.mxu0 %v5246
        %5524 = vmatpush1.bf16.msra.mxu0 %v5245
        %5525 = vmatprep.subr.bf16.mxu0 %v5244
        %5526 = vmatpush1.bf16.msra.mxu0 %v5243
        %5527 = vmatprep.subr.bf16.mxu0 %v5242
        %5528 = vmatpush1.bf16.msra.mxu0 %v5241
        %5529 = vmatprep.subr.bf16.mxu0 %v5240
        %5530 = vmatpush1.bf16.msra.mxu0 %v5239
        %5531 = vmatprep.subr.bf16.mxu0 %v5270
        %5532 = vmatpush2.bf16.msra.mxu0 %v5269
        %5533 = vmatprep.subr.bf16.mxu0 %v5268
        %5534 = vmatpush2.bf16.msra.mxu0 %v5267
        %5535 = vmatprep.subr.bf16.mxu0 %v5266
        %5536 = vmatpush2.bf16.msra.mxu0 %v5265
        %5537 = vmatprep.subr.bf16.mxu0 %v5264
        %5538 = vmatpush2.bf16.msra.mxu0 %v5263
        %5539 = vmatprep.subr.bf16.mxu0 %v5262
        %5540 = vmatpush2.bf16.msra.mxu0 %v5261
        %5541 = vmatprep.subr.bf16.mxu0 %v5260
        %5542 = vmatpush2.bf16.msra.mxu0 %v5259
        %5543 = vmatprep.subr.bf16.mxu0 %v5258
        %5544 = vmatpush2.bf16.msra.mxu0 %v5257
        %5545 = vmatprep.subr.bf16.mxu0 %v5256
        %5546 = vmatpush2.bf16.msra.mxu0 %v5255
        %5547 = vmatprep.mubr.bf16.mxu0 %v4689
        %5548 = vmatmul.mubr.bf16.gmra.mxu0 %v4688
        %v5549 = vpop.f32.mrf.mxu0
        %v5550 = vadd.f32 %v5509, %v5549
        %v5551 = vpop.f32.mrf.mxu0
        %v5552 = vadd.f32 %v5511, %v5551
        %v5553 = vpop.f32.mrf.mxu0
        %v5554 = vpop.f32.mrf.mxu0
        %5555 = vdwg.mxu0
        %5556 = vmatprep.subr.bf16.mxu0 %v5286
        %5557 = vmatpush1.bf16.msra.mxu0 %v5285
        %5558 = vmatprep.subr.bf16.mxu0 %v5284
        %5559 = vmatpush1.bf16.msra.mxu0 %v5283
        %5560 = vmatprep.subr.bf16.mxu0 %v5282
        %5561 = vmatpush1.bf16.msra.mxu0 %v5281
        %5562 = vmatprep.subr.bf16.mxu0 %v5280
        %5563 = vmatpush1.bf16.msra.mxu0 %v5279
        %5564 = vmatprep.subr.bf16.mxu0 %v5278
        %5565 = vmatpush1.bf16.msra.mxu0 %v5277
        %5566 = vmatprep.subr.bf16.mxu0 %v5276
        %5567 = vmatpush1.bf16.msra.mxu0 %v5275
        %5568 = vmatprep.subr.bf16.mxu0 %v5274
        %5569 = vmatpush1.bf16.msra.mxu0 %v5273
        %5570 = vmatprep.subr.bf16.mxu0 %v5272
        %5571 = vmatpush1.bf16.msra.mxu0 %v5271
        %5572 = vmatprep.subr.bf16.mxu0 %v5302
        %5573 = vmatpush2.bf16.msra.mxu0 %v5301
        %5574 = vmatprep.subr.bf16.mxu0 %v5300
        %5575 = vmatpush2.bf16.msra.mxu0 %v5299
        %5576 = vmatprep.subr.bf16.mxu0 %v5298
        %5577 = vmatpush2.bf16.msra.mxu0 %v5297
        %5578 = vmatprep.subr.bf16.mxu0 %v5296
        %5579 = vmatpush2.bf16.msra.mxu0 %v5295
        %5580 = vmatprep.subr.bf16.mxu0 %v5294
        %5581 = vmatpush2.bf16.msra.mxu0 %v5293
        %5582 = vmatprep.subr.bf16.mxu0 %v5292
        %5583 = vmatpush2.bf16.msra.mxu0 %v5291
        %5584 = vmatprep.subr.bf16.mxu0 %v5290
        %5585 = vmatpush2.bf16.msra.mxu0 %v5289
        %5586 = vmatprep.subr.bf16.mxu0 %v5288
        %5587 = vmatpush2.bf16.msra.mxu0 %v5287
        %5588 = vmatprep.mubr.bf16.mxu0 %v4691
        %5589 = vmatmul.mubr.bf16.gmra.mxu0 %v4690
        %v5590 = vpop.f32.mrf.mxu0
        %v5591 = vadd.f32 %v5550, %v5590
        %v5592 = vpop.f32.mrf.mxu0
        %v5593 = vadd.f32 %v5552, %v5592
        %v5594 = vpop.f32.mrf.mxu0
        %v5595 = vpop.f32.mrf.mxu0
        %5596 = vdwg.mxu0
        %5597 = vmatprep.subr.bf16.mxu0 %v5318
        %5598 = vmatpush1.bf16.msra.mxu0 %v5317
        %5599 = vmatprep.subr.bf16.mxu0 %v5316
        %5600 = vmatpush1.bf16.msra.mxu0 %v5315
        %5601 = vmatprep.subr.bf16.mxu0 %v5314
        %5602 = vmatpush1.bf16.msra.mxu0 %v5313
        %5603 = vmatprep.subr.bf16.mxu0 %v5312
        %5604 = vmatpush1.bf16.msra.mxu0 %v5311
        %5605 = vmatprep.subr.bf16.mxu0 %v5310
        %5606 = vmatpush1.bf16.msra.mxu0 %v5309
        %5607 = vmatprep.subr.bf16.mxu0 %v5308
        %5608 = vmatpush1.bf16.msra.mxu0 %v5307
        %5609 = vmatprep.subr.bf16.mxu0 %v5306
        %5610 = vmatpush1.bf16.msra.mxu0 %v5305
        %5611 = vmatprep.subr.bf16.mxu0 %v5304
        %5612 = vmatpush1.bf16.msra.mxu0 %v5303
        %5613 = vmatprep.subr.bf16.mxu0 %v5334
        %5614 = vmatpush2.bf16.msra.mxu0 %v5333
        %5615 = vmatprep.subr.bf16.mxu0 %v5332
        %5616 = vmatpush2.bf16.msra.mxu0 %v5331
        %5617 = vmatprep.subr.bf16.mxu0 %v5330
        %5618 = vmatpush2.bf16.msra.mxu0 %v5329
        %5619 = vmatprep.subr.bf16.mxu0 %v5328
        %5620 = vmatpush2.bf16.msra.mxu0 %v5327
        %5621 = vmatprep.subr.bf16.mxu0 %v5326
        %5622 = vmatpush2.bf16.msra.mxu0 %v5325
        %5623 = vmatprep.subr.bf16.mxu0 %v5324
        %5624 = vmatpush2.bf16.msra.mxu0 %v5323
        %5625 = vmatprep.subr.bf16.mxu0 %v5322
        %5626 = vmatpush2.bf16.msra.mxu0 %v5321
        %5627 = vmatprep.subr.bf16.mxu0 %v5320
        %5628 = vmatpush2.bf16.msra.mxu0 %v5319
        %5629 = vmatprep.mubr.bf16.mxu0 %v4693
        %5630 = vmatmul.mubr.bf16.gmra.mxu0 %v4692
        %v5631 = vpop.f32.mrf.mxu0
        %v5632 = vadd.f32 %v5591, %v5631
        %v5633 = vpop.f32.mrf.mxu0
        %v5634 = vadd.f32 %v5593, %v5633
        %v5635 = vpop.f32.mrf.mxu0
        %v5636 = vpop.f32.mrf.mxu0
        %5637 = vdwg.mxu0
        %v5638 = vmax.f32 %v5632, 0.0
        %v5639 = vmax.f32 %v5634, 0.0
        %v5640 = vpack.c.bf16 %v5638, %v5638
        %v5641 = vpack.c.bf16 %v5639, %v5639
        %v5642 = vld [vmem:[#allocation37] sm:$0xf]
        %v5643 = vld [vmem:[#allocation37 + $0x4] sm:$0xf]
        %v5644 = vld [vmem:[#allocation37 + $0x8] sm:$0xf]
        %v5645 = vld [vmem:[#allocation37 + $0xc] sm:$0xf]
        %v5646 = vld [vmem:[#allocation37 + $0x10] sm:$0xf]
        %v5647 = vld [vmem:[#allocation37 + $0x14] sm:$0xf]
        %v5648 = vld [vmem:[#allocation37 + $0x18] sm:$0xf]
        %v5649 = vld [vmem:[#allocation37 + $0x1c] sm:$0xf]
        %v5650 = vld [vmem:[#allocation37 + $0x20] sm:$0xf]
        %v5651 = vld [vmem:[#allocation37 + $0x24] sm:$0xf]
        %v5652 = vld [vmem:[#allocation37 + $0x28] sm:$0xf]
        %v5653 = vld [vmem:[#allocation37 + $0x2c] sm:$0xf]
        %v5654 = vld [vmem:[#allocation37 + $0x30] sm:$0xf]
        %v5655 = vld [vmem:[#allocation37 + $0x34] sm:$0xf]
        %v5656 = vld [vmem:[#allocation37 + $0x38] sm:$0xf]
        %v5657 = vld [vmem:[#allocation37 + $0x3c] sm:$0xf]
        %v5658 = vld [vmem:[#allocation37 + $0x40] sm:$0xf]
        %v5659 = vld [vmem:[#allocation37 + $0x44] sm:$0xf]
        %v5660 = vld [vmem:[#allocation37 + $0x48] sm:$0xf]
        %v5661 = vld [vmem:[#allocation37 + $0x4c] sm:$0xf]
        %v5662 = vld [vmem:[#allocation37 + $0x50] sm:$0xf]
        %v5663 = vld [vmem:[#allocation37 + $0x54] sm:$0xf]
        %v5664 = vld [vmem:[#allocation37 + $0x58] sm:$0xf]
        %v5665 = vld [vmem:[#allocation37 + $0x5c] sm:$0xf]
        %v5666 = vld [vmem:[#allocation37 + $0x60] sm:$0xf]
        %v5667 = vld [vmem:[#allocation37 + $0x64] sm:$0xf]
        %v5668 = vld [vmem:[#allocation37 + $0x68] sm:$0xf]
        %v5669 = vld [vmem:[#allocation37 + $0x6c] sm:$0xf]
        %v5670 = vld [vmem:[#allocation37 + $0x70] sm:$0xf]
        %v5671 = vld [vmem:[#allocation37 + $0x74] sm:$0xf]
        %v5672 = vld [vmem:[#allocation37 + $0x78] sm:$0xf]
        %v5673 = vld [vmem:[#allocation37 + $0x7c] sm:$0xf]
        %v5674 = vld [vmem:[%s57] sm:$0x1]
        %v5707 = vunpack.c.l.b16 %v5642
        %v5708 = vunpack.c.l.b16 %v5643
        %v5709 = vunpack.c.l.b16 %v5644
        %v5710 = vunpack.c.l.b16 %v5645
        %v5711 = vunpack.c.l.b16 %v5646
        %v5712 = vunpack.c.l.b16 %v5647
        %v5713 = vunpack.c.l.b16 %v5648
        %v5714 = vunpack.c.l.b16 %v5649
        %v5715 = vunpack.c.l.b16 %v5650
        %v5716 = vunpack.c.l.b16 %v5651
        %v5717 = vunpack.c.l.b16 %v5652
        %v5718 = vunpack.c.l.b16 %v5653
        %v5719 = vunpack.c.l.b16 %v5654
        %v5720 = vunpack.c.l.b16 %v5655
        %v5721 = vunpack.c.l.b16 %v5656
        %v5722 = vunpack.c.l.b16 %v5657
        %v5723 = vunpack.c.l.b16 %v5658
        %v5724 = vunpack.c.l.b16 %v5659
        %v5725 = vunpack.c.l.b16 %v5660
        %v5726 = vunpack.c.l.b16 %v5661
        %v5727 = vunpack.c.l.b16 %v5662
        %v5728 = vunpack.c.l.b16 %v5663
        %v5729 = vunpack.c.l.b16 %v5664
        %v5730 = vunpack.c.l.b16 %v5665
        %v5731 = vunpack.c.l.b16 %v5666
        %v5732 = vunpack.c.l.b16 %v5667
        %v5733 = vunpack.c.l.b16 %v5668
        %v5734 = vunpack.c.l.b16 %v5669
        %v5735 = vunpack.c.l.b16 %v5670
        %v5736 = vunpack.c.l.b16 %v5671
        %v5737 = vunpack.c.l.b16 %v5672
        %v5738 = vunpack.c.l.b16 %v5673
        %v5739 = vpack.c.b16 %v5708, %v5707
        %v5740 = vpack.c.b16 %v5710, %v5709
        %v5741 = vpack.c.b16 %v5712, %v5711
        %v5742 = vpack.c.b16 %v5714, %v5713
        %v5743 = vpack.c.b16 %v5716, %v5715
        %v5744 = vpack.c.b16 %v5718, %v5717
        %v5745 = vpack.c.b16 %v5720, %v5719
        %v5746 = vpack.c.b16 %v5722, %v5721
        %v5747 = vpack.c.b16 %v5724, %v5723
        %v5748 = vpack.c.b16 %v5726, %v5725
        %v5749 = vpack.c.b16 %v5728, %v5727
        %v5750 = vpack.c.b16 %v5730, %v5729
        %v5751 = vpack.c.b16 %v5732, %v5731
        %v5752 = vpack.c.b16 %v5734, %v5733
        %v5753 = vpack.c.b16 %v5736, %v5735
        %v5754 = vpack.c.b16 %v5738, %v5737
        %5771 = vmatprep.subr.bf16.mxu0 0
        %5772 = vmatpush1.bf16.msra.mxu0 %v5746
        %5773 = vmatprep.subr.bf16.mxu0 0
        %5774 = vmatpush1.bf16.msra.mxu0 %v5745
        %5775 = vmatprep.subr.bf16.mxu0 0
        %5776 = vmatpush1.bf16.msra.mxu0 %v5744
        %5777 = vmatprep.subr.bf16.mxu0 0
        %5778 = vmatpush1.bf16.msra.mxu0 %v5743
        %5779 = vmatprep.subr.bf16.mxu0 0
        %5780 = vmatpush1.bf16.msra.mxu0 %v5742
        %5781 = vmatprep.subr.bf16.mxu0 0
        %5782 = vmatpush1.bf16.msra.mxu0 %v5741
        %5783 = vmatprep.subr.bf16.mxu0 0
        %5784 = vmatpush1.bf16.msra.mxu0 %v5740
        %5785 = vmatprep.subr.bf16.mxu0 0
        %5786 = vmatpush1.bf16.msra.mxu0 %v5739
        %5787 = vmatprep.subr.bf16.mxu0 0
        %5788 = vmatpush2.bf16.msra.mxu0 %v5754
        %5789 = vmatprep.subr.bf16.mxu0 0
        %5790 = vmatpush2.bf16.msra.mxu0 %v5753
        %5791 = vmatprep.subr.bf16.mxu0 0
        %5792 = vmatpush2.bf16.msra.mxu0 %v5752
        %5793 = vmatprep.subr.bf16.mxu0 0
        %5794 = vmatpush2.bf16.msra.mxu0 %v5751
        %5795 = vmatprep.subr.bf16.mxu0 0
        %5796 = vmatpush2.bf16.msra.mxu0 %v5750
        %5797 = vmatprep.subr.bf16.mxu0 0
        %5798 = vmatpush2.bf16.msra.mxu0 %v5749
        %5799 = vmatprep.subr.bf16.mxu0 0
        %5800 = vmatpush2.bf16.msra.mxu0 %v5748
        %5801 = vmatprep.subr.bf16.mxu0 0
        %5802 = vmatpush2.bf16.msra.mxu0 %v5747
        %5803 = vmatprep.mubr.bf16.mxu0 %v5641
        %5804 = vmatmul.mubr.bf16.gmra.mxu0 %v5640
        %v5805 = vpop.f32.mrf.mxu0
        %v5806 = vadd.f32 %v5674, %v5805
        %v5807 = vpop.f32.mrf.mxu0
        %v5808 = vpop.f32.mrf.mxu0
        %v5809 = vpop.f32.mrf.mxu0
        %5810 = vdwg.mxu0
        %5811 = vst [vmem:[%s1140] sm:$0x1] %v5806
        %s5812 = sand.u32 %s705, 1
        %s5813 = scalar_lea.sflag [#allocation12], %s5812
        %s5814 = sand.u32 %s705, 1
        %s5815 = scalar_lea.vmem [#allocation39], %s5814
        // Predicated region
        $region209: #{_lambda_.1} parent=135 // pred_check
          %p5816 = pneg %p715
        $region210: #{_lambda_.1} parent=135 // pred_check_branch
          %5818 = sbr.rel (%p5816) target = $region212
        $region211: #{_lambda_.1} parent=135 // pred_region
          %s5820 = ssub.s32 16, 16
          %5821 = vsyncadd %s5813, %s5820
          %s5822 = smul.addr %s83, 16
          %s5823 = scalar_lea.hbm %s59, %s5822
          %s5825 = sshll.u32 %s5815, 4
          %s5826 = int_to_ptr.vmem [resolvable:$true] %s5825
          %5828 = dma.vmem_to_hbm [thread:$0]  %s5826, 16, %s5823, %s5813
        $region212: #{_lambda_.1} parent=135 // pred_fallthru
          _
      $region136: #{_lambda_.1} parent=5 // pred_fallthru
        _
      %p5829 = scmp.le.s32.totalorder 2, %s78
      // Predicated region
      $region213: #{_lambda_.1} parent=5 // pred_check
        %p5830 = pneg %p5829
      $region214: #{_lambda_.1} parent=5 // pred_check_branch
        %5832 = sbr.rel (%p5830) target = $region216
      $region215: #{_lambda_.1} parent=5 // pred_region
        %s5833 = ssub.s32 %s78, 2
        // Predicated region
        $region217: #{_lambda_.1} parent=215 // pred_check
          %p5834 = pneg %p721
        $region218: #{_lambda_.1} parent=215 // pred_check_branch
          %5836 = sbr.rel (%p5834) target = $region220
        $region219: #{_lambda_.1} parent=215 // pred_region
          %s5837 = sand.u32 %s706, 1
          %s5838 = scalar_lea.sflag [#allocation12], %s5837
          %s5839 = sand.u32 %s706, 1
          %s5840 = scalar_lea.vmem [#allocation39], %s5839
          %5841 = dma.done %s5838, 16
        $region220: #{_lambda_.1} parent=215 // pred_fallthru
          _
      $region216: #{_lambda_.1} parent=5 // pred_fallthru
        _
    $region6: #{_lambda_.1} parent=1 // loop_footer
      %s82 = sadd.s32 1, %s78
    $region7: #{_lambda_.1} parent=1 // loop_footer_branch
      %77 = sbr.rel target = $region3
    $region8: #{_lambda_.1} parent=1 // loop_exit
      _
    %5842 = vsyncpa [#allocation11], 1
    %s5843 = scalar_lea.sflag [#allocation11], 1
    %5844 = vsyncpa %s5843, 1
    %5845 = vsyncpa [#allocation14], 1
    %5846 = vsyncpa [#allocation17], 1
    %5847 = vsyncpa [#allocation20], 1
    %5848 = vsyncpa [#allocation23], 1
    %5849 = vsyncpa [#allocation26], 1
    %5850 = vsyncpa [#allocation29], 1
    %5851 = vsyncpa [#allocation32], 1
    %5852 = vsyncpa [#allocation35], 1
    %5853 = vsyncpa [#allocation38], 1
    %5854 = vsyncpa [#allocation12], 1
    %s5855 = scalar_lea.sflag [#allocation12], 1
    %5856 = vsyncpa %s5855, 1

</llo_original>
